<compile_context>
chip_gen: v6e
topology: v6e:2x2x1
jax: 0.10.0
libtpu: 0.0.40
codegen_flags: <defaults>
</compile_context>

<pallas_src>
import jax
import jax.numpy as jnp
import numpy as np
from jax import lax
from jax.experimental import pallas as pl
from jax.experimental.pallas import tpu as pltpu

MATMUL_DTYPE = jnp.bfloat16   # MXU operand dtype; accumulation & pointwise stay f32


# ------------------------------ padding utils ------------------------------ #
def _round_up(x, m):
    return ((x + m - 1) // m) * m


def _pad_axis(a, axis, new_size):
    pad = [(0, 0)] * a.ndim
    pad[axis] = (0, new_size - a.shape[axis])
    return jnp.pad(a, pad)


def _pad_gate_cols(w, H, H_pad):
    """(..., 4H) -> (..., 4*H_pad); zero-pad each gate block (i,f,g,o)."""
    lead = w.shape[:-1]
    w = w.reshape(*lead, 4, H)
    w = _pad_axis(w, -1, H_pad)
    return w.reshape(*lead, 4 * H_pad)


def _largest_divisor_tile(total, maximum, quantum):
    """Largest multiple of `quantum` that divides `total` and is <= maximum."""
    for cand in range(min(maximum, total), quantum - 1, -quantum):
        if total % cand == 0:
            return cand
    return quantum


# --------------------------- kernel 1: recurrence --------------------------- #
def _lstm_chunk_kernel(x_ref, wih0_ref, whh0_ref, b0_ref,
                       wih1_ref, whh1_ref, b1_ref,
                       h_out_ref, h_sc, c_sc):
    """One (batch-block, time-chunk) grid step of the 2-layer LSTM.

    h/c live in VMEM scratch and persist across the inner ("arbitrary")
    time-chunk axis; they are re-initialized whenever a new batch block
    begins its time sweep (program_id(1) == 0).
    """
    Tc = x_ref.shape[0]
    H = h_sc.shape[-1]          # padded hidden size (lane-aligned, 128x)

    @pl.when(pl.program_id(1) == 0)
    def _():
        h_sc[...] = jnp.zeros_like(h_sc)
        c_sc[...] = jnp.zeros_like(c_sc)

    def cell(layer, inp, wih_ref, whh_ref, b_ref):
        h_prev = h_sc[layer]
        c_prev = c_sc[layer]
        # Two dots, no concat copy: bf16 on the MXU, f32 accumulation.
        gates = (jnp.dot(inp.astype(MATMUL_DTYPE), wih_ref[...],
                         preferred_element_type=jnp.float32)
                 + jnp.dot(h_prev.astype(MATMUL_DTYPE), whh_ref[...],
                           preferred_element_type=jnp.float32)
                 + b_ref[...])
        # H is a multiple of 128, so every gate slice is lane-aligned.
        i = jax.nn.sigmoid(gates[:, 0 * H:1 * H])
        f = jax.nn.sigmoid(gates[:, 1 * H:2 * H])
        g = jnp.tanh(gates[:, 2 * H:3 * H])
        o = jax.nn.sigmoid(gates[:, 3 * H:4 * H])
        c_new = f * c_prev + i * g
        h_new = o * jnp.tanh(c_new)
        h_sc[layer] = h_new
        c_sc[layer] = c_new
        return h_new

    def body(t, carry):
        x_t = x_ref[t]                                    # (Bblk, E_pad) f32
        h0 = cell(0, x_t, wih0_ref, whh0_ref, b0_ref)
        h1 = cell(1, h0, wih1_ref, whh1_ref, b1_ref)
        h_out_ref[t] = h1.astype(MATMUL_DTYPE)
        return carry

    # Bounded unroll within the chunk only (keeps LLO co-issue, no spill blowup).
    lax.fori_loop(0, Tc, body, None, unroll=min(Tc, 8))


def lstm_recurrence_pallas(x_tm, pp, *, Tc=8, bblk=8):
    """x_tm: (T_pad, B_pad, E_pad) f32, T_pad % Tc == 0, B_pad % bblk == 0.
    Returns per-step layer-1 hidden states (T_pad, B_pad, H_pad) in MATMUL_DTYPE."""
    T_pad, B_pad, E_pad = x_tm.shape
    H_pad = pp["whh0"].shape[0]
    n_b = B_pad // bblk
    n_t = T_pad // Tc

    def wspec(shape):
        return pl.BlockSpec(shape, lambda b, t: (0, 0))

    # Explicit VMEM budget (double-buffered tiles + weights + state scratch).
    vmem_bytes = (
        2 * (Tc * bblk * E_pad * 4                       # x chunk (f32)
             + Tc * bblk * H_pad * 2                     # h_out chunk (bf16)
             + (E_pad + 3 * H_pad) * 4 * H_pad * 2       # 4 weight mats (bf16)
             + 2 * bblk * 4 * H_pad * 4)                 # 2 biases (f32)
        + 2 * 2 * bblk * H_pad * 4                       # h/c scratch
        + (4 << 20))                                     # headroom
    vmem_bytes = int(max(16 << 20, vmem_bytes))

    return pl.pallas_call(
        _lstm_chunk_kernel,
        out_shape=jax.ShapeDtypeStruct((T_pad, B_pad, H_pad), MATMUL_DTYPE),
        grid=(n_b, n_t),
        in_specs=[
            pl.BlockSpec((Tc, bblk, E_pad), lambda b, t: (t, b, 0)),  # x chunk
            wspec((E_pad, 4 * H_pad)),                                # wih0
            wspec((H_pad, 4 * H_pad)),                                # whh0
            wspec((bblk, 4 * H_pad)),                                 # b0
            wspec((H_pad, 4 * H_pad)),                                # wih1
            wspec((H_pad, 4 * H_pad)),                                # whh1
            wspec((bblk, 4 * H_pad)),                                 # b1
        ],
        out_specs=pl.BlockSpec((Tc, bblk, H_pad), lambda b, t: (t, b, 0)),
        scratch_shapes=[
            pltpu.VMEM((2, bblk, H_pad), jnp.float32),   # h per layer
            pltpu.VMEM((2, bblk, H_pad), jnp.float32),   # c per layer
        ],
        compiler_params=pltpu.CompilerParams(
            dimension_semantics=("parallel", "arbitrary"),
            vmem_limit_bytes=vmem_bytes),
    )(x_tm, pp["wih0"], pp["whh0"], pp["b0"], pp["wih1"], pp["whh1"], pp["b1"])


# --------------------------- kernel 2: projection --------------------------- #
def _proj_kernel(h_ref, w_ref, b_ref, out_ref):
    out_ref[...] = (jnp.dot(h_ref[...], w_ref[...],
                            preferred_element_type=jnp.float32) + b_ref[...])


def vocab_projection_pallas(h_flat, wout, bout, *, tn_max=512, tm_max=256):
    """h_flat: (M, H_pad) bf16, all timesteps batched; returns (M, V_pad) f32."""
    M, H_pad = h_flat.shape
    V_pad = wout.shape[1]
    tn = _largest_divisor_tile(V_pad, tn_max, 128)       # fills 256-wide MXU N
    tm = min(tm_max, _round_up(M, 8))
    M_pad = _round_up(M, tm)
    if M_pad != M:
        h_flat = _pad_axis(h_flat, 0, M_pad)
    grid = (M_pad // tm, V_pad // tn)

    vmem_bytes = int(2 * (tm * H_pad * 2 + H_pad * tn * 2 + tn * 4 + tm * tn * 4)
                     + (4 << 20))
    out = pl.pallas_call(
        _proj_kernel,
        out_shape=jax.ShapeDtypeStruct((M_pad, V_pad), jnp.float32),
        grid=grid,
        in_specs=[
            pl.BlockSpec((tm, H_pad), lambda i, j: (i, 0)),
            pl.BlockSpec((H_pad, tn), lambda i, j: (0, j)),
            pl.BlockSpec((1, tn), lambda i, j: (0, j)),
        ],
        out_specs=pl.BlockSpec((tm, tn), lambda i, j: (i, j)),
        compiler_params=pltpu.CompilerParams(
            dimension_semantics=("parallel", "parallel"),
            vmem_limit_bytes=max(16 << 20, vmem_bytes)),
    )(h_flat, wout, bout)
    return out[:M]


# --------------------------- params / padded params ------------------------- #
def init_params(key, embed_size, hidden_size, vocab_size):
    ks = jax.random.split(key, 10)
    s = 0.1
    return {
        "embed": s * jax.random.normal(ks[0], (vocab_size, embed_size), jnp.float32),
        "wih0": s * jax.random.normal(ks[1], (embed_size, 4 * hidden_size), jnp.float32),
        "whh0": s * jax.random.normal(ks[2], (hidden_size, 4 * hidden_size), jnp.float32),
        "b0":   s * jax.random.normal(ks[3], (1, 4 * hidden_size), jnp.float32),
        "wih1": s * jax.random.normal(ks[4], (hidden_size, 4 * hidden_size), jnp.float32),
        "whh1": s * jax.random.normal(ks[5], (hidden_size, 4 * hidden_size), jnp.float32),
        "b1":   s * jax.random.normal(ks[6], (1, 4 * hidden_size), jnp.float32),
        "wout": s * jax.random.normal(ks[7], (hidden_size, vocab_size), jnp.float32),
        "bout": s * jax.random.normal(ks[8], (1, vocab_size), jnp.float32),
    }


def prepare_padded_params(params, E, H, V, E_pad, H_pad, V_pad, bblk):
    """Zero-pad weights into the lane-aligned layout; matmul operands in bf16,
    biases kept in f32 (added post-accumulation)."""
    mm = MATMUL_DTYPE
    wih0 = _pad_axis(_pad_gate_cols(params["wih0"], H, H_pad), 0, E_pad).astype(mm)
    whh0 = _pad_axis(_pad_gate_cols(params["whh0"], H, H_pad), 0, H_pad).astype(mm)
    wih1 = _pad_axis(_pad_gate_cols(params["wih1"], H, H_pad), 0, H_pad).astype(mm)
    whh1 = _pad_axis(_pad_gate_cols(params["whh1"], H, H_pad), 0, H_pad).astype(mm)
    b0 = jnp.broadcast_to(_pad_gate_cols(params["b0"], H, H_pad),
                          (bblk, 4 * H_pad)).astype(jnp.float32)
    b1 = jnp.broadcast_to(_pad_gate_cols(params["b1"], H, H_pad),
                          (bblk, 4 * H_pad)).astype(jnp.float32)
    wout = _pad_axis(_pad_axis(params["wout"], 0, H_pad), 1, V_pad).astype(mm)
    bout = _pad_axis(params["bout"], 1, V_pad).astype(jnp.float32)
    return dict(wih0=wih0, whh0=whh0, b0=b0, wih1=wih1, whh1=whh1, b1=b1,
                wout=wout, bout=bout)


# ------------------------------ pure-JAX ref -------------------------------- #
def decoder_lstm_ref(x_tm, params):
    T_total, B, _ = x_tm.shape
    H = params["whh0"].shape[0]
    h = [jnp.zeros((B, H), jnp.float32) for _ in range(2)]
    c = [jnp.zeros((B, H), jnp.float32) for _ in range(2)]
    outs = []
    for t in range(T_total):
        inp = x_tm[t]
        for layer, (wih, whh, b) in enumerate(
                [(params["wih0"], params["whh0"], params["b0"]),
                 (params["wih1"], params["whh1"], params["b1"])]):
            gates = inp @ wih + h[layer] @ whh + b
            i, f, g, o = jnp.split(gates, 4, axis=-1)
            i, f, o = jax.nn.sigmoid(i), jax.nn.sigmoid(f), jax.nn.sigmoid(o)
            g = jnp.tanh(g)
            c[layer] = f * c[layer] + i * g
            h[layer] = o * jnp.tanh(c[layer])
            inp = h[layer]
        outs.append(inp @ params["wout"] + params["bout"])
    return jnp.stack(outs, axis=0)   # (T_total, B, V)


# --------------------------------- forward ---------------------------------- #
def forward(features, captions, lengths, params, *, Tc=8, bblk=8):
    """Mirrors DecoderLSTM.forward: returns (packed logits (sum(lengths), V), dense)."""
    B, T = captions.shape
    E = features.shape[1]
    H = params["whh0"].shape[0]
    V = params["wout"].shape[1]
    T_total = T + 1

    B_pad = _round_up(max(B, bblk), bblk)   # f32 sublane / batch-block aligned
    E_pad = _round_up(E, 128)               # lane-aligned input
    H_pad = _round_up(H, 128)               # lane-aligned gate slices
    V_pad = _round_up(V, 128)               # lane-dense output stores
    T_pad = _round_up(T_total, Tc)          # whole time chunks

    # glue: embedding lookup + feature prepend + padding (plain JAX)
    emb = jnp.take(params["embed"], captions, axis=0)            # (B, T, E)
    x = jnp.concatenate([features[:, None, :], emb], axis=1)     # (B, T+1, E)
    x_tm = jnp.transpose(x, (1, 0, 2))                           # (T_total, B, E)
    x_tm = _pad_axis(_pad_axis(_pad_axis(x_tm, 0, T_pad), 1, B_pad), 2, E_pad)

    pp = prepare_padded_params(params, E, H, V, E_pad, H_pad, V_pad, bblk)

    # recurrent part: time-chunked, state carried in VMEM scratch
    hs = lstm_recurrence_pallas(x_tm, pp, Tc=Tc, bblk=bblk)      # (T_pad,B_pad,H_pad) bf16
    # batched, lane-dense vocab projection over all (T*B) rows
    logits_flat = vocab_projection_pallas(
        hs.reshape(T_pad * B_pad, H_pad), pp["wout"], pp["bout"])

    dense = logits_flat.reshape(T_pad, B_pad, V_pad)[:T_total, :B, :V]

    # pack_padded_sequence: single precomputed gather.  Lengths must be
    # concrete host values (torch convention: sorted descending); under jit
    # with traced lengths this would need a masked formulation instead.
    lengths_np = np.asarray(lengths)
    idx = []
    for t in range(int(lengths_np.max())):
        for b in range(B):
            if lengths_np[b] > t:
                idx.append(t * B_pad + b)
    gather_idx = jnp.asarray(np.asarray(idx, dtype=np.int32))
    packed = jnp.take(logits_flat, gather_idx, axis=0)[:, :V]
    return packed, dense


# --------------------------------- driver ----------------------------------- #
if __name__ == "__main__":
    embed_size, hidden_size, vocab_size, num_layers = 32, 32, 64, 2
    B, T = 4, 7                      # captions (B, T); T_total = T + 1 = 8
    lengths = [8, 6, 5, 3]           # sorted descending, <= T + 1

    key = jax.random.PRNGKey(0)
    kp, kf, kc = jax.random.split(key, 3)
    params = init_params(kp, embed_size, hidden_size, vocab_size)

    features = jax.random.normal(kf, (B, embed_size), jnp.float32)
    captions = jax.random.randint(kc, (B, T), 0, vocab_size, jnp.int32)

    packed_out, dense = forward(features, captions, lengths, params)
    packed_out = jax.block_until_ready(packed_out)

    # sanity check against pure-JAX f32 reference (bf16 MXU => relaxed tolerance)
    emb = jnp.take(params["embed"], captions, axis=0)
    x_tm = jnp.transpose(
        jnp.concatenate([features[:, None, :], emb], axis=1), (1, 0, 2))
    ref_dense = decoder_lstm_ref(x_tm, params)
    np.testing.assert_allclose(np.asarray(dense), np.asarray(ref_dense),
                               rtol=3e-2, atol=3e-3)

    ref_packed = jnp.concatenate(
        [ref_dense[t, :int(np.sum(np.asarray(lengths) > t)), :]
         for t in range(int(np.max(lengths)))], axis=0)
    np.testing.assert_allclose(np.asarray(packed_out), np.asarray(ref_packed),
                               rtol=3e-2, atol=3e-3)
    assert packed_out.shape == (sum(lengths), vocab_size)

    print("KERNEL_OK")
</pallas_src>

<mosaic_0001>
module attributes {stable_mosaic.version = 11 : i64} {
  func.func @_lstm_chunk_kernel(%arg0: i32, %arg1: i32, %arg2: memref<8x8x128xf32, #tpu.memory_space<vmem>>, %arg3: memref<128x512xbf16, #tpu.memory_space<vmem>>, %arg4: memref<128x512xbf16, #tpu.memory_space<vmem>>, %arg5: memref<8x512xf32, #tpu.memory_space<vmem>>, %arg6: memref<128x512xbf16, #tpu.memory_space<vmem>>, %arg7: memref<128x512xbf16, #tpu.memory_space<vmem>>, %arg8: memref<8x512xf32, #tpu.memory_space<vmem>>, %arg9: memref<8x8x128xbf16, #tpu.memory_space<vmem>>, %arg10: memref<2x8x128xf32, #tpu.memory_space<vmem>>, %arg11: memref<2x8x128xf32, #tpu.memory_space<vmem>>) attributes {dimension_semantics = [#tpu.dimension_semantics<parallel>, #tpu.dimension_semantics<arbitrary>], iteration_bounds = array<i64: 1, 1>, scalar_prefetch = 0 : i64, scratch_operands = 2 : i64, tpu.core_type = #tpu.core_type<tc>, window_params = [{transform_indices = @transform_0, window_bounds = array<i64: 8, 8, 128>}, {pipeline_mode = #tpu.pipeline_mode<synchronous>, transform_indices = @transform_1, window_bounds = array<i64: 128, 512>}, {pipeline_mode = #tpu.pipeline_mode<synchronous>, transform_indices = @transform_2, window_bounds = array<i64: 128, 512>}, {pipeline_mode = #tpu.pipeline_mode<synchronous>, transform_indices = @transform_3, window_bounds = array<i64: 8, 512>}, {pipeline_mode = #tpu.pipeline_mode<synchronous>, transform_indices = @transform_4, window_bounds = array<i64: 128, 512>}, {pipeline_mode = #tpu.pipeline_mode<synchronous>, transform_indices = @transform_5, window_bounds = array<i64: 128, 512>}, {pipeline_mode = #tpu.pipeline_mode<synchronous>, transform_indices = @transform_6, window_bounds = array<i64: 8, 512>}, {transform_indices = @transform_7, window_bounds = array<i64: 8, 8, 128>}]} {
    %c0_i32 = arith.constant 0 : i32
    %0 = arith.cmpi eq, %arg1, %c0_i32 : i32
    %1 = arith.extui %0 : i1 to i32
    %c0_i32_0 = arith.constant 0 : i32
    %2 = arith.cmpi ne, %1, %c0_i32_0 : i32
    scf.if %2 {
      %cst_399 = arith.constant 0.000000e+00 : f32
      %771 = vector.broadcast %cst_399 : f32 to vector<2x8x128xf32>
      %c0_400 = arith.constant 0 : index
      %c0_401 = arith.constant 0 : index
      %c0_402 = arith.constant 0 : index
      %772 = vector.load %arg10[%c0_400, %c0_401, %c0_402] : memref<2x8x128xf32, #tpu.memory_space<vmem>>, vector<2x8x128xf32>
      tpu.vector_store %arg10[%c0_400, %c0_401, %c0_402], %771 {strides = array<i32>} : memref<2x8x128xf32, #tpu.memory_space<vmem>>, vector<2x8x128xf32>,
      %cst_403 = arith.constant 0.000000e+00 : f32
      %773 = vector.broadcast %cst_403 : f32 to vector<2x8x128xf32>
      %c0_404 = arith.constant 0 : index
      %c0_405 = arith.constant 0 : index
      %c0_406 = arith.constant 0 : index
      %774 = vector.load %arg11[%c0_404, %c0_405, %c0_406] : memref<2x8x128xf32, #tpu.memory_space<vmem>>, vector<2x8x128xf32>
      tpu.vector_store %arg11[%c0_404, %c0_405, %c0_406], %773 {strides = array<i32>} : memref<2x8x128xf32, #tpu.memory_space<vmem>>, vector<2x8x128xf32>,
    } else {
    }
    %c0_i32_1 = arith.constant 0 : i32
    %3 = arith.index_cast %c0_i32_1 : i32 to index
    %c0 = arith.constant 0 : index
    %c0_2 = arith.constant 0 : index
    %4 = vector.load %arg2[%3, %c0, %c0_2] : memref<8x8x128xf32, #tpu.memory_space<vmem>>, vector<1x8x128xf32>
    %5 = vector.shape_cast %4 : vector<1x8x128xf32> to vector<8x128xf32>
    %c0_3 = arith.constant 0 : index
    %c0_4 = arith.constant 0 : index
    %c0_5 = arith.constant 0 : index
    %6 = vector.load %arg10[%c0_3, %c0_4, %c0_5] : memref<2x8x128xf32, #tpu.memory_space<vmem>>, vector<1x8x128xf32>
    %7 = vector.shape_cast %6 : vector<1x8x128xf32> to vector<8x128xf32>
    %c0_6 = arith.constant 0 : index
    %c0_7 = arith.constant 0 : index
    %c0_8 = arith.constant 0 : index
    %8 = vector.load %arg11[%c0_6, %c0_7, %c0_8] : memref<2x8x128xf32, #tpu.memory_space<vmem>>, vector<1x8x128xf32>
    %9 = vector.shape_cast %8 : vector<1x8x128xf32> to vector<8x128xf32>
    %10 = arith.truncf %5 : vector<8x128xf32> to vector<8x128xbf16>
    %c0_9 = arith.constant 0 : index
    %c0_10 = arith.constant 0 : index
    %11 = vector.load %arg3[%c0_9, %c0_10] : memref<128x512xbf16, #tpu.memory_space<vmem>>, vector<128x512xbf16>
    %cst = arith.constant dense<0.000000e+00> : vector<8x512xf32>
    %12 = tpu.matmul %10, %11, %cst {dimension_numbers = #tpu.dot_dimension_numbers<[1], [0], [0], [1], [0, 0, 1, 1], [], []>} : vector<8x128xbf16>, vector<128x512xbf16>, vector<8x512xf32> -> vector<8x512xf32>
    %13 = arith.truncf %7 : vector<8x128xf32> to vector<8x128xbf16>
    %c0_11 = arith.constant 0 : index
    %c0_12 = arith.constant 0 : index
    %14 = vector.load %arg4[%c0_11, %c0_12] : memref<128x512xbf16, #tpu.memory_space<vmem>>, vector<128x512xbf16>
    %cst_13 = arith.constant dense<0.000000e+00> : vector<8x512xf32>
    %15 = tpu.matmul %13, %14, %cst_13 {dimension_numbers = #tpu.dot_dimension_numbers<[1], [0], [0], [1], [0, 0, 1, 1], [], []>} : vector<8x128xbf16>, vector<128x512xbf16>, vector<8x512xf32> -> vector<8x512xf32>
    %16 = arith.addf %12, %15 : vector<8x512xf32>
    %c0_14 = arith.constant 0 : index
    %c0_15 = arith.constant 0 : index
    %17 = vector.load %arg5[%c0_14, %c0_15] : memref<8x512xf32, #tpu.memory_space<vmem>>, vector<8x512xf32>
    %18 = arith.addf %16, %17 : vector<8x512xf32>
    %19 = vector.extract_strided_slice %18 {offsets = [0, 0], sizes = [8, 128], strides = [1, 1]} : vector<8x512xf32> to vector<8x128xf32>
    %20 = arith.negf %19 : vector<8x128xf32>
    %21 = math.exp %20 : vector<8x128xf32>
    %cst_16 = arith.constant 1.000000e+00 : f32
    %22 = vector.broadcast %cst_16 : f32 to vector<8x128xf32>
    %23 = arith.addf %22, %21 : vector<8x128xf32>
    %24 = arith.divf %22, %23 : vector<8x128xf32>
    %25 = vector.extract_strided_slice %18 {offsets = [0, 128], sizes = [8, 128], strides = [1, 1]} : vector<8x512xf32> to vector<8x128xf32>
    %26 = arith.negf %25 : vector<8x128xf32>
    %27 = math.exp %26 : vector<8x128xf32>
    %cst_17 = arith.constant 1.000000e+00 : f32
    %28 = vector.broadcast %cst_17 : f32 to vector<8x128xf32>
    %29 = arith.addf %28, %27 : vector<8x128xf32>
    %30 = arith.divf %28, %29 : vector<8x128xf32>
    %31 = vector.extract_strided_slice %18 {offsets = [0, 256], sizes = [8, 128], strides = [1, 1]} : vector<8x512xf32> to vector<8x128xf32>
    %32 = math.tanh %31 : vector<8x128xf32>
    %33 = vector.extract_strided_slice %18 {offsets = [0, 384], sizes = [8, 128], strides = [1, 1]} : vector<8x512xf32> to vector<8x128xf32>
    %34 = arith.negf %33 : vector<8x128xf32>
    %35 = math.exp %34 : vector<8x128xf32>
    %cst_18 = arith.constant 1.000000e+00 : f32
    %36 = vector.broadcast %cst_18 : f32 to vector<8x128xf32>
    %37 = arith.addf %36, %35 : vector<8x128xf32>
    %38 = arith.divf %36, %37 : vector<8x128xf32>
    %39 = arith.mulf %30, %9 : vector<8x128xf32>
    %40 = arith.mulf %24, %32 : vector<8x128xf32>
    %41 = arith.addf %39, %40 : vector<8x128xf32>
    %42 = math.tanh %41 : vector<8x128xf32>
    %43 = arith.mulf %38, %42 : vector<8x128xf32>
    %c0_19 = arith.constant 0 : index
    %c0_20 = arith.constant 0 : index
    %c0_21 = arith.constant 0 : index
    %44 = vector.load %arg10[%c0_19, %c0_20, %c0_21] : memref<2x8x128xf32, #tpu.memory_space<vmem>>, vector<1x8x128xf32>
    %45 = vector.shape_cast %44 : vector<1x8x128xf32> to vector<8x128xf32>
    %46 = vector.shape_cast %43 : vector<8x128xf32> to vector<1x8x128xf32>
    tpu.vector_store %arg10[%c0_19, %c0_20, %c0_21], %46 {strides = array<i32>} : memref<2x8x128xf32, #tpu.memory_space<vmem>>, vector<1x8x128xf32>,
    %c0_22 = arith.constant 0 : index
    %c0_23 = arith.constant 0 : index
    %c0_24 = arith.constant 0 : index
    %47 = vector.load %arg11[%c0_22, %c0_23, %c0_24] : memref<2x8x128xf32, #tpu.memory_space<vmem>>, vector<1x8x128xf32>
    %48 = vector.shape_cast %47 : vector<1x8x128xf32> to vector<8x128xf32>
    %49 = vector.shape_cast %41 : vector<8x128xf32> to vector<1x8x128xf32>
    tpu.vector_store %arg11[%c0_22, %c0_23, %c0_24], %49 {strides = array<i32>} : memref<2x8x128xf32, #tpu.memory_space<vmem>>, vector<1x8x128xf32>,
    %c1 = arith.constant 1 : index
    %c0_25 = arith.constant 0 : index
    %c0_26 = arith.constant 0 : index
    %50 = vector.load %arg10[%c1, %c0_25, %c0_26] : memref<2x8x128xf32, #tpu.memory_space<vmem>>, vector<1x8x128xf32>
    %51 = vector.shape_cast %50 : vector<1x8x128xf32> to vector<8x128xf32>
    %c1_27 = arith.constant 1 : index
    %c0_28 = arith.constant 0 : index
    %c0_29 = arith.constant 0 : index
    %52 = vector.load %arg11[%c1_27, %c0_28, %c0_29] : memref<2x8x128xf32, #tpu.memory_space<vmem>>, vector<1x8x128xf32>
    %53 = vector.shape_cast %52 : vector<1x8x128xf32> to vector<8x128xf32>
    %54 = arith.truncf %43 : vector<8x128xf32> to vector<8x128xbf16>
    %c0_30 = arith.constant 0 : index
    %c0_31 = arith.constant 0 : index
    %55 = vector.load %arg6[%c0_30, %c0_31] : memref<128x512xbf16, #tpu.memory_space<vmem>>, vector<128x512xbf16>
    %cst_32 = arith.constant dense<0.000000e+00> : vector<8x512xf32>
    %56 = tpu.matmul %54, %55, %cst_32 {dimension_numbers = #tpu.dot_dimension_numbers<[1], [0], [0], [1], [0, 0, 1, 1], [], []>} : vector<8x128xbf16>, vector<128x512xbf16>, vector<8x512xf32> -> vector<8x512xf32>
    %57 = arith.truncf %51 : vector<8x128xf32> to vector<8x128xbf16>
    %c0_33 = arith.constant 0 : index
    %c0_34 = arith.constant 0 : index
    %58 = vector.load %arg7[%c0_33, %c0_34] : memref<128x512xbf16, #tpu.memory_space<vmem>>, vector<128x512xbf16>
    %cst_35 = arith.constant dense<0.000000e+00> : vector<8x512xf32>
    %59 = tpu.matmul %57, %58, %cst_35 {dimension_numbers = #tpu.dot_dimension_numbers<[1], [0], [0], [1], [0, 0, 1, 1], [], []>} : vector<8x128xbf16>, vector<128x512xbf16>, vector<8x512xf32> -> vector<8x512xf32>
    %60 = arith.addf %56, %59 : vector<8x512xf32>
    %c0_36 = arith.constant 0 : index
    %c0_37 = arith.constant 0 : index
    %61 = vector.load %arg8[%c0_36, %c0_37] : memref<8x512xf32, #tpu.memory_space<vmem>>, vector<8x512xf32>
    %62 = arith.addf %60, %61 : vector<8x512xf32>
    %63 = vector.extract_strided_slice %62 {offsets = [0, 0], sizes = [8, 128], strides = [1, 1]} : vector<8x512xf32> to vector<8x128xf32>
    %64 = arith.negf %63 : vector<8x128xf32>
    %65 = math.exp %64 : vector<8x128xf32>
    %cst_38 = arith.constant 1.000000e+00 : f32
    %66 = vector.broadcast %cst_38 : f32 to vector<8x128xf32>
    %67 = arith.addf %66, %65 : vector<8x128xf32>
    %68 = arith.divf %66, %67 : vector<8x128xf32>
    %69 = vector.extract_strided_slice %62 {offsets = [0, 128], sizes = [8, 128], strides = [1, 1]} : vector<8x512xf32> to vector<8x128xf32>
    %70 = arith.negf %69 : vector<8x128xf32>
    %71 = math.exp %70 : vector<8x128xf32>
    %cst_39 = arith.constant 1.000000e+00 : f32
    %72 = vector.broadcast %cst_39 : f32 to vector<8x128xf32>
    %73 = arith.addf %72, %71 : vector<8x128xf32>
    %74 = arith.divf %72, %73 : vector<8x128xf32>
    %75 = vector.extract_strided_slice %62 {offsets = [0, 256], sizes = [8, 128], strides = [1, 1]} : vector<8x512xf32> to vector<8x128xf32>
    %76 = math.tanh %75 : vector<8x128xf32>
    %77 = vector.extract_strided_slice %62 {offsets = [0, 384], sizes = [8, 128], strides = [1, 1]} : vector<8x512xf32> to vector<8x128xf32>
    %78 = arith.negf %77 : vector<8x128xf32>
    %79 = math.exp %78 : vector<8x128xf32>
    %cst_40 = arith.constant 1.000000e+00 : f32
    %80 = vector.broadcast %cst_40 : f32 to vector<8x128xf32>
    %81 = arith.addf %80, %79 : vector<8x128xf32>
    %82 = arith.divf %80, %81 : vector<8x128xf32>
    %83 = arith.mulf %74, %53 : vector<8x128xf32>
    %84 = arith.mulf %68, %76 : vector<8x128xf32>
    %85 = arith.addf %83, %84 : vector<8x128xf32>
    %86 = math.tanh %85 : vector<8x128xf32>
    %87 = arith.mulf %82, %86 : vector<8x128xf32>
    %c1_41 = arith.constant 1 : index
    %c0_42 = arith.constant 0 : index
    %c0_43 = arith.constant 0 : index
    %88 = vector.load %arg10[%c1_41, %c0_42, %c0_43] : memref<2x8x128xf32, #tpu.memory_space<vmem>>, vector<1x8x128xf32>
    %89 = vector.shape_cast %88 : vector<1x8x128xf32> to vector<8x128xf32>
    %90 = vector.shape_cast %87 : vector<8x128xf32> to vector<1x8x128xf32>
    tpu.vector_store %arg10[%c1_41, %c0_42, %c0_43], %90 {strides = array<i32>} : memref<2x8x128xf32, #tpu.memory_space<vmem>>, vector<1x8x128xf32>,
    %c1_44 = arith.constant 1 : index
    %c0_45 = arith.constant 0 : index
    %c0_46 = arith.constant 0 : index
    %91 = vector.load %arg11[%c1_44, %c0_45, %c0_46] : memref<2x8x128xf32, #tpu.memory_space<vmem>>, vector<1x8x128xf32>
    %92 = vector.shape_cast %91 : vector<1x8x128xf32> to vector<8x128xf32>
    %93 = vector.shape_cast %85 : vector<8x128xf32> to vector<1x8x128xf32>
    tpu.vector_store %arg11[%c1_44, %c0_45, %c0_46], %93 {strides = array<i32>} : memref<2x8x128xf32, #tpu.memory_space<vmem>>, vector<1x8x128xf32>,
    %94 = arith.truncf %87 : vector<8x128xf32> to vector<8x128xbf16>
    %95 = arith.index_cast %c0_i32_1 : i32 to index
    %c0_47 = arith.constant 0 : index
    %c0_48 = arith.constant 0 : index
    %96 = vector.load %arg9[%95, %c0_47, %c0_48] : memref<8x8x128xbf16, #tpu.memory_space<vmem>>, vector<1x8x128xbf16>
    %97 = vector.shape_cast %96 : vector<1x8x128xbf16> to vector<8x128xbf16>
    %98 = vector.shape_cast %94 : vector<8x128xbf16> to vector<1x8x128xbf16>
    tpu.vector_store %arg9[%95, %c0_47, %c0_48], %98 {strides = array<i32>} : memref<8x8x128xbf16, #tpu.memory_space<vmem>>, vector<1x8x128xbf16>,
    %c1_i32 = arith.constant 1 : i32
    %99 = arith.index_cast %c1_i32 : i32 to index
    %c0_49 = arith.constant 0 : index
    %c0_50 = arith.constant 0 : index
    %100 = vector.load %arg2[%99, %c0_49, %c0_50] : memref<8x8x128xf32, #tpu.memory_space<vmem>>, vector<1x8x128xf32>
    %101 = vector.shape_cast %100 : vector<1x8x128xf32> to vector<8x128xf32>
    %c0_51 = arith.constant 0 : index
    %c0_52 = arith.constant 0 : index
    %c0_53 = arith.constant 0 : index
    %102 = vector.load %arg10[%c0_51, %c0_52, %c0_53] : memref<2x8x128xf32, #tpu.memory_space<vmem>>, vector<1x8x128xf32>
    %103 = vector.shape_cast %102 : vector<1x8x128xf32> to vector<8x128xf32>
    %c0_54 = arith.constant 0 : index
    %c0_55 = arith.constant 0 : index
    %c0_56 = arith.constant 0 : index
    %104 = vector.load %arg11[%c0_54, %c0_55, %c0_56] : memref<2x8x128xf32, #tpu.memory_space<vmem>>, vector<1x8x128xf32>
    %105 = vector.shape_cast %104 : vector<1x8x128xf32> to vector<8x128xf32>
    %106 = arith.truncf %101 : vector<8x128xf32> to vector<8x128xbf16>
    %c0_57 = arith.constant 0 : index
    %c0_58 = arith.constant 0 : index
    %107 = vector.load %arg3[%c0_57, %c0_58] : memref<128x512xbf16, #tpu.memory_space<vmem>>, vector<128x512xbf16>
    %cst_59 = arith.constant dense<0.000000e+00> : vector<8x512xf32>
    %108 = tpu.matmul %106, %107, %cst_59 {dimension_numbers = #tpu.dot_dimension_numbers<[1], [0], [0], [1], [0, 0, 1, 1], [], []>} : vector<8x128xbf16>, vector<128x512xbf16>, vector<8x512xf32> -> vector<8x512xf32>
    %109 = arith.truncf %103 : vector<8x128xf32> to vector<8x128xbf16>
    %c0_60 = arith.constant 0 : index
    %c0_61 = arith.constant 0 : index
    %110 = vector.load %arg4[%c0_60, %c0_61] : memref<128x512xbf16, #tpu.memory_space<vmem>>, vector<128x512xbf16>
    %cst_62 = arith.constant dense<0.000000e+00> : vector<8x512xf32>
    %111 = tpu.matmul %109, %110, %cst_62 {dimension_numbers = #tpu.dot_dimension_numbers<[1], [0], [0], [1], [0, 0, 1, 1], [], []>} : vector<8x128xbf16>, vector<128x512xbf16>, vector<8x512xf32> -> vector<8x512xf32>
    %112 = arith.addf %108, %111 : vector<8x512xf32>
    %c0_63 = arith.constant 0 : index
    %c0_64 = arith.constant 0 : index
    %113 = vector.load %arg5[%c0_63, %c0_64] : memref<8x512xf32, #tpu.memory_space<vmem>>, vector<8x512xf32>
    %114 = arith.addf %112, %113 : vector<8x512xf32>
    %115 = vector.extract_strided_slice %114 {offsets = [0, 0], sizes = [8, 128], strides = [1, 1]} : vector<8x512xf32> to vector<8x128xf32>
    %116 = arith.negf %115 : vector<8x128xf32>
    %117 = math.exp %116 : vector<8x128xf32>
    %cst_65 = arith.constant 1.000000e+00 : f32
    %118 = vector.broadcast %cst_65 : f32 to vector<8x128xf32>
    %119 = arith.addf %118, %117 : vector<8x128xf32>
    %120 = arith.divf %118, %119 : vector<8x128xf32>
    %121 = vector.extract_strided_slice %114 {offsets = [0, 128], sizes = [8, 128], strides = [1, 1]} : vector<8x512xf32> to vector<8x128xf32>
    %122 = arith.negf %121 : vector<8x128xf32>
    %123 = math.exp %122 : vector<8x128xf32>
    %cst_66 = arith.constant 1.000000e+00 : f32
    %124 = vector.broadcast %cst_66 : f32 to vector<8x128xf32>
    %125 = arith.addf %124, %123 : vector<8x128xf32>
    %126 = arith.divf %124, %125 : vector<8x128xf32>
    %127 = vector.extract_strided_slice %114 {offsets = [0, 256], sizes = [8, 128], strides = [1, 1]} : vector<8x512xf32> to vector<8x128xf32>
    %128 = math.tanh %127 : vector<8x128xf32>
    %129 = vector.extract_strided_slice %114 {offsets = [0, 384], sizes = [8, 128], strides = [1, 1]} : vector<8x512xf32> to vector<8x128xf32>
    %130 = arith.negf %129 : vector<8x128xf32>
    %131 = math.exp %130 : vector<8x128xf32>
    %cst_67 = arith.constant 1.000000e+00 : f32
    %132 = vector.broadcast %cst_67 : f32 to vector<8x128xf32>
    %133 = arith.addf %132, %131 : vector<8x128xf32>
    %134 = arith.divf %132, %133 : vector<8x128xf32>
    %135 = arith.mulf %126, %105 : vector<8x128xf32>
    %136 = arith.mulf %120, %128 : vector<8x128xf32>
    %137 = arith.addf %135, %136 : vector<8x128xf32>
    %138 = math.tanh %137 : vector<8x128xf32>
    %139 = arith.mulf %134, %138 : vector<8x128xf32>
    %c0_68 = arith.constant 0 : index
    %c0_69 = arith.constant 0 : index
    %c0_70 = arith.constant 0 : index
    %140 = vector.load %arg10[%c0_68, %c0_69, %c0_70] : memref<2x8x128xf32, #tpu.memory_space<vmem>>, vector<1x8x128xf32>
    %141 = vector.shape_cast %140 : vector<1x8x128xf32> to vector<8x128xf32>
    %142 = vector.shape_cast %139 : vector<8x128xf32> to vector<1x8x128xf32>
    tpu.vector_store %arg10[%c0_68, %c0_69, %c0_70], %142 {strides = array<i32>} : memref<2x8x128xf32, #tpu.memory_space<vmem>>, vector<1x8x128xf32>,
    %c0_71 = arith.constant 0 : index
    %c0_72 = arith.constant 0 : index
    %c0_73 = arith.constant 0 : index
    %143 = vector.load %arg11[%c0_71, %c0_72, %c0_73] : memref<2x8x128xf32, #tpu.memory_space<vmem>>, vector<1x8x128xf32>
    %144 = vector.shape_cast %143 : vector<1x8x128xf32> to vector<8x128xf32>
    %145 = vector.shape_cast %137 : vector<8x128xf32> to vector<1x8x128xf32>
    tpu.vector_store %arg11[%c0_71, %c0_72, %c0_73], %145 {strides = array<i32>} : memref<2x8x128xf32, #tpu.memory_space<vmem>>, vector<1x8x128xf32>,
    %c1_74 = arith.constant 1 : index
    %c0_75 = arith.constant 0 : index
    %c0_76 = arith.constant 0 : index
    %146 = vector.load %arg10[%c1_74, %c0_75, %c0_76] : memref<2x8x128xf32, #tpu.memory_space<vmem>>, vector<1x8x128xf32>
    %147 = vector.shape_cast %146 : vector<1x8x128xf32> to vector<8x128xf32>
    %c1_77 = arith.constant 1 : index
    %c0_78 = arith.constant 0 : index
    %c0_79 = arith.constant 0 : index
    %148 = vector.load %arg11[%c1_77, %c0_78, %c0_79] : memref<2x8x128xf32, #tpu.memory_space<vmem>>, vector<1x8x128xf32>
    %149 = vector.shape_cast %148 : vector<1x8x128xf32> to vector<8x128xf32>
    %150 = arith.truncf %139 : vector<8x128xf32> to vector<8x128xbf16>
    %c0_80 = arith.constant 0 : index
    %c0_81 = arith.constant 0 : index
    %151 = vector.load %arg6[%c0_80, %c0_81] : memref<128x512xbf16, #tpu.memory_space<vmem>>, vector<128x512xbf16>
    %cst_82 = arith.constant dense<0.000000e+00> : vector<8x512xf32>
    %152 = tpu.matmul %150, %151, %cst_82 {dimension_numbers = #tpu.dot_dimension_numbers<[1], [0], [0], [1], [0, 0, 1, 1], [], []>} : vector<8x128xbf16>, vector<128x512xbf16>, vector<8x512xf32> -> vector<8x512xf32>
    %153 = arith.truncf %147 : vector<8x128xf32> to vector<8x128xbf16>
    %c0_83 = arith.constant 0 : index
    %c0_84 = arith.constant 0 : index
    %154 = vector.load %arg7[%c0_83, %c0_84] : memref<128x512xbf16, #tpu.memory_space<vmem>>, vector<128x512xbf16>
    %cst_85 = arith.constant dense<0.000000e+00> : vector<8x512xf32>
    %155 = tpu.matmul %153, %154, %cst_85 {dimension_numbers = #tpu.dot_dimension_numbers<[1], [0], [0], [1], [0, 0, 1, 1], [], []>} : vector<8x128xbf16>, vector<128x512xbf16>, vector<8x512xf32> -> vector<8x512xf32>
    %156 = arith.addf %152, %155 : vector<8x512xf32>
    %c0_86 = arith.constant 0 : index
    %c0_87 = arith.constant 0 : index
    %157 = vector.load %arg8[%c0_86, %c0_87] : memref<8x512xf32, #tpu.memory_space<vmem>>, vector<8x512xf32>
    %158 = arith.addf %156, %157 : vector<8x512xf32>
    %159 = vector.extract_strided_slice %158 {offsets = [0, 0], sizes = [8, 128], strides = [1, 1]} : vector<8x512xf32> to vector<8x128xf32>
    %160 = arith.negf %159 : vector<8x128xf32>
    %161 = math.exp %160 : vector<8x128xf32>
    %cst_88 = arith.constant 1.000000e+00 : f32
    %162 = vector.broadcast %cst_88 : f32 to vector<8x128xf32>
    %163 = arith.addf %162, %161 : vector<8x128xf32>
    %164 = arith.divf %162, %163 : vector<8x128xf32>
    %165 = vector.extract_strided_slice %158 {offsets = [0, 128], sizes = [8, 128], strides = [1, 1]} : vector<8x512xf32> to vector<8x128xf32>
    %166 = arith.negf %165 : vector<8x128xf32>
    %167 = math.exp %166 : vector<8x128xf32>
    %cst_89 = arith.constant 1.000000e+00 : f32
    %168 = vector.broadcast %cst_89 : f32 to vector<8x128xf32>
    %169 = arith.addf %168, %167 : vector<8x128xf32>
    %170 = arith.divf %168, %169 : vector<8x128xf32>
    %171 = vector.extract_strided_slice %158 {offsets = [0, 256], sizes = [8, 128], strides = [1, 1]} : vector<8x512xf32> to vector<8x128xf32>
    %172 = math.tanh %171 : vector<8x128xf32>
    %173 = vector.extract_strided_slice %158 {offsets = [0, 384], sizes = [8, 128], strides = [1, 1]} : vector<8x512xf32> to vector<8x128xf32>
    %174 = arith.negf %173 : vector<8x128xf32>
    %175 = math.exp %174 : vector<8x128xf32>
    %cst_90 = arith.constant 1.000000e+00 : f32
    %176 = vector.broadcast %cst_90 : f32 to vector<8x128xf32>
    %177 = arith.addf %176, %175 : vector<8x128xf32>
    %178 = arith.divf %176, %177 : vector<8x128xf32>
    %179 = arith.mulf %170, %149 : vector<8x128xf32>
    %180 = arith.mulf %164, %172 : vector<8x128xf32>
    %181 = arith.addf %179, %180 : vector<8x128xf32>
    %182 = math.tanh %181 : vector<8x128xf32>
    %183 = arith.mulf %178, %182 : vector<8x128xf32>
    %c1_91 = arith.constant 1 : index
    %c0_92 = arith.constant 0 : index
    %c0_93 = arith.constant 0 : index
    %184 = vector.load %arg10[%c1_91, %c0_92, %c0_93] : memref<2x8x128xf32, #tpu.memory_space<vmem>>, vector<1x8x128xf32>
    %185 = vector.shape_cast %184 : vector<1x8x128xf32> to vector<8x128xf32>
    %186 = vector.shape_cast %183 : vector<8x128xf32> to vector<1x8x128xf32>
    tpu.vector_store %arg10[%c1_91, %c0_92, %c0_93], %186 {strides = array<i32>} : memref<2x8x128xf32, #tpu.memory_space<vmem>>, vector<1x8x128xf32>,
    %c1_94 = arith.constant 1 : index
    %c0_95 = arith.constant 0 : index
    %c0_96 = arith.constant 0 : index
    %187 = vector.load %arg11[%c1_94, %c0_95, %c0_96] : memref<2x8x128xf32, #tpu.memory_space<vmem>>, vector<1x8x128xf32>
    %188 = vector.shape_cast %187 : vector<1x8x128xf32> to vector<8x128xf32>
    %189 = vector.shape_cast %181 : vector<8x128xf32> to vector<1x8x128xf32>
    tpu.vector_store %arg11[%c1_94, %c0_95, %c0_96], %189 {strides = array<i32>} : memref<2x8x128xf32, #tpu.memory_space<vmem>>, vector<1x8x128xf32>,
    %190 = arith.truncf %183 : vector<8x128xf32> to vector<8x128xbf16>
    %191 = arith.index_cast %c1_i32 : i32 to index
    %c0_97 = arith.constant 0 : index
    %c0_98 = arith.constant 0 : index
    %192 = vector.load %arg9[%191, %c0_97, %c0_98] : memref<8x8x128xbf16, #tpu.memory_space<vmem>>, vector<1x8x128xbf16>
    %193 = vector.shape_cast %192 : vector<1x8x128xbf16> to vector<8x128xbf16>
    %194 = vector.shape_cast %190 : vector<8x128xbf16> to vector<1x8x128xbf16>
    tpu.vector_store %arg9[%191, %c0_97, %c0_98], %194 {strides = array<i32>} : memref<8x8x128xbf16, #tpu.memory_space<vmem>>, vector<1x8x128xbf16>,
    %c2_i32 = arith.constant 2 : i32
    %195 = arith.index_cast %c2_i32 : i32 to index
    %c0_99 = arith.constant 0 : index
    %c0_100 = arith.constant 0 : index
    %196 = vector.load %arg2[%195, %c0_99, %c0_100] : memref<8x8x128xf32, #tpu.memory_space<vmem>>, vector<1x8x128xf32>
    %197 = vector.shape_cast %196 : vector<1x8x128xf32> to vector<8x128xf32>
    %c0_101 = arith.constant 0 : index
    %c0_102 = arith.constant 0 : index
    %c0_103 = arith.constant 0 : index
    %198 = vector.load %arg10[%c0_101, %c0_102, %c0_103] : memref<2x8x128xf32, #tpu.memory_space<vmem>>, vector<1x8x128xf32>
    %199 = vector.shape_cast %198 : vector<1x8x128xf32> to vector<8x128xf32>
    %c0_104 = arith.constant 0 : index
    %c0_105 = arith.constant 0 : index
    %c0_106 = arith.constant 0 : index
    %200 = vector.load %arg11[%c0_104, %c0_105, %c0_106] : memref<2x8x128xf32, #tpu.memory_space<vmem>>, vector<1x8x128xf32>
    %201 = vector.shape_cast %200 : vector<1x8x128xf32> to vector<8x128xf32>
    %202 = arith.truncf %197 : vector<8x128xf32> to vector<8x128xbf16>
    %c0_107 = arith.constant 0 : index
    %c0_108 = arith.constant 0 : index
    %203 = vector.load %arg3[%c0_107, %c0_108] : memref<128x512xbf16, #tpu.memory_space<vmem>>, vector<128x512xbf16>
    %cst_109 = arith.constant dense<0.000000e+00> : vector<8x512xf32>
    %204 = tpu.matmul %202, %203, %cst_109 {dimension_numbers = #tpu.dot_dimension_numbers<[1], [0], [0], [1], [0, 0, 1, 1], [], []>} : vector<8x128xbf16>, vector<128x512xbf16>, vector<8x512xf32> -> vector<8x512xf32>
    %205 = arith.truncf %199 : vector<8x128xf32> to vector<8x128xbf16>
    %c0_110 = arith.constant 0 : index
    %c0_111 = arith.constant 0 : index
    %206 = vector.load %arg4[%c0_110, %c0_111] : memref<128x512xbf16, #tpu.memory_space<vmem>>, vector<128x512xbf16>
    %cst_112 = arith.constant dense<0.000000e+00> : vector<8x512xf32>
    %207 = tpu.matmul %205, %206, %cst_112 {dimension_numbers = #tpu.dot_dimension_numbers<[1], [0], [0], [1], [0, 0, 1, 1], [], []>} : vector<8x128xbf16>, vector<128x512xbf16>, vector<8x512xf32> -> vector<8x512xf32>
    %208 = arith.addf %204, %207 : vector<8x512xf32>
    %c0_113 = arith.constant 0 : index
    %c0_114 = arith.constant 0 : index
    %209 = vector.load %arg5[%c0_113, %c0_114] : memref<8x512xf32, #tpu.memory_space<vmem>>, vector<8x512xf32>
    %210 = arith.addf %208, %209 : vector<8x512xf32>
    %211 = vector.extract_strided_slice %210 {offsets = [0, 0], sizes = [8, 128], strides = [1, 1]} : vector<8x512xf32> to vector<8x128xf32>
    %212 = arith.negf %211 : vector<8x128xf32>
    %213 = math.exp %212 : vector<8x128xf32>
    %cst_115 = arith.constant 1.000000e+00 : f32
    %214 = vector.broadcast %cst_115 : f32 to vector<8x128xf32>
    %215 = arith.addf %214, %213 : vector<8x128xf32>
    %216 = arith.divf %214, %215 : vector<8x128xf32>
    %217 = vector.extract_strided_slice %210 {offsets = [0, 128], sizes = [8, 128], strides = [1, 1]} : vector<8x512xf32> to vector<8x128xf32>
    %218 = arith.negf %217 : vector<8x128xf32>
    %219 = math.exp %218 : vector<8x128xf32>
    %cst_116 = arith.constant 1.000000e+00 : f32
    %220 = vector.broadcast %cst_116 : f32 to vector<8x128xf32>
    %221 = arith.addf %220, %219 : vector<8x128xf32>
    %222 = arith.divf %220, %221 : vector<8x128xf32>
    %223 = vector.extract_strided_slice %210 {offsets = [0, 256], sizes = [8, 128], strides = [1, 1]} : vector<8x512xf32> to vector<8x128xf32>
    %224 = math.tanh %223 : vector<8x128xf32>
    %225 = vector.extract_strided_slice %210 {offsets = [0, 384], sizes = [8, 128], strides = [1, 1]} : vector<8x512xf32> to vector<8x128xf32>
    %226 = arith.negf %225 : vector<8x128xf32>
    %227 = math.exp %226 : vector<8x128xf32>
    %cst_117 = arith.constant 1.000000e+00 : f32
    %228 = vector.broadcast %cst_117 : f32 to vector<8x128xf32>
    %229 = arith.addf %228, %227 : vector<8x128xf32>
    %230 = arith.divf %228, %229 : vector<8x128xf32>
    %231 = arith.mulf %222, %201 : vector<8x128xf32>
    %232 = arith.mulf %216, %224 : vector<8x128xf32>
    %233 = arith.addf %231, %232 : vector<8x128xf32>
    %234 = math.tanh %233 : vector<8x128xf32>
    %235 = arith.mulf %230, %234 : vector<8x128xf32>
    %c0_118 = arith.constant 0 : index
    %c0_119 = arith.constant 0 : index
    %c0_120 = arith.constant 0 : index
    %236 = vector.load %arg10[%c0_118, %c0_119, %c0_120] : memref<2x8x128xf32, #tpu.memory_space<vmem>>, vector<1x8x128xf32>
    %237 = vector.shape_cast %236 : vector<1x8x128xf32> to vector<8x128xf32>
    %238 = vector.shape_cast %235 : vector<8x128xf32> to vector<1x8x128xf32>
    tpu.vector_store %arg10[%c0_118, %c0_119, %c0_120], %238 {strides = array<i32>} : memref<2x8x128xf32, #tpu.memory_space<vmem>>, vector<1x8x128xf32>,
    %c0_121 = arith.constant 0 : index
    %c0_122 = arith.constant 0 : index
    %c0_123 = arith.constant 0 : index
    %239 = vector.load %arg11[%c0_121, %c0_122, %c0_123] : memref<2x8x128xf32, #tpu.memory_space<vmem>>, vector<1x8x128xf32>
    %240 = vector.shape_cast %239 : vector<1x8x128xf32> to vector<8x128xf32>
    %241 = vector.shape_cast %233 : vector<8x128xf32> to vector<1x8x128xf32>
    tpu.vector_store %arg11[%c0_121, %c0_122, %c0_123], %241 {strides = array<i32>} : memref<2x8x128xf32, #tpu.memory_space<vmem>>, vector<1x8x128xf32>,
    %c1_124 = arith.constant 1 : index
    %c0_125 = arith.constant 0 : index
    %c0_126 = arith.constant 0 : index
    %242 = vector.load %arg10[%c1_124, %c0_125, %c0_126] : memref<2x8x128xf32, #tpu.memory_space<vmem>>, vector<1x8x128xf32>
    %243 = vector.shape_cast %242 : vector<1x8x128xf32> to vector<8x128xf32>
    %c1_127 = arith.constant 1 : index
    %c0_128 = arith.constant 0 : index
    %c0_129 = arith.constant 0 : index
    %244 = vector.load %arg11[%c1_127, %c0_128, %c0_129] : memref<2x8x128xf32, #tpu.memory_space<vmem>>, vector<1x8x128xf32>
    %245 = vector.shape_cast %244 : vector<1x8x128xf32> to vector<8x128xf32>
    %246 = arith.truncf %235 : vector<8x128xf32> to vector<8x128xbf16>
    %c0_130 = arith.constant 0 : index
    %c0_131 = arith.constant 0 : index
    %247 = vector.load %arg6[%c0_130, %c0_131] : memref<128x512xbf16, #tpu.memory_space<vmem>>, vector<128x512xbf16>
    %cst_132 = arith.constant dense<0.000000e+00> : vector<8x512xf32>
    %248 = tpu.matmul %246, %247, %cst_132 {dimension_numbers = #tpu.dot_dimension_numbers<[1], [0], [0], [1], [0, 0, 1, 1], [], []>} : vector<8x128xbf16>, vector<128x512xbf16>, vector<8x512xf32> -> vector<8x512xf32>
    %249 = arith.truncf %243 : vector<8x128xf32> to vector<8x128xbf16>
    %c0_133 = arith.constant 0 : index
    %c0_134 = arith.constant 0 : index
    %250 = vector.load %arg7[%c0_133, %c0_134] : memref<128x512xbf16, #tpu.memory_space<vmem>>, vector<128x512xbf16>
    %cst_135 = arith.constant dense<0.000000e+00> : vector<8x512xf32>
    %251 = tpu.matmul %249, %250, %cst_135 {dimension_numbers = #tpu.dot_dimension_numbers<[1], [0], [0], [1], [0, 0, 1, 1], [], []>} : vector<8x128xbf16>, vector<128x512xbf16>, vector<8x512xf32> -> vector<8x512xf32>
    %252 = arith.addf %248, %251 : vector<8x512xf32>
    %c0_136 = arith.constant 0 : index
    %c0_137 = arith.constant 0 : index
    %253 = vector.load %arg8[%c0_136, %c0_137] : memref<8x512xf32, #tpu.memory_space<vmem>>, vector<8x512xf32>
    %254 = arith.addf %252, %253 : vector<8x512xf32>
    %255 = vector.extract_strided_slice %254 {offsets = [0, 0], sizes = [8, 128], strides = [1, 1]} : vector<8x512xf32> to vector<8x128xf32>
    %256 = arith.negf %255 : vector<8x128xf32>
    %257 = math.exp %256 : vector<8x128xf32>
    %cst_138 = arith.constant 1.000000e+00 : f32
    %258 = vector.broadcast %cst_138 : f32 to vector<8x128xf32>
    %259 = arith.addf %258, %257 : vector<8x128xf32>
    %260 = arith.divf %258, %259 : vector<8x128xf32>
    %261 = vector.extract_strided_slice %254 {offsets = [0, 128], sizes = [8, 128], strides = [1, 1]} : vector<8x512xf32> to vector<8x128xf32>
    %262 = arith.negf %261 : vector<8x128xf32>
    %263 = math.exp %262 : vector<8x128xf32>
    %cst_139 = arith.constant 1.000000e+00 : f32
    %264 = vector.broadcast %cst_139 : f32 to vector<8x128xf32>
    %265 = arith.addf %264, %263 : vector<8x128xf32>
    %266 = arith.divf %264, %265 : vector<8x128xf32>
    %267 = vector.extract_strided_slice %254 {offsets = [0, 256], sizes = [8, 128], strides = [1, 1]} : vector<8x512xf32> to vector<8x128xf32>
    %268 = math.tanh %267 : vector<8x128xf32>
    %269 = vector.extract_strided_slice %254 {offsets = [0, 384], sizes = [8, 128], strides = [1, 1]} : vector<8x512xf32> to vector<8x128xf32>
    %270 = arith.negf %269 : vector<8x128xf32>
    %271 = math.exp %270 : vector<8x128xf32>
    %cst_140 = arith.constant 1.000000e+00 : f32
    %272 = vector.broadcast %cst_140 : f32 to vector<8x128xf32>
    %273 = arith.addf %272, %271 : vector<8x128xf32>
    %274 = arith.divf %272, %273 : vector<8x128xf32>
    %275 = arith.mulf %266, %245 : vector<8x128xf32>
    %276 = arith.mulf %260, %268 : vector<8x128xf32>
    %277 = arith.addf %275, %276 : vector<8x128xf32>
    %278 = math.tanh %277 : vector<8x128xf32>
    %279 = arith.mulf %274, %278 : vector<8x128xf32>
    %c1_141 = arith.constant 1 : index
    %c0_142 = arith.constant 0 : index
    %c0_143 = arith.constant 0 : index
    %280 = vector.load %arg10[%c1_141, %c0_142, %c0_143] : memref<2x8x128xf32, #tpu.memory_space<vmem>>, vector<1x8x128xf32>
    %281 = vector.shape_cast %280 : vector<1x8x128xf32> to vector<8x128xf32>
    %282 = vector.shape_cast %279 : vector<8x128xf32> to vector<1x8x128xf32>
    tpu.vector_store %arg10[%c1_141, %c0_142, %c0_143], %282 {strides = array<i32>} : memref<2x8x128xf32, #tpu.memory_space<vmem>>, vector<1x8x128xf32>,
    %c1_144 = arith.constant 1 : index
    %c0_145 = arith.constant 0 : index
    %c0_146 = arith.constant 0 : index
    %283 = vector.load %arg11[%c1_144, %c0_145, %c0_146] : memref<2x8x128xf32, #tpu.memory_space<vmem>>, vector<1x8x128xf32>
    %284 = vector.shape_cast %283 : vector<1x8x128xf32> to vector<8x128xf32>
    %285 = vector.shape_cast %277 : vector<8x128xf32> to vector<1x8x128xf32>
    tpu.vector_store %arg11[%c1_144, %c0_145, %c0_146], %285 {strides = array<i32>} : memref<2x8x128xf32, #tpu.memory_space<vmem>>, vector<1x8x128xf32>,
    %286 = arith.truncf %279 : vector<8x128xf32> to vector<8x128xbf16>
    %287 = arith.index_cast %c2_i32 : i32 to index
    %c0_147 = arith.constant 0 : index
    %c0_148 = arith.constant 0 : index
    %288 = vector.load %arg9[%287, %c0_147, %c0_148] : memref<8x8x128xbf16, #tpu.memory_space<vmem>>, vector<1x8x128xbf16>
    %289 = vector.shape_cast %288 : vector<1x8x128xbf16> to vector<8x128xbf16>
    %290 = vector.shape_cast %286 : vector<8x128xbf16> to vector<1x8x128xbf16>
    tpu.vector_store %arg9[%287, %c0_147, %c0_148], %290 {strides = array<i32>} : memref<8x8x128xbf16, #tpu.memory_space<vmem>>, vector<1x8x128xbf16>,
    %c3_i32 = arith.constant 3 : i32
    %291 = arith.index_cast %c3_i32 : i32 to index
    %c0_149 = arith.constant 0 : index
    %c0_150 = arith.constant 0 : index
    %292 = vector.load %arg2[%291, %c0_149, %c0_150] : memref<8x8x128xf32, #tpu.memory_space<vmem>>, vector<1x8x128xf32>
    %293 = vector.shape_cast %292 : vector<1x8x128xf32> to vector<8x128xf32>
    %c0_151 = arith.constant 0 : index
    %c0_152 = arith.constant 0 : index
    %c0_153 = arith.constant 0 : index
    %294 = vector.load %arg10[%c0_151, %c0_152, %c0_153] : memref<2x8x128xf32, #tpu.memory_space<vmem>>, vector<1x8x128xf32>
    %295 = vector.shape_cast %294 : vector<1x8x128xf32> to vector<8x128xf32>
    %c0_154 = arith.constant 0 : index
    %c0_155 = arith.constant 0 : index
    %c0_156 = arith.constant 0 : index
    %296 = vector.load %arg11[%c0_154, %c0_155, %c0_156] : memref<2x8x128xf32, #tpu.memory_space<vmem>>, vector<1x8x128xf32>
    %297 = vector.shape_cast %296 : vector<1x8x128xf32> to vector<8x128xf32>
    %298 = arith.truncf %293 : vector<8x128xf32> to vector<8x128xbf16>
    %c0_157 = arith.constant 0 : index
    %c0_158 = arith.constant 0 : index
    %299 = vector.load %arg3[%c0_157, %c0_158] : memref<128x512xbf16, #tpu.memory_space<vmem>>, vector<128x512xbf16>
    %cst_159 = arith.constant dense<0.000000e+00> : vector<8x512xf32>
    %300 = tpu.matmul %298, %299, %cst_159 {dimension_numbers = #tpu.dot_dimension_numbers<[1], [0], [0], [1], [0, 0, 1, 1], [], []>} : vector<8x128xbf16>, vector<128x512xbf16>, vector<8x512xf32> -> vector<8x512xf32>
    %301 = arith.truncf %295 : vector<8x128xf32> to vector<8x128xbf16>
    %c0_160 = arith.constant 0 : index
    %c0_161 = arith.constant 0 : index
    %302 = vector.load %arg4[%c0_160, %c0_161] : memref<128x512xbf16, #tpu.memory_space<vmem>>, vector<128x512xbf16>
    %cst_162 = arith.constant dense<0.000000e+00> : vector<8x512xf32>
    %303 = tpu.matmul %301, %302, %cst_162 {dimension_numbers = #tpu.dot_dimension_numbers<[1], [0], [0], [1], [0, 0, 1, 1], [], []>} : vector<8x128xbf16>, vector<128x512xbf16>, vector<8x512xf32> -> vector<8x512xf32>
    %304 = arith.addf %300, %303 : vector<8x512xf32>
    %c0_163 = arith.constant 0 : index
    %c0_164 = arith.constant 0 : index
    %305 = vector.load %arg5[%c0_163, %c0_164] : memref<8x512xf32, #tpu.memory_space<vmem>>, vector<8x512xf32>
    %306 = arith.addf %304, %305 : vector<8x512xf32>
    %307 = vector.extract_strided_slice %306 {offsets = [0, 0], sizes = [8, 128], strides = [1, 1]} : vector<8x512xf32> to vector<8x128xf32>
    %308 = arith.negf %307 : vector<8x128xf32>
    %309 = math.exp %308 : vector<8x128xf32>
    %cst_165 = arith.constant 1.000000e+00 : f32
    %310 = vector.broadcast %cst_165 : f32 to vector<8x128xf32>
    %311 = arith.addf %310, %309 : vector<8x128xf32>
    %312 = arith.divf %310, %311 : vector<8x128xf32>
    %313 = vector.extract_strided_slice %306 {offsets = [0, 128], sizes = [8, 128], strides = [1, 1]} : vector<8x512xf32> to vector<8x128xf32>
    %314 = arith.negf %313 : vector<8x128xf32>
    %315 = math.exp %314 : vector<8x128xf32>
    %cst_166 = arith.constant 1.000000e+00 : f32
    %316 = vector.broadcast %cst_166 : f32 to vector<8x128xf32>
    %317 = arith.addf %316, %315 : vector<8x128xf32>
    %318 = arith.divf %316, %317 : vector<8x128xf32>
    %319 = vector.extract_strided_slice %306 {offsets = [0, 256], sizes = [8, 128], strides = [1, 1]} : vector<8x512xf32> to vector<8x128xf32>
    %320 = math.tanh %319 : vector<8x128xf32>
    %321 = vector.extract_strided_slice %306 {offsets = [0, 384], sizes = [8, 128], strides = [1, 1]} : vector<8x512xf32> to vector<8x128xf32>
    %322 = arith.negf %321 : vector<8x128xf32>
    %323 = math.exp %322 : vector<8x128xf32>
    %cst_167 = arith.constant 1.000000e+00 : f32
    %324 = vector.broadcast %cst_167 : f32 to vector<8x128xf32>
    %325 = arith.addf %324, %323 : vector<8x128xf32>
    %326 = arith.divf %324, %325 : vector<8x128xf32>
    %327 = arith.mulf %318, %297 : vector<8x128xf32>
    %328 = arith.mulf %312, %320 : vector<8x128xf32>
    %329 = arith.addf %327, %328 : vector<8x128xf32>
    %330 = math.tanh %329 : vector<8x128xf32>
    %331 = arith.mulf %326, %330 : vector<8x128xf32>
    %c0_168 = arith.constant 0 : index
    %c0_169 = arith.constant 0 : index
    %c0_170 = arith.constant 0 : index
    %332 = vector.load %arg10[%c0_168, %c0_169, %c0_170] : memref<2x8x128xf32, #tpu.memory_space<vmem>>, vector<1x8x128xf32>
    %333 = vector.shape_cast %332 : vector<1x8x128xf32> to vector<8x128xf32>
    %334 = vector.shape_cast %331 : vector<8x128xf32> to vector<1x8x128xf32>
    tpu.vector_store %arg10[%c0_168, %c0_169, %c0_170], %334 {strides = array<i32>} : memref<2x8x128xf32, #tpu.memory_space<vmem>>, vector<1x8x128xf32>,
    %c0_171 = arith.constant 0 : index
    %c0_172 = arith.constant 0 : index
    %c0_173 = arith.constant 0 : index
    %335 = vector.load %arg11[%c0_171, %c0_172, %c0_173] : memref<2x8x128xf32, #tpu.memory_space<vmem>>, vector<1x8x128xf32>
    %336 = vector.shape_cast %335 : vector<1x8x128xf32> to vector<8x128xf32>
    %337 = vector.shape_cast %329 : vector<8x128xf32> to vector<1x8x128xf32>
    tpu.vector_store %arg11[%c0_171, %c0_172, %c0_173], %337 {strides = array<i32>} : memref<2x8x128xf32, #tpu.memory_space<vmem>>, vector<1x8x128xf32>,
    %c1_174 = arith.constant 1 : index
    %c0_175 = arith.constant 0 : index
    %c0_176 = arith.constant 0 : index
    %338 = vector.load %arg10[%c1_174, %c0_175, %c0_176] : memref<2x8x128xf32, #tpu.memory_space<vmem>>, vector<1x8x128xf32>
    %339 = vector.shape_cast %338 : vector<1x8x128xf32> to vector<8x128xf32>
    %c1_177 = arith.constant 1 : index
    %c0_178 = arith.constant 0 : index
    %c0_179 = arith.constant 0 : index
    %340 = vector.load %arg11[%c1_177, %c0_178, %c0_179] : memref<2x8x128xf32, #tpu.memory_space<vmem>>, vector<1x8x128xf32>
    %341 = vector.shape_cast %340 : vector<1x8x128xf32> to vector<8x128xf32>
    %342 = arith.truncf %331 : vector<8x128xf32> to vector<8x128xbf16>
    %c0_180 = arith.constant 0 : index
    %c0_181 = arith.constant 0 : index
    %343 = vector.load %arg6[%c0_180, %c0_181] : memref<128x512xbf16, #tpu.memory_space<vmem>>, vector<128x512xbf16>
    %cst_182 = arith.constant dense<0.000000e+00> : vector<8x512xf32>
    %344 = tpu.matmul %342, %343, %cst_182 {dimension_numbers = #tpu.dot_dimension_numbers<[1], [0], [0], [1], [0, 0, 1, 1], [], []>} : vector<8x128xbf16>, vector<128x512xbf16>, vector<8x512xf32> -> vector<8x512xf32>
    %345 = arith.truncf %339 : vector<8x128xf32> to vector<8x128xbf16>
    %c0_183 = arith.constant 0 : index
    %c0_184 = arith.constant 0 : index
    %346 = vector.load %arg7[%c0_183, %c0_184] : memref<128x512xbf16, #tpu.memory_space<vmem>>, vector<128x512xbf16>
    %cst_185 = arith.constant dense<0.000000e+00> : vector<8x512xf32>
    %347 = tpu.matmul %345, %346, %cst_185 {dimension_numbers = #tpu.dot_dimension_numbers<[1], [0], [0], [1], [0, 0, 1, 1], [], []>} : vector<8x128xbf16>, vector<128x512xbf16>, vector<8x512xf32> -> vector<8x512xf32>
    %348 = arith.addf %344, %347 : vector<8x512xf32>
    %c0_186 = arith.constant 0 : index
    %c0_187 = arith.constant 0 : index
    %349 = vector.load %arg8[%c0_186, %c0_187] : memref<8x512xf32, #tpu.memory_space<vmem>>, vector<8x512xf32>
    %350 = arith.addf %348, %349 : vector<8x512xf32>
    %351 = vector.extract_strided_slice %350 {offsets = [0, 0], sizes = [8, 128], strides = [1, 1]} : vector<8x512xf32> to vector<8x128xf32>
    %352 = arith.negf %351 : vector<8x128xf32>
    %353 = math.exp %352 : vector<8x128xf32>
    %cst_188 = arith.constant 1.000000e+00 : f32
    %354 = vector.broadcast %cst_188 : f32 to vector<8x128xf32>
    %355 = arith.addf %354, %353 : vector<8x128xf32>
    %356 = arith.divf %354, %355 : vector<8x128xf32>
    %357 = vector.extract_strided_slice %350 {offsets = [0, 128], sizes = [8, 128], strides = [1, 1]} : vector<8x512xf32> to vector<8x128xf32>
    %358 = arith.negf %357 : vector<8x128xf32>
    %359 = math.exp %358 : vector<8x128xf32>
    %cst_189 = arith.constant 1.000000e+00 : f32
    %360 = vector.broadcast %cst_189 : f32 to vector<8x128xf32>
    %361 = arith.addf %360, %359 : vector<8x128xf32>
    %362 = arith.divf %360, %361 : vector<8x128xf32>
    %363 = vector.extract_strided_slice %350 {offsets = [0, 256], sizes = [8, 128], strides = [1, 1]} : vector<8x512xf32> to vector<8x128xf32>
    %364 = math.tanh %363 : vector<8x128xf32>
    %365 = vector.extract_strided_slice %350 {offsets = [0, 384], sizes = [8, 128], strides = [1, 1]} : vector<8x512xf32> to vector<8x128xf32>
    %366 = arith.negf %365 : vector<8x128xf32>
    %367 = math.exp %366 : vector<8x128xf32>
    %cst_190 = arith.constant 1.000000e+00 : f32
    %368 = vector.broadcast %cst_190 : f32 to vector<8x128xf32>
    %369 = arith.addf %368, %367 : vector<8x128xf32>
    %370 = arith.divf %368, %369 : vector<8x128xf32>
    %371 = arith.mulf %362, %341 : vector<8x128xf32>
    %372 = arith.mulf %356, %364 : vector<8x128xf32>
    %373 = arith.addf %371, %372 : vector<8x128xf32>
    %374 = math.tanh %373 : vector<8x128xf32>
    %375 = arith.mulf %370, %374 : vector<8x128xf32>
    %c1_191 = arith.constant 1 : index
    %c0_192 = arith.constant 0 : index
    %c0_193 = arith.constant 0 : index
    %376 = vector.load %arg10[%c1_191, %c0_192, %c0_193] : memref<2x8x128xf32, #tpu.memory_space<vmem>>, vector<1x8x128xf32>
    %377 = vector.shape_cast %376 : vector<1x8x128xf32> to vector<8x128xf32>
    %378 = vector.shape_cast %375 : vector<8x128xf32> to vector<1x8x128xf32>
    tpu.vector_store %arg10[%c1_191, %c0_192, %c0_193], %378 {strides = array<i32>} : memref<2x8x128xf32, #tpu.memory_space<vmem>>, vector<1x8x128xf32>,
    %c1_194 = arith.constant 1 : index
    %c0_195 = arith.constant 0 : index
    %c0_196 = arith.constant 0 : index
    %379 = vector.load %arg11[%c1_194, %c0_195, %c0_196] : memref<2x8x128xf32, #tpu.memory_space<vmem>>, vector<1x8x128xf32>
    %380 = vector.shape_cast %379 : vector<1x8x128xf32> to vector<8x128xf32>
    %381 = vector.shape_cast %373 : vector<8x128xf32> to vector<1x8x128xf32>
    tpu.vector_store %arg11[%c1_194, %c0_195, %c0_196], %381 {strides = array<i32>} : memref<2x8x128xf32, #tpu.memory_space<vmem>>, vector<1x8x128xf32>,
    %382 = arith.truncf %375 : vector<8x128xf32> to vector<8x128xbf16>
    %383 = arith.index_cast %c3_i32 : i32 to index
    %c0_197 = arith.constant 0 : index
    %c0_198 = arith.constant 0 : index
    %384 = vector.load %arg9[%383, %c0_197, %c0_198] : memref<8x8x128xbf16, #tpu.memory_space<vmem>>, vector<1x8x128xbf16>
    %385 = vector.shape_cast %384 : vector<1x8x128xbf16> to vector<8x128xbf16>
    %386 = vector.shape_cast %382 : vector<8x128xbf16> to vector<1x8x128xbf16>
    tpu.vector_store %arg9[%383, %c0_197, %c0_198], %386 {strides = array<i32>} : memref<8x8x128xbf16, #tpu.memory_space<vmem>>, vector<1x8x128xbf16>,
    %c4_i32 = arith.constant 4 : i32
    %387 = arith.index_cast %c4_i32 : i32 to index
    %c0_199 = arith.constant 0 : index
    %c0_200 = arith.constant 0 : index
    %388 = vector.load %arg2[%387, %c0_199, %c0_200] : memref<8x8x128xf32, #tpu.memory_space<vmem>>, vector<1x8x128xf32>
    %389 = vector.shape_cast %388 : vector<1x8x128xf32> to vector<8x128xf32>
    %c0_201 = arith.constant 0 : index
    %c0_202 = arith.constant 0 : index
    %c0_203 = arith.constant 0 : index
    %390 = vector.load %arg10[%c0_201, %c0_202, %c0_203] : memref<2x8x128xf32, #tpu.memory_space<vmem>>, vector<1x8x128xf32>
    %391 = vector.shape_cast %390 : vector<1x8x128xf32> to vector<8x128xf32>
    %c0_204 = arith.constant 0 : index
    %c0_205 = arith.constant 0 : index
    %c0_206 = arith.constant 0 : index
    %392 = vector.load %arg11[%c0_204, %c0_205, %c0_206] : memref<2x8x128xf32, #tpu.memory_space<vmem>>, vector<1x8x128xf32>
    %393 = vector.shape_cast %392 : vector<1x8x128xf32> to vector<8x128xf32>
    %394 = arith.truncf %389 : vector<8x128xf32> to vector<8x128xbf16>
    %c0_207 = arith.constant 0 : index
    %c0_208 = arith.constant 0 : index
    %395 = vector.load %arg3[%c0_207, %c0_208] : memref<128x512xbf16, #tpu.memory_space<vmem>>, vector<128x512xbf16>
    %cst_209 = arith.constant dense<0.000000e+00> : vector<8x512xf32>
    %396 = tpu.matmul %394, %395, %cst_209 {dimension_numbers = #tpu.dot_dimension_numbers<[1], [0], [0], [1], [0, 0, 1, 1], [], []>} : vector<8x128xbf16>, vector<128x512xbf16>, vector<8x512xf32> -> vector<8x512xf32>
    %397 = arith.truncf %391 : vector<8x128xf32> to vector<8x128xbf16>
    %c0_210 = arith.constant 0 : index
    %c0_211 = arith.constant 0 : index
    %398 = vector.load %arg4[%c0_210, %c0_211] : memref<128x512xbf16, #tpu.memory_space<vmem>>, vector<128x512xbf16>
    %cst_212 = arith.constant dense<0.000000e+00> : vector<8x512xf32>
    %399 = tpu.matmul %397, %398, %cst_212 {dimension_numbers = #tpu.dot_dimension_numbers<[1], [0], [0], [1], [0, 0, 1, 1], [], []>} : vector<8x128xbf16>, vector<128x512xbf16>, vector<8x512xf32> -> vector<8x512xf32>
    %400 = arith.addf %396, %399 : vector<8x512xf32>
    %c0_213 = arith.constant 0 : index
    %c0_214 = arith.constant 0 : index
    %401 = vector.load %arg5[%c0_213, %c0_214] : memref<8x512xf32, #tpu.memory_space<vmem>>, vector<8x512xf32>
    %402 = arith.addf %400, %401 : vector<8x512xf32>
    %403 = vector.extract_strided_slice %402 {offsets = [0, 0], sizes = [8, 128], strides = [1, 1]} : vector<8x512xf32> to vector<8x128xf32>
    %404 = arith.negf %403 : vector<8x128xf32>
    %405 = math.exp %404 : vector<8x128xf32>
    %cst_215 = arith.constant 1.000000e+00 : f32
    %406 = vector.broadcast %cst_215 : f32 to vector<8x128xf32>
    %407 = arith.addf %406, %405 : vector<8x128xf32>
    %408 = arith.divf %406, %407 : vector<8x128xf32>
    %409 = vector.extract_strided_slice %402 {offsets = [0, 128], sizes = [8, 128], strides = [1, 1]} : vector<8x512xf32> to vector<8x128xf32>
    %410 = arith.negf %409 : vector<8x128xf32>
    %411 = math.exp %410 : vector<8x128xf32>
    %cst_216 = arith.constant 1.000000e+00 : f32
    %412 = vector.broadcast %cst_216 : f32 to vector<8x128xf32>
    %413 = arith.addf %412, %411 : vector<8x128xf32>
    %414 = arith.divf %412, %413 : vector<8x128xf32>
    %415 = vector.extract_strided_slice %402 {offsets = [0, 256], sizes = [8, 128], strides = [1, 1]} : vector<8x512xf32> to vector<8x128xf32>
    %416 = math.tanh %415 : vector<8x128xf32>
    %417 = vector.extract_strided_slice %402 {offsets = [0, 384], sizes = [8, 128], strides = [1, 1]} : vector<8x512xf32> to vector<8x128xf32>
    %418 = arith.negf %417 : vector<8x128xf32>
    %419 = math.exp %418 : vector<8x128xf32>
    %cst_217 = arith.constant 1.000000e+00 : f32
    %420 = vector.broadcast %cst_217 : f32 to vector<8x128xf32>
    %421 = arith.addf %420, %419 : vector<8x128xf32>
    %422 = arith.divf %420, %421 : vector<8x128xf32>
    %423 = arith.mulf %414, %393 : vector<8x128xf32>
    %424 = arith.mulf %408, %416 : vector<8x128xf32>
    %425 = arith.addf %423, %424 : vector<8x128xf32>
    %426 = math.tanh %425 : vector<8x128xf32>
    %427 = arith.mulf %422, %426 : vector<8x128xf32>
    %c0_218 = arith.constant 0 : index
    %c0_219 = arith.constant 0 : index
    %c0_220 = arith.constant 0 : index
    %428 = vector.load %arg10[%c0_218, %c0_219, %c0_220] : memref<2x8x128xf32, #tpu.memory_space<vmem>>, vector<1x8x128xf32>
    %429 = vector.shape_cast %428 : vector<1x8x128xf32> to vector<8x128xf32>
    %430 = vector.shape_cast %427 : vector<8x128xf32> to vector<1x8x128xf32>
    tpu.vector_store %arg10[%c0_218, %c0_219, %c0_220], %430 {strides = array<i32>} : memref<2x8x128xf32, #tpu.memory_space<vmem>>, vector<1x8x128xf32>,
    %c0_221 = arith.constant 0 : index
    %c0_222 = arith.constant 0 : index
    %c0_223 = arith.constant 0 : index
    %431 = vector.load %arg11[%c0_221, %c0_222, %c0_223] : memref<2x8x128xf32, #tpu.memory_space<vmem>>, vector<1x8x128xf32>
    %432 = vector.shape_cast %431 : vector<1x8x128xf32> to vector<8x128xf32>
    %433 = vector.shape_cast %425 : vector<8x128xf32> to vector<1x8x128xf32>
    tpu.vector_store %arg11[%c0_221, %c0_222, %c0_223], %433 {strides = array<i32>} : memref<2x8x128xf32, #tpu.memory_space<vmem>>, vector<1x8x128xf32>,
    %c1_224 = arith.constant 1 : index
    %c0_225 = arith.constant 0 : index
    %c0_226 = arith.constant 0 : index
    %434 = vector.load %arg10[%c1_224, %c0_225, %c0_226] : memref<2x8x128xf32, #tpu.memory_space<vmem>>, vector<1x8x128xf32>
    %435 = vector.shape_cast %434 : vector<1x8x128xf32> to vector<8x128xf32>
    %c1_227 = arith.constant 1 : index
    %c0_228 = arith.constant 0 : index
    %c0_229 = arith.constant 0 : index
    %436 = vector.load %arg11[%c1_227, %c0_228, %c0_229] : memref<2x8x128xf32, #tpu.memory_space<vmem>>, vector<1x8x128xf32>
    %437 = vector.shape_cast %436 : vector<1x8x128xf32> to vector<8x128xf32>
    %438 = arith.truncf %427 : vector<8x128xf32> to vector<8x128xbf16>
    %c0_230 = arith.constant 0 : index
    %c0_231 = arith.constant 0 : index
    %439 = vector.load %arg6[%c0_230, %c0_231] : memref<128x512xbf16, #tpu.memory_space<vmem>>, vector<128x512xbf16>
    %cst_232 = arith.constant dense<0.000000e+00> : vector<8x512xf32>
    %440 = tpu.matmul %438, %439, %cst_232 {dimension_numbers = #tpu.dot_dimension_numbers<[1], [0], [0], [1], [0, 0, 1, 1], [], []>} : vector<8x128xbf16>, vector<128x512xbf16>, vector<8x512xf32> -> vector<8x512xf32>
    %441 = arith.truncf %435 : vector<8x128xf32> to vector<8x128xbf16>
    %c0_233 = arith.constant 0 : index
    %c0_234 = arith.constant 0 : index
    %442 = vector.load %arg7[%c0_233, %c0_234] : memref<128x512xbf16, #tpu.memory_space<vmem>>, vector<128x512xbf16>
    %cst_235 = arith.constant dense<0.000000e+00> : vector<8x512xf32>
    %443 = tpu.matmul %441, %442, %cst_235 {dimension_numbers = #tpu.dot_dimension_numbers<[1], [0], [0], [1], [0, 0, 1, 1], [], []>} : vector<8x128xbf16>, vector<128x512xbf16>, vector<8x512xf32> -> vector<8x512xf32>
    %444 = arith.addf %440, %443 : vector<8x512xf32>
    %c0_236 = arith.constant 0 : index
    %c0_237 = arith.constant 0 : index
    %445 = vector.load %arg8[%c0_236, %c0_237] : memref<8x512xf32, #tpu.memory_space<vmem>>, vector<8x512xf32>
    %446 = arith.addf %444, %445 : vector<8x512xf32>
    %447 = vector.extract_strided_slice %446 {offsets = [0, 0], sizes = [8, 128], strides = [1, 1]} : vector<8x512xf32> to vector<8x128xf32>
    %448 = arith.negf %447 : vector<8x128xf32>
    %449 = math.exp %448 : vector<8x128xf32>
    %cst_238 = arith.constant 1.000000e+00 : f32
    %450 = vector.broadcast %cst_238 : f32 to vector<8x128xf32>
    %451 = arith.addf %450, %449 : vector<8x128xf32>
    %452 = arith.divf %450, %451 : vector<8x128xf32>
    %453 = vector.extract_strided_slice %446 {offsets = [0, 128], sizes = [8, 128], strides = [1, 1]} : vector<8x512xf32> to vector<8x128xf32>
    %454 = arith.negf %453 : vector<8x128xf32>
    %455 = math.exp %454 : vector<8x128xf32>
    %cst_239 = arith.constant 1.000000e+00 : f32
    %456 = vector.broadcast %cst_239 : f32 to vector<8x128xf32>
    %457 = arith.addf %456, %455 : vector<8x128xf32>
    %458 = arith.divf %456, %457 : vector<8x128xf32>
    %459 = vector.extract_strided_slice %446 {offsets = [0, 256], sizes = [8, 128], strides = [1, 1]} : vector<8x512xf32> to vector<8x128xf32>
    %460 = math.tanh %459 : vector<8x128xf32>
    %461 = vector.extract_strided_slice %446 {offsets = [0, 384], sizes = [8, 128], strides = [1, 1]} : vector<8x512xf32> to vector<8x128xf32>
    %462 = arith.negf %461 : vector<8x128xf32>
    %463 = math.exp %462 : vector<8x128xf32>
    %cst_240 = arith.constant 1.000000e+00 : f32
    %464 = vector.broadcast %cst_240 : f32 to vector<8x128xf32>
    %465 = arith.addf %464, %463 : vector<8x128xf32>
    %466 = arith.divf %464, %465 : vector<8x128xf32>
    %467 = arith.mulf %458, %437 : vector<8x128xf32>
    %468 = arith.mulf %452, %460 : vector<8x128xf32>
    %469 = arith.addf %467, %468 : vector<8x128xf32>
    %470 = math.tanh %469 : vector<8x128xf32>
    %471 = arith.mulf %466, %470 : vector<8x128xf32>
    %c1_241 = arith.constant 1 : index
    %c0_242 = arith.constant 0 : index
    %c0_243 = arith.constant 0 : index
    %472 = vector.load %arg10[%c1_241, %c0_242, %c0_243] : memref<2x8x128xf32, #tpu.memory_space<vmem>>, vector<1x8x128xf32>
    %473 = vector.shape_cast %472 : vector<1x8x128xf32> to vector<8x128xf32>
    %474 = vector.shape_cast %471 : vector<8x128xf32> to vector<1x8x128xf32>
    tpu.vector_store %arg10[%c1_241, %c0_242, %c0_243], %474 {strides = array<i32>} : memref<2x8x128xf32, #tpu.memory_space<vmem>>, vector<1x8x128xf32>,
    %c1_244 = arith.constant 1 : index
    %c0_245 = arith.constant 0 : index
    %c0_246 = arith.constant 0 : index
    %475 = vector.load %arg11[%c1_244, %c0_245, %c0_246] : memref<2x8x128xf32, #tpu.memory_space<vmem>>, vector<1x8x128xf32>
    %476 = vector.shape_cast %475 : vector<1x8x128xf32> to vector<8x128xf32>
    %477 = vector.shape_cast %469 : vector<8x128xf32> to vector<1x8x128xf32>
    tpu.vector_store %arg11[%c1_244, %c0_245, %c0_246], %477 {strides = array<i32>} : memref<2x8x128xf32, #tpu.memory_space<vmem>>, vector<1x8x128xf32>,
    %478 = arith.truncf %471 : vector<8x128xf32> to vector<8x128xbf16>
    %479 = arith.index_cast %c4_i32 : i32 to index
    %c0_247 = arith.constant 0 : index
    %c0_248 = arith.constant 0 : index
    %480 = vector.load %arg9[%479, %c0_247, %c0_248] : memref<8x8x128xbf16, #tpu.memory_space<vmem>>, vector<1x8x128xbf16>
    %481 = vector.shape_cast %480 : vector<1x8x128xbf16> to vector<8x128xbf16>
    %482 = vector.shape_cast %478 : vector<8x128xbf16> to vector<1x8x128xbf16>
    tpu.vector_store %arg9[%479, %c0_247, %c0_248], %482 {strides = array<i32>} : memref<8x8x128xbf16, #tpu.memory_space<vmem>>, vector<1x8x128xbf16>,
    %c5_i32 = arith.constant 5 : i32
    %483 = arith.index_cast %c5_i32 : i32 to index
    %c0_249 = arith.constant 0 : index
    %c0_250 = arith.constant 0 : index
    %484 = vector.load %arg2[%483, %c0_249, %c0_250] : memref<8x8x128xf32, #tpu.memory_space<vmem>>, vector<1x8x128xf32>
    %485 = vector.shape_cast %484 : vector<1x8x128xf32> to vector<8x128xf32>
    %c0_251 = arith.constant 0 : index
    %c0_252 = arith.constant 0 : index
    %c0_253 = arith.constant 0 : index
    %486 = vector.load %arg10[%c0_251, %c0_252, %c0_253] : memref<2x8x128xf32, #tpu.memory_space<vmem>>, vector<1x8x128xf32>
    %487 = vector.shape_cast %486 : vector<1x8x128xf32> to vector<8x128xf32>
    %c0_254 = arith.constant 0 : index
    %c0_255 = arith.constant 0 : index
    %c0_256 = arith.constant 0 : index
    %488 = vector.load %arg11[%c0_254, %c0_255, %c0_256] : memref<2x8x128xf32, #tpu.memory_space<vmem>>, vector<1x8x128xf32>
    %489 = vector.shape_cast %488 : vector<1x8x128xf32> to vector<8x128xf32>
    %490 = arith.truncf %485 : vector<8x128xf32> to vector<8x128xbf16>
    %c0_257 = arith.constant 0 : index
    %c0_258 = arith.constant 0 : index
    %491 = vector.load %arg3[%c0_257, %c0_258] : memref<128x512xbf16, #tpu.memory_space<vmem>>, vector<128x512xbf16>
    %cst_259 = arith.constant dense<0.000000e+00> : vector<8x512xf32>
    %492 = tpu.matmul %490, %491, %cst_259 {dimension_numbers = #tpu.dot_dimension_numbers<[1], [0], [0], [1], [0, 0, 1, 1], [], []>} : vector<8x128xbf16>, vector<128x512xbf16>, vector<8x512xf32> -> vector<8x512xf32>
    %493 = arith.truncf %487 : vector<8x128xf32> to vector<8x128xbf16>
    %c0_260 = arith.constant 0 : index
    %c0_261 = arith.constant 0 : index
    %494 = vector.load %arg4[%c0_260, %c0_261] : memref<128x512xbf16, #tpu.memory_space<vmem>>, vector<128x512xbf16>
    %cst_262 = arith.constant dense<0.000000e+00> : vector<8x512xf32>
    %495 = tpu.matmul %493, %494, %cst_262 {dimension_numbers = #tpu.dot_dimension_numbers<[1], [0], [0], [1], [0, 0, 1, 1], [], []>} : vector<8x128xbf16>, vector<128x512xbf16>, vector<8x512xf32> -> vector<8x512xf32>
    %496 = arith.addf %492, %495 : vector<8x512xf32>
    %c0_263 = arith.constant 0 : index
    %c0_264 = arith.constant 0 : index
    %497 = vector.load %arg5[%c0_263, %c0_264] : memref<8x512xf32, #tpu.memory_space<vmem>>, vector<8x512xf32>
    %498 = arith.addf %496, %497 : vector<8x512xf32>
    %499 = vector.extract_strided_slice %498 {offsets = [0, 0], sizes = [8, 128], strides = [1, 1]} : vector<8x512xf32> to vector<8x128xf32>
    %500 = arith.negf %499 : vector<8x128xf32>
    %501 = math.exp %500 : vector<8x128xf32>
    %cst_265 = arith.constant 1.000000e+00 : f32
    %502 = vector.broadcast %cst_265 : f32 to vector<8x128xf32>
    %503 = arith.addf %502, %501 : vector<8x128xf32>
    %504 = arith.divf %502, %503 : vector<8x128xf32>
    %505 = vector.extract_strided_slice %498 {offsets = [0, 128], sizes = [8, 128], strides = [1, 1]} : vector<8x512xf32> to vector<8x128xf32>
    %506 = arith.negf %505 : vector<8x128xf32>
    %507 = math.exp %506 : vector<8x128xf32>
    %cst_266 = arith.constant 1.000000e+00 : f32
    %508 = vector.broadcast %cst_266 : f32 to vector<8x128xf32>
    %509 = arith.addf %508, %507 : vector<8x128xf32>
    %510 = arith.divf %508, %509 : vector<8x128xf32>
    %511 = vector.extract_strided_slice %498 {offsets = [0, 256], sizes = [8, 128], strides = [1, 1]} : vector<8x512xf32> to vector<8x128xf32>
    %512 = math.tanh %511 : vector<8x128xf32>
    %513 = vector.extract_strided_slice %498 {offsets = [0, 384], sizes = [8, 128], strides = [1, 1]} : vector<8x512xf32> to vector<8x128xf32>
    %514 = arith.negf %513 : vector<8x128xf32>
    %515 = math.exp %514 : vector<8x128xf32>
    %cst_267 = arith.constant 1.000000e+00 : f32
    %516 = vector.broadcast %cst_267 : f32 to vector<8x128xf32>
    %517 = arith.addf %516, %515 : vector<8x128xf32>
    %518 = arith.divf %516, %517 : vector<8x128xf32>
    %519 = arith.mulf %510, %489 : vector<8x128xf32>
    %520 = arith.mulf %504, %512 : vector<8x128xf32>
    %521 = arith.addf %519, %520 : vector<8x128xf32>
    %522 = math.tanh %521 : vector<8x128xf32>
    %523 = arith.mulf %518, %522 : vector<8x128xf32>
    %c0_268 = arith.constant 0 : index
    %c0_269 = arith.constant 0 : index
    %c0_270 = arith.constant 0 : index
    %524 = vector.load %arg10[%c0_268, %c0_269, %c0_270] : memref<2x8x128xf32, #tpu.memory_space<vmem>>, vector<1x8x128xf32>
    %525 = vector.shape_cast %524 : vector<1x8x128xf32> to vector<8x128xf32>
    %526 = vector.shape_cast %523 : vector<8x128xf32> to vector<1x8x128xf32>
    tpu.vector_store %arg10[%c0_268, %c0_269, %c0_270], %526 {strides = array<i32>} : memref<2x8x128xf32, #tpu.memory_space<vmem>>, vector<1x8x128xf32>,
    %c0_271 = arith.constant 0 : index
    %c0_272 = arith.constant 0 : index
    %c0_273 = arith.constant 0 : index
    %527 = vector.load %arg11[%c0_271, %c0_272, %c0_273] : memref<2x8x128xf32, #tpu.memory_space<vmem>>, vector<1x8x128xf32>
    %528 = vector.shape_cast %527 : vector<1x8x128xf32> to vector<8x128xf32>
    %529 = vector.shape_cast %521 : vector<8x128xf32> to vector<1x8x128xf32>
    tpu.vector_store %arg11[%c0_271, %c0_272, %c0_273], %529 {strides = array<i32>} : memref<2x8x128xf32, #tpu.memory_space<vmem>>, vector<1x8x128xf32>,
    %c1_274 = arith.constant 1 : index
    %c0_275 = arith.constant 0 : index
    %c0_276 = arith.constant 0 : index
    %530 = vector.load %arg10[%c1_274, %c0_275, %c0_276] : memref<2x8x128xf32, #tpu.memory_space<vmem>>, vector<1x8x128xf32>
    %531 = vector.shape_cast %530 : vector<1x8x128xf32> to vector<8x128xf32>
    %c1_277 = arith.constant 1 : index
    %c0_278 = arith.constant 0 : index
    %c0_279 = arith.constant 0 : index
    %532 = vector.load %arg11[%c1_277, %c0_278, %c0_279] : memref<2x8x128xf32, #tpu.memory_space<vmem>>, vector<1x8x128xf32>
    %533 = vector.shape_cast %532 : vector<1x8x128xf32> to vector<8x128xf32>
    %534 = arith.truncf %523 : vector<8x128xf32> to vector<8x128xbf16>
    %c0_280 = arith.constant 0 : index
    %c0_281 = arith.constant 0 : index
    %535 = vector.load %arg6[%c0_280, %c0_281] : memref<128x512xbf16, #tpu.memory_space<vmem>>, vector<128x512xbf16>
    %cst_282 = arith.constant dense<0.000000e+00> : vector<8x512xf32>
    %536 = tpu.matmul %534, %535, %cst_282 {dimension_numbers = #tpu.dot_dimension_numbers<[1], [0], [0], [1], [0, 0, 1, 1], [], []>} : vector<8x128xbf16>, vector<128x512xbf16>, vector<8x512xf32> -> vector<8x512xf32>
    %537 = arith.truncf %531 : vector<8x128xf32> to vector<8x128xbf16>
    %c0_283 = arith.constant 0 : index
    %c0_284 = arith.constant 0 : index
    %538 = vector.load %arg7[%c0_283, %c0_284] : memref<128x512xbf16, #tpu.memory_space<vmem>>, vector<128x512xbf16>
    %cst_285 = arith.constant dense<0.000000e+00> : vector<8x512xf32>
    %539 = tpu.matmul %537, %538, %cst_285 {dimension_numbers = #tpu.dot_dimension_numbers<[1], [0], [0], [1], [0, 0, 1, 1], [], []>} : vector<8x128xbf16>, vector<128x512xbf16>, vector<8x512xf32> -> vector<8x512xf32>
    %540 = arith.addf %536, %539 : vector<8x512xf32>
    %c0_286 = arith.constant 0 : index
    %c0_287 = arith.constant 0 : index
    %541 = vector.load %arg8[%c0_286, %c0_287] : memref<8x512xf32, #tpu.memory_space<vmem>>, vector<8x512xf32>
    %542 = arith.addf %540, %541 : vector<8x512xf32>
    %543 = vector.extract_strided_slice %542 {offsets = [0, 0], sizes = [8, 128], strides = [1, 1]} : vector<8x512xf32> to vector<8x128xf32>
    %544 = arith.negf %543 : vector<8x128xf32>
    %545 = math.exp %544 : vector<8x128xf32>
    %cst_288 = arith.constant 1.000000e+00 : f32
    %546 = vector.broadcast %cst_288 : f32 to vector<8x128xf32>
    %547 = arith.addf %546, %545 : vector<8x128xf32>
    %548 = arith.divf %546, %547 : vector<8x128xf32>
    %549 = vector.extract_strided_slice %542 {offsets = [0, 128], sizes = [8, 128], strides = [1, 1]} : vector<8x512xf32> to vector<8x128xf32>
    %550 = arith.negf %549 : vector<8x128xf32>
    %551 = math.exp %550 : vector<8x128xf32>
    %cst_289 = arith.constant 1.000000e+00 : f32
    %552 = vector.broadcast %cst_289 : f32 to vector<8x128xf32>
    %553 = arith.addf %552, %551 : vector<8x128xf32>
    %554 = arith.divf %552, %553 : vector<8x128xf32>
    %555 = vector.extract_strided_slice %542 {offsets = [0, 256], sizes = [8, 128], strides = [1, 1]} : vector<8x512xf32> to vector<8x128xf32>
    %556 = math.tanh %555 : vector<8x128xf32>
    %557 = vector.extract_strided_slice %542 {offsets = [0, 384], sizes = [8, 128], strides = [1, 1]} : vector<8x512xf32> to vector<8x128xf32>
    %558 = arith.negf %557 : vector<8x128xf32>
    %559 = math.exp %558 : vector<8x128xf32>
    %cst_290 = arith.constant 1.000000e+00 : f32
    %560 = vector.broadcast %cst_290 : f32 to vector<8x128xf32>
    %561 = arith.addf %560, %559 : vector<8x128xf32>
    %562 = arith.divf %560, %561 : vector<8x128xf32>
    %563 = arith.mulf %554, %533 : vector<8x128xf32>
    %564 = arith.mulf %548, %556 : vector<8x128xf32>
    %565 = arith.addf %563, %564 : vector<8x128xf32>
    %566 = math.tanh %565 : vector<8x128xf32>
    %567 = arith.mulf %562, %566 : vector<8x128xf32>
    %c1_291 = arith.constant 1 : index
    %c0_292 = arith.constant 0 : index
    %c0_293 = arith.constant 0 : index
    %568 = vector.load %arg10[%c1_291, %c0_292, %c0_293] : memref<2x8x128xf32, #tpu.memory_space<vmem>>, vector<1x8x128xf32>
    %569 = vector.shape_cast %568 : vector<1x8x128xf32> to vector<8x128xf32>
    %570 = vector.shape_cast %567 : vector<8x128xf32> to vector<1x8x128xf32>
    tpu.vector_store %arg10[%c1_291, %c0_292, %c0_293], %570 {strides = array<i32>} : memref<2x8x128xf32, #tpu.memory_space<vmem>>, vector<1x8x128xf32>,
    %c1_294 = arith.constant 1 : index
    %c0_295 = arith.constant 0 : index
    %c0_296 = arith.constant 0 : index
    %571 = vector.load %arg11[%c1_294, %c0_295, %c0_296] : memref<2x8x128xf32, #tpu.memory_space<vmem>>, vector<1x8x128xf32>
    %572 = vector.shape_cast %571 : vector<1x8x128xf32> to vector<8x128xf32>
    %573 = vector.shape_cast %565 : vector<8x128xf32> to vector<1x8x128xf32>
    tpu.vector_store %arg11[%c1_294, %c0_295, %c0_296], %573 {strides = array<i32>} : memref<2x8x128xf32, #tpu.memory_space<vmem>>, vector<1x8x128xf32>,
    %574 = arith.truncf %567 : vector<8x128xf32> to vector<8x128xbf16>
    %575 = arith.index_cast %c5_i32 : i32 to index
    %c0_297 = arith.constant 0 : index
    %c0_298 = arith.constant 0 : index
    %576 = vector.load %arg9[%575, %c0_297, %c0_298] : memref<8x8x128xbf16, #tpu.memory_space<vmem>>, vector<1x8x128xbf16>
    %577 = vector.shape_cast %576 : vector<1x8x128xbf16> to vector<8x128xbf16>
    %578 = vector.shape_cast %574 : vector<8x128xbf16> to vector<1x8x128xbf16>
    tpu.vector_store %arg9[%575, %c0_297, %c0_298], %578 {strides = array<i32>} : memref<8x8x128xbf16, #tpu.memory_space<vmem>>, vector<1x8x128xbf16>,
    %c6_i32 = arith.constant 6 : i32
    %579 = arith.index_cast %c6_i32 : i32 to index
    %c0_299 = arith.constant 0 : index
    %c0_300 = arith.constant 0 : index
    %580 = vector.load %arg2[%579, %c0_299, %c0_300] : memref<8x8x128xf32, #tpu.memory_space<vmem>>, vector<1x8x128xf32>
    %581 = vector.shape_cast %580 : vector<1x8x128xf32> to vector<8x128xf32>
    %c0_301 = arith.constant 0 : index
    %c0_302 = arith.constant 0 : index
    %c0_303 = arith.constant 0 : index
    %582 = vector.load %arg10[%c0_301, %c0_302, %c0_303] : memref<2x8x128xf32, #tpu.memory_space<vmem>>, vector<1x8x128xf32>
    %583 = vector.shape_cast %582 : vector<1x8x128xf32> to vector<8x128xf32>
    %c0_304 = arith.constant 0 : index
    %c0_305 = arith.constant 0 : index
    %c0_306 = arith.constant 0 : index
    %584 = vector.load %arg11[%c0_304, %c0_305, %c0_306] : memref<2x8x128xf32, #tpu.memory_space<vmem>>, vector<1x8x128xf32>
    %585 = vector.shape_cast %584 : vector<1x8x128xf32> to vector<8x128xf32>
    %586 = arith.truncf %581 : vector<8x128xf32> to vector<8x128xbf16>
    %c0_307 = arith.constant 0 : index
    %c0_308 = arith.constant 0 : index
    %587 = vector.load %arg3[%c0_307, %c0_308] : memref<128x512xbf16, #tpu.memory_space<vmem>>, vector<128x512xbf16>
    %cst_309 = arith.constant dense<0.000000e+00> : vector<8x512xf32>
    %588 = tpu.matmul %586, %587, %cst_309 {dimension_numbers = #tpu.dot_dimension_numbers<[1], [0], [0], [1], [0, 0, 1, 1], [], []>} : vector<8x128xbf16>, vector<128x512xbf16>, vector<8x512xf32> -> vector<8x512xf32>
    %589 = arith.truncf %583 : vector<8x128xf32> to vector<8x128xbf16>
    %c0_310 = arith.constant 0 : index
    %c0_311 = arith.constant 0 : index
    %590 = vector.load %arg4[%c0_310, %c0_311] : memref<128x512xbf16, #tpu.memory_space<vmem>>, vector<128x512xbf16>
    %cst_312 = arith.constant dense<0.000000e+00> : vector<8x512xf32>
    %591 = tpu.matmul %589, %590, %cst_312 {dimension_numbers = #tpu.dot_dimension_numbers<[1], [0], [0], [1], [0, 0, 1, 1], [], []>} : vector<8x128xbf16>, vector<128x512xbf16>, vector<8x512xf32> -> vector<8x512xf32>
    %592 = arith.addf %588, %591 : vector<8x512xf32>
    %c0_313 = arith.constant 0 : index
    %c0_314 = arith.constant 0 : index
    %593 = vector.load %arg5[%c0_313, %c0_314] : memref<8x512xf32, #tpu.memory_space<vmem>>, vector<8x512xf32>
    %594 = arith.addf %592, %593 : vector<8x512xf32>
    %595 = vector.extract_strided_slice %594 {offsets = [0, 0], sizes = [8, 128], strides = [1, 1]} : vector<8x512xf32> to vector<8x128xf32>
    %596 = arith.negf %595 : vector<8x128xf32>
    %597 = math.exp %596 : vector<8x128xf32>
    %cst_315 = arith.constant 1.000000e+00 : f32
    %598 = vector.broadcast %cst_315 : f32 to vector<8x128xf32>
    %599 = arith.addf %598, %597 : vector<8x128xf32>
    %600 = arith.divf %598, %599 : vector<8x128xf32>
    %601 = vector.extract_strided_slice %594 {offsets = [0, 128], sizes = [8, 128], strides = [1, 1]} : vector<8x512xf32> to vector<8x128xf32>
    %602 = arith.negf %601 : vector<8x128xf32>
    %603 = math.exp %602 : vector<8x128xf32>
    %cst_316 = arith.constant 1.000000e+00 : f32
    %604 = vector.broadcast %cst_316 : f32 to vector<8x128xf32>
    %605 = arith.addf %604, %603 : vector<8x128xf32>
    %606 = arith.divf %604, %605 : vector<8x128xf32>
    %607 = vector.extract_strided_slice %594 {offsets = [0, 256], sizes = [8, 128], strides = [1, 1]} : vector<8x512xf32> to vector<8x128xf32>
    %608 = math.tanh %607 : vector<8x128xf32>
    %609 = vector.extract_strided_slice %594 {offsets = [0, 384], sizes = [8, 128], strides = [1, 1]} : vector<8x512xf32> to vector<8x128xf32>
    %610 = arith.negf %609 : vector<8x128xf32>
    %611 = math.exp %610 : vector<8x128xf32>
    %cst_317 = arith.constant 1.000000e+00 : f32
    %612 = vector.broadcast %cst_317 : f32 to vector<8x128xf32>
    %613 = arith.addf %612, %611 : vector<8x128xf32>
    %614 = arith.divf %612, %613 : vector<8x128xf32>
    %615 = arith.mulf %606, %585 : vector<8x128xf32>
    %616 = arith.mulf %600, %608 : vector<8x128xf32>
    %617 = arith.addf %615, %616 : vector<8x128xf32>
    %618 = math.tanh %617 : vector<8x128xf32>
    %619 = arith.mulf %614, %618 : vector<8x128xf32>
    %c0_318 = arith.constant 0 : index
    %c0_319 = arith.constant 0 : index
    %c0_320 = arith.constant 0 : index
    %620 = vector.load %arg10[%c0_318, %c0_319, %c0_320] : memref<2x8x128xf32, #tpu.memory_space<vmem>>, vector<1x8x128xf32>
    %621 = vector.shape_cast %620 : vector<1x8x128xf32> to vector<8x128xf32>
    %622 = vector.shape_cast %619 : vector<8x128xf32> to vector<1x8x128xf32>
    tpu.vector_store %arg10[%c0_318, %c0_319, %c0_320], %622 {strides = array<i32>} : memref<2x8x128xf32, #tpu.memory_space<vmem>>, vector<1x8x128xf32>,
    %c0_321 = arith.constant 0 : index
    %c0_322 = arith.constant 0 : index
    %c0_323 = arith.constant 0 : index
    %623 = vector.load %arg11[%c0_321, %c0_322, %c0_323] : memref<2x8x128xf32, #tpu.memory_space<vmem>>, vector<1x8x128xf32>
    %624 = vector.shape_cast %623 : vector<1x8x128xf32> to vector<8x128xf32>
    %625 = vector.shape_cast %617 : vector<8x128xf32> to vector<1x8x128xf32>
    tpu.vector_store %arg11[%c0_321, %c0_322, %c0_323], %625 {strides = array<i32>} : memref<2x8x128xf32, #tpu.memory_space<vmem>>, vector<1x8x128xf32>,
    %c1_324 = arith.constant 1 : index
    %c0_325 = arith.constant 0 : index
    %c0_326 = arith.constant 0 : index
    %626 = vector.load %arg10[%c1_324, %c0_325, %c0_326] : memref<2x8x128xf32, #tpu.memory_space<vmem>>, vector<1x8x128xf32>
    %627 = vector.shape_cast %626 : vector<1x8x128xf32> to vector<8x128xf32>
    %c1_327 = arith.constant 1 : index
    %c0_328 = arith.constant 0 : index
    %c0_329 = arith.constant 0 : index
    %628 = vector.load %arg11[%c1_327, %c0_328, %c0_329] : memref<2x8x128xf32, #tpu.memory_space<vmem>>, vector<1x8x128xf32>
    %629 = vector.shape_cast %628 : vector<1x8x128xf32> to vector<8x128xf32>
    %630 = arith.truncf %619 : vector<8x128xf32> to vector<8x128xbf16>
    %c0_330 = arith.constant 0 : index
    %c0_331 = arith.constant 0 : index
    %631 = vector.load %arg6[%c0_330, %c0_331] : memref<128x512xbf16, #tpu.memory_space<vmem>>, vector<128x512xbf16>
    %cst_332 = arith.constant dense<0.000000e+00> : vector<8x512xf32>
    %632 = tpu.matmul %630, %631, %cst_332 {dimension_numbers = #tpu.dot_dimension_numbers<[1], [0], [0], [1], [0, 0, 1, 1], [], []>} : vector<8x128xbf16>, vector<128x512xbf16>, vector<8x512xf32> -> vector<8x512xf32>
    %633 = arith.truncf %627 : vector<8x128xf32> to vector<8x128xbf16>
    %c0_333 = arith.constant 0 : index
    %c0_334 = arith.constant 0 : index
    %634 = vector.load %arg7[%c0_333, %c0_334] : memref<128x512xbf16, #tpu.memory_space<vmem>>, vector<128x512xbf16>
    %cst_335 = arith.constant dense<0.000000e+00> : vector<8x512xf32>
    %635 = tpu.matmul %633, %634, %cst_335 {dimension_numbers = #tpu.dot_dimension_numbers<[1], [0], [0], [1], [0, 0, 1, 1], [], []>} : vector<8x128xbf16>, vector<128x512xbf16>, vector<8x512xf32> -> vector<8x512xf32>
    %636 = arith.addf %632, %635 : vector<8x512xf32>
    %c0_336 = arith.constant 0 : index
    %c0_337 = arith.constant 0 : index
    %637 = vector.load %arg8[%c0_336, %c0_337] : memref<8x512xf32, #tpu.memory_space<vmem>>, vector<8x512xf32>
    %638 = arith.addf %636, %637 : vector<8x512xf32>
    %639 = vector.extract_strided_slice %638 {offsets = [0, 0], sizes = [8, 128], strides = [1, 1]} : vector<8x512xf32> to vector<8x128xf32>
    %640 = arith.negf %639 : vector<8x128xf32>
    %641 = math.exp %640 : vector<8x128xf32>
    %cst_338 = arith.constant 1.000000e+00 : f32
    %642 = vector.broadcast %cst_338 : f32 to vector<8x128xf32>
    %643 = arith.addf %642, %641 : vector<8x128xf32>
    %644 = arith.divf %642, %643 : vector<8x128xf32>
    %645 = vector.extract_strided_slice %638 {offsets = [0, 128], sizes = [8, 128], strides = [1, 1]} : vector<8x512xf32> to vector<8x128xf32>
    %646 = arith.negf %645 : vector<8x128xf32>
    %647 = math.exp %646 : vector<8x128xf32>
    %cst_339 = arith.constant 1.000000e+00 : f32
    %648 = vector.broadcast %cst_339 : f32 to vector<8x128xf32>
    %649 = arith.addf %648, %647 : vector<8x128xf32>
    %650 = arith.divf %648, %649 : vector<8x128xf32>
    %651 = vector.extract_strided_slice %638 {offsets = [0, 256], sizes = [8, 128], strides = [1, 1]} : vector<8x512xf32> to vector<8x128xf32>
    %652 = math.tanh %651 : vector<8x128xf32>
    %653 = vector.extract_strided_slice %638 {offsets = [0, 384], sizes = [8, 128], strides = [1, 1]} : vector<8x512xf32> to vector<8x128xf32>
    %654 = arith.negf %653 : vector<8x128xf32>
    %655 = math.exp %654 : vector<8x128xf32>
    %cst_340 = arith.constant 1.000000e+00 : f32
    %656 = vector.broadcast %cst_340 : f32 to vector<8x128xf32>
    %657 = arith.addf %656, %655 : vector<8x128xf32>
    %658 = arith.divf %656, %657 : vector<8x128xf32>
    %659 = arith.mulf %650, %629 : vector<8x128xf32>
    %660 = arith.mulf %644, %652 : vector<8x128xf32>
    %661 = arith.addf %659, %660 : vector<8x128xf32>
    %662 = math.tanh %661 : vector<8x128xf32>
    %663 = arith.mulf %658, %662 : vector<8x128xf32>
    %c1_341 = arith.constant 1 : index
    %c0_342 = arith.constant 0 : index
    %c0_343 = arith.constant 0 : index
    %664 = vector.load %arg10[%c1_341, %c0_342, %c0_343] : memref<2x8x128xf32, #tpu.memory_space<vmem>>, vector<1x8x128xf32>
    %665 = vector.shape_cast %664 : vector<1x8x128xf32> to vector<8x128xf32>
    %666 = vector.shape_cast %663 : vector<8x128xf32> to vector<1x8x128xf32>
    tpu.vector_store %arg10[%c1_341, %c0_342, %c0_343], %666 {strides = array<i32>} : memref<2x8x128xf32, #tpu.memory_space<vmem>>, vector<1x8x128xf32>,
    %c1_344 = arith.constant 1 : index
    %c0_345 = arith.constant 0 : index
    %c0_346 = arith.constant 0 : index
    %667 = vector.load %arg11[%c1_344, %c0_345, %c0_346] : memref<2x8x128xf32, #tpu.memory_space<vmem>>, vector<1x8x128xf32>
    %668 = vector.shape_cast %667 : vector<1x8x128xf32> to vector<8x128xf32>
    %669 = vector.shape_cast %661 : vector<8x128xf32> to vector<1x8x128xf32>
    tpu.vector_store %arg11[%c1_344, %c0_345, %c0_346], %669 {strides = array<i32>} : memref<2x8x128xf32, #tpu.memory_space<vmem>>, vector<1x8x128xf32>,
    %670 = arith.truncf %663 : vector<8x128xf32> to vector<8x128xbf16>
    %671 = arith.index_cast %c6_i32 : i32 to index
    %c0_347 = arith.constant 0 : index
    %c0_348 = arith.constant 0 : index
    %672 = vector.load %arg9[%671, %c0_347, %c0_348] : memref<8x8x128xbf16, #tpu.memory_space<vmem>>, vector<1x8x128xbf16>
    %673 = vector.shape_cast %672 : vector<1x8x128xbf16> to vector<8x128xbf16>
    %674 = vector.shape_cast %670 : vector<8x128xbf16> to vector<1x8x128xbf16>
    tpu.vector_store %arg9[%671, %c0_347, %c0_348], %674 {strides = array<i32>} : memref<8x8x128xbf16, #tpu.memory_space<vmem>>, vector<1x8x128xbf16>,
    %c7_i32 = arith.constant 7 : i32
    %675 = arith.index_cast %c7_i32 : i32 to index
    %c0_349 = arith.constant 0 : index
    %c0_350 = arith.constant 0 : index
    %676 = vector.load %arg2[%675, %c0_349, %c0_350] : memref<8x8x128xf32, #tpu.memory_space<vmem>>, vector<1x8x128xf32>
    %677 = vector.shape_cast %676 : vector<1x8x128xf32> to vector<8x128xf32>
    %c0_351 = arith.constant 0 : index
    %c0_352 = arith.constant 0 : index
    %c0_353 = arith.constant 0 : index
    %678 = vector.load %arg10[%c0_351, %c0_352, %c0_353] : memref<2x8x128xf32, #tpu.memory_space<vmem>>, vector<1x8x128xf32>
    %679 = vector.shape_cast %678 : vector<1x8x128xf32> to vector<8x128xf32>
    %c0_354 = arith.constant 0 : index
    %c0_355 = arith.constant 0 : index
    %c0_356 = arith.constant 0 : index
    %680 = vector.load %arg11[%c0_354, %c0_355, %c0_356] : memref<2x8x128xf32, #tpu.memory_space<vmem>>, vector<1x8x128xf32>
    %681 = vector.shape_cast %680 : vector<1x8x128xf32> to vector<8x128xf32>
    %682 = arith.truncf %677 : vector<8x128xf32> to vector<8x128xbf16>
    %c0_357 = arith.constant 0 : index
    %c0_358 = arith.constant 0 : index
    %683 = vector.load %arg3[%c0_357, %c0_358] : memref<128x512xbf16, #tpu.memory_space<vmem>>, vector<128x512xbf16>
    %cst_359 = arith.constant dense<0.000000e+00> : vector<8x512xf32>
    %684 = tpu.matmul %682, %683, %cst_359 {dimension_numbers = #tpu.dot_dimension_numbers<[1], [0], [0], [1], [0, 0, 1, 1], [], []>} : vector<8x128xbf16>, vector<128x512xbf16>, vector<8x512xf32> -> vector<8x512xf32>
    %685 = arith.truncf %679 : vector<8x128xf32> to vector<8x128xbf16>
    %c0_360 = arith.constant 0 : index
    %c0_361 = arith.constant 0 : index
    %686 = vector.load %arg4[%c0_360, %c0_361] : memref<128x512xbf16, #tpu.memory_space<vmem>>, vector<128x512xbf16>
    %cst_362 = arith.constant dense<0.000000e+00> : vector<8x512xf32>
    %687 = tpu.matmul %685, %686, %cst_362 {dimension_numbers = #tpu.dot_dimension_numbers<[1], [0], [0], [1], [0, 0, 1, 1], [], []>} : vector<8x128xbf16>, vector<128x512xbf16>, vector<8x512xf32> -> vector<8x512xf32>
    %688 = arith.addf %684, %687 : vector<8x512xf32>
    %c0_363 = arith.constant 0 : index
    %c0_364 = arith.constant 0 : index
    %689 = vector.load %arg5[%c0_363, %c0_364] : memref<8x512xf32, #tpu.memory_space<vmem>>, vector<8x512xf32>
    %690 = arith.addf %688, %689 : vector<8x512xf32>
    %691 = vector.extract_strided_slice %690 {offsets = [0, 0], sizes = [8, 128], strides = [1, 1]} : vector<8x512xf32> to vector<8x128xf32>
    %692 = arith.negf %691 : vector<8x128xf32>
    %693 = math.exp %692 : vector<8x128xf32>
    %cst_365 = arith.constant 1.000000e+00 : f32
    %694 = vector.broadcast %cst_365 : f32 to vector<8x128xf32>
    %695 = arith.addf %694, %693 : vector<8x128xf32>
    %696 = arith.divf %694, %695 : vector<8x128xf32>
    %697 = vector.extract_strided_slice %690 {offsets = [0, 128], sizes = [8, 128], strides = [1, 1]} : vector<8x512xf32> to vector<8x128xf32>
    %698 = arith.negf %697 : vector<8x128xf32>
    %699 = math.exp %698 : vector<8x128xf32>
    %cst_366 = arith.constant 1.000000e+00 : f32
    %700 = vector.broadcast %cst_366 : f32 to vector<8x128xf32>
    %701 = arith.addf %700, %699 : vector<8x128xf32>
    %702 = arith.divf %700, %701 : vector<8x128xf32>
    %703 = vector.extract_strided_slice %690 {offsets = [0, 256], sizes = [8, 128], strides = [1, 1]} : vector<8x512xf32> to vector<8x128xf32>
    %704 = math.tanh %703 : vector<8x128xf32>
    %705 = vector.extract_strided_slice %690 {offsets = [0, 384], sizes = [8, 128], strides = [1, 1]} : vector<8x512xf32> to vector<8x128xf32>
    %706 = arith.negf %705 : vector<8x128xf32>
    %707 = math.exp %706 : vector<8x128xf32>
    %cst_367 = arith.constant 1.000000e+00 : f32
    %708 = vector.broadcast %cst_367 : f32 to vector<8x128xf32>
    %709 = arith.addf %708, %707 : vector<8x128xf32>
    %710 = arith.divf %708, %709 : vector<8x128xf32>
    %711 = arith.mulf %702, %681 : vector<8x128xf32>
    %712 = arith.mulf %696, %704 : vector<8x128xf32>
    %713 = arith.addf %711, %712 : vector<8x128xf32>
    %714 = math.tanh %713 : vector<8x128xf32>
    %715 = arith.mulf %710, %714 : vector<8x128xf32>
    %c0_368 = arith.constant 0 : index
    %c0_369 = arith.constant 0 : index
    %c0_370 = arith.constant 0 : index
    %716 = vector.load %arg10[%c0_368, %c0_369, %c0_370] : memref<2x8x128xf32, #tpu.memory_space<vmem>>, vector<1x8x128xf32>
    %717 = vector.shape_cast %716 : vector<1x8x128xf32> to vector<8x128xf32>
    %718 = vector.shape_cast %715 : vector<8x128xf32> to vector<1x8x128xf32>
    tpu.vector_store %arg10[%c0_368, %c0_369, %c0_370], %718 {strides = array<i32>} : memref<2x8x128xf32, #tpu.memory_space<vmem>>, vector<1x8x128xf32>,
    %c0_371 = arith.constant 0 : index
    %c0_372 = arith.constant 0 : index
    %c0_373 = arith.constant 0 : index
    %719 = vector.load %arg11[%c0_371, %c0_372, %c0_373] : memref<2x8x128xf32, #tpu.memory_space<vmem>>, vector<1x8x128xf32>
    %720 = vector.shape_cast %719 : vector<1x8x128xf32> to vector<8x128xf32>
    %721 = vector.shape_cast %713 : vector<8x128xf32> to vector<1x8x128xf32>
    tpu.vector_store %arg11[%c0_371, %c0_372, %c0_373], %721 {strides = array<i32>} : memref<2x8x128xf32, #tpu.memory_space<vmem>>, vector<1x8x128xf32>,
    %c1_374 = arith.constant 1 : index
    %c0_375 = arith.constant 0 : index
    %c0_376 = arith.constant 0 : index
    %722 = vector.load %arg10[%c1_374, %c0_375, %c0_376] : memref<2x8x128xf32, #tpu.memory_space<vmem>>, vector<1x8x128xf32>
    %723 = vector.shape_cast %722 : vector<1x8x128xf32> to vector<8x128xf32>
    %c1_377 = arith.constant 1 : index
    %c0_378 = arith.constant 0 : index
    %c0_379 = arith.constant 0 : index
    %724 = vector.load %arg11[%c1_377, %c0_378, %c0_379] : memref<2x8x128xf32, #tpu.memory_space<vmem>>, vector<1x8x128xf32>
    %725 = vector.shape_cast %724 : vector<1x8x128xf32> to vector<8x128xf32>
    %726 = arith.truncf %715 : vector<8x128xf32> to vector<8x128xbf16>
    %c0_380 = arith.constant 0 : index
    %c0_381 = arith.constant 0 : index
    %727 = vector.load %arg6[%c0_380, %c0_381] : memref<128x512xbf16, #tpu.memory_space<vmem>>, vector<128x512xbf16>
    %cst_382 = arith.constant dense<0.000000e+00> : vector<8x512xf32>
    %728 = tpu.matmul %726, %727, %cst_382 {dimension_numbers = #tpu.dot_dimension_numbers<[1], [0], [0], [1], [0, 0, 1, 1], [], []>} : vector<8x128xbf16>, vector<128x512xbf16>, vector<8x512xf32> -> vector<8x512xf32>
    %729 = arith.truncf %723 : vector<8x128xf32> to vector<8x128xbf16>
    %c0_383 = arith.constant 0 : index
    %c0_384 = arith.constant 0 : index
    %730 = vector.load %arg7[%c0_383, %c0_384] : memref<128x512xbf16, #tpu.memory_space<vmem>>, vector<128x512xbf16>
    %cst_385 = arith.constant dense<0.000000e+00> : vector<8x512xf32>
    %731 = tpu.matmul %729, %730, %cst_385 {dimension_numbers = #tpu.dot_dimension_numbers<[1], [0], [0], [1], [0, 0, 1, 1], [], []>} : vector<8x128xbf16>, vector<128x512xbf16>, vector<8x512xf32> -> vector<8x512xf32>
    %732 = arith.addf %728, %731 : vector<8x512xf32>
    %c0_386 = arith.constant 0 : index
    %c0_387 = arith.constant 0 : index
    %733 = vector.load %arg8[%c0_386, %c0_387] : memref<8x512xf32, #tpu.memory_space<vmem>>, vector<8x512xf32>
    %734 = arith.addf %732, %733 : vector<8x512xf32>
    %735 = vector.extract_strided_slice %734 {offsets = [0, 0], sizes = [8, 128], strides = [1, 1]} : vector<8x512xf32> to vector<8x128xf32>
    %736 = arith.negf %735 : vector<8x128xf32>
    %737 = math.exp %736 : vector<8x128xf32>
    %cst_388 = arith.constant 1.000000e+00 : f32
    %738 = vector.broadcast %cst_388 : f32 to vector<8x128xf32>
    %739 = arith.addf %738, %737 : vector<8x128xf32>
    %740 = arith.divf %738, %739 : vector<8x128xf32>
    %741 = vector.extract_strided_slice %734 {offsets = [0, 128], sizes = [8, 128], strides = [1, 1]} : vector<8x512xf32> to vector<8x128xf32>
    %742 = arith.negf %741 : vector<8x128xf32>
    %743 = math.exp %742 : vector<8x128xf32>
    %cst_389 = arith.constant 1.000000e+00 : f32
    %744 = vector.broadcast %cst_389 : f32 to vector<8x128xf32>
    %745 = arith.addf %744, %743 : vector<8x128xf32>
    %746 = arith.divf %744, %745 : vector<8x128xf32>
    %747 = vector.extract_strided_slice %734 {offsets = [0, 256], sizes = [8, 128], strides = [1, 1]} : vector<8x512xf32> to vector<8x128xf32>
    %748 = math.tanh %747 : vector<8x128xf32>
    %749 = vector.extract_strided_slice %734 {offsets = [0, 384], sizes = [8, 128], strides = [1, 1]} : vector<8x512xf32> to vector<8x128xf32>
    %750 = arith.negf %749 : vector<8x128xf32>
    %751 = math.exp %750 : vector<8x128xf32>
    %cst_390 = arith.constant 1.000000e+00 : f32
    %752 = vector.broadcast %cst_390 : f32 to vector<8x128xf32>
    %753 = arith.addf %752, %751 : vector<8x128xf32>
    %754 = arith.divf %752, %753 : vector<8x128xf32>
    %755 = arith.mulf %746, %725 : vector<8x128xf32>
    %756 = arith.mulf %740, %748 : vector<8x128xf32>
    %757 = arith.addf %755, %756 : vector<8x128xf32>
    %758 = math.tanh %757 : vector<8x128xf32>
    %759 = arith.mulf %754, %758 : vector<8x128xf32>
    %c1_391 = arith.constant 1 : index
    %c0_392 = arith.constant 0 : index
    %c0_393 = arith.constant 0 : index
    %760 = vector.load %arg10[%c1_391, %c0_392, %c0_393] : memref<2x8x128xf32, #tpu.memory_space<vmem>>, vector<1x8x128xf32>
    %761 = vector.shape_cast %760 : vector<1x8x128xf32> to vector<8x128xf32>
    %762 = vector.shape_cast %759 : vector<8x128xf32> to vector<1x8x128xf32>
    tpu.vector_store %arg10[%c1_391, %c0_392, %c0_393], %762 {strides = array<i32>} : memref<2x8x128xf32, #tpu.memory_space<vmem>>, vector<1x8x128xf32>,
    %c1_394 = arith.constant 1 : index
    %c0_395 = arith.constant 0 : index
    %c0_396 = arith.constant 0 : index
    %763 = vector.load %arg11[%c1_394, %c0_395, %c0_396] : memref<2x8x128xf32, #tpu.memory_space<vmem>>, vector<1x8x128xf32>
    %764 = vector.shape_cast %763 : vector<1x8x128xf32> to vector<8x128xf32>
    %765 = vector.shape_cast %757 : vector<8x128xf32> to vector<1x8x128xf32>
    tpu.vector_store %arg11[%c1_394, %c0_395, %c0_396], %765 {strides = array<i32>} : memref<2x8x128xf32, #tpu.memory_space<vmem>>, vector<1x8x128xf32>,
    %766 = arith.truncf %759 : vector<8x128xf32> to vector<8x128xbf16>
    %767 = arith.index_cast %c7_i32 : i32 to index
    %c0_397 = arith.constant 0 : index
    %c0_398 = arith.constant 0 : index
    %768 = vector.load %arg9[%767, %c0_397, %c0_398] : memref<8x8x128xbf16, #tpu.memory_space<vmem>>, vector<1x8x128xbf16>
    %769 = vector.shape_cast %768 : vector<1x8x128xbf16> to vector<8x128xbf16>
    %770 = vector.shape_cast %766 : vector<8x128xbf16> to vector<1x8x128xbf16>
    tpu.vector_store %arg9[%767, %c0_397, %c0_398], %770 {strides = array<i32>} : memref<8x8x128xbf16, #tpu.memory_space<vmem>>, vector<1x8x128xbf16>,
    %c8_i32 = arith.constant 8 : i32
    return
  }
  func.func @transform_0(%arg0: i32, %arg1: i32) -> (i32, i32, i32) {
    %c0_i32 = arith.constant 0 : i32
    %c0_i32_0 = arith.constant 0 : i32
    return %arg1, %arg0, %c0_i32 : i32, i32, i32
  }
  func.func @transform_1(%arg0: i32, %arg1: i32) -> (i32, i32) {
    %c0_i32 = arith.constant 0 : i32
    %c0_i32_0 = arith.constant 0 : i32
    %c0_i32_1 = arith.constant 0 : i32
    return %c0_i32, %c0_i32_0 : i32, i32
  }
  func.func @transform_2(%arg0: i32, %arg1: i32) -> (i32, i32) {
    %c0_i32 = arith.constant 0 : i32
    %c0_i32_0 = arith.constant 0 : i32
    %c0_i32_1 = arith.constant 0 : i32
    return %c0_i32, %c0_i32_0 : i32, i32
  }
  func.func @transform_3(%arg0: i32, %arg1: i32) -> (i32, i32) {
    %c0_i32 = arith.constant 0 : i32
    %c0_i32_0 = arith.constant 0 : i32
    %c0_i32_1 = arith.constant 0 : i32
    return %c0_i32, %c0_i32_0 : i32, i32
  }
  func.func @transform_4(%arg0: i32, %arg1: i32) -> (i32, i32) {
    %c0_i32 = arith.constant 0 : i32
    %c0_i32_0 = arith.constant 0 : i32
    %c0_i32_1 = arith.constant 0 : i32
    return %c0_i32, %c0_i32_0 : i32, i32
  }
  func.func @transform_5(%arg0: i32, %arg1: i32) -> (i32, i32) {
    %c0_i32 = arith.constant 0 : i32
    %c0_i32_0 = arith.constant 0 : i32
    %c0_i32_1 = arith.constant 0 : i32
    return %c0_i32, %c0_i32_0 : i32, i32
  }
  func.func @transform_6(%arg0: i32, %arg1: i32) -> (i32, i32) {
    %c0_i32 = arith.constant 0 : i32
    %c0_i32_0 = arith.constant 0 : i32
    %c0_i32_1 = arith.constant 0 : i32
    return %c0_i32, %c0_i32_0 : i32, i32
  }
  func.func @transform_7(%arg0: i32, %arg1: i32) -> (i32, i32, i32) {
    %c0_i32 = arith.constant 0 : i32
    %c0_i32_0 = arith.constant 0 : i32
    return %arg1, %arg0, %c0_i32 : i32, i32, i32
  }
}

</mosaic_0001>

<llo_original>
// kernel: tpu_custom_call.1
$region0: #{tpu_custom_call.1}
  #allocation0 [shape = 'u32[]', space=smem, size = 0x4, offset = 0x4, fixed_abs, tag = 'smem constant byte address 0x4 - core index']
  #allocation1 [shape = 'u32[144,128]{1,0:T(1,128)}', space=vmem, size = 0x12000, scoped, tag = 'internal scratch']
  #allocation2 [shape = 'f32[2,8,128]{2,1,0:T(8,128)}', space=vmem, size = 0x2000, scoped, tag = 'scratch operand']
  #allocation3 [shape = 'f32[2,8,128]{2,1,0:T(8,128)}', space=vmem, size = 0x2000, scoped, tag = 'scratch operand']
  %s0 = inlined_call_operand.hbm [shape: f32[8,8,128], index: 0, kind: input, shape index: {}]
  %s1 = inlined_call_operand.hbm [shape: bf16[128,512], index: 1, kind: input, shape index: {}]
  %s2 = inlined_call_operand.hbm [shape: bf16[128,512], index: 2, kind: input, shape index: {}]
  %s3 = inlined_call_operand.hbm [shape: f32[8,512], index: 3, kind: input, shape index: {}]
  %s4 = inlined_call_operand.hbm [shape: bf16[128,512], index: 4, kind: input, shape index: {}]
  %s5 = inlined_call_operand.hbm [shape: bf16[128,512], index: 5, kind: input, shape index: {}]
  %s6 = inlined_call_operand.hbm [shape: f32[8,512], index: 6, kind: input, shape index: {}]
  %s7 = inlined_call_operand.hbm [shape: bf16[8,8,128], index: 7, kind: output, shape index: {}]
  %s8 = sld [smem:[#allocation0]]
  $region70: #{tpu_custom_call.1} parent=0
    _
  %s10 = ssub.s32 1, %s8
  %s11 = scalar_select 0, %s10, %s8
  $region1: #{tpu_custom_call.1} parent=0
    #allocation4 [shape = 'u8[32768]{0}', space=vmem, size = 0x8000, scoped, tag = 'input window, operand 0, single buffered']
    #allocation5 [shape = 's32[1]{0}', space=sflag, size = 0x4, scoped, tag = 'scoped memory for tpu_custom_call.1']
    #allocation6 [shape = 's32[1]{0}', space=sflag, size = 0x4, scoped, tag = 'scoped memory for tpu_custom_call.1']
    #allocation7 [shape = 'u8[131072]{0}', space=vmem, size = 0x20000, scoped, tag = 'input window, operand 1, single buffered']
    #allocation8 [shape = 's32[1]{0}', space=sflag, size = 0x4, scoped, tag = 'scoped memory for tpu_custom_call.1']
    #allocation9 [shape = 'u8[131072]{0}', space=vmem, size = 0x20000, scoped, tag = 'input window, operand 2, single buffered']
    #allocation10 [shape = 'u8[16384]{0}', space=vmem, size = 0x4000, scoped, tag = 'input window, operand 3, single buffered']
    #allocation11 [shape = 's32[1]{0}', space=sflag, size = 0x4, scoped, tag = 'scoped memory for tpu_custom_call.1']
    #allocation12 [shape = 'u8[131072]{0}', space=vmem, size = 0x20000, scoped, tag = 'input window, operand 4, single buffered']
    #allocation13 [shape = 'u8[131072]{0}', space=vmem, size = 0x20000, scoped, tag = 'input window, operand 5, single buffered']
    #allocation14 [shape = 's32[1]{0}', space=sflag, size = 0x4, scoped, tag = 'scoped memory for tpu_custom_call.1']
    #allocation15 [shape = 'u8[16384]{0}', space=vmem, size = 0x4000, scoped, tag = 'input window, operand 6, single buffered']
    #allocation16 [shape = 'u8[16384]{0}', space=vmem, size = 0x4000, scoped, tag = 'output window, operand 0, single buffered']
    %12 = vsyncpa [#allocation5], 0
    %13 = vsyncpa [#allocation8], 0
    %14 = vsyncpa [#allocation11], 0
    %15 = vsyncpa [#allocation14], 0
    %16 = vsyncpa [#allocation6], 0
    // Predicated region
    $region2: #{tpu_custom_call.1} parent=1 // pred_check
      _
    $region3: #{tpu_custom_call.1} parent=1 // pred_check_branch
      %18 = sbr.rel (0) target = $region5
    $region4: #{tpu_custom_call.1} parent=1 // pred_region
      %s20 = ssub.s32 1024, 1024
      %21 = vsyncadd [#allocation5], %s20
      %s22 = sshll.u32 [#allocation4], 4
      %s23 = int_to_ptr.vmem [resolvable:$true] %s22
      %28 = dma.hbm_to_vmem [thread:$0]  %s0, 1024, %s23, [#allocation5], 128, 128, 8
    $region5: #{tpu_custom_call.1} parent=1 // pred_fallthru
      _
    // Predicated region
    $region6: #{tpu_custom_call.1} parent=1 // pred_check
      _
    $region7: #{tpu_custom_call.1} parent=1 // pred_check_branch
      %30 = sbr.rel (0) target = $region9
    $region8: #{tpu_custom_call.1} parent=1 // pred_region
      %s32 = ssub.s32 4096, 4096
      %33 = vsyncadd [#allocation8], %s32
      %s34 = sshll.u32 [#allocation7], 4
      %s35 = int_to_ptr.vmem [resolvable:$true] %s34
      %40 = dma.hbm_to_vmem [thread:$0]  %s1, 4096, %s35, [#allocation8], 256, 256, 16
    $region9: #{tpu_custom_call.1} parent=1 // pred_fallthru
      _
    // Predicated region
    $region10: #{tpu_custom_call.1} parent=1 // pred_check
      _
    $region11: #{tpu_custom_call.1} parent=1 // pred_check_branch
      %42 = sbr.rel (0) target = $region13
    $region12: #{tpu_custom_call.1} parent=1 // pred_region
      %s44 = ssub.s32 4096, 4096
      %45 = vsyncadd [#allocation8], %s44
      %s46 = sshll.u32 [#allocation9], 4
      %s47 = int_to_ptr.vmem [resolvable:$true] %s46
      %52 = dma.hbm_to_vmem [thread:$0]  %s2, 4096, %s47, [#allocation8], 256, 256, 16
    $region13: #{tpu_custom_call.1} parent=1 // pred_fallthru
      _
    // Predicated region
    $region14: #{tpu_custom_call.1} parent=1 // pred_check
      _
    $region15: #{tpu_custom_call.1} parent=1 // pred_check_branch
      %54 = sbr.rel (0) target = $region17
    $region16: #{tpu_custom_call.1} parent=1 // pred_region
      %s56 = ssub.s32 512, 512
      %57 = vsyncadd [#allocation11], %s56
      %s59 = sshll.u32 [#allocation10], 4
      %s60 = int_to_ptr.vmem [resolvable:$true] %s59
      %62 = dma.hbm_to_vmem [thread:$0]  %s3, 512, %s60, [#allocation11]
    $region17: #{tpu_custom_call.1} parent=1 // pred_fallthru
      _
    // Predicated region
    $region18: #{tpu_custom_call.1} parent=1 // pred_check
      _
    $region19: #{tpu_custom_call.1} parent=1 // pred_check_branch
      %64 = sbr.rel (0) target = $region21
    $region20: #{tpu_custom_call.1} parent=1 // pred_region
      %s66 = ssub.s32 4096, 4096
      %67 = vsyncadd [#allocation11], %s66
      %s68 = sshll.u32 [#allocation12], 4
      %s69 = int_to_ptr.vmem [resolvable:$true] %s68
      %74 = dma.hbm_to_vmem [thread:$0]  %s4, 4096, %s69, [#allocation11], 256, 256, 16
    $region21: #{tpu_custom_call.1} parent=1 // pred_fallthru
      _
    // Predicated region
    $region22: #{tpu_custom_call.1} parent=1 // pred_check
      _
    $region23: #{tpu_custom_call.1} parent=1 // pred_check_branch
      %76 = sbr.rel (0) target = $region25
    $region24: #{tpu_custom_call.1} parent=1 // pred_region
      %s78 = ssub.s32 4096, 4096
      %79 = vsyncadd [#allocation14], %s78
      %s80 = sshll.u32 [#allocation13], 4
      %s81 = int_to_ptr.vmem [resolvable:$true] %s80
      %86 = dma.hbm_to_vmem [thread:$0]  %s5, 4096, %s81, [#allocation14], 256, 256, 16
    $region25: #{tpu_custom_call.1} parent=1 // pred_fallthru
      _
    // Predicated region
    $region26: #{tpu_custom_call.1} parent=1 // pred_check
      _
    $region27: #{tpu_custom_call.1} parent=1 // pred_check_branch
      %88 = sbr.rel (0) target = $region29
    $region28: #{tpu_custom_call.1} parent=1 // pred_region
      %s90 = ssub.s32 512, 512
      %91 = vsyncadd [#allocation14], %s90
      %s93 = sshll.u32 [#allocation15], 4
      %s94 = int_to_ptr.vmem [resolvable:$true] %s93
      %96 = dma.hbm_to_vmem [thread:$0]  %s6, 512, %s94, [#allocation14]
    $region29: #{tpu_custom_call.1} parent=1 // pred_fallthru
      _
    // Predicated region
    $region30: #{tpu_custom_call.1} parent=1 // pred_check
      _
    $region31: #{tpu_custom_call.1} parent=1 // pred_check_branch
      %98 = sbr.rel (0) target = $region33
    $region32: #{tpu_custom_call.1} parent=1 // pred_region
      %99 = dma.done [#allocation5], 1024
    $region33: #{tpu_custom_call.1} parent=1 // pred_fallthru
      _
    // Predicated region
    $region34: #{tpu_custom_call.1} parent=1 // pred_check
      _
    $region35: #{tpu_custom_call.1} parent=1 // pred_check_branch
      %101 = sbr.rel (0) target = $region37
    $region36: #{tpu_custom_call.1} parent=1 // pred_region
      %102 = dma.done [#allocation8], 4096
    $region37: #{tpu_custom_call.1} parent=1 // pred_fallthru
      _
    // Predicated region
    $region38: #{tpu_custom_call.1} parent=1 // pred_check
      _
    $region39: #{tpu_custom_call.1} parent=1 // pred_check_branch
      %104 = sbr.rel (0) target = $region41
    $region40: #{tpu_custom_call.1} parent=1 // pred_region
      %105 = dma.done [#allocation8], 4096
    $region41: #{tpu_custom_call.1} parent=1 // pred_fallthru
      _
    // Predicated region
    $region42: #{tpu_custom_call.1} parent=1 // pred_check
      _
    $region43: #{tpu_custom_call.1} parent=1 // pred_check_branch
      %107 = sbr.rel (0) target = $region45
    $region44: #{tpu_custom_call.1} parent=1 // pred_region
      %108 = dma.done [#allocation11], 512
    $region45: #{tpu_custom_call.1} parent=1 // pred_fallthru
      _
    // Predicated region
    $region46: #{tpu_custom_call.1} parent=1 // pred_check
      _
    $region47: #{tpu_custom_call.1} parent=1 // pred_check_branch
      %110 = sbr.rel (0) target = $region49
    $region48: #{tpu_custom_call.1} parent=1 // pred_region
      %111 = dma.done [#allocation11], 4096
    $region49: #{tpu_custom_call.1} parent=1 // pred_fallthru
      _
    // Predicated region
    $region50: #{tpu_custom_call.1} parent=1 // pred_check
      _
    $region51: #{tpu_custom_call.1} parent=1 // pred_check_branch
      %113 = sbr.rel (0) target = $region53
    $region52: #{tpu_custom_call.1} parent=1 // pred_region
      %114 = dma.done [#allocation14], 4096
    $region53: #{tpu_custom_call.1} parent=1 // pred_fallthru
      _
    // Predicated region
    $region54: #{tpu_custom_call.1} parent=1 // pred_check
      _
    $region55: #{tpu_custom_call.1} parent=1 // pred_check_branch
      %116 = sbr.rel (0) target = $region57
    $region56: #{tpu_custom_call.1} parent=1 // pred_region
      %117 = dma.done [#allocation14], 512
    $region57: #{tpu_custom_call.1} parent=1 // pred_fallthru
      _
    %p119 = scmp.eq.s32.totalorder 0, 0
    // Predicated region
    $region58: #{tpu_custom_call.1} parent=1 // pred_check
      %p120 = pneg %p119
    $region59: #{tpu_custom_call.1} parent=1 // pred_check_branch
      %122 = sbr.rel (%p120) target = $region61
    $region60: #{tpu_custom_call.1} parent=1 // pred_region
      %123 = vst [vmem:[#allocation2] sm:$0xff] 0.0
      %124 = vst [vmem:[#allocation2 + $0x8] sm:$0xff] 0.0
      %125 = vst [vmem:[#allocation3] sm:$0xff] 0.0
      %126 = vst [vmem:[#allocation3 + $0x8] sm:$0xff] 0.0
    $region61: #{tpu_custom_call.1} parent=1 // pred_fallthru
      _
    %v127 = vld [vmem:[#allocation4] sm:$0xff]
    %v128 = vld [vmem:[#allocation2] sm:$0xff]
    %v129 = vld [vmem:[#allocation3] sm:$0xff]
    %v130 = vpack.c.bf16 %v127, %v127
    %v131 = vld [vmem:[#allocation7] sm:$0xff]
    %v132 = vld [vmem:[#allocation7 + $0x8] sm:$0xff]
    %v133 = vld [vmem:[#allocation7 + $0x10] sm:$0xff]
    %v134 = vld [vmem:[#allocation7 + $0x18] sm:$0xff]
    %v135 = vld [vmem:[#allocation7 + $0x20] sm:$0xff]
    %v136 = vld [vmem:[#allocation7 + $0x28] sm:$0xff]
    %v137 = vld [vmem:[#allocation7 + $0x30] sm:$0xff]
    %v138 = vld [vmem:[#allocation7 + $0x38] sm:$0xff]
    %v139 = vld [vmem:[#allocation7 + $0x40] sm:$0xff]
    %v140 = vld [vmem:[#allocation7 + $0x48] sm:$0xff]
    %v141 = vld [vmem:[#allocation7 + $0x50] sm:$0xff]
    %v142 = vld [vmem:[#allocation7 + $0x58] sm:$0xff]
    %v143 = vld [vmem:[#allocation7 + $0x60] sm:$0xff]
    %v144 = vld [vmem:[#allocation7 + $0x68] sm:$0xff]
    %v145 = vld [vmem:[#allocation7 + $0x70] sm:$0xff]
    %v146 = vld [vmem:[#allocation7 + $0x78] sm:$0xff]
    %v147 = vld [vmem:[#allocation7 + $0x80] sm:$0xff]
    %v148 = vld [vmem:[#allocation7 + $0x88] sm:$0xff]
    %v149 = vld [vmem:[#allocation7 + $0x90] sm:$0xff]
    %v150 = vld [vmem:[#allocation7 + $0x98] sm:$0xff]
    %v151 = vld [vmem:[#allocation7 + $0xa0] sm:$0xff]
    %v152 = vld [vmem:[#allocation7 + $0xa8] sm:$0xff]
    %v153 = vld [vmem:[#allocation7 + $0xb0] sm:$0xff]
    %v154 = vld [vmem:[#allocation7 + $0xb8] sm:$0xff]
    %v155 = vld [vmem:[#allocation7 + $0xc0] sm:$0xff]
    %v156 = vld [vmem:[#allocation7 + $0xc8] sm:$0xff]
    %v157 = vld [vmem:[#allocation7 + $0xd0] sm:$0xff]
    %v158 = vld [vmem:[#allocation7 + $0xd8] sm:$0xff]
    %v159 = vld [vmem:[#allocation7 + $0xe0] sm:$0xff]
    %v160 = vld [vmem:[#allocation7 + $0xe8] sm:$0xff]
    %v161 = vld [vmem:[#allocation7 + $0xf0] sm:$0xff]
    %v162 = vld [vmem:[#allocation7 + $0xf8] sm:$0xff]
    %v163 = vpack.c.bf16 %v128, %v128
    %v164 = vld [vmem:[#allocation9] sm:$0xff]
    %v165 = vld [vmem:[#allocation9 + $0x8] sm:$0xff]
    %v166 = vld [vmem:[#allocation9 + $0x10] sm:$0xff]
    %v167 = vld [vmem:[#allocation9 + $0x18] sm:$0xff]
    %v168 = vld [vmem:[#allocation9 + $0x20] sm:$0xff]
    %v169 = vld [vmem:[#allocation9 + $0x28] sm:$0xff]
    %v170 = vld [vmem:[#allocation9 + $0x30] sm:$0xff]
    %v171 = vld [vmem:[#allocation9 + $0x38] sm:$0xff]
    %v172 = vld [vmem:[#allocation9 + $0x40] sm:$0xff]
    %v173 = vld [vmem:[#allocation9 + $0x48] sm:$0xff]
    %v174 = vld [vmem:[#allocation9 + $0x50] sm:$0xff]
    %v175 = vld [vmem:[#allocation9 + $0x58] sm:$0xff]
    %v176 = vld [vmem:[#allocation9 + $0x60] sm:$0xff]
    %v177 = vld [vmem:[#allocation9 + $0x68] sm:$0xff]
    %v178 = vld [vmem:[#allocation9 + $0x70] sm:$0xff]
    %v179 = vld [vmem:[#allocation9 + $0x78] sm:$0xff]
    %v180 = vld [vmem:[#allocation9 + $0x80] sm:$0xff]
    %v181 = vld [vmem:[#allocation9 + $0x88] sm:$0xff]
    %v182 = vld [vmem:[#allocation9 + $0x90] sm:$0xff]
    %v183 = vld [vmem:[#allocation9 + $0x98] sm:$0xff]
    %v184 = vld [vmem:[#allocation9 + $0xa0] sm:$0xff]
    %v185 = vld [vmem:[#allocation9 + $0xa8] sm:$0xff]
    %v186 = vld [vmem:[#allocation9 + $0xb0] sm:$0xff]
    %v187 = vld [vmem:[#allocation9 + $0xb8] sm:$0xff]
    %v188 = vld [vmem:[#allocation9 + $0xc0] sm:$0xff]
    %v189 = vld [vmem:[#allocation9 + $0xc8] sm:$0xff]
    %v190 = vld [vmem:[#allocation9 + $0xd0] sm:$0xff]
    %v191 = vld [vmem:[#allocation9 + $0xd8] sm:$0xff]
    %v192 = vld [vmem:[#allocation9 + $0xe0] sm:$0xff]
    %v193 = vld [vmem:[#allocation9 + $0xe8] sm:$0xff]
    %v194 = vld [vmem:[#allocation9 + $0xf0] sm:$0xff]
    %v195 = vld [vmem:[#allocation9 + $0xf8] sm:$0xff]
    %v228 = vunpack.c.l.b16 %v164
    %v229 = vunpack.c.h.b16 %v164
    %v230 = vunpack.c.l.b16 %v165
    %v231 = vunpack.c.h.b16 %v165
    %v232 = vunpack.c.l.b16 %v166
    %v233 = vunpack.c.h.b16 %v166
    %v234 = vunpack.c.l.b16 %v167
    %v235 = vunpack.c.h.b16 %v167
    %v236 = vunpack.c.l.b16 %v168
    %v237 = vunpack.c.h.b16 %v168
    %v238 = vunpack.c.l.b16 %v169
    %v239 = vunpack.c.h.b16 %v169
    %v240 = vunpack.c.l.b16 %v170
    %v241 = vunpack.c.h.b16 %v170
    %v242 = vunpack.c.l.b16 %v171
    %v243 = vunpack.c.h.b16 %v171
    %v244 = vunpack.c.l.b16 %v172
    %v245 = vunpack.c.h.b16 %v172
    %v246 = vunpack.c.l.b16 %v173
    %v247 = vunpack.c.h.b16 %v173
    %v248 = vunpack.c.l.b16 %v174
    %v249 = vunpack.c.h.b16 %v174
    %v250 = vunpack.c.l.b16 %v175
    %v251 = vunpack.c.h.b16 %v175
    %v252 = vunpack.c.l.b16 %v176
    %v253 = vunpack.c.h.b16 %v176
    %v254 = vunpack.c.l.b16 %v177
    %v255 = vunpack.c.h.b16 %v177
    %v256 = vunpack.c.l.b16 %v178
    %v257 = vunpack.c.h.b16 %v178
    %v258 = vunpack.c.l.b16 %v179
    %v259 = vunpack.c.h.b16 %v179
    %v260 = vunpack.c.l.b16 %v180
    %v261 = vunpack.c.h.b16 %v180
    %v262 = vunpack.c.l.b16 %v181
    %v263 = vunpack.c.h.b16 %v181
    %v264 = vunpack.c.l.b16 %v182
    %v265 = vunpack.c.h.b16 %v182
    %v266 = vunpack.c.l.b16 %v183
    %v267 = vunpack.c.h.b16 %v183
    %v268 = vunpack.c.l.b16 %v184
    %v269 = vunpack.c.h.b16 %v184
    %v270 = vunpack.c.l.b16 %v185
    %v271 = vunpack.c.h.b16 %v185
    %v272 = vunpack.c.l.b16 %v186
    %v273 = vunpack.c.h.b16 %v186
    %v274 = vunpack.c.l.b16 %v187
    %v275 = vunpack.c.h.b16 %v187
    %v276 = vunpack.c.l.b16 %v188
    %v277 = vunpack.c.h.b16 %v188
    %v278 = vunpack.c.l.b16 %v189
    %v279 = vunpack.c.h.b16 %v189
    %v280 = vunpack.c.l.b16 %v190
    %v281 = vunpack.c.h.b16 %v190
    %v282 = vunpack.c.l.b16 %v191
    %v283 = vunpack.c.h.b16 %v191
    %v284 = vunpack.c.l.b16 %v192
    %v285 = vunpack.c.h.b16 %v192
    %v286 = vunpack.c.l.b16 %v193
    %v287 = vunpack.c.h.b16 %v193
    %v288 = vunpack.c.l.b16 %v194
    %v289 = vunpack.c.h.b16 %v194
    %v290 = vunpack.c.l.b16 %v195
    %v291 = vunpack.c.h.b16 %v195
    %v292 = vpack.c.b16 %v232, %v228
    %v293 = vpack.c.b16 %v233, %v229
    %v294 = vpack.c.b16 %v234, %v230
    %v295 = vpack.c.b16 %v235, %v231
    %v296 = vpack.c.b16 %v240, %v236
    %v297 = vpack.c.b16 %v241, %v237
    %v298 = vpack.c.b16 %v242, %v238
    %v299 = vpack.c.b16 %v243, %v239
    %v300 = vpack.c.b16 %v248, %v244
    %v301 = vpack.c.b16 %v249, %v245
    %v302 = vpack.c.b16 %v250, %v246
    %v303 = vpack.c.b16 %v251, %v247
    %v304 = vpack.c.b16 %v256, %v252
    %v305 = vpack.c.b16 %v257, %v253
    %v306 = vpack.c.b16 %v258, %v254
    %v307 = vpack.c.b16 %v259, %v255
    %v308 = vpack.c.b16 %v264, %v260
    %v309 = vpack.c.b16 %v265, %v261
    %v310 = vpack.c.b16 %v266, %v262
    %v311 = vpack.c.b16 %v267, %v263
    %v312 = vpack.c.b16 %v272, %v268
    %v313 = vpack.c.b16 %v273, %v269
    %v314 = vpack.c.b16 %v274, %v270
    %v315 = vpack.c.b16 %v275, %v271
    %v316 = vpack.c.b16 %v280, %v276
    %v317 = vpack.c.b16 %v281, %v277
    %v318 = vpack.c.b16 %v282, %v278
    %v319 = vpack.c.b16 %v283, %v279
    %v320 = vpack.c.b16 %v288, %v284
    %v321 = vpack.c.b16 %v289, %v285
    %v322 = vpack.c.b16 %v290, %v286
    %v323 = vpack.c.b16 %v291, %v287
    %356 = vmatprep.subr.bf16.mxu0 %v321
    %357 = vmatpush1.bf16.msra.mxu0 %v320
    %358 = vmatprep.subr.bf16.mxu0 %v317
    %359 = vmatpush1.bf16.msra.mxu0 %v316
    %360 = vmatprep.subr.bf16.mxu0 %v313
    %361 = vmatpush1.bf16.msra.mxu0 %v312
    %362 = vmatprep.subr.bf16.mxu0 %v309
    %363 = vmatpush1.bf16.msra.mxu0 %v308
    %364 = vmatprep.subr.bf16.mxu0 %v305
    %365 = vmatpush1.bf16.msra.mxu0 %v304
    %366 = vmatprep.subr.bf16.mxu0 %v301
    %367 = vmatpush1.bf16.msra.mxu0 %v300
    %368 = vmatprep.subr.bf16.mxu0 %v297
    %369 = vmatpush1.bf16.msra.mxu0 %v296
    %370 = vmatprep.subr.bf16.mxu0 %v293
    %371 = vmatpush1.bf16.msra.mxu0 %v292
    %372 = vmatprep.subr.bf16.mxu0 0
    %373 = vmatpush2.bf16.msra.mxu0 0
    %374 = vmatprep.subr.bf16.mxu0 0
    %375 = vmatpush2.bf16.msra.mxu0 0
    %376 = vmatprep.subr.bf16.mxu0 0
    %377 = vmatpush2.bf16.msra.mxu0 0
    %378 = vmatprep.subr.bf16.mxu0 0
    %379 = vmatpush2.bf16.msra.mxu0 0
    %380 = vmatprep.subr.bf16.mxu0 0
    %381 = vmatpush2.bf16.msra.mxu0 0
    %382 = vmatprep.subr.bf16.mxu0 0
    %383 = vmatpush2.bf16.msra.mxu0 0
    %384 = vmatprep.subr.bf16.mxu0 0
    %385 = vmatpush2.bf16.msra.mxu0 0
    %386 = vmatprep.subr.bf16.mxu0 0
    %387 = vmatpush2.bf16.msra.mxu0 0
    %388 = vmatprep.mubr.bf16.mxu0 0
    %389 = vmatmul.mubr.bf16.gmra.mxu0 %v163
    %v390 = vpop.f32.mrf.mxu0
    %v391 = vadd.f32 0.0, %v390
    %v392 = vpop.f32.mrf.mxu0
    %v393 = vadd.f32 0.0, %v392
    %v394 = vpop.f32.mrf.mxu0
    %v395 = vpop.f32.mrf.mxu0
    %396 = vdwg.mxu0
    %397 = vmatprep.subr.bf16.mxu0 %v323
    %398 = vmatpush1.bf16.msra.mxu0 %v322
    %399 = vmatprep.subr.bf16.mxu0 %v319
    %400 = vmatpush1.bf16.msra.mxu0 %v318
    %401 = vmatprep.subr.bf16.mxu0 %v315
    %402 = vmatpush1.bf16.msra.mxu0 %v314
    %403 = vmatprep.subr.bf16.mxu0 %v311
    %404 = vmatpush1.bf16.msra.mxu0 %v310
    %405 = vmatprep.subr.bf16.mxu0 %v307
    %406 = vmatpush1.bf16.msra.mxu0 %v306
    %407 = vmatprep.subr.bf16.mxu0 %v303
    %408 = vmatpush1.bf16.msra.mxu0 %v302
    %409 = vmatprep.subr.bf16.mxu0 %v299
    %410 = vmatpush1.bf16.msra.mxu0 %v298
    %411 = vmatprep.subr.bf16.mxu0 %v295
    %412 = vmatpush1.bf16.msra.mxu0 %v294
    %413 = vmatprep.subr.bf16.mxu0 0
    %414 = vmatpush2.bf16.msra.mxu0 0
    %415 = vmatprep.subr.bf16.mxu0 0
    %416 = vmatpush2.bf16.msra.mxu0 0
    %417 = vmatprep.subr.bf16.mxu0 0
    %418 = vmatpush2.bf16.msra.mxu0 0
    %419 = vmatprep.subr.bf16.mxu0 0
    %420 = vmatpush2.bf16.msra.mxu0 0
    %421 = vmatprep.subr.bf16.mxu0 0
    %422 = vmatpush2.bf16.msra.mxu0 0
    %423 = vmatprep.subr.bf16.mxu0 0
    %424 = vmatpush2.bf16.msra.mxu0 0
    %425 = vmatprep.subr.bf16.mxu0 0
    %426 = vmatpush2.bf16.msra.mxu0 0
    %427 = vmatprep.subr.bf16.mxu0 0
    %428 = vmatpush2.bf16.msra.mxu0 0
    %429 = vmatprep.mubr.bf16.mxu0 0
    %430 = vmatmul.mubr.bf16.gmra.mxu0 %v163
    %v431 = vpop.f32.mrf.mxu0
    %v432 = vadd.f32 0.0, %v431
    %v433 = vpop.f32.mrf.mxu0
    %v434 = vadd.f32 0.0, %v433
    %v435 = vpop.f32.mrf.mxu0
    %v436 = vpop.f32.mrf.mxu0
    %437 = vdwg.mxu0
    %v470 = vunpack.c.l.b16 %v131
    %v471 = vunpack.c.h.b16 %v131
    %v472 = vunpack.c.l.b16 %v132
    %v473 = vunpack.c.h.b16 %v132
    %v474 = vunpack.c.l.b16 %v133
    %v475 = vunpack.c.h.b16 %v133
    %v476 = vunpack.c.l.b16 %v134
    %v477 = vunpack.c.h.b16 %v134
    %v478 = vunpack.c.l.b16 %v135
    %v479 = vunpack.c.h.b16 %v135
    %v480 = vunpack.c.l.b16 %v136
    %v481 = vunpack.c.h.b16 %v136
    %v482 = vunpack.c.l.b16 %v137
    %v483 = vunpack.c.h.b16 %v137
    %v484 = vunpack.c.l.b16 %v138
    %v485 = vunpack.c.h.b16 %v138
    %v486 = vunpack.c.l.b16 %v139
    %v487 = vunpack.c.h.b16 %v139
    %v488 = vunpack.c.l.b16 %v140
    %v489 = vunpack.c.h.b16 %v140
    %v490 = vunpack.c.l.b16 %v141
    %v491 = vunpack.c.h.b16 %v141
    %v492 = vunpack.c.l.b16 %v142
    %v493 = vunpack.c.h.b16 %v142
    %v494 = vunpack.c.l.b16 %v143
    %v495 = vunpack.c.h.b16 %v143
    %v496 = vunpack.c.l.b16 %v144
    %v497 = vunpack.c.h.b16 %v144
    %v498 = vunpack.c.l.b16 %v145
    %v499 = vunpack.c.h.b16 %v145
    %v500 = vunpack.c.l.b16 %v146
    %v501 = vunpack.c.h.b16 %v146
    %v502 = vunpack.c.l.b16 %v147
    %v503 = vunpack.c.h.b16 %v147
    %v504 = vunpack.c.l.b16 %v148
    %v505 = vunpack.c.h.b16 %v148
    %v506 = vunpack.c.l.b16 %v149
    %v507 = vunpack.c.h.b16 %v149
    %v508 = vunpack.c.l.b16 %v150
    %v509 = vunpack.c.h.b16 %v150
    %v510 = vunpack.c.l.b16 %v151
    %v511 = vunpack.c.h.b16 %v151
    %v512 = vunpack.c.l.b16 %v152
    %v513 = vunpack.c.h.b16 %v152
    %v514 = vunpack.c.l.b16 %v153
    %v515 = vunpack.c.h.b16 %v153
    %v516 = vunpack.c.l.b16 %v154
    %v517 = vunpack.c.h.b16 %v154
    %v518 = vunpack.c.l.b16 %v155
    %v519 = vunpack.c.h.b16 %v155
    %v520 = vunpack.c.l.b16 %v156
    %v521 = vunpack.c.h.b16 %v156
    %v522 = vunpack.c.l.b16 %v157
    %v523 = vunpack.c.h.b16 %v157
    %v524 = vunpack.c.l.b16 %v158
    %v525 = vunpack.c.h.b16 %v158
    %v526 = vunpack.c.l.b16 %v159
    %v527 = vunpack.c.h.b16 %v159
    %v528 = vunpack.c.l.b16 %v160
    %v529 = vunpack.c.h.b16 %v160
    %v530 = vunpack.c.l.b16 %v161
    %v531 = vunpack.c.h.b16 %v161
    %v532 = vunpack.c.l.b16 %v162
    %v533 = vunpack.c.h.b16 %v162
    %v534 = vpack.c.b16 %v474, %v470
    %v535 = vpack.c.b16 %v475, %v471
    %v536 = vpack.c.b16 %v476, %v472
    %v537 = vpack.c.b16 %v477, %v473
    %v538 = vpack.c.b16 %v482, %v478
    %v539 = vpack.c.b16 %v483, %v479
    %v540 = vpack.c.b16 %v484, %v480
    %v541 = vpack.c.b16 %v485, %v481
    %v542 = vpack.c.b16 %v490, %v486
    %v543 = vpack.c.b16 %v491, %v487
    %v544 = vpack.c.b16 %v492, %v488
    %v545 = vpack.c.b16 %v493, %v489
    %v546 = vpack.c.b16 %v498, %v494
    %v547 = vpack.c.b16 %v499, %v495
    %v548 = vpack.c.b16 %v500, %v496
    %v549 = vpack.c.b16 %v501, %v497
    %v550 = vpack.c.b16 %v506, %v502
    %v551 = vpack.c.b16 %v507, %v503
    %v552 = vpack.c.b16 %v508, %v504
    %v553 = vpack.c.b16 %v509, %v505
    %v554 = vpack.c.b16 %v514, %v510
    %v555 = vpack.c.b16 %v515, %v511
    %v556 = vpack.c.b16 %v516, %v512
    %v557 = vpack.c.b16 %v517, %v513
    %v558 = vpack.c.b16 %v522, %v518
    %v559 = vpack.c.b16 %v523, %v519
    %v560 = vpack.c.b16 %v524, %v520
    %v561 = vpack.c.b16 %v525, %v521
    %v562 = vpack.c.b16 %v530, %v526
    %v563 = vpack.c.b16 %v531, %v527
    %v564 = vpack.c.b16 %v532, %v528
    %v565 = vpack.c.b16 %v533, %v529
    %598 = vmatprep.subr.bf16.mxu0 %v563
    %599 = vmatpush1.bf16.msra.mxu0 %v562
    %600 = vmatprep.subr.bf16.mxu0 %v559
    %601 = vmatpush1.bf16.msra.mxu0 %v558
    %602 = vmatprep.subr.bf16.mxu0 %v555
    %603 = vmatpush1.bf16.msra.mxu0 %v554
    %604 = vmatprep.subr.bf16.mxu0 %v551
    %605 = vmatpush1.bf16.msra.mxu0 %v550
    %606 = vmatprep.subr.bf16.mxu0 %v547
    %607 = vmatpush1.bf16.msra.mxu0 %v546
    %608 = vmatprep.subr.bf16.mxu0 %v543
    %609 = vmatpush1.bf16.msra.mxu0 %v542
    %610 = vmatprep.subr.bf16.mxu0 %v539
    %611 = vmatpush1.bf16.msra.mxu0 %v538
    %612 = vmatprep.subr.bf16.mxu0 %v535
    %613 = vmatpush1.bf16.msra.mxu0 %v534
    %614 = vmatprep.subr.bf16.mxu0 0
    %615 = vmatpush2.bf16.msra.mxu0 0
    %616 = vmatprep.subr.bf16.mxu0 0
    %617 = vmatpush2.bf16.msra.mxu0 0
    %618 = vmatprep.subr.bf16.mxu0 0
    %619 = vmatpush2.bf16.msra.mxu0 0
    %620 = vmatprep.subr.bf16.mxu0 0
    %621 = vmatpush2.bf16.msra.mxu0 0
    %622 = vmatprep.subr.bf16.mxu0 0
    %623 = vmatpush2.bf16.msra.mxu0 0
    %624 = vmatprep.subr.bf16.mxu0 0
    %625 = vmatpush2.bf16.msra.mxu0 0
    %626 = vmatprep.subr.bf16.mxu0 0
    %627 = vmatpush2.bf16.msra.mxu0 0
    %628 = vmatprep.subr.bf16.mxu0 0
    %629 = vmatpush2.bf16.msra.mxu0 0
    %630 = vmatprep.mubr.bf16.mxu0 0
    %631 = vmatmul.mubr.bf16.gmra.mxu0 %v130
    %v632 = vpop.f32.mrf.mxu0
    %v633 = vadd.f32 %v391, %v632
    %v634 = vpop.f32.mrf.mxu0
    %v635 = vadd.f32 %v393, %v634
    %v636 = vpop.f32.mrf.mxu0
    %v637 = vpop.f32.mrf.mxu0
    %638 = vdwg.mxu0
    %639 = vmatprep.subr.bf16.mxu0 %v565
    %640 = vmatpush1.bf16.msra.mxu0 %v564
    %641 = vmatprep.subr.bf16.mxu0 %v561
    %642 = vmatpush1.bf16.msra.mxu0 %v560
    %643 = vmatprep.subr.bf16.mxu0 %v557
    %644 = vmatpush1.bf16.msra.mxu0 %v556
    %645 = vmatprep.subr.bf16.mxu0 %v553
    %646 = vmatpush1.bf16.msra.mxu0 %v552
    %647 = vmatprep.subr.bf16.mxu0 %v549
    %648 = vmatpush1.bf16.msra.mxu0 %v548
    %649 = vmatprep.subr.bf16.mxu0 %v545
    %650 = vmatpush1.bf16.msra.mxu0 %v544
    %651 = vmatprep.subr.bf16.mxu0 %v541
    %652 = vmatpush1.bf16.msra.mxu0 %v540
    %653 = vmatprep.subr.bf16.mxu0 %v537
    %654 = vmatpush1.bf16.msra.mxu0 %v536
    %655 = vmatprep.subr.bf16.mxu0 0
    %656 = vmatpush2.bf16.msra.mxu0 0
    %657 = vmatprep.subr.bf16.mxu0 0
    %658 = vmatpush2.bf16.msra.mxu0 0
    %659 = vmatprep.subr.bf16.mxu0 0
    %660 = vmatpush2.bf16.msra.mxu0 0
    %661 = vmatprep.subr.bf16.mxu0 0
    %662 = vmatpush2.bf16.msra.mxu0 0
    %663 = vmatprep.subr.bf16.mxu0 0
    %664 = vmatpush2.bf16.msra.mxu0 0
    %665 = vmatprep.subr.bf16.mxu0 0
    %666 = vmatpush2.bf16.msra.mxu0 0
    %667 = vmatprep.subr.bf16.mxu0 0
    %668 = vmatpush2.bf16.msra.mxu0 0
    %669 = vmatprep.subr.bf16.mxu0 0
    %670 = vmatpush2.bf16.msra.mxu0 0
    %671 = vmatprep.mubr.bf16.mxu0 0
    %672 = vmatmul.mubr.bf16.gmra.mxu0 %v130
    %v673 = vpop.f32.mrf.mxu0
    %v674 = vadd.f32 %v432, %v673
    %v675 = vpop.f32.mrf.mxu0
    %v676 = vadd.f32 %v434, %v675
    %v677 = vpop.f32.mrf.mxu0
    %v678 = vpop.f32.mrf.mxu0
    %679 = vdwg.mxu0
    %v680 = vld [vmem:[#allocation10] sm:$0xff]
    %v681 = vld [vmem:[#allocation10 + $0x8] sm:$0xff]
    %v682 = vld [vmem:[#allocation10 + $0x10] sm:$0xff]
    %v683 = vld [vmem:[#allocation10 + $0x18] sm:$0xff]
    %v684 = vadd.f32 %v633, %v680
    %v685 = vadd.f32 %v635, %v681
    %v686 = vadd.f32 %v674, %v682
    %v687 = vadd.f32 %v676, %v683
    %v688 = vxor.u32 %v684, 2147483648
    %v689 = vmul.f32 %v688, 1.442695
    %v690 = vpow.pop %v689
    %v691 = vadd.f32 %v690, 1.0
    %v692 = vrcp.pop %v691
    %v693 = vmul.f32 1.0, %v692
    %v694 = vxor.u32 %v685, 2147483648
    %v695 = vmul.f32 %v694, 1.442695
    %v696 = vpow.pop %v695
    %v697 = vadd.f32 %v696, 1.0
    %v698 = vrcp.pop %v697
    %v699 = vmul.f32 1.0, %v698
    %v700 = vtanh.pop %v686
    %v701 = vxor.u32 %v687, 2147483648
    %v702 = vmul.f32 %v701, 1.442695
    %v703 = vpow.pop %v702
    %v704 = vadd.f32 %v703, 1.0
    %v705 = vrcp.pop %v704
    %v706 = vmul.f32 1.0, %v705
    %v707 = vmul.f32 %v699, %v129
    %v708 = vmul.f32 %v693, %v700
    %v709 = vadd.f32 %v707, %v708
    %v710 = vtanh.pop %v709
    %v711 = vmul.f32 %v706, %v710
    %712 = vst [vmem:[#allocation2] sm:$0xff] %v711
    %713 = vst [vmem:[#allocation3] sm:$0xff] %v709
    %s714 = scalar_lea.vmem [#allocation2], 8
    %v715 = vld [vmem:[%s714] sm:$0xff]
    %s716 = scalar_lea.vmem [#allocation3], 8
    %v717 = vld [vmem:[%s716] sm:$0xff]
    %v718 = vpack.c.bf16 %v711, %v711
    %v719 = vld [vmem:[#allocation12] sm:$0xff]
    %v720 = vld [vmem:[#allocation12 + $0x8] sm:$0xff]
    %v721 = vld [vmem:[#allocation12 + $0x10] sm:$0xff]
    %v722 = vld [vmem:[#allocation12 + $0x18] sm:$0xff]
    %v723 = vld [vmem:[#allocation12 + $0x20] sm:$0xff]
    %v724 = vld [vmem:[#allocation12 + $0x28] sm:$0xff]
    %v725 = vld [vmem:[#allocation12 + $0x30] sm:$0xff]
    %v726 = vld [vmem:[#allocation12 + $0x38] sm:$0xff]
    %v727 = vld [vmem:[#allocation12 + $0x40] sm:$0xff]
    %v728 = vld [vmem:[#allocation12 + $0x48] sm:$0xff]
    %v729 = vld [vmem:[#allocation12 + $0x50] sm:$0xff]
    %v730 = vld [vmem:[#allocation12 + $0x58] sm:$0xff]
    %v731 = vld [vmem:[#allocation12 + $0x60] sm:$0xff]
    %v732 = vld [vmem:[#allocation12 + $0x68] sm:$0xff]
    %v733 = vld [vmem:[#allocation12 + $0x70] sm:$0xff]
    %v734 = vld [vmem:[#allocation12 + $0x78] sm:$0xff]
    %v735 = vld [vmem:[#allocation12 + $0x80] sm:$0xff]
    %v736 = vld [vmem:[#allocation12 + $0x88] sm:$0xff]
    %v737 = vld [vmem:[#allocation12 + $0x90] sm:$0xff]
    %v738 = vld [vmem:[#allocation12 + $0x98] sm:$0xff]
    %v739 = vld [vmem:[#allocation12 + $0xa0] sm:$0xff]
    %v740 = vld [vmem:[#allocation12 + $0xa8] sm:$0xff]
    %v741 = vld [vmem:[#allocation12 + $0xb0] sm:$0xff]
    %v742 = vld [vmem:[#allocation12 + $0xb8] sm:$0xff]
    %v743 = vld [vmem:[#allocation12 + $0xc0] sm:$0xff]
    %v744 = vld [vmem:[#allocation12 + $0xc8] sm:$0xff]
    %v745 = vld [vmem:[#allocation12 + $0xd0] sm:$0xff]
    %v746 = vld [vmem:[#allocation12 + $0xd8] sm:$0xff]
    %v747 = vld [vmem:[#allocation12 + $0xe0] sm:$0xff]
    %v748 = vld [vmem:[#allocation12 + $0xe8] sm:$0xff]
    %v749 = vld [vmem:[#allocation12 + $0xf0] sm:$0xff]
    %v750 = vld [vmem:[#allocation12 + $0xf8] sm:$0xff]
    %v751 = vpack.c.bf16 %v715, %v715
    %v752 = vld [vmem:[#allocation13] sm:$0xff]
    %v753 = vld [vmem:[#allocation13 + $0x8] sm:$0xff]
    %v754 = vld [vmem:[#allocation13 + $0x10] sm:$0xff]
    %v755 = vld [vmem:[#allocation13 + $0x18] sm:$0xff]
    %v756 = vld [vmem:[#allocation13 + $0x20] sm:$0xff]
    %v757 = vld [vmem:[#allocation13 + $0x28] sm:$0xff]
    %v758 = vld [vmem:[#allocation13 + $0x30] sm:$0xff]
    %v759 = vld [vmem:[#allocation13 + $0x38] sm:$0xff]
    %v760 = vld [vmem:[#allocation13 + $0x40] sm:$0xff]
    %v761 = vld [vmem:[#allocation13 + $0x48] sm:$0xff]
    %v762 = vld [vmem:[#allocation13 + $0x50] sm:$0xff]
    %v763 = vld [vmem:[#allocation13 + $0x58] sm:$0xff]
    %v764 = vld [vmem:[#allocation13 + $0x60] sm:$0xff]
    %v765 = vld [vmem:[#allocation13 + $0x68] sm:$0xff]
    %v766 = vld [vmem:[#allocation13 + $0x70] sm:$0xff]
    %v767 = vld [vmem:[#allocation13 + $0x78] sm:$0xff]
    %v768 = vld [vmem:[#allocation13 + $0x80] sm:$0xff]
    %v769 = vld [vmem:[#allocation13 + $0x88] sm:$0xff]
    %v770 = vld [vmem:[#allocation13 + $0x90] sm:$0xff]
    %v771 = vld [vmem:[#allocation13 + $0x98] sm:$0xff]
    %v772 = vld [vmem:[#allocation13 + $0xa0] sm:$0xff]
    %v773 = vld [vmem:[#allocation13 + $0xa8] sm:$0xff]
    %v774 = vld [vmem:[#allocation13 + $0xb0] sm:$0xff]
    %v775 = vld [vmem:[#allocation13 + $0xb8] sm:$0xff]
    %v776 = vld [vmem:[#allocation13 + $0xc0] sm:$0xff]
    %v777 = vld [vmem:[#allocation13 + $0xc8] sm:$0xff]
    %v778 = vld [vmem:[#allocation13 + $0xd0] sm:$0xff]
    %v779 = vld [vmem:[#allocation13 + $0xd8] sm:$0xff]
    %v780 = vld [vmem:[#allocation13 + $0xe0] sm:$0xff]
    %v781 = vld [vmem:[#allocation13 + $0xe8] sm:$0xff]
    %v782 = vld [vmem:[#allocation13 + $0xf0] sm:$0xff]
    %v783 = vld [vmem:[#allocation13 + $0xf8] sm:$0xff]
    %v816 = vunpack.c.l.b16 %v752
    %v817 = vunpack.c.h.b16 %v752
    %v818 = vunpack.c.l.b16 %v753
    %v819 = vunpack.c.h.b16 %v753
    %v820 = vunpack.c.l.b16 %v754
    %v821 = vunpack.c.h.b16 %v754
    %v822 = vunpack.c.l.b16 %v755
    %v823 = vunpack.c.h.b16 %v755
    %v824 = vunpack.c.l.b16 %v756
    %v825 = vunpack.c.h.b16 %v756
    %v826 = vunpack.c.l.b16 %v757
    %v827 = vunpack.c.h.b16 %v757
    %v828 = vunpack.c.l.b16 %v758
    %v829 = vunpack.c.h.b16 %v758
    %v830 = vunpack.c.l.b16 %v759
    %v831 = vunpack.c.h.b16 %v759
    %v832 = vunpack.c.l.b16 %v760
    %v833 = vunpack.c.h.b16 %v760
    %v834 = vunpack.c.l.b16 %v761
    %v835 = vunpack.c.h.b16 %v761
    %v836 = vunpack.c.l.b16 %v762
    %v837 = vunpack.c.h.b16 %v762
    %v838 = vunpack.c.l.b16 %v763
    %v839 = vunpack.c.h.b16 %v763
    %v840 = vunpack.c.l.b16 %v764
    %v841 = vunpack.c.h.b16 %v764
    %v842 = vunpack.c.l.b16 %v765
    %v843 = vunpack.c.h.b16 %v765
    %v844 = vunpack.c.l.b16 %v766
    %v845 = vunpack.c.h.b16 %v766
    %v846 = vunpack.c.l.b16 %v767
    %v847 = vunpack.c.h.b16 %v767
    %v848 = vunpack.c.l.b16 %v768
    %v849 = vunpack.c.h.b16 %v768
    %v850 = vunpack.c.l.b16 %v769
    %v851 = vunpack.c.h.b16 %v769
    %v852 = vunpack.c.l.b16 %v770
    %v853 = vunpack.c.h.b16 %v770
    %v854 = vunpack.c.l.b16 %v771
    %v855 = vunpack.c.h.b16 %v771
    %v856 = vunpack.c.l.b16 %v772
    %v857 = vunpack.c.h.b16 %v772
    %v858 = vunpack.c.l.b16 %v773
    %v859 = vunpack.c.h.b16 %v773
    %v860 = vunpack.c.l.b16 %v774
    %v861 = vunpack.c.h.b16 %v774
    %v862 = vunpack.c.l.b16 %v775
    %v863 = vunpack.c.h.b16 %v775
    %v864 = vunpack.c.l.b16 %v776
    %v865 = vunpack.c.h.b16 %v776
    %v866 = vunpack.c.l.b16 %v777
    %v867 = vunpack.c.h.b16 %v777
    %v868 = vunpack.c.l.b16 %v778
    %v869 = vunpack.c.h.b16 %v778
    %v870 = vunpack.c.l.b16 %v779
    %v871 = vunpack.c.h.b16 %v779
    %v872 = vunpack.c.l.b16 %v780
    %v873 = vunpack.c.h.b16 %v780
    %v874 = vunpack.c.l.b16 %v781
    %v875 = vunpack.c.h.b16 %v781
    %v876 = vunpack.c.l.b16 %v782
    %v877 = vunpack.c.h.b16 %v782
    %v878 = vunpack.c.l.b16 %v783
    %v879 = vunpack.c.h.b16 %v783
    %v880 = vpack.c.b16 %v820, %v816
    %v881 = vpack.c.b16 %v821, %v817
    %v882 = vpack.c.b16 %v822, %v818
    %v883 = vpack.c.b16 %v823, %v819
    %v884 = vpack.c.b16 %v828, %v824
    %v885 = vpack.c.b16 %v829, %v825
    %v886 = vpack.c.b16 %v830, %v826
    %v887 = vpack.c.b16 %v831, %v827
    %v888 = vpack.c.b16 %v836, %v832
    %v889 = vpack.c.b16 %v837, %v833
    %v890 = vpack.c.b16 %v838, %v834
    %v891 = vpack.c.b16 %v839, %v835
    %v892 = vpack.c.b16 %v844, %v840
    %v893 = vpack.c.b16 %v845, %v841
    %v894 = vpack.c.b16 %v846, %v842
    %v895 = vpack.c.b16 %v847, %v843
    %v896 = vpack.c.b16 %v852, %v848
    %v897 = vpack.c.b16 %v853, %v849
    %v898 = vpack.c.b16 %v854, %v850
    %v899 = vpack.c.b16 %v855, %v851
    %v900 = vpack.c.b16 %v860, %v856
    %v901 = vpack.c.b16 %v861, %v857
    %v902 = vpack.c.b16 %v862, %v858
    %v903 = vpack.c.b16 %v863, %v859
    %v904 = vpack.c.b16 %v868, %v864
    %v905 = vpack.c.b16 %v869, %v865
    %v906 = vpack.c.b16 %v870, %v866
    %v907 = vpack.c.b16 %v871, %v867
    %v908 = vpack.c.b16 %v876, %v872
    %v909 = vpack.c.b16 %v877, %v873
    %v910 = vpack.c.b16 %v878, %v874
    %v911 = vpack.c.b16 %v879, %v875
    %944 = vmatprep.subr.bf16.mxu0 %v909
    %945 = vmatpush1.bf16.msra.mxu0 %v908
    %946 = vmatprep.subr.bf16.mxu0 %v905
    %947 = vmatpush1.bf16.msra.mxu0 %v904
    %948 = vmatprep.subr.bf16.mxu0 %v901
    %949 = vmatpush1.bf16.msra.mxu0 %v900
    %950 = vmatprep.subr.bf16.mxu0 %v897
    %951 = vmatpush1.bf16.msra.mxu0 %v896
    %952 = vmatprep.subr.bf16.mxu0 %v893
    %953 = vmatpush1.bf16.msra.mxu0 %v892
    %954 = vmatprep.subr.bf16.mxu0 %v889
    %955 = vmatpush1.bf16.msra.mxu0 %v888
    %956 = vmatprep.subr.bf16.mxu0 %v885
    %957 = vmatpush1.bf16.msra.mxu0 %v884
    %958 = vmatprep.subr.bf16.mxu0 %v881
    %959 = vmatpush1.bf16.msra.mxu0 %v880
    %960 = vmatprep.subr.bf16.mxu0 0
    %961 = vmatpush2.bf16.msra.mxu0 0
    %962 = vmatprep.subr.bf16.mxu0 0
    %963 = vmatpush2.bf16.msra.mxu0 0
    %964 = vmatprep.subr.bf16.mxu0 0
    %965 = vmatpush2.bf16.msra.mxu0 0
    %966 = vmatprep.subr.bf16.mxu0 0
    %967 = vmatpush2.bf16.msra.mxu0 0
    %968 = vmatprep.subr.bf16.mxu0 0
    %969 = vmatpush2.bf16.msra.mxu0 0
    %970 = vmatprep.subr.bf16.mxu0 0
    %971 = vmatpush2.bf16.msra.mxu0 0
    %972 = vmatprep.subr.bf16.mxu0 0
    %973 = vmatpush2.bf16.msra.mxu0 0
    %974 = vmatprep.subr.bf16.mxu0 0
    %975 = vmatpush2.bf16.msra.mxu0 0
    %976 = vmatprep.mubr.bf16.mxu0 0
    %977 = vmatmul.mubr.bf16.gmra.mxu0 %v751
    %v978 = vpop.f32.mrf.mxu0
    %v979 = vadd.f32 0.0, %v978
    %v980 = vpop.f32.mrf.mxu0
    %v981 = vadd.f32 0.0, %v980
    %v982 = vpop.f32.mrf.mxu0
    %v983 = vpop.f32.mrf.mxu0
    %984 = vdwg.mxu0
    %985 = vmatprep.subr.bf16.mxu0 %v911
    %986 = vmatpush1.bf16.msra.mxu0 %v910
    %987 = vmatprep.subr.bf16.mxu0 %v907
    %988 = vmatpush1.bf16.msra.mxu0 %v906
    %989 = vmatprep.subr.bf16.mxu0 %v903
    %990 = vmatpush1.bf16.msra.mxu0 %v902
    %991 = vmatprep.subr.bf16.mxu0 %v899
    %992 = vmatpush1.bf16.msra.mxu0 %v898
    %993 = vmatprep.subr.bf16.mxu0 %v895
    %994 = vmatpush1.bf16.msra.mxu0 %v894
    %995 = vmatprep.subr.bf16.mxu0 %v891
    %996 = vmatpush1.bf16.msra.mxu0 %v890
    %997 = vmatprep.subr.bf16.mxu0 %v887
    %998 = vmatpush1.bf16.msra.mxu0 %v886
    %999 = vmatprep.subr.bf16.mxu0 %v883
    %1000 = vmatpush1.bf16.msra.mxu0 %v882
    %1001 = vmatprep.subr.bf16.mxu0 0
    %1002 = vmatpush2.bf16.msra.mxu0 0
    %1003 = vmatprep.subr.bf16.mxu0 0
    %1004 = vmatpush2.bf16.msra.mxu0 0
    %1005 = vmatprep.subr.bf16.mxu0 0
    %1006 = vmatpush2.bf16.msra.mxu0 0
    %1007 = vmatprep.subr.bf16.mxu0 0
    %1008 = vmatpush2.bf16.msra.mxu0 0
    %1009 = vmatprep.subr.bf16.mxu0 0
    %1010 = vmatpush2.bf16.msra.mxu0 0
    %1011 = vmatprep.subr.bf16.mxu0 0
    %1012 = vmatpush2.bf16.msra.mxu0 0
    %1013 = vmatprep.subr.bf16.mxu0 0
    %1014 = vmatpush2.bf16.msra.mxu0 0
    %1015 = vmatprep.subr.bf16.mxu0 0
    %1016 = vmatpush2.bf16.msra.mxu0 0
    %1017 = vmatprep.mubr.bf16.mxu0 0
    %1018 = vmatmul.mubr.bf16.gmra.mxu0 %v751
    %v1019 = vpop.f32.mrf.mxu0
    %v1020 = vadd.f32 0.0, %v1019
    %v1021 = vpop.f32.mrf.mxu0
    %v1022 = vadd.f32 0.0, %v1021
    %v1023 = vpop.f32.mrf.mxu0
    %v1024 = vpop.f32.mrf.mxu0
    %1025 = vdwg.mxu0
    %v1058 = vunpack.c.l.b16 %v719
    %v1059 = vunpack.c.h.b16 %v719
    %v1060 = vunpack.c.l.b16 %v720
    %v1061 = vunpack.c.h.b16 %v720
    %v1062 = vunpack.c.l.b16 %v721
    %v1063 = vunpack.c.h.b16 %v721
    %v1064 = vunpack.c.l.b16 %v722
    %v1065 = vunpack.c.h.b16 %v722
    %v1066 = vunpack.c.l.b16 %v723
    %v1067 = vunpack.c.h.b16 %v723
    %v1068 = vunpack.c.l.b16 %v724
    %v1069 = vunpack.c.h.b16 %v724
    %v1070 = vunpack.c.l.b16 %v725
    %v1071 = vunpack.c.h.b16 %v725
    %v1072 = vunpack.c.l.b16 %v726
    %v1073 = vunpack.c.h.b16 %v726
    %v1074 = vunpack.c.l.b16 %v727
    %v1075 = vunpack.c.h.b16 %v727
    %v1076 = vunpack.c.l.b16 %v728
    %v1077 = vunpack.c.h.b16 %v728
    %v1078 = vunpack.c.l.b16 %v729
    %v1079 = vunpack.c.h.b16 %v729
    %v1080 = vunpack.c.l.b16 %v730
    %v1081 = vunpack.c.h.b16 %v730
    %v1082 = vunpack.c.l.b16 %v731
    %v1083 = vunpack.c.h.b16 %v731
    %v1084 = vunpack.c.l.b16 %v732
    %v1085 = vunpack.c.h.b16 %v732
    %v1086 = vunpack.c.l.b16 %v733
    %v1087 = vunpack.c.h.b16 %v733
    %v1088 = vunpack.c.l.b16 %v734
    %v1089 = vunpack.c.h.b16 %v734
    %v1090 = vunpack.c.l.b16 %v735
    %v1091 = vunpack.c.h.b16 %v735
    %v1092 = vunpack.c.l.b16 %v736
    %v1093 = vunpack.c.h.b16 %v736
    %v1094 = vunpack.c.l.b16 %v737
    %v1095 = vunpack.c.h.b16 %v737
    %v1096 = vunpack.c.l.b16 %v738
    %v1097 = vunpack.c.h.b16 %v738
    %v1098 = vunpack.c.l.b16 %v739
    %v1099 = vunpack.c.h.b16 %v739
    %v1100 = vunpack.c.l.b16 %v740
    %v1101 = vunpack.c.h.b16 %v740
    %v1102 = vunpack.c.l.b16 %v741
    %v1103 = vunpack.c.h.b16 %v741
    %v1104 = vunpack.c.l.b16 %v742
    %v1105 = vunpack.c.h.b16 %v742
    %v1106 = vunpack.c.l.b16 %v743
    %v1107 = vunpack.c.h.b16 %v743
    %v1108 = vunpack.c.l.b16 %v744
    %v1109 = vunpack.c.h.b16 %v744
    %v1110 = vunpack.c.l.b16 %v745
    %v1111 = vunpack.c.h.b16 %v745
    %v1112 = vunpack.c.l.b16 %v746
    %v1113 = vunpack.c.h.b16 %v746
    %v1114 = vunpack.c.l.b16 %v747
    %v1115 = vunpack.c.h.b16 %v747
    %v1116 = vunpack.c.l.b16 %v748
    %v1117 = vunpack.c.h.b16 %v748
    %v1118 = vunpack.c.l.b16 %v749
    %v1119 = vunpack.c.h.b16 %v749
    %v1120 = vunpack.c.l.b16 %v750
    %v1121 = vunpack.c.h.b16 %v750
    %v1122 = vpack.c.b16 %v1062, %v1058
    %v1123 = vpack.c.b16 %v1063, %v1059
    %v1124 = vpack.c.b16 %v1064, %v1060
    %v1125 = vpack.c.b16 %v1065, %v1061
    %v1126 = vpack.c.b16 %v1070, %v1066
    %v1127 = vpack.c.b16 %v1071, %v1067
    %v1128 = vpack.c.b16 %v1072, %v1068
    %v1129 = vpack.c.b16 %v1073, %v1069
    %v1130 = vpack.c.b16 %v1078, %v1074
    %v1131 = vpack.c.b16 %v1079, %v1075
    %v1132 = vpack.c.b16 %v1080, %v1076
    %v1133 = vpack.c.b16 %v1081, %v1077
    %v1134 = vpack.c.b16 %v1086, %v1082
    %v1135 = vpack.c.b16 %v1087, %v1083
    %v1136 = vpack.c.b16 %v1088, %v1084
    %v1137 = vpack.c.b16 %v1089, %v1085
    %v1138 = vpack.c.b16 %v1094, %v1090
    %v1139 = vpack.c.b16 %v1095, %v1091
    %v1140 = vpack.c.b16 %v1096, %v1092
    %v1141 = vpack.c.b16 %v1097, %v1093
    %v1142 = vpack.c.b16 %v1102, %v1098
    %v1143 = vpack.c.b16 %v1103, %v1099
    %v1144 = vpack.c.b16 %v1104, %v1100
    %v1145 = vpack.c.b16 %v1105, %v1101
    %v1146 = vpack.c.b16 %v1110, %v1106
    %v1147 = vpack.c.b16 %v1111, %v1107
    %v1148 = vpack.c.b16 %v1112, %v1108
    %v1149 = vpack.c.b16 %v1113, %v1109
    %v1150 = vpack.c.b16 %v1118, %v1114
    %v1151 = vpack.c.b16 %v1119, %v1115
    %v1152 = vpack.c.b16 %v1120, %v1116
    %v1153 = vpack.c.b16 %v1121, %v1117
    %1186 = vmatprep.subr.bf16.mxu0 %v1151
    %1187 = vmatpush1.bf16.msra.mxu0 %v1150
    %1188 = vmatprep.subr.bf16.mxu0 %v1147
    %1189 = vmatpush1.bf16.msra.mxu0 %v1146
    %1190 = vmatprep.subr.bf16.mxu0 %v1143
    %1191 = vmatpush1.bf16.msra.mxu0 %v1142
    %1192 = vmatprep.subr.bf16.mxu0 %v1139
    %1193 = vmatpush1.bf16.msra.mxu0 %v1138
    %1194 = vmatprep.subr.bf16.mxu0 %v1135
    %1195 = vmatpush1.bf16.msra.mxu0 %v1134
    %1196 = vmatprep.subr.bf16.mxu0 %v1131
    %1197 = vmatpush1.bf16.msra.mxu0 %v1130
    %1198 = vmatprep.subr.bf16.mxu0 %v1127
    %1199 = vmatpush1.bf16.msra.mxu0 %v1126
    %1200 = vmatprep.subr.bf16.mxu0 %v1123
    %1201 = vmatpush1.bf16.msra.mxu0 %v1122
    %1202 = vmatprep.subr.bf16.mxu0 0
    %1203 = vmatpush2.bf16.msra.mxu0 0
    %1204 = vmatprep.subr.bf16.mxu0 0
    %1205 = vmatpush2.bf16.msra.mxu0 0
    %1206 = vmatprep.subr.bf16.mxu0 0
    %1207 = vmatpush2.bf16.msra.mxu0 0
    %1208 = vmatprep.subr.bf16.mxu0 0
    %1209 = vmatpush2.bf16.msra.mxu0 0
    %1210 = vmatprep.subr.bf16.mxu0 0
    %1211 = vmatpush2.bf16.msra.mxu0 0
    %1212 = vmatprep.subr.bf16.mxu0 0
    %1213 = vmatpush2.bf16.msra.mxu0 0
    %1214 = vmatprep.subr.bf16.mxu0 0
    %1215 = vmatpush2.bf16.msra.mxu0 0
    %1216 = vmatprep.subr.bf16.mxu0 0
    %1217 = vmatpush2.bf16.msra.mxu0 0
    %1218 = vmatprep.mubr.bf16.mxu0 0
    %1219 = vmatmul.mubr.bf16.gmra.mxu0 %v718
    %v1220 = vpop.f32.mrf.mxu0
    %v1221 = vadd.f32 %v979, %v1220
    %v1222 = vpop.f32.mrf.mxu0
    %v1223 = vadd.f32 %v981, %v1222
    %v1224 = vpop.f32.mrf.mxu0
    %v1225 = vpop.f32.mrf.mxu0
    %1226 = vdwg.mxu0
    %1227 = vmatprep.subr.bf16.mxu0 %v1153
    %1228 = vmatpush1.bf16.msra.mxu0 %v1152
    %1229 = vmatprep.subr.bf16.mxu0 %v1149
    %1230 = vmatpush1.bf16.msra.mxu0 %v1148
    %1231 = vmatprep.subr.bf16.mxu0 %v1145
    %1232 = vmatpush1.bf16.msra.mxu0 %v1144
    %1233 = vmatprep.subr.bf16.mxu0 %v1141
    %1234 = vmatpush1.bf16.msra.mxu0 %v1140
    %1235 = vmatprep.subr.bf16.mxu0 %v1137
    %1236 = vmatpush1.bf16.msra.mxu0 %v1136
    %1237 = vmatprep.subr.bf16.mxu0 %v1133
    %1238 = vmatpush1.bf16.msra.mxu0 %v1132
    %1239 = vmatprep.subr.bf16.mxu0 %v1129
    %1240 = vmatpush1.bf16.msra.mxu0 %v1128
    %1241 = vmatprep.subr.bf16.mxu0 %v1125
    %1242 = vmatpush1.bf16.msra.mxu0 %v1124
    %1243 = vmatprep.subr.bf16.mxu0 0
    %1244 = vmatpush2.bf16.msra.mxu0 0
    %1245 = vmatprep.subr.bf16.mxu0 0
    %1246 = vmatpush2.bf16.msra.mxu0 0
    %1247 = vmatprep.subr.bf16.mxu0 0
    %1248 = vmatpush2.bf16.msra.mxu0 0
    %1249 = vmatprep.subr.bf16.mxu0 0
    %1250 = vmatpush2.bf16.msra.mxu0 0
    %1251 = vmatprep.subr.bf16.mxu0 0
    %1252 = vmatpush2.bf16.msra.mxu0 0
    %1253 = vmatprep.subr.bf16.mxu0 0
    %1254 = vmatpush2.bf16.msra.mxu0 0
    %1255 = vmatprep.subr.bf16.mxu0 0
    %1256 = vmatpush2.bf16.msra.mxu0 0
    %1257 = vmatprep.subr.bf16.mxu0 0
    %1258 = vmatpush2.bf16.msra.mxu0 0
    %1259 = vmatprep.mubr.bf16.mxu0 0
    %1260 = vmatmul.mubr.bf16.gmra.mxu0 %v718
    %v1261 = vpop.f32.mrf.mxu0
    %v1262 = vadd.f32 %v1020, %v1261
    %v1263 = vpop.f32.mrf.mxu0
    %v1264 = vadd.f32 %v1022, %v1263
    %v1265 = vpop.f32.mrf.mxu0
    %v1266 = vpop.f32.mrf.mxu0
    %1267 = vdwg.mxu0
    %v1268 = vld [vmem:[#allocation15] sm:$0xff]
    %v1269 = vld [vmem:[#allocation15 + $0x8] sm:$0xff]
    %v1270 = vld [vmem:[#allocation15 + $0x10] sm:$0xff]
    %v1271 = vld [vmem:[#allocation15 + $0x18] sm:$0xff]
    %v1272 = vadd.f32 %v1221, %v1268
    %v1273 = vadd.f32 %v1223, %v1269
    %v1274 = vadd.f32 %v1262, %v1270
    %v1275 = vadd.f32 %v1264, %v1271
    %v1276 = vxor.u32 %v1272, 2147483648
    %v1277 = vmul.f32 %v1276, 1.442695
    %v1278 = vpow.pop %v1277
    %v1279 = vadd.f32 %v1278, 1.0
    %v1280 = vrcp.pop %v1279
    %v1281 = vmul.f32 1.0, %v1280
    %v1282 = vxor.u32 %v1273, 2147483648
    %v1283 = vmul.f32 %v1282, 1.442695
    %v1284 = vpow.pop %v1283
    %v1285 = vadd.f32 %v1284, 1.0
    %v1286 = vrcp.pop %v1285
    %v1287 = vmul.f32 1.0, %v1286
    %v1288 = vtanh.pop %v1274
    %v1289 = vxor.u32 %v1275, 2147483648
    %v1290 = vmul.f32 %v1289, 1.442695
    %v1291 = vpow.pop %v1290
    %v1292 = vadd.f32 %v1291, 1.0
    %v1293 = vrcp.pop %v1292
    %v1294 = vmul.f32 1.0, %v1293
    %v1295 = vmul.f32 %v1287, %v717
    %v1296 = vmul.f32 %v1281, %v1288
    %v1297 = vadd.f32 %v1295, %v1296
    %v1298 = vtanh.pop %v1297
    %v1299 = vmul.f32 %v1294, %v1298
    %1300 = vst [vmem:[%s714] sm:$0xff] %v1299
    %1301 = vst [vmem:[%s716] sm:$0xff] %v1297
    %v1302 = vpack.c.bf16 %v1299, %v1299
    %1303 = vst [vmem:[#allocation16] sm:$0xf] %v1302
    %s1304 = scalar_lea.vmem [#allocation4], 8
    %v1305 = vld [vmem:[%s1304] sm:$0xff]
    %v1306 = vld [vmem:[#allocation2] sm:$0xff]
    %v1307 = vld [vmem:[#allocation3] sm:$0xff]
    %v1308 = vpack.c.bf16 %v1305, %v1305
    %v1309 = vld [vmem:[#allocation7] sm:$0xff]
    %v1310 = vld [vmem:[#allocation7 + $0x8] sm:$0xff]
    %v1311 = vld [vmem:[#allocation7 + $0x10] sm:$0xff]
    %v1312 = vld [vmem:[#allocation7 + $0x18] sm:$0xff]
    %v1313 = vld [vmem:[#allocation7 + $0x20] sm:$0xff]
    %v1314 = vld [vmem:[#allocation7 + $0x28] sm:$0xff]
    %v1315 = vld [vmem:[#allocation7 + $0x30] sm:$0xff]
    %v1316 = vld [vmem:[#allocation7 + $0x38] sm:$0xff]
    %v1317 = vld [vmem:[#allocation7 + $0x40] sm:$0xff]
    %v1318 = vld [vmem:[#allocation7 + $0x48] sm:$0xff]
    %v1319 = vld [vmem:[#allocation7 + $0x50] sm:$0xff]
    %v1320 = vld [vmem:[#allocation7 + $0x58] sm:$0xff]
    %v1321 = vld [vmem:[#allocation7 + $0x60] sm:$0xff]
    %v1322 = vld [vmem:[#allocation7 + $0x68] sm:$0xff]
    %v1323 = vld [vmem:[#allocation7 + $0x70] sm:$0xff]
    %v1324 = vld [vmem:[#allocation7 + $0x78] sm:$0xff]
    %v1325 = vld [vmem:[#allocation7 + $0x80] sm:$0xff]
    %v1326 = vld [vmem:[#allocation7 + $0x88] sm:$0xff]
    %v1327 = vld [vmem:[#allocation7 + $0x90] sm:$0xff]
    %v1328 = vld [vmem:[#allocation7 + $0x98] sm:$0xff]
    %v1329 = vld [vmem:[#allocation7 + $0xa0] sm:$0xff]
    %v1330 = vld [vmem:[#allocation7 + $0xa8] sm:$0xff]
    %v1331 = vld [vmem:[#allocation7 + $0xb0] sm:$0xff]
    %v1332 = vld [vmem:[#allocation7 + $0xb8] sm:$0xff]
    %v1333 = vld [vmem:[#allocation7 + $0xc0] sm:$0xff]
    %v1334 = vld [vmem:[#allocation7 + $0xc8] sm:$0xff]
    %v1335 = vld [vmem:[#allocation7 + $0xd0] sm:$0xff]
    %v1336 = vld [vmem:[#allocation7 + $0xd8] sm:$0xff]
    %v1337 = vld [vmem:[#allocation7 + $0xe0] sm:$0xff]
    %v1338 = vld [vmem:[#allocation7 + $0xe8] sm:$0xff]
    %v1339 = vld [vmem:[#allocation7 + $0xf0] sm:$0xff]
    %v1340 = vld [vmem:[#allocation7 + $0xf8] sm:$0xff]
    %v1341 = vpack.c.bf16 %v1306, %v1306
    %v1342 = vld [vmem:[#allocation9] sm:$0xff]
    %v1343 = vld [vmem:[#allocation9 + $0x8] sm:$0xff]
    %v1344 = vld [vmem:[#allocation9 + $0x10] sm:$0xff]
    %v1345 = vld [vmem:[#allocation9 + $0x18] sm:$0xff]
    %v1346 = vld [vmem:[#allocation9 + $0x20] sm:$0xff]
    %v1347 = vld [vmem:[#allocation9 + $0x28] sm:$0xff]
    %v1348 = vld [vmem:[#allocation9 + $0x30] sm:$0xff]
    %v1349 = vld [vmem:[#allocation9 + $0x38] sm:$0xff]
    %v1350 = vld [vmem:[#allocation9 + $0x40] sm:$0xff]
    %v1351 = vld [vmem:[#allocation9 + $0x48] sm:$0xff]
    %v1352 = vld [vmem:[#allocation9 + $0x50] sm:$0xff]
    %v1353 = vld [vmem:[#allocation9 + $0x58] sm:$0xff]
    %v1354 = vld [vmem:[#allocation9 + $0x60] sm:$0xff]
    %v1355 = vld [vmem:[#allocation9 + $0x68] sm:$0xff]
    %v1356 = vld [vmem:[#allocation9 + $0x70] sm:$0xff]
    %v1357 = vld [vmem:[#allocation9 + $0x78] sm:$0xff]
    %v1358 = vld [vmem:[#allocation9 + $0x80] sm:$0xff]
    %v1359 = vld [vmem:[#allocation9 + $0x88] sm:$0xff]
    %v1360 = vld [vmem:[#allocation9 + $0x90] sm:$0xff]
    %v1361 = vld [vmem:[#allocation9 + $0x98] sm:$0xff]
    %v1362 = vld [vmem:[#allocation9 + $0xa0] sm:$0xff]
    %v1363 = vld [vmem:[#allocation9 + $0xa8] sm:$0xff]
    %v1364 = vld [vmem:[#allocation9 + $0xb0] sm:$0xff]
    %v1365 = vld [vmem:[#allocation9 + $0xb8] sm:$0xff]
    %v1366 = vld [vmem:[#allocation9 + $0xc0] sm:$0xff]
    %v1367 = vld [vmem:[#allocation9 + $0xc8] sm:$0xff]
    %v1368 = vld [vmem:[#allocation9 + $0xd0] sm:$0xff]
    %v1369 = vld [vmem:[#allocation9 + $0xd8] sm:$0xff]
    %v1370 = vld [vmem:[#allocation9 + $0xe0] sm:$0xff]
    %v1371 = vld [vmem:[#allocation9 + $0xe8] sm:$0xff]
    %v1372 = vld [vmem:[#allocation9 + $0xf0] sm:$0xff]
    %v1373 = vld [vmem:[#allocation9 + $0xf8] sm:$0xff]
    %v1406 = vunpack.c.l.b16 %v1342
    %v1407 = vunpack.c.h.b16 %v1342
    %v1408 = vunpack.c.l.b16 %v1343
    %v1409 = vunpack.c.h.b16 %v1343
    %v1410 = vunpack.c.l.b16 %v1344
    %v1411 = vunpack.c.h.b16 %v1344
    %v1412 = vunpack.c.l.b16 %v1345
    %v1413 = vunpack.c.h.b16 %v1345
    %v1414 = vunpack.c.l.b16 %v1346
    %v1415 = vunpack.c.h.b16 %v1346
    %v1416 = vunpack.c.l.b16 %v1347
    %v1417 = vunpack.c.h.b16 %v1347
    %v1418 = vunpack.c.l.b16 %v1348
    %v1419 = vunpack.c.h.b16 %v1348
    %v1420 = vunpack.c.l.b16 %v1349
    %v1421 = vunpack.c.h.b16 %v1349
    %v1422 = vunpack.c.l.b16 %v1350
    %v1423 = vunpack.c.h.b16 %v1350
    %v1424 = vunpack.c.l.b16 %v1351
    %v1425 = vunpack.c.h.b16 %v1351
    %v1426 = vunpack.c.l.b16 %v1352
    %v1427 = vunpack.c.h.b16 %v1352
    %v1428 = vunpack.c.l.b16 %v1353
    %v1429 = vunpack.c.h.b16 %v1353
    %v1430 = vunpack.c.l.b16 %v1354
    %v1431 = vunpack.c.h.b16 %v1354
    %v1432 = vunpack.c.l.b16 %v1355
    %v1433 = vunpack.c.h.b16 %v1355
    %v1434 = vunpack.c.l.b16 %v1356
    %v1435 = vunpack.c.h.b16 %v1356
    %v1436 = vunpack.c.l.b16 %v1357
    %v1437 = vunpack.c.h.b16 %v1357
    %v1438 = vunpack.c.l.b16 %v1358
    %v1439 = vunpack.c.h.b16 %v1358
    %v1440 = vunpack.c.l.b16 %v1359
    %v1441 = vunpack.c.h.b16 %v1359
    %v1442 = vunpack.c.l.b16 %v1360
    %v1443 = vunpack.c.h.b16 %v1360
    %v1444 = vunpack.c.l.b16 %v1361
    %v1445 = vunpack.c.h.b16 %v1361
    %v1446 = vunpack.c.l.b16 %v1362
    %v1447 = vunpack.c.h.b16 %v1362
    %v1448 = vunpack.c.l.b16 %v1363
    %v1449 = vunpack.c.h.b16 %v1363
    %v1450 = vunpack.c.l.b16 %v1364
    %v1451 = vunpack.c.h.b16 %v1364
    %v1452 = vunpack.c.l.b16 %v1365
    %v1453 = vunpack.c.h.b16 %v1365
    %v1454 = vunpack.c.l.b16 %v1366
    %v1455 = vunpack.c.h.b16 %v1366
    %v1456 = vunpack.c.l.b16 %v1367
    %v1457 = vunpack.c.h.b16 %v1367
    %v1458 = vunpack.c.l.b16 %v1368
    %v1459 = vunpack.c.h.b16 %v1368
    %v1460 = vunpack.c.l.b16 %v1369
    %v1461 = vunpack.c.h.b16 %v1369
    %v1462 = vunpack.c.l.b16 %v1370
    %v1463 = vunpack.c.h.b16 %v1370
    %v1464 = vunpack.c.l.b16 %v1371
    %v1465 = vunpack.c.h.b16 %v1371
    %v1466 = vunpack.c.l.b16 %v1372
    %v1467 = vunpack.c.h.b16 %v1372
    %v1468 = vunpack.c.l.b16 %v1373
    %v1469 = vunpack.c.h.b16 %v1373
    %v1470 = vpack.c.b16 %v1410, %v1406
    %v1471 = vpack.c.b16 %v1411, %v1407
    %v1472 = vpack.c.b16 %v1412, %v1408
    %v1473 = vpack.c.b16 %v1413, %v1409
    %v1474 = vpack.c.b16 %v1418, %v1414
    %v1475 = vpack.c.b16 %v1419, %v1415
    %v1476 = vpack.c.b16 %v1420, %v1416
    %v1477 = vpack.c.b16 %v1421, %v1417
    %v1478 = vpack.c.b16 %v1426, %v1422
    %v1479 = vpack.c.b16 %v1427, %v1423
    %v1480 = vpack.c.b16 %v1428, %v1424
    %v1481 = vpack.c.b16 %v1429, %v1425
    %v1482 = vpack.c.b16 %v1434, %v1430
    %v1483 = vpack.c.b16 %v1435, %v1431
    %v1484 = vpack.c.b16 %v1436, %v1432
    %v1485 = vpack.c.b16 %v1437, %v1433
    %v1486 = vpack.c.b16 %v1442, %v1438
    %v1487 = vpack.c.b16 %v1443, %v1439
    %v1488 = vpack.c.b16 %v1444, %v1440
    %v1489 = vpack.c.b16 %v1445, %v1441
    %v1490 = vpack.c.b16 %v1450, %v1446
    %v1491 = vpack.c.b16 %v1451, %v1447
    %v1492 = vpack.c.b16 %v1452, %v1448
    %v1493 = vpack.c.b16 %v1453, %v1449
    %v1494 = vpack.c.b16 %v1458, %v1454
    %v1495 = vpack.c.b16 %v1459, %v1455
    %v1496 = vpack.c.b16 %v1460, %v1456
    %v1497 = vpack.c.b16 %v1461, %v1457
    %v1498 = vpack.c.b16 %v1466, %v1462
    %v1499 = vpack.c.b16 %v1467, %v1463
    %v1500 = vpack.c.b16 %v1468, %v1464
    %v1501 = vpack.c.b16 %v1469, %v1465
    %1534 = vmatprep.subr.bf16.mxu0 %v1499
    %1535 = vmatpush1.bf16.msra.mxu0 %v1498
    %1536 = vmatprep.subr.bf16.mxu0 %v1495
    %1537 = vmatpush1.bf16.msra.mxu0 %v1494
    %1538 = vmatprep.subr.bf16.mxu0 %v1491
    %1539 = vmatpush1.bf16.msra.mxu0 %v1490
    %1540 = vmatprep.subr.bf16.mxu0 %v1487
    %1541 = vmatpush1.bf16.msra.mxu0 %v1486
    %1542 = vmatprep.subr.bf16.mxu0 %v1483
    %1543 = vmatpush1.bf16.msra.mxu0 %v1482
    %1544 = vmatprep.subr.bf16.mxu0 %v1479
    %1545 = vmatpush1.bf16.msra.mxu0 %v1478
    %1546 = vmatprep.subr.bf16.mxu0 %v1475
    %1547 = vmatpush1.bf16.msra.mxu0 %v1474
    %1548 = vmatprep.subr.bf16.mxu0 %v1471
    %1549 = vmatpush1.bf16.msra.mxu0 %v1470
    %1550 = vmatprep.subr.bf16.mxu0 0
    %1551 = vmatpush2.bf16.msra.mxu0 0
    %1552 = vmatprep.subr.bf16.mxu0 0
    %1553 = vmatpush2.bf16.msra.mxu0 0
    %1554 = vmatprep.subr.bf16.mxu0 0
    %1555 = vmatpush2.bf16.msra.mxu0 0
    %1556 = vmatprep.subr.bf16.mxu0 0
    %1557 = vmatpush2.bf16.msra.mxu0 0
    %1558 = vmatprep.subr.bf16.mxu0 0
    %1559 = vmatpush2.bf16.msra.mxu0 0
    %1560 = vmatprep.subr.bf16.mxu0 0
    %1561 = vmatpush2.bf16.msra.mxu0 0
    %1562 = vmatprep.subr.bf16.mxu0 0
    %1563 = vmatpush2.bf16.msra.mxu0 0
    %1564 = vmatprep.subr.bf16.mxu0 0
    %1565 = vmatpush2.bf16.msra.mxu0 0
    %1566 = vmatprep.mubr.bf16.mxu0 0
    %1567 = vmatmul.mubr.bf16.gmra.mxu0 %v1341
    %v1568 = vpop.f32.mrf.mxu0
    %v1569 = vadd.f32 0.0, %v1568
    %v1570 = vpop.f32.mrf.mxu0
    %v1571 = vadd.f32 0.0, %v1570
    %v1572 = vpop.f32.mrf.mxu0
    %v1573 = vpop.f32.mrf.mxu0
    %1574 = vdwg.mxu0
    %1575 = vmatprep.subr.bf16.mxu0 %v1501
    %1576 = vmatpush1.bf16.msra.mxu0 %v1500
    %1577 = vmatprep.subr.bf16.mxu0 %v1497
    %1578 = vmatpush1.bf16.msra.mxu0 %v1496
    %1579 = vmatprep.subr.bf16.mxu0 %v1493
    %1580 = vmatpush1.bf16.msra.mxu0 %v1492
    %1581 = vmatprep.subr.bf16.mxu0 %v1489
    %1582 = vmatpush1.bf16.msra.mxu0 %v1488
    %1583 = vmatprep.subr.bf16.mxu0 %v1485
    %1584 = vmatpush1.bf16.msra.mxu0 %v1484
    %1585 = vmatprep.subr.bf16.mxu0 %v1481
    %1586 = vmatpush1.bf16.msra.mxu0 %v1480
    %1587 = vmatprep.subr.bf16.mxu0 %v1477
    %1588 = vmatpush1.bf16.msra.mxu0 %v1476
    %1589 = vmatprep.subr.bf16.mxu0 %v1473
    %1590 = vmatpush1.bf16.msra.mxu0 %v1472
    %1591 = vmatprep.subr.bf16.mxu0 0
    %1592 = vmatpush2.bf16.msra.mxu0 0
    %1593 = vmatprep.subr.bf16.mxu0 0
    %1594 = vmatpush2.bf16.msra.mxu0 0
    %1595 = vmatprep.subr.bf16.mxu0 0
    %1596 = vmatpush2.bf16.msra.mxu0 0
    %1597 = vmatprep.subr.bf16.mxu0 0
    %1598 = vmatpush2.bf16.msra.mxu0 0
    %1599 = vmatprep.subr.bf16.mxu0 0
    %1600 = vmatpush2.bf16.msra.mxu0 0
    %1601 = vmatprep.subr.bf16.mxu0 0
    %1602 = vmatpush2.bf16.msra.mxu0 0
    %1603 = vmatprep.subr.bf16.mxu0 0
    %1604 = vmatpush2.bf16.msra.mxu0 0
    %1605 = vmatprep.subr.bf16.mxu0 0
    %1606 = vmatpush2.bf16.msra.mxu0 0
    %1607 = vmatprep.mubr.bf16.mxu0 0
    %1608 = vmatmul.mubr.bf16.gmra.mxu0 %v1341
    %v1609 = vpop.f32.mrf.mxu0
    %v1610 = vadd.f32 0.0, %v1609
    %v1611 = vpop.f32.mrf.mxu0
    %v1612 = vadd.f32 0.0, %v1611
    %v1613 = vpop.f32.mrf.mxu0
    %v1614 = vpop.f32.mrf.mxu0
    %1615 = vdwg.mxu0
    %v1648 = vunpack.c.l.b16 %v1309
    %v1649 = vunpack.c.h.b16 %v1309
    %v1650 = vunpack.c.l.b16 %v1310
    %v1651 = vunpack.c.h.b16 %v1310
    %v1652 = vunpack.c.l.b16 %v1311
    %v1653 = vunpack.c.h.b16 %v1311
    %v1654 = vunpack.c.l.b16 %v1312
    %v1655 = vunpack.c.h.b16 %v1312
    %v1656 = vunpack.c.l.b16 %v1313
    %v1657 = vunpack.c.h.b16 %v1313
    %v1658 = vunpack.c.l.b16 %v1314
    %v1659 = vunpack.c.h.b16 %v1314
    %v1660 = vunpack.c.l.b16 %v1315
    %v1661 = vunpack.c.h.b16 %v1315
    %v1662 = vunpack.c.l.b16 %v1316
    %v1663 = vunpack.c.h.b16 %v1316
    %v1664 = vunpack.c.l.b16 %v1317
    %v1665 = vunpack.c.h.b16 %v1317
    %v1666 = vunpack.c.l.b16 %v1318
    %v1667 = vunpack.c.h.b16 %v1318
    %v1668 = vunpack.c.l.b16 %v1319
    %v1669 = vunpack.c.h.b16 %v1319
    %v1670 = vunpack.c.l.b16 %v1320
    %v1671 = vunpack.c.h.b16 %v1320
    %v1672 = vunpack.c.l.b16 %v1321
    %v1673 = vunpack.c.h.b16 %v1321
    %v1674 = vunpack.c.l.b16 %v1322
    %v1675 = vunpack.c.h.b16 %v1322
    %v1676 = vunpack.c.l.b16 %v1323
    %v1677 = vunpack.c.h.b16 %v1323
    %v1678 = vunpack.c.l.b16 %v1324
    %v1679 = vunpack.c.h.b16 %v1324
    %v1680 = vunpack.c.l.b16 %v1325
    %v1681 = vunpack.c.h.b16 %v1325
    %v1682 = vunpack.c.l.b16 %v1326
    %v1683 = vunpack.c.h.b16 %v1326
    %v1684 = vunpack.c.l.b16 %v1327
    %v1685 = vunpack.c.h.b16 %v1327
    %v1686 = vunpack.c.l.b16 %v1328
    %v1687 = vunpack.c.h.b16 %v1328
    %v1688 = vunpack.c.l.b16 %v1329
    %v1689 = vunpack.c.h.b16 %v1329
    %v1690 = vunpack.c.l.b16 %v1330
    %v1691 = vunpack.c.h.b16 %v1330
    %v1692 = vunpack.c.l.b16 %v1331
    %v1693 = vunpack.c.h.b16 %v1331
    %v1694 = vunpack.c.l.b16 %v1332
    %v1695 = vunpack.c.h.b16 %v1332
    %v1696 = vunpack.c.l.b16 %v1333
    %v1697 = vunpack.c.h.b16 %v1333
    %v1698 = vunpack.c.l.b16 %v1334
    %v1699 = vunpack.c.h.b16 %v1334
    %v1700 = vunpack.c.l.b16 %v1335
    %v1701 = vunpack.c.h.b16 %v1335
    %v1702 = vunpack.c.l.b16 %v1336
    %v1703 = vunpack.c.h.b16 %v1336
    %v1704 = vunpack.c.l.b16 %v1337
    %v1705 = vunpack.c.h.b16 %v1337
    %v1706 = vunpack.c.l.b16 %v1338
    %v1707 = vunpack.c.h.b16 %v1338
    %v1708 = vunpack.c.l.b16 %v1339
    %v1709 = vunpack.c.h.b16 %v1339
    %v1710 = vunpack.c.l.b16 %v1340
    %v1711 = vunpack.c.h.b16 %v1340
    %v1712 = vpack.c.b16 %v1652, %v1648
    %v1713 = vpack.c.b16 %v1653, %v1649
    %v1714 = vpack.c.b16 %v1654, %v1650
    %v1715 = vpack.c.b16 %v1655, %v1651
    %v1716 = vpack.c.b16 %v1660, %v1656
    %v1717 = vpack.c.b16 %v1661, %v1657
    %v1718 = vpack.c.b16 %v1662, %v1658
    %v1719 = vpack.c.b16 %v1663, %v1659
    %v1720 = vpack.c.b16 %v1668, %v1664
    %v1721 = vpack.c.b16 %v1669, %v1665
    %v1722 = vpack.c.b16 %v1670, %v1666
    %v1723 = vpack.c.b16 %v1671, %v1667
    %v1724 = vpack.c.b16 %v1676, %v1672
    %v1725 = vpack.c.b16 %v1677, %v1673
    %v1726 = vpack.c.b16 %v1678, %v1674
    %v1727 = vpack.c.b16 %v1679, %v1675
    %v1728 = vpack.c.b16 %v1684, %v1680
    %v1729 = vpack.c.b16 %v1685, %v1681
    %v1730 = vpack.c.b16 %v1686, %v1682
    %v1731 = vpack.c.b16 %v1687, %v1683
    %v1732 = vpack.c.b16 %v1692, %v1688
    %v1733 = vpack.c.b16 %v1693, %v1689
    %v1734 = vpack.c.b16 %v1694, %v1690
    %v1735 = vpack.c.b16 %v1695, %v1691
    %v1736 = vpack.c.b16 %v1700, %v1696
    %v1737 = vpack.c.b16 %v1701, %v1697
    %v1738 = vpack.c.b16 %v1702, %v1698
    %v1739 = vpack.c.b16 %v1703, %v1699
    %v1740 = vpack.c.b16 %v1708, %v1704
    %v1741 = vpack.c.b16 %v1709, %v1705
    %v1742 = vpack.c.b16 %v1710, %v1706
    %v1743 = vpack.c.b16 %v1711, %v1707
    %1776 = vmatprep.subr.bf16.mxu0 %v1741
    %1777 = vmatpush1.bf16.msra.mxu0 %v1740
    %1778 = vmatprep.subr.bf16.mxu0 %v1737
    %1779 = vmatpush1.bf16.msra.mxu0 %v1736
    %1780 = vmatprep.subr.bf16.mxu0 %v1733
    %1781 = vmatpush1.bf16.msra.mxu0 %v1732
    %1782 = vmatprep.subr.bf16.mxu0 %v1729
    %1783 = vmatpush1.bf16.msra.mxu0 %v1728
    %1784 = vmatprep.subr.bf16.mxu0 %v1725
    %1785 = vmatpush1.bf16.msra.mxu0 %v1724
    %1786 = vmatprep.subr.bf16.mxu0 %v1721
    %1787 = vmatpush1.bf16.msra.mxu0 %v1720
    %1788 = vmatprep.subr.bf16.mxu0 %v1717
    %1789 = vmatpush1.bf16.msra.mxu0 %v1716
    %1790 = vmatprep.subr.bf16.mxu0 %v1713
    %1791 = vmatpush1.bf16.msra.mxu0 %v1712
    %1792 = vmatprep.subr.bf16.mxu0 0
    %1793 = vmatpush2.bf16.msra.mxu0 0
    %1794 = vmatprep.subr.bf16.mxu0 0
    %1795 = vmatpush2.bf16.msra.mxu0 0
    %1796 = vmatprep.subr.bf16.mxu0 0
    %1797 = vmatpush2.bf16.msra.mxu0 0
    %1798 = vmatprep.subr.bf16.mxu0 0
    %1799 = vmatpush2.bf16.msra.mxu0 0
    %1800 = vmatprep.subr.bf16.mxu0 0
    %1801 = vmatpush2.bf16.msra.mxu0 0
    %1802 = vmatprep.subr.bf16.mxu0 0
    %1803 = vmatpush2.bf16.msra.mxu0 0
    %1804 = vmatprep.subr.bf16.mxu0 0
    %1805 = vmatpush2.bf16.msra.mxu0 0
    %1806 = vmatprep.subr.bf16.mxu0 0
    %1807 = vmatpush2.bf16.msra.mxu0 0
    %1808 = vmatprep.mubr.bf16.mxu0 0
    %1809 = vmatmul.mubr.bf16.gmra.mxu0 %v1308
    %v1810 = vpop.f32.mrf.mxu0
    %v1811 = vadd.f32 %v1569, %v1810
    %v1812 = vpop.f32.mrf.mxu0
    %v1813 = vadd.f32 %v1571, %v1812
    %v1814 = vpop.f32.mrf.mxu0
    %v1815 = vpop.f32.mrf.mxu0
    %1816 = vdwg.mxu0
    %1817 = vmatprep.subr.bf16.mxu0 %v1743
    %1818 = vmatpush1.bf16.msra.mxu0 %v1742
    %1819 = vmatprep.subr.bf16.mxu0 %v1739
    %1820 = vmatpush1.bf16.msra.mxu0 %v1738
    %1821 = vmatprep.subr.bf16.mxu0 %v1735
    %1822 = vmatpush1.bf16.msra.mxu0 %v1734
    %1823 = vmatprep.subr.bf16.mxu0 %v1731
    %1824 = vmatpush1.bf16.msra.mxu0 %v1730
    %1825 = vmatprep.subr.bf16.mxu0 %v1727
    %1826 = vmatpush1.bf16.msra.mxu0 %v1726
    %1827 = vmatprep.subr.bf16.mxu0 %v1723
    %1828 = vmatpush1.bf16.msra.mxu0 %v1722
    %1829 = vmatprep.subr.bf16.mxu0 %v1719
    %1830 = vmatpush1.bf16.msra.mxu0 %v1718
    %1831 = vmatprep.subr.bf16.mxu0 %v1715
    %1832 = vmatpush1.bf16.msra.mxu0 %v1714
    %1833 = vmatprep.subr.bf16.mxu0 0
    %1834 = vmatpush2.bf16.msra.mxu0 0
    %1835 = vmatprep.subr.bf16.mxu0 0
    %1836 = vmatpush2.bf16.msra.mxu0 0
    %1837 = vmatprep.subr.bf16.mxu0 0
    %1838 = vmatpush2.bf16.msra.mxu0 0
    %1839 = vmatprep.subr.bf16.mxu0 0
    %1840 = vmatpush2.bf16.msra.mxu0 0
    %1841 = vmatprep.subr.bf16.mxu0 0
    %1842 = vmatpush2.bf16.msra.mxu0 0
    %1843 = vmatprep.subr.bf16.mxu0 0
    %1844 = vmatpush2.bf16.msra.mxu0 0
    %1845 = vmatprep.subr.bf16.mxu0 0
    %1846 = vmatpush2.bf16.msra.mxu0 0
    %1847 = vmatprep.subr.bf16.mxu0 0
    %1848 = vmatpush2.bf16.msra.mxu0 0
    %1849 = vmatprep.mubr.bf16.mxu0 0
    %1850 = vmatmul.mubr.bf16.gmra.mxu0 %v1308
    %v1851 = vpop.f32.mrf.mxu0
    %v1852 = vadd.f32 %v1610, %v1851
    %v1853 = vpop.f32.mrf.mxu0
    %v1854 = vadd.f32 %v1612, %v1853
    %v1855 = vpop.f32.mrf.mxu0
    %v1856 = vpop.f32.mrf.mxu0
    %1857 = vdwg.mxu0
    %v1858 = vld [vmem:[#allocation10] sm:$0xff]
    %v1859 = vld [vmem:[#allocation10 + $0x8] sm:$0xff]
    %v1860 = vld [vmem:[#allocation10 + $0x10] sm:$0xff]
    %v1861 = vld [vmem:[#allocation10 + $0x18] sm:$0xff]
    %v1862 = vadd.f32 %v1811, %v1858
    %v1863 = vadd.f32 %v1813, %v1859
    %v1864 = vadd.f32 %v1852, %v1860
    %v1865 = vadd.f32 %v1854, %v1861
    %v1866 = vxor.u32 %v1862, 2147483648
    %v1867 = vmul.f32 %v1866, 1.442695
    %v1868 = vpow.pop %v1867
    %v1869 = vadd.f32 %v1868, 1.0
    %v1870 = vrcp.pop %v1869
    %v1871 = vmul.f32 1.0, %v1870
    %v1872 = vxor.u32 %v1863, 2147483648
    %v1873 = vmul.f32 %v1872, 1.442695
    %v1874 = vpow.pop %v1873
    %v1875 = vadd.f32 %v1874, 1.0
    %v1876 = vrcp.pop %v1875
    %v1877 = vmul.f32 1.0, %v1876
    %v1878 = vtanh.pop %v1864
    %v1879 = vxor.u32 %v1865, 2147483648
    %v1880 = vmul.f32 %v1879, 1.442695
    %v1881 = vpow.pop %v1880
    %v1882 = vadd.f32 %v1881, 1.0
    %v1883 = vrcp.pop %v1882
    %v1884 = vmul.f32 1.0, %v1883
    %v1885 = vmul.f32 %v1877, %v1307
    %v1886 = vmul.f32 %v1871, %v1878
    %v1887 = vadd.f32 %v1885, %v1886
    %v1888 = vtanh.pop %v1887
    %v1889 = vmul.f32 %v1884, %v1888
    %1890 = vst [vmem:[#allocation2] sm:$0xff] %v1889
    %1891 = vst [vmem:[#allocation3] sm:$0xff] %v1887
    %v1892 = vld [vmem:[%s714] sm:$0xff]
    %v1893 = vld [vmem:[%s716] sm:$0xff]
    %v1894 = vpack.c.bf16 %v1889, %v1889
    %v1895 = vld [vmem:[#allocation12] sm:$0xff]
    %v1896 = vld [vmem:[#allocation12 + $0x8] sm:$0xff]
    %v1897 = vld [vmem:[#allocation12 + $0x10] sm:$0xff]
    %v1898 = vld [vmem:[#allocation12 + $0x18] sm:$0xff]
    %v1899 = vld [vmem:[#allocation12 + $0x20] sm:$0xff]
    %v1900 = vld [vmem:[#allocation12 + $0x28] sm:$0xff]
    %v1901 = vld [vmem:[#allocation12 + $0x30] sm:$0xff]
    %v1902 = vld [vmem:[#allocation12 + $0x38] sm:$0xff]
    %v1903 = vld [vmem:[#allocation12 + $0x40] sm:$0xff]
    %v1904 = vld [vmem:[#allocation12 + $0x48] sm:$0xff]
    %v1905 = vld [vmem:[#allocation12 + $0x50] sm:$0xff]
    %v1906 = vld [vmem:[#allocation12 + $0x58] sm:$0xff]
    %v1907 = vld [vmem:[#allocation12 + $0x60] sm:$0xff]
    %v1908 = vld [vmem:[#allocation12 + $0x68] sm:$0xff]
    %v1909 = vld [vmem:[#allocation12 + $0x70] sm:$0xff]
    %v1910 = vld [vmem:[#allocation12 + $0x78] sm:$0xff]
    %v1911 = vld [vmem:[#allocation12 + $0x80] sm:$0xff]
    %v1912 = vld [vmem:[#allocation12 + $0x88] sm:$0xff]
    %v1913 = vld [vmem:[#allocation12 + $0x90] sm:$0xff]
    %v1914 = vld [vmem:[#allocation12 + $0x98] sm:$0xff]
    %v1915 = vld [vmem:[#allocation12 + $0xa0] sm:$0xff]
    %v1916 = vld [vmem:[#allocation12 + $0xa8] sm:$0xff]
    %v1917 = vld [vmem:[#allocation12 + $0xb0] sm:$0xff]
    %v1918 = vld [vmem:[#allocation12 + $0xb8] sm:$0xff]
    %v1919 = vld [vmem:[#allocation12 + $0xc0] sm:$0xff]
    %v1920 = vld [vmem:[#allocation12 + $0xc8] sm:$0xff]
    %v1921 = vld [vmem:[#allocation12 + $0xd0] sm:$0xff]
    %v1922 = vld [vmem:[#allocation12 + $0xd8] sm:$0xff]
    %v1923 = vld [vmem:[#allocation12 + $0xe0] sm:$0xff]
    %v1924 = vld [vmem:[#allocation12 + $0xe8] sm:$0xff]
    %v1925 = vld [vmem:[#allocation12 + $0xf0] sm:$0xff]
    %v1926 = vld [vmem:[#allocation12 + $0xf8] sm:$0xff]
    %v1927 = vpack.c.bf16 %v1892, %v1892
    %v1928 = vld [vmem:[#allocation13] sm:$0xff]
    %v1929 = vld [vmem:[#allocation13 + $0x8] sm:$0xff]
    %v1930 = vld [vmem:[#allocation13 + $0x10] sm:$0xff]
    %v1931 = vld [vmem:[#allocation13 + $0x18] sm:$0xff]
    %v1932 = vld [vmem:[#allocation13 + $0x20] sm:$0xff]
    %v1933 = vld [vmem:[#allocation13 + $0x28] sm:$0xff]
    %v1934 = vld [vmem:[#allocation13 + $0x30] sm:$0xff]
    %v1935 = vld [vmem:[#allocation13 + $0x38] sm:$0xff]
    %v1936 = vld [vmem:[#allocation13 + $0x40] sm:$0xff]
    %v1937 = vld [vmem:[#allocation13 + $0x48] sm:$0xff]
    %v1938 = vld [vmem:[#allocation13 + $0x50] sm:$0xff]
    %v1939 = vld [vmem:[#allocation13 + $0x58] sm:$0xff]
    %v1940 = vld [vmem:[#allocation13 + $0x60] sm:$0xff]
    %v1941 = vld [vmem:[#allocation13 + $0x68] sm:$0xff]
    %v1942 = vld [vmem:[#allocation13 + $0x70] sm:$0xff]
    %v1943 = vld [vmem:[#allocation13 + $0x78] sm:$0xff]
    %v1944 = vld [vmem:[#allocation13 + $0x80] sm:$0xff]
    %v1945 = vld [vmem:[#allocation13 + $0x88] sm:$0xff]
    %v1946 = vld [vmem:[#allocation13 + $0x90] sm:$0xff]
    %v1947 = vld [vmem:[#allocation13 + $0x98] sm:$0xff]
    %v1948 = vld [vmem:[#allocation13 + $0xa0] sm:$0xff]
    %v1949 = vld [vmem:[#allocation13 + $0xa8] sm:$0xff]
    %v1950 = vld [vmem:[#allocation13 + $0xb0] sm:$0xff]
    %v1951 = vld [vmem:[#allocation13 + $0xb8] sm:$0xff]
    %v1952 = vld [vmem:[#allocation13 + $0xc0] sm:$0xff]
    %v1953 = vld [vmem:[#allocation13 + $0xc8] sm:$0xff]
    %v1954 = vld [vmem:[#allocation13 + $0xd0] sm:$0xff]
    %v1955 = vld [vmem:[#allocation13 + $0xd8] sm:$0xff]
    %v1956 = vld [vmem:[#allocation13 + $0xe0] sm:$0xff]
    %v1957 = vld [vmem:[#allocation13 + $0xe8] sm:$0xff]
    %v1958 = vld [vmem:[#allocation13 + $0xf0] sm:$0xff]
    %v1959 = vld [vmem:[#allocation13 + $0xf8] sm:$0xff]
    %v1992 = vunpack.c.l.b16 %v1928
    %v1993 = vunpack.c.h.b16 %v1928
    %v1994 = vunpack.c.l.b16 %v1929
    %v1995 = vunpack.c.h.b16 %v1929
    %v1996 = vunpack.c.l.b16 %v1930
    %v1997 = vunpack.c.h.b16 %v1930
    %v1998 = vunpack.c.l.b16 %v1931
    %v1999 = vunpack.c.h.b16 %v1931
    %v2000 = vunpack.c.l.b16 %v1932
    %v2001 = vunpack.c.h.b16 %v1932
    %v2002 = vunpack.c.l.b16 %v1933
    %v2003 = vunpack.c.h.b16 %v1933
    %v2004 = vunpack.c.l.b16 %v1934
    %v2005 = vunpack.c.h.b16 %v1934
    %v2006 = vunpack.c.l.b16 %v1935
    %v2007 = vunpack.c.h.b16 %v1935
    %v2008 = vunpack.c.l.b16 %v1936
    %v2009 = vunpack.c.h.b16 %v1936
    %v2010 = vunpack.c.l.b16 %v1937
    %v2011 = vunpack.c.h.b16 %v1937
    %v2012 = vunpack.c.l.b16 %v1938
    %v2013 = vunpack.c.h.b16 %v1938
    %v2014 = vunpack.c.l.b16 %v1939
    %v2015 = vunpack.c.h.b16 %v1939
    %v2016 = vunpack.c.l.b16 %v1940
    %v2017 = vunpack.c.h.b16 %v1940
    %v2018 = vunpack.c.l.b16 %v1941
    %v2019 = vunpack.c.h.b16 %v1941
    %v2020 = vunpack.c.l.b16 %v1942
    %v2021 = vunpack.c.h.b16 %v1942
    %v2022 = vunpack.c.l.b16 %v1943
    %v2023 = vunpack.c.h.b16 %v1943
    %v2024 = vunpack.c.l.b16 %v1944
    %v2025 = vunpack.c.h.b16 %v1944
    %v2026 = vunpack.c.l.b16 %v1945
    %v2027 = vunpack.c.h.b16 %v1945
    %v2028 = vunpack.c.l.b16 %v1946
    %v2029 = vunpack.c.h.b16 %v1946
    %v2030 = vunpack.c.l.b16 %v1947
    %v2031 = vunpack.c.h.b16 %v1947
    %v2032 = vunpack.c.l.b16 %v1948
    %v2033 = vunpack.c.h.b16 %v1948
    %v2034 = vunpack.c.l.b16 %v1949
    %v2035 = vunpack.c.h.b16 %v1949
    %v2036 = vunpack.c.l.b16 %v1950
    %v2037 = vunpack.c.h.b16 %v1950
    %v2038 = vunpack.c.l.b16 %v1951
    %v2039 = vunpack.c.h.b16 %v1951
    %v2040 = vunpack.c.l.b16 %v1952
    %v2041 = vunpack.c.h.b16 %v1952
    %v2042 = vunpack.c.l.b16 %v1953
    %v2043 = vunpack.c.h.b16 %v1953
    %v2044 = vunpack.c.l.b16 %v1954
    %v2045 = vunpack.c.h.b16 %v1954
    %v2046 = vunpack.c.l.b16 %v1955
    %v2047 = vunpack.c.h.b16 %v1955
    %v2048 = vunpack.c.l.b16 %v1956
    %v2049 = vunpack.c.h.b16 %v1956
    %v2050 = vunpack.c.l.b16 %v1957
    %v2051 = vunpack.c.h.b16 %v1957
    %v2052 = vunpack.c.l.b16 %v1958
    %v2053 = vunpack.c.h.b16 %v1958
    %v2054 = vunpack.c.l.b16 %v1959
    %v2055 = vunpack.c.h.b16 %v1959
    %v2056 = vpack.c.b16 %v1996, %v1992
    %v2057 = vpack.c.b16 %v1997, %v1993
    %v2058 = vpack.c.b16 %v1998, %v1994
    %v2059 = vpack.c.b16 %v1999, %v1995
    %v2060 = vpack.c.b16 %v2004, %v2000
    %v2061 = vpack.c.b16 %v2005, %v2001
    %v2062 = vpack.c.b16 %v2006, %v2002
    %v2063 = vpack.c.b16 %v2007, %v2003
    %v2064 = vpack.c.b16 %v2012, %v2008
    %v2065 = vpack.c.b16 %v2013, %v2009
    %v2066 = vpack.c.b16 %v2014, %v2010
    %v2067 = vpack.c.b16 %v2015, %v2011
    %v2068 = vpack.c.b16 %v2020, %v2016
    %v2069 = vpack.c.b16 %v2021, %v2017
    %v2070 = vpack.c.b16 %v2022, %v2018
    %v2071 = vpack.c.b16 %v2023, %v2019
    %v2072 = vpack.c.b16 %v2028, %v2024
    %v2073 = vpack.c.b16 %v2029, %v2025
    %v2074 = vpack.c.b16 %v2030, %v2026
    %v2075 = vpack.c.b16 %v2031, %v2027
    %v2076 = vpack.c.b16 %v2036, %v2032
    %v2077 = vpack.c.b16 %v2037, %v2033
    %v2078 = vpack.c.b16 %v2038, %v2034
    %v2079 = vpack.c.b16 %v2039, %v2035
    %v2080 = vpack.c.b16 %v2044, %v2040
    %v2081 = vpack.c.b16 %v2045, %v2041
    %v2082 = vpack.c.b16 %v2046, %v2042
    %v2083 = vpack.c.b16 %v2047, %v2043
    %v2084 = vpack.c.b16 %v2052, %v2048
    %v2085 = vpack.c.b16 %v2053, %v2049
    %v2086 = vpack.c.b16 %v2054, %v2050
    %v2087 = vpack.c.b16 %v2055, %v2051
    %2120 = vmatprep.subr.bf16.mxu0 %v2085
    %2121 = vmatpush1.bf16.msra.mxu0 %v2084
    %2122 = vmatprep.subr.bf16.mxu0 %v2081
    %2123 = vmatpush1.bf16.msra.mxu0 %v2080
    %2124 = vmatprep.subr.bf16.mxu0 %v2077
    %2125 = vmatpush1.bf16.msra.mxu0 %v2076
    %2126 = vmatprep.subr.bf16.mxu0 %v2073
    %2127 = vmatpush1.bf16.msra.mxu0 %v2072
    %2128 = vmatprep.subr.bf16.mxu0 %v2069
    %2129 = vmatpush1.bf16.msra.mxu0 %v2068
    %2130 = vmatprep.subr.bf16.mxu0 %v2065
    %2131 = vmatpush1.bf16.msra.mxu0 %v2064
    %2132 = vmatprep.subr.bf16.mxu0 %v2061
    %2133 = vmatpush1.bf16.msra.mxu0 %v2060
    %2134 = vmatprep.subr.bf16.mxu0 %v2057
    %2135 = vmatpush1.bf16.msra.mxu0 %v2056
    %2136 = vmatprep.subr.bf16.mxu0 0
    %2137 = vmatpush2.bf16.msra.mxu0 0
    %2138 = vmatprep.subr.bf16.mxu0 0
    %2139 = vmatpush2.bf16.msra.mxu0 0
    %2140 = vmatprep.subr.bf16.mxu0 0
    %2141 = vmatpush2.bf16.msra.mxu0 0
    %2142 = vmatprep.subr.bf16.mxu0 0
    %2143 = vmatpush2.bf16.msra.mxu0 0
    %2144 = vmatprep.subr.bf16.mxu0 0
    %2145 = vmatpush2.bf16.msra.mxu0 0
    %2146 = vmatprep.subr.bf16.mxu0 0
    %2147 = vmatpush2.bf16.msra.mxu0 0
    %2148 = vmatprep.subr.bf16.mxu0 0
    %2149 = vmatpush2.bf16.msra.mxu0 0
    %2150 = vmatprep.subr.bf16.mxu0 0
    %2151 = vmatpush2.bf16.msra.mxu0 0
    %2152 = vmatprep.mubr.bf16.mxu0 0
    %2153 = vmatmul.mubr.bf16.gmra.mxu0 %v1927
    %v2154 = vpop.f32.mrf.mxu0
    %v2155 = vadd.f32 0.0, %v2154
    %v2156 = vpop.f32.mrf.mxu0
    %v2157 = vadd.f32 0.0, %v2156
    %v2158 = vpop.f32.mrf.mxu0
    %v2159 = vpop.f32.mrf.mxu0
    %2160 = vdwg.mxu0
    %2161 = vmatprep.subr.bf16.mxu0 %v2087
    %2162 = vmatpush1.bf16.msra.mxu0 %v2086
    %2163 = vmatprep.subr.bf16.mxu0 %v2083
    %2164 = vmatpush1.bf16.msra.mxu0 %v2082
    %2165 = vmatprep.subr.bf16.mxu0 %v2079
    %2166 = vmatpush1.bf16.msra.mxu0 %v2078
    %2167 = vmatprep.subr.bf16.mxu0 %v2075
    %2168 = vmatpush1.bf16.msra.mxu0 %v2074
    %2169 = vmatprep.subr.bf16.mxu0 %v2071
    %2170 = vmatpush1.bf16.msra.mxu0 %v2070
    %2171 = vmatprep.subr.bf16.mxu0 %v2067
    %2172 = vmatpush1.bf16.msra.mxu0 %v2066
    %2173 = vmatprep.subr.bf16.mxu0 %v2063
    %2174 = vmatpush1.bf16.msra.mxu0 %v2062
    %2175 = vmatprep.subr.bf16.mxu0 %v2059
    %2176 = vmatpush1.bf16.msra.mxu0 %v2058
    %2177 = vmatprep.subr.bf16.mxu0 0
    %2178 = vmatpush2.bf16.msra.mxu0 0
    %2179 = vmatprep.subr.bf16.mxu0 0
    %2180 = vmatpush2.bf16.msra.mxu0 0
    %2181 = vmatprep.subr.bf16.mxu0 0
    %2182 = vmatpush2.bf16.msra.mxu0 0
    %2183 = vmatprep.subr.bf16.mxu0 0
    %2184 = vmatpush2.bf16.msra.mxu0 0
    %2185 = vmatprep.subr.bf16.mxu0 0
    %2186 = vmatpush2.bf16.msra.mxu0 0
    %2187 = vmatprep.subr.bf16.mxu0 0
    %2188 = vmatpush2.bf16.msra.mxu0 0
    %2189 = vmatprep.subr.bf16.mxu0 0
    %2190 = vmatpush2.bf16.msra.mxu0 0
    %2191 = vmatprep.subr.bf16.mxu0 0
    %2192 = vmatpush2.bf16.msra.mxu0 0
    %2193 = vmatprep.mubr.bf16.mxu0 0
    %2194 = vmatmul.mubr.bf16.gmra.mxu0 %v1927
    %v2195 = vpop.f32.mrf.mxu0
    %v2196 = vadd.f32 0.0, %v2195
    %v2197 = vpop.f32.mrf.mxu0
    %v2198 = vadd.f32 0.0, %v2197
    %v2199 = vpop.f32.mrf.mxu0
    %v2200 = vpop.f32.mrf.mxu0
    %2201 = vdwg.mxu0
    %v2234 = vunpack.c.l.b16 %v1895
    %v2235 = vunpack.c.h.b16 %v1895
    %v2236 = vunpack.c.l.b16 %v1896
    %v2237 = vunpack.c.h.b16 %v1896
    %v2238 = vunpack.c.l.b16 %v1897
    %v2239 = vunpack.c.h.b16 %v1897
    %v2240 = vunpack.c.l.b16 %v1898
    %v2241 = vunpack.c.h.b16 %v1898
    %v2242 = vunpack.c.l.b16 %v1899
    %v2243 = vunpack.c.h.b16 %v1899
    %v2244 = vunpack.c.l.b16 %v1900
    %v2245 = vunpack.c.h.b16 %v1900
    %v2246 = vunpack.c.l.b16 %v1901
    %v2247 = vunpack.c.h.b16 %v1901
    %v2248 = vunpack.c.l.b16 %v1902
    %v2249 = vunpack.c.h.b16 %v1902
    %v2250 = vunpack.c.l.b16 %v1903
    %v2251 = vunpack.c.h.b16 %v1903
    %v2252 = vunpack.c.l.b16 %v1904
    %v2253 = vunpack.c.h.b16 %v1904
    %v2254 = vunpack.c.l.b16 %v1905
    %v2255 = vunpack.c.h.b16 %v1905
    %v2256 = vunpack.c.l.b16 %v1906
    %v2257 = vunpack.c.h.b16 %v1906
    %v2258 = vunpack.c.l.b16 %v1907
    %v2259 = vunpack.c.h.b16 %v1907
    %v2260 = vunpack.c.l.b16 %v1908
    %v2261 = vunpack.c.h.b16 %v1908
    %v2262 = vunpack.c.l.b16 %v1909
    %v2263 = vunpack.c.h.b16 %v1909
    %v2264 = vunpack.c.l.b16 %v1910
    %v2265 = vunpack.c.h.b16 %v1910
    %v2266 = vunpack.c.l.b16 %v1911
    %v2267 = vunpack.c.h.b16 %v1911
    %v2268 = vunpack.c.l.b16 %v1912
    %v2269 = vunpack.c.h.b16 %v1912
    %v2270 = vunpack.c.l.b16 %v1913
    %v2271 = vunpack.c.h.b16 %v1913
    %v2272 = vunpack.c.l.b16 %v1914
    %v2273 = vunpack.c.h.b16 %v1914
    %v2274 = vunpack.c.l.b16 %v1915
    %v2275 = vunpack.c.h.b16 %v1915
    %v2276 = vunpack.c.l.b16 %v1916
    %v2277 = vunpack.c.h.b16 %v1916
    %v2278 = vunpack.c.l.b16 %v1917
    %v2279 = vunpack.c.h.b16 %v1917
    %v2280 = vunpack.c.l.b16 %v1918
    %v2281 = vunpack.c.h.b16 %v1918
    %v2282 = vunpack.c.l.b16 %v1919
    %v2283 = vunpack.c.h.b16 %v1919
    %v2284 = vunpack.c.l.b16 %v1920
    %v2285 = vunpack.c.h.b16 %v1920
    %v2286 = vunpack.c.l.b16 %v1921
    %v2287 = vunpack.c.h.b16 %v1921
    %v2288 = vunpack.c.l.b16 %v1922
    %v2289 = vunpack.c.h.b16 %v1922
    %v2290 = vunpack.c.l.b16 %v1923
    %v2291 = vunpack.c.h.b16 %v1923
    %v2292 = vunpack.c.l.b16 %v1924
    %v2293 = vunpack.c.h.b16 %v1924
    %v2294 = vunpack.c.l.b16 %v1925
    %v2295 = vunpack.c.h.b16 %v1925
    %v2296 = vunpack.c.l.b16 %v1926
    %v2297 = vunpack.c.h.b16 %v1926
    %v2298 = vpack.c.b16 %v2238, %v2234
    %v2299 = vpack.c.b16 %v2239, %v2235
    %v2300 = vpack.c.b16 %v2240, %v2236
    %v2301 = vpack.c.b16 %v2241, %v2237
    %v2302 = vpack.c.b16 %v2246, %v2242
    %v2303 = vpack.c.b16 %v2247, %v2243
    %v2304 = vpack.c.b16 %v2248, %v2244
    %v2305 = vpack.c.b16 %v2249, %v2245
    %v2306 = vpack.c.b16 %v2254, %v2250
    %v2307 = vpack.c.b16 %v2255, %v2251
    %v2308 = vpack.c.b16 %v2256, %v2252
    %v2309 = vpack.c.b16 %v2257, %v2253
    %v2310 = vpack.c.b16 %v2262, %v2258
    %v2311 = vpack.c.b16 %v2263, %v2259
    %v2312 = vpack.c.b16 %v2264, %v2260
    %v2313 = vpack.c.b16 %v2265, %v2261
    %v2314 = vpack.c.b16 %v2270, %v2266
    %v2315 = vpack.c.b16 %v2271, %v2267
    %v2316 = vpack.c.b16 %v2272, %v2268
    %v2317 = vpack.c.b16 %v2273, %v2269
    %v2318 = vpack.c.b16 %v2278, %v2274
    %v2319 = vpack.c.b16 %v2279, %v2275
    %v2320 = vpack.c.b16 %v2280, %v2276
    %v2321 = vpack.c.b16 %v2281, %v2277
    %v2322 = vpack.c.b16 %v2286, %v2282
    %v2323 = vpack.c.b16 %v2287, %v2283
    %v2324 = vpack.c.b16 %v2288, %v2284
    %v2325 = vpack.c.b16 %v2289, %v2285
    %v2326 = vpack.c.b16 %v2294, %v2290
    %v2327 = vpack.c.b16 %v2295, %v2291
    %v2328 = vpack.c.b16 %v2296, %v2292
    %v2329 = vpack.c.b16 %v2297, %v2293
    %2362 = vmatprep.subr.bf16.mxu0 %v2327
    %2363 = vmatpush1.bf16.msra.mxu0 %v2326
    %2364 = vmatprep.subr.bf16.mxu0 %v2323
    %2365 = vmatpush1.bf16.msra.mxu0 %v2322
    %2366 = vmatprep.subr.bf16.mxu0 %v2319
    %2367 = vmatpush1.bf16.msra.mxu0 %v2318
    %2368 = vmatprep.subr.bf16.mxu0 %v2315
    %2369 = vmatpush1.bf16.msra.mxu0 %v2314
    %2370 = vmatprep.subr.bf16.mxu0 %v2311
    %2371 = vmatpush1.bf16.msra.mxu0 %v2310
    %2372 = vmatprep.subr.bf16.mxu0 %v2307
    %2373 = vmatpush1.bf16.msra.mxu0 %v2306
    %2374 = vmatprep.subr.bf16.mxu0 %v2303
    %2375 = vmatpush1.bf16.msra.mxu0 %v2302
    %2376 = vmatprep.subr.bf16.mxu0 %v2299
    %2377 = vmatpush1.bf16.msra.mxu0 %v2298
    %2378 = vmatprep.subr.bf16.mxu0 0
    %2379 = vmatpush2.bf16.msra.mxu0 0
    %2380 = vmatprep.subr.bf16.mxu0 0
    %2381 = vmatpush2.bf16.msra.mxu0 0
    %2382 = vmatprep.subr.bf16.mxu0 0
    %2383 = vmatpush2.bf16.msra.mxu0 0
    %2384 = vmatprep.subr.bf16.mxu0 0
    %2385 = vmatpush2.bf16.msra.mxu0 0
    %2386 = vmatprep.subr.bf16.mxu0 0
    %2387 = vmatpush2.bf16.msra.mxu0 0
    %2388 = vmatprep.subr.bf16.mxu0 0
    %2389 = vmatpush2.bf16.msra.mxu0 0
    %2390 = vmatprep.subr.bf16.mxu0 0
    %2391 = vmatpush2.bf16.msra.mxu0 0
    %2392 = vmatprep.subr.bf16.mxu0 0
    %2393 = vmatpush2.bf16.msra.mxu0 0
    %2394 = vmatprep.mubr.bf16.mxu0 0
    %2395 = vmatmul.mubr.bf16.gmra.mxu0 %v1894
    %v2396 = vpop.f32.mrf.mxu0
    %v2397 = vadd.f32 %v2155, %v2396
    %v2398 = vpop.f32.mrf.mxu0
    %v2399 = vadd.f32 %v2157, %v2398
    %v2400 = vpop.f32.mrf.mxu0
    %v2401 = vpop.f32.mrf.mxu0
    %2402 = vdwg.mxu0
    %2403 = vmatprep.subr.bf16.mxu0 %v2329
    %2404 = vmatpush1.bf16.msra.mxu0 %v2328
    %2405 = vmatprep.subr.bf16.mxu0 %v2325
    %2406 = vmatpush1.bf16.msra.mxu0 %v2324
    %2407 = vmatprep.subr.bf16.mxu0 %v2321
    %2408 = vmatpush1.bf16.msra.mxu0 %v2320
    %2409 = vmatprep.subr.bf16.mxu0 %v2317
    %2410 = vmatpush1.bf16.msra.mxu0 %v2316
    %2411 = vmatprep.subr.bf16.mxu0 %v2313
    %2412 = vmatpush1.bf16.msra.mxu0 %v2312
    %2413 = vmatprep.subr.bf16.mxu0 %v2309
    %2414 = vmatpush1.bf16.msra.mxu0 %v2308
    %2415 = vmatprep.subr.bf16.mxu0 %v2305
    %2416 = vmatpush1.bf16.msra.mxu0 %v2304
    %2417 = vmatprep.subr.bf16.mxu0 %v2301
    %2418 = vmatpush1.bf16.msra.mxu0 %v2300
    %2419 = vmatprep.subr.bf16.mxu0 0
    %2420 = vmatpush2.bf16.msra.mxu0 0
    %2421 = vmatprep.subr.bf16.mxu0 0
    %2422 = vmatpush2.bf16.msra.mxu0 0
    %2423 = vmatprep.subr.bf16.mxu0 0
    %2424 = vmatpush2.bf16.msra.mxu0 0
    %2425 = vmatprep.subr.bf16.mxu0 0
    %2426 = vmatpush2.bf16.msra.mxu0 0
    %2427 = vmatprep.subr.bf16.mxu0 0
    %2428 = vmatpush2.bf16.msra.mxu0 0
    %2429 = vmatprep.subr.bf16.mxu0 0
    %2430 = vmatpush2.bf16.msra.mxu0 0
    %2431 = vmatprep.subr.bf16.mxu0 0
    %2432 = vmatpush2.bf16.msra.mxu0 0
    %2433 = vmatprep.subr.bf16.mxu0 0
    %2434 = vmatpush2.bf16.msra.mxu0 0
    %2435 = vmatprep.mubr.bf16.mxu0 0
    %2436 = vmatmul.mubr.bf16.gmra.mxu0 %v1894
    %v2437 = vpop.f32.mrf.mxu0
    %v2438 = vadd.f32 %v2196, %v2437
    %v2439 = vpop.f32.mrf.mxu0
    %v2440 = vadd.f32 %v2198, %v2439
    %v2441 = vpop.f32.mrf.mxu0
    %v2442 = vpop.f32.mrf.mxu0
    %2443 = vdwg.mxu0
    %v2444 = vld [vmem:[#allocation15] sm:$0xff]
    %v2445 = vld [vmem:[#allocation15 + $0x8] sm:$0xff]
    %v2446 = vld [vmem:[#allocation15 + $0x10] sm:$0xff]
    %v2447 = vld [vmem:[#allocation15 + $0x18] sm:$0xff]
    %v2448 = vadd.f32 %v2397, %v2444
    %v2449 = vadd.f32 %v2399, %v2445
    %v2450 = vadd.f32 %v2438, %v2446
    %v2451 = vadd.f32 %v2440, %v2447
    %v2452 = vxor.u32 %v2448, 2147483648
    %v2453 = vmul.f32 %v2452, 1.442695
    %v2454 = vpow.pop %v2453
    %v2455 = vadd.f32 %v2454, 1.0
    %v2456 = vrcp.pop %v2455
    %v2457 = vmul.f32 1.0, %v2456
    %v2458 = vxor.u32 %v2449, 2147483648
    %v2459 = vmul.f32 %v2458, 1.442695
    %v2460 = vpow.pop %v2459
    %v2461 = vadd.f32 %v2460, 1.0
    %v2462 = vrcp.pop %v2461
    %v2463 = vmul.f32 1.0, %v2462
    %v2464 = vtanh.pop %v2450
    %v2465 = vxor.u32 %v2451, 2147483648
    %v2466 = vmul.f32 %v2465, 1.442695
    %v2467 = vpow.pop %v2466
    %v2468 = vadd.f32 %v2467, 1.0
    %v2469 = vrcp.pop %v2468
    %v2470 = vmul.f32 1.0, %v2469
    %v2471 = vmul.f32 %v2463, %v1893
    %v2472 = vmul.f32 %v2457, %v2464
    %v2473 = vadd.f32 %v2471, %v2472
    %v2474 = vtanh.pop %v2473
    %v2475 = vmul.f32 %v2470, %v2474
    %2476 = vst [vmem:[%s714] sm:$0xff] %v2475
    %2477 = vst [vmem:[%s716] sm:$0xff] %v2473
    %v2478 = vpack.c.bf16 %v2475, %v2475
    %s2479 = scalar_lea.vmem [#allocation16], 4
    %2480 = vst [vmem:[%s2479] sm:$0xf] %v2478
    %s2481 = scalar_lea.vmem [#allocation4], 16
    %v2482 = vld [vmem:[%s2481] sm:$0xff]
    %v2483 = vld [vmem:[#allocation2] sm:$0xff]
    %v2484 = vld [vmem:[#allocation3] sm:$0xff]
    %v2485 = vpack.c.bf16 %v2482, %v2482
    %v2486 = vld [vmem:[#allocation7] sm:$0xff]
    %v2487 = vld [vmem:[#allocation7 + $0x8] sm:$0xff]
    %v2488 = vld [vmem:[#allocation7 + $0x10] sm:$0xff]
    %v2489 = vld [vmem:[#allocation7 + $0x18] sm:$0xff]
    %v2490 = vld [vmem:[#allocation7 + $0x20] sm:$0xff]
    %v2491 = vld [vmem:[#allocation7 + $0x28] sm:$0xff]
    %v2492 = vld [vmem:[#allocation7 + $0x30] sm:$0xff]
    %v2493 = vld [vmem:[#allocation7 + $0x38] sm:$0xff]
    %v2494 = vld [vmem:[#allocation7 + $0x40] sm:$0xff]
    %v2495 = vld [vmem:[#allocation7 + $0x48] sm:$0xff]
    %v2496 = vld [vmem:[#allocation7 + $0x50] sm:$0xff]
    %v2497 = vld [vmem:[#allocation7 + $0x58] sm:$0xff]
    %v2498 = vld [vmem:[#allocation7 + $0x60] sm:$0xff]
    %v2499 = vld [vmem:[#allocation7 + $0x68] sm:$0xff]
    %v2500 = vld [vmem:[#allocation7 + $0x70] sm:$0xff]
    %v2501 = vld [vmem:[#allocation7 + $0x78] sm:$0xff]
    %v2502 = vld [vmem:[#allocation7 + $0x80] sm:$0xff]
    %v2503 = vld [vmem:[#allocation7 + $0x88] sm:$0xff]
    %v2504 = vld [vmem:[#allocation7 + $0x90] sm:$0xff]
    %v2505 = vld [vmem:[#allocation7 + $0x98] sm:$0xff]
    %v2506 = vld [vmem:[#allocation7 + $0xa0] sm:$0xff]
    %v2507 = vld [vmem:[#allocation7 + $0xa8] sm:$0xff]
    %v2508 = vld [vmem:[#allocation7 + $0xb0] sm:$0xff]
    %v2509 = vld [vmem:[#allocation7 + $0xb8] sm:$0xff]
    %v2510 = vld [vmem:[#allocation7 + $0xc0] sm:$0xff]
    %v2511 = vld [vmem:[#allocation7 + $0xc8] sm:$0xff]
    %v2512 = vld [vmem:[#allocation7 + $0xd0] sm:$0xff]
    %v2513 = vld [vmem:[#allocation7 + $0xd8] sm:$0xff]
    %v2514 = vld [vmem:[#allocation7 + $0xe0] sm:$0xff]
    %v2515 = vld [vmem:[#allocation7 + $0xe8] sm:$0xff]
    %v2516 = vld [vmem:[#allocation7 + $0xf0] sm:$0xff]
    %v2517 = vld [vmem:[#allocation7 + $0xf8] sm:$0xff]
    %v2518 = vpack.c.bf16 %v2483, %v2483
    %v2519 = vld [vmem:[#allocation9] sm:$0xff]
    %v2520 = vld [vmem:[#allocation9 + $0x8] sm:$0xff]
    %v2521 = vld [vmem:[#allocation9 + $0x10] sm:$0xff]
    %v2522 = vld [vmem:[#allocation9 + $0x18] sm:$0xff]
    %v2523 = vld [vmem:[#allocation9 + $0x20] sm:$0xff]
    %v2524 = vld [vmem:[#allocation9 + $0x28] sm:$0xff]
    %v2525 = vld [vmem:[#allocation9 + $0x30] sm:$0xff]
    %v2526 = vld [vmem:[#allocation9 + $0x38] sm:$0xff]
    %v2527 = vld [vmem:[#allocation9 + $0x40] sm:$0xff]
    %v2528 = vld [vmem:[#allocation9 + $0x48] sm:$0xff]
    %v2529 = vld [vmem:[#allocation9 + $0x50] sm:$0xff]
    %v2530 = vld [vmem:[#allocation9 + $0x58] sm:$0xff]
    %v2531 = vld [vmem:[#allocation9 + $0x60] sm:$0xff]
    %v2532 = vld [vmem:[#allocation9 + $0x68] sm:$0xff]
    %v2533 = vld [vmem:[#allocation9 + $0x70] sm:$0xff]
    %v2534 = vld [vmem:[#allocation9 + $0x78] sm:$0xff]
    %v2535 = vld [vmem:[#allocation9 + $0x80] sm:$0xff]
    %v2536 = vld [vmem:[#allocation9 + $0x88] sm:$0xff]
    %v2537 = vld [vmem:[#allocation9 + $0x90] sm:$0xff]
    %v2538 = vld [vmem:[#allocation9 + $0x98] sm:$0xff]
    %v2539 = vld [vmem:[#allocation9 + $0xa0] sm:$0xff]
    %v2540 = vld [vmem:[#allocation9 + $0xa8] sm:$0xff]
    %v2541 = vld [vmem:[#allocation9 + $0xb0] sm:$0xff]
    %v2542 = vld [vmem:[#allocation9 + $0xb8] sm:$0xff]
    %v2543 = vld [vmem:[#allocation9 + $0xc0] sm:$0xff]
    %v2544 = vld [vmem:[#allocation9 + $0xc8] sm:$0xff]
    %v2545 = vld [vmem:[#allocation9 + $0xd0] sm:$0xff]
    %v2546 = vld [vmem:[#allocation9 + $0xd8] sm:$0xff]
    %v2547 = vld [vmem:[#allocation9 + $0xe0] sm:$0xff]
    %v2548 = vld [vmem:[#allocation9 + $0xe8] sm:$0xff]
    %v2549 = vld [vmem:[#allocation9 + $0xf0] sm:$0xff]
    %v2550 = vld [vmem:[#allocation9 + $0xf8] sm:$0xff]
    %v2583 = vunpack.c.l.b16 %v2519
    %v2584 = vunpack.c.h.b16 %v2519
    %v2585 = vunpack.c.l.b16 %v2520
    %v2586 = vunpack.c.h.b16 %v2520
    %v2587 = vunpack.c.l.b16 %v2521
    %v2588 = vunpack.c.h.b16 %v2521
    %v2589 = vunpack.c.l.b16 %v2522
    %v2590 = vunpack.c.h.b16 %v2522
    %v2591 = vunpack.c.l.b16 %v2523
    %v2592 = vunpack.c.h.b16 %v2523
    %v2593 = vunpack.c.l.b16 %v2524
    %v2594 = vunpack.c.h.b16 %v2524
    %v2595 = vunpack.c.l.b16 %v2525
    %v2596 = vunpack.c.h.b16 %v2525
    %v2597 = vunpack.c.l.b16 %v2526
    %v2598 = vunpack.c.h.b16 %v2526
    %v2599 = vunpack.c.l.b16 %v2527
    %v2600 = vunpack.c.h.b16 %v2527
    %v2601 = vunpack.c.l.b16 %v2528
    %v2602 = vunpack.c.h.b16 %v2528
    %v2603 = vunpack.c.l.b16 %v2529
    %v2604 = vunpack.c.h.b16 %v2529
    %v2605 = vunpack.c.l.b16 %v2530
    %v2606 = vunpack.c.h.b16 %v2530
    %v2607 = vunpack.c.l.b16 %v2531
    %v2608 = vunpack.c.h.b16 %v2531
    %v2609 = vunpack.c.l.b16 %v2532
    %v2610 = vunpack.c.h.b16 %v2532
    %v2611 = vunpack.c.l.b16 %v2533
    %v2612 = vunpack.c.h.b16 %v2533
    %v2613 = vunpack.c.l.b16 %v2534
    %v2614 = vunpack.c.h.b16 %v2534
    %v2615 = vunpack.c.l.b16 %v2535
    %v2616 = vunpack.c.h.b16 %v2535
    %v2617 = vunpack.c.l.b16 %v2536
    %v2618 = vunpack.c.h.b16 %v2536
    %v2619 = vunpack.c.l.b16 %v2537
    %v2620 = vunpack.c.h.b16 %v2537
    %v2621 = vunpack.c.l.b16 %v2538
    %v2622 = vunpack.c.h.b16 %v2538
    %v2623 = vunpack.c.l.b16 %v2539
    %v2624 = vunpack.c.h.b16 %v2539
    %v2625 = vunpack.c.l.b16 %v2540
    %v2626 = vunpack.c.h.b16 %v2540
    %v2627 = vunpack.c.l.b16 %v2541
    %v2628 = vunpack.c.h.b16 %v2541
    %v2629 = vunpack.c.l.b16 %v2542
    %v2630 = vunpack.c.h.b16 %v2542
    %v2631 = vunpack.c.l.b16 %v2543
    %v2632 = vunpack.c.h.b16 %v2543
    %v2633 = vunpack.c.l.b16 %v2544
    %v2634 = vunpack.c.h.b16 %v2544
    %v2635 = vunpack.c.l.b16 %v2545
    %v2636 = vunpack.c.h.b16 %v2545
    %v2637 = vunpack.c.l.b16 %v2546
    %v2638 = vunpack.c.h.b16 %v2546
    %v2639 = vunpack.c.l.b16 %v2547
    %v2640 = vunpack.c.h.b16 %v2547
    %v2641 = vunpack.c.l.b16 %v2548
    %v2642 = vunpack.c.h.b16 %v2548
    %v2643 = vunpack.c.l.b16 %v2549
    %v2644 = vunpack.c.h.b16 %v2549
    %v2645 = vunpack.c.l.b16 %v2550
    %v2646 = vunpack.c.h.b16 %v2550
    %v2647 = vpack.c.b16 %v2587, %v2583
    %v2648 = vpack.c.b16 %v2588, %v2584
    %v2649 = vpack.c.b16 %v2589, %v2585
    %v2650 = vpack.c.b16 %v2590, %v2586
    %v2651 = vpack.c.b16 %v2595, %v2591
    %v2652 = vpack.c.b16 %v2596, %v2592
    %v2653 = vpack.c.b16 %v2597, %v2593
    %v2654 = vpack.c.b16 %v2598, %v2594
    %v2655 = vpack.c.b16 %v2603, %v2599
    %v2656 = vpack.c.b16 %v2604, %v2600
    %v2657 = vpack.c.b16 %v2605, %v2601
    %v2658 = vpack.c.b16 %v2606, %v2602
    %v2659 = vpack.c.b16 %v2611, %v2607
    %v2660 = vpack.c.b16 %v2612, %v2608
    %v2661 = vpack.c.b16 %v2613, %v2609
    %v2662 = vpack.c.b16 %v2614, %v2610
    %v2663 = vpack.c.b16 %v2619, %v2615
    %v2664 = vpack.c.b16 %v2620, %v2616
    %v2665 = vpack.c.b16 %v2621, %v2617
    %v2666 = vpack.c.b16 %v2622, %v2618
    %v2667 = vpack.c.b16 %v2627, %v2623
    %v2668 = vpack.c.b16 %v2628, %v2624
    %v2669 = vpack.c.b16 %v2629, %v2625
    %v2670 = vpack.c.b16 %v2630, %v2626
    %v2671 = vpack.c.b16 %v2635, %v2631
    %v2672 = vpack.c.b16 %v2636, %v2632
    %v2673 = vpack.c.b16 %v2637, %v2633
    %v2674 = vpack.c.b16 %v2638, %v2634
    %v2675 = vpack.c.b16 %v2643, %v2639
    %v2676 = vpack.c.b16 %v2644, %v2640
    %v2677 = vpack.c.b16 %v2645, %v2641
    %v2678 = vpack.c.b16 %v2646, %v2642
    %2711 = vmatprep.subr.bf16.mxu0 %v2676
    %2712 = vmatpush1.bf16.msra.mxu0 %v2675
    %2713 = vmatprep.subr.bf16.mxu0 %v2672
    %2714 = vmatpush1.bf16.msra.mxu0 %v2671
    %2715 = vmatprep.subr.bf16.mxu0 %v2668
    %2716 = vmatpush1.bf16.msra.mxu0 %v2667
    %2717 = vmatprep.subr.bf16.mxu0 %v2664
    %2718 = vmatpush1.bf16.msra.mxu0 %v2663
    %2719 = vmatprep.subr.bf16.mxu0 %v2660
    %2720 = vmatpush1.bf16.msra.mxu0 %v2659
    %2721 = vmatprep.subr.bf16.mxu0 %v2656
    %2722 = vmatpush1.bf16.msra.mxu0 %v2655
    %2723 = vmatprep.subr.bf16.mxu0 %v2652
    %2724 = vmatpush1.bf16.msra.mxu0 %v2651
    %2725 = vmatprep.subr.bf16.mxu0 %v2648
    %2726 = vmatpush1.bf16.msra.mxu0 %v2647
    %2727 = vmatprep.subr.bf16.mxu0 0
    %2728 = vmatpush2.bf16.msra.mxu0 0
    %2729 = vmatprep.subr.bf16.mxu0 0
    %2730 = vmatpush2.bf16.msra.mxu0 0
    %2731 = vmatprep.subr.bf16.mxu0 0
    %2732 = vmatpush2.bf16.msra.mxu0 0
    %2733 = vmatprep.subr.bf16.mxu0 0
    %2734 = vmatpush2.bf16.msra.mxu0 0
    %2735 = vmatprep.subr.bf16.mxu0 0
    %2736 = vmatpush2.bf16.msra.mxu0 0
    %2737 = vmatprep.subr.bf16.mxu0 0
    %2738 = vmatpush2.bf16.msra.mxu0 0
    %2739 = vmatprep.subr.bf16.mxu0 0
    %2740 = vmatpush2.bf16.msra.mxu0 0
    %2741 = vmatprep.subr.bf16.mxu0 0
    %2742 = vmatpush2.bf16.msra.mxu0 0
    %2743 = vmatprep.mubr.bf16.mxu0 0
    %2744 = vmatmul.mubr.bf16.gmra.mxu0 %v2518
    %v2745 = vpop.f32.mrf.mxu0
    %v2746 = vadd.f32 0.0, %v2745
    %v2747 = vpop.f32.mrf.mxu0
    %v2748 = vadd.f32 0.0, %v2747
    %v2749 = vpop.f32.mrf.mxu0
    %v2750 = vpop.f32.mrf.mxu0
    %2751 = vdwg.mxu0
    %2752 = vmatprep.subr.bf16.mxu0 %v2678
    %2753 = vmatpush1.bf16.msra.mxu0 %v2677
    %2754 = vmatprep.subr.bf16.mxu0 %v2674
    %2755 = vmatpush1.bf16.msra.mxu0 %v2673
    %2756 = vmatprep.subr.bf16.mxu0 %v2670
    %2757 = vmatpush1.bf16.msra.mxu0 %v2669
    %2758 = vmatprep.subr.bf16.mxu0 %v2666
    %2759 = vmatpush1.bf16.msra.mxu0 %v2665
    %2760 = vmatprep.subr.bf16.mxu0 %v2662
    %2761 = vmatpush1.bf16.msra.mxu0 %v2661
    %2762 = vmatprep.subr.bf16.mxu0 %v2658
    %2763 = vmatpush1.bf16.msra.mxu0 %v2657
    %2764 = vmatprep.subr.bf16.mxu0 %v2654
    %2765 = vmatpush1.bf16.msra.mxu0 %v2653
    %2766 = vmatprep.subr.bf16.mxu0 %v2650
    %2767 = vmatpush1.bf16.msra.mxu0 %v2649
    %2768 = vmatprep.subr.bf16.mxu0 0
    %2769 = vmatpush2.bf16.msra.mxu0 0
    %2770 = vmatprep.subr.bf16.mxu0 0
    %2771 = vmatpush2.bf16.msra.mxu0 0
    %2772 = vmatprep.subr.bf16.mxu0 0
    %2773 = vmatpush2.bf16.msra.mxu0 0
    %2774 = vmatprep.subr.bf16.mxu0 0
    %2775 = vmatpush2.bf16.msra.mxu0 0
    %2776 = vmatprep.subr.bf16.mxu0 0
    %2777 = vmatpush2.bf16.msra.mxu0 0
    %2778 = vmatprep.subr.bf16.mxu0 0
    %2779 = vmatpush2.bf16.msra.mxu0 0
    %2780 = vmatprep.subr.bf16.mxu0 0
    %2781 = vmatpush2.bf16.msra.mxu0 0
    %2782 = vmatprep.subr.bf16.mxu0 0
    %2783 = vmatpush2.bf16.msra.mxu0 0
    %2784 = vmatprep.mubr.bf16.mxu0 0
    %2785 = vmatmul.mubr.bf16.gmra.mxu0 %v2518
    %v2786 = vpop.f32.mrf.mxu0
    %v2787 = vadd.f32 0.0, %v2786
    %v2788 = vpop.f32.mrf.mxu0
    %v2789 = vadd.f32 0.0, %v2788
    %v2790 = vpop.f32.mrf.mxu0
    %v2791 = vpop.f32.mrf.mxu0
    %2792 = vdwg.mxu0
    %v2825 = vunpack.c.l.b16 %v2486
    %v2826 = vunpack.c.h.b16 %v2486
    %v2827 = vunpack.c.l.b16 %v2487
    %v2828 = vunpack.c.h.b16 %v2487
    %v2829 = vunpack.c.l.b16 %v2488
    %v2830 = vunpack.c.h.b16 %v2488
    %v2831 = vunpack.c.l.b16 %v2489
    %v2832 = vunpack.c.h.b16 %v2489
    %v2833 = vunpack.c.l.b16 %v2490
    %v2834 = vunpack.c.h.b16 %v2490
    %v2835 = vunpack.c.l.b16 %v2491
    %v2836 = vunpack.c.h.b16 %v2491
    %v2837 = vunpack.c.l.b16 %v2492
    %v2838 = vunpack.c.h.b16 %v2492
    %v2839 = vunpack.c.l.b16 %v2493
    %v2840 = vunpack.c.h.b16 %v2493
    %v2841 = vunpack.c.l.b16 %v2494
    %v2842 = vunpack.c.h.b16 %v2494
    %v2843 = vunpack.c.l.b16 %v2495
    %v2844 = vunpack.c.h.b16 %v2495
    %v2845 = vunpack.c.l.b16 %v2496
    %v2846 = vunpack.c.h.b16 %v2496
    %v2847 = vunpack.c.l.b16 %v2497
    %v2848 = vunpack.c.h.b16 %v2497
    %v2849 = vunpack.c.l.b16 %v2498
    %v2850 = vunpack.c.h.b16 %v2498
    %v2851 = vunpack.c.l.b16 %v2499
    %v2852 = vunpack.c.h.b16 %v2499
    %v2853 = vunpack.c.l.b16 %v2500
    %v2854 = vunpack.c.h.b16 %v2500
    %v2855 = vunpack.c.l.b16 %v2501
    %v2856 = vunpack.c.h.b16 %v2501
    %v2857 = vunpack.c.l.b16 %v2502
    %v2858 = vunpack.c.h.b16 %v2502
    %v2859 = vunpack.c.l.b16 %v2503
    %v2860 = vunpack.c.h.b16 %v2503
    %v2861 = vunpack.c.l.b16 %v2504
    %v2862 = vunpack.c.h.b16 %v2504
    %v2863 = vunpack.c.l.b16 %v2505
    %v2864 = vunpack.c.h.b16 %v2505
    %v2865 = vunpack.c.l.b16 %v2506
    %v2866 = vunpack.c.h.b16 %v2506
    %v2867 = vunpack.c.l.b16 %v2507
    %v2868 = vunpack.c.h.b16 %v2507
    %v2869 = vunpack.c.l.b16 %v2508
    %v2870 = vunpack.c.h.b16 %v2508
    %v2871 = vunpack.c.l.b16 %v2509
    %v2872 = vunpack.c.h.b16 %v2509
    %v2873 = vunpack.c.l.b16 %v2510
    %v2874 = vunpack.c.h.b16 %v2510
    %v2875 = vunpack.c.l.b16 %v2511
    %v2876 = vunpack.c.h.b16 %v2511
    %v2877 = vunpack.c.l.b16 %v2512
    %v2878 = vunpack.c.h.b16 %v2512
    %v2879 = vunpack.c.l.b16 %v2513
    %v2880 = vunpack.c.h.b16 %v2513
    %v2881 = vunpack.c.l.b16 %v2514
    %v2882 = vunpack.c.h.b16 %v2514
    %v2883 = vunpack.c.l.b16 %v2515
    %v2884 = vunpack.c.h.b16 %v2515
    %v2885 = vunpack.c.l.b16 %v2516
    %v2886 = vunpack.c.h.b16 %v2516
    %v2887 = vunpack.c.l.b16 %v2517
    %v2888 = vunpack.c.h.b16 %v2517
    %v2889 = vpack.c.b16 %v2829, %v2825
    %v2890 = vpack.c.b16 %v2830, %v2826
    %v2891 = vpack.c.b16 %v2831, %v2827
    %v2892 = vpack.c.b16 %v2832, %v2828
    %v2893 = vpack.c.b16 %v2837, %v2833
    %v2894 = vpack.c.b16 %v2838, %v2834
    %v2895 = vpack.c.b16 %v2839, %v2835
    %v2896 = vpack.c.b16 %v2840, %v2836
    %v2897 = vpack.c.b16 %v2845, %v2841
    %v2898 = vpack.c.b16 %v2846, %v2842
    %v2899 = vpack.c.b16 %v2847, %v2843
    %v2900 = vpack.c.b16 %v2848, %v2844
    %v2901 = vpack.c.b16 %v2853, %v2849
    %v2902 = vpack.c.b16 %v2854, %v2850
    %v2903 = vpack.c.b16 %v2855, %v2851
    %v2904 = vpack.c.b16 %v2856, %v2852
    %v2905 = vpack.c.b16 %v2861, %v2857
    %v2906 = vpack.c.b16 %v2862, %v2858
    %v2907 = vpack.c.b16 %v2863, %v2859
    %v2908 = vpack.c.b16 %v2864, %v2860
    %v2909 = vpack.c.b16 %v2869, %v2865
    %v2910 = vpack.c.b16 %v2870, %v2866
    %v2911 = vpack.c.b16 %v2871, %v2867
    %v2912 = vpack.c.b16 %v2872, %v2868
    %v2913 = vpack.c.b16 %v2877, %v2873
    %v2914 = vpack.c.b16 %v2878, %v2874
    %v2915 = vpack.c.b16 %v2879, %v2875
    %v2916 = vpack.c.b16 %v2880, %v2876
    %v2917 = vpack.c.b16 %v2885, %v2881
    %v2918 = vpack.c.b16 %v2886, %v2882
    %v2919 = vpack.c.b16 %v2887, %v2883
    %v2920 = vpack.c.b16 %v2888, %v2884
    %2953 = vmatprep.subr.bf16.mxu0 %v2918
    %2954 = vmatpush1.bf16.msra.mxu0 %v2917
    %2955 = vmatprep.subr.bf16.mxu0 %v2914
    %2956 = vmatpush1.bf16.msra.mxu0 %v2913
    %2957 = vmatprep.subr.bf16.mxu0 %v2910
    %2958 = vmatpush1.bf16.msra.mxu0 %v2909
    %2959 = vmatprep.subr.bf16.mxu0 %v2906
    %2960 = vmatpush1.bf16.msra.mxu0 %v2905
    %2961 = vmatprep.subr.bf16.mxu0 %v2902
    %2962 = vmatpush1.bf16.msra.mxu0 %v2901
    %2963 = vmatprep.subr.bf16.mxu0 %v2898
    %2964 = vmatpush1.bf16.msra.mxu0 %v2897
    %2965 = vmatprep.subr.bf16.mxu0 %v2894
    %2966 = vmatpush1.bf16.msra.mxu0 %v2893
    %2967 = vmatprep.subr.bf16.mxu0 %v2890
    %2968 = vmatpush1.bf16.msra.mxu0 %v2889
    %2969 = vmatprep.subr.bf16.mxu0 0
    %2970 = vmatpush2.bf16.msra.mxu0 0
    %2971 = vmatprep.subr.bf16.mxu0 0
    %2972 = vmatpush2.bf16.msra.mxu0 0
    %2973 = vmatprep.subr.bf16.mxu0 0
    %2974 = vmatpush2.bf16.msra.mxu0 0
    %2975 = vmatprep.subr.bf16.mxu0 0
    %2976 = vmatpush2.bf16.msra.mxu0 0
    %2977 = vmatprep.subr.bf16.mxu0 0
    %2978 = vmatpush2.bf16.msra.mxu0 0
    %2979 = vmatprep.subr.bf16.mxu0 0
    %2980 = vmatpush2.bf16.msra.mxu0 0
    %2981 = vmatprep.subr.bf16.mxu0 0
    %2982 = vmatpush2.bf16.msra.mxu0 0
    %2983 = vmatprep.subr.bf16.mxu0 0
    %2984 = vmatpush2.bf16.msra.mxu0 0
    %2985 = vmatprep.mubr.bf16.mxu0 0
    %2986 = vmatmul.mubr.bf16.gmra.mxu0 %v2485
    %v2987 = vpop.f32.mrf.mxu0
    %v2988 = vadd.f32 %v2746, %v2987
    %v2989 = vpop.f32.mrf.mxu0
    %v2990 = vadd.f32 %v2748, %v2989
    %v2991 = vpop.f32.mrf.mxu0
    %v2992 = vpop.f32.mrf.mxu0
    %2993 = vdwg.mxu0
    %2994 = vmatprep.subr.bf16.mxu0 %v2920
    %2995 = vmatpush1.bf16.msra.mxu0 %v2919
    %2996 = vmatprep.subr.bf16.mxu0 %v2916
    %2997 = vmatpush1.bf16.msra.mxu0 %v2915
    %2998 = vmatprep.subr.bf16.mxu0 %v2912
    %2999 = vmatpush1.bf16.msra.mxu0 %v2911
    %3000 = vmatprep.subr.bf16.mxu0 %v2908
    %3001 = vmatpush1.bf16.msra.mxu0 %v2907
    %3002 = vmatprep.subr.bf16.mxu0 %v2904
    %3003 = vmatpush1.bf16.msra.mxu0 %v2903
    %3004 = vmatprep.subr.bf16.mxu0 %v2900
    %3005 = vmatpush1.bf16.msra.mxu0 %v2899
    %3006 = vmatprep.subr.bf16.mxu0 %v2896
    %3007 = vmatpush1.bf16.msra.mxu0 %v2895
    %3008 = vmatprep.subr.bf16.mxu0 %v2892
    %3009 = vmatpush1.bf16.msra.mxu0 %v2891
    %3010 = vmatprep.subr.bf16.mxu0 0
    %3011 = vmatpush2.bf16.msra.mxu0 0
    %3012 = vmatprep.subr.bf16.mxu0 0
    %3013 = vmatpush2.bf16.msra.mxu0 0
    %3014 = vmatprep.subr.bf16.mxu0 0
    %3015 = vmatpush2.bf16.msra.mxu0 0
    %3016 = vmatprep.subr.bf16.mxu0 0
    %3017 = vmatpush2.bf16.msra.mxu0 0
    %3018 = vmatprep.subr.bf16.mxu0 0
    %3019 = vmatpush2.bf16.msra.mxu0 0
    %3020 = vmatprep.subr.bf16.mxu0 0
    %3021 = vmatpush2.bf16.msra.mxu0 0
    %3022 = vmatprep.subr.bf16.mxu0 0
    %3023 = vmatpush2.bf16.msra.mxu0 0
    %3024 = vmatprep.subr.bf16.mxu0 0
    %3025 = vmatpush2.bf16.msra.mxu0 0
    %3026 = vmatprep.mubr.bf16.mxu0 0
    %3027 = vmatmul.mubr.bf16.gmra.mxu0 %v2485
    %v3028 = vpop.f32.mrf.mxu0
    %v3029 = vadd.f32 %v2787, %v3028
    %v3030 = vpop.f32.mrf.mxu0
    %v3031 = vadd.f32 %v2789, %v3030
    %v3032 = vpop.f32.mrf.mxu0
    %v3033 = vpop.f32.mrf.mxu0
    %3034 = vdwg.mxu0
    %v3035 = vld [vmem:[#allocation10] sm:$0xff]
    %v3036 = vld [vmem:[#allocation10 + $0x8] sm:$0xff]
    %v3037 = vld [vmem:[#allocation10 + $0x10] sm:$0xff]
    %v3038 = vld [vmem:[#allocation10 + $0x18] sm:$0xff]
    %v3039 = vadd.f32 %v2988, %v3035
    %v3040 = vadd.f32 %v2990, %v3036
    %v3041 = vadd.f32 %v3029, %v3037
    %v3042 = vadd.f32 %v3031, %v3038
    %v3043 = vxor.u32 %v3039, 2147483648
    %v3044 = vmul.f32 %v3043, 1.442695
    %v3045 = vpow.pop %v3044
    %v3046 = vadd.f32 %v3045, 1.0
    %v3047 = vrcp.pop %v3046
    %v3048 = vmul.f32 1.0, %v3047
    %v3049 = vxor.u32 %v3040, 2147483648
    %v3050 = vmul.f32 %v3049, 1.442695
    %v3051 = vpow.pop %v3050
    %v3052 = vadd.f32 %v3051, 1.0
    %v3053 = vrcp.pop %v3052
    %v3054 = vmul.f32 1.0, %v3053
    %v3055 = vtanh.pop %v3041
    %v3056 = vxor.u32 %v3042, 2147483648
    %v3057 = vmul.f32 %v3056, 1.442695
    %v3058 = vpow.pop %v3057
    %v3059 = vadd.f32 %v3058, 1.0
    %v3060 = vrcp.pop %v3059
    %v3061 = vmul.f32 1.0, %v3060
    %v3062 = vmul.f32 %v3054, %v2484
    %v3063 = vmul.f32 %v3048, %v3055
    %v3064 = vadd.f32 %v3062, %v3063
    %v3065 = vtanh.pop %v3064
    %v3066 = vmul.f32 %v3061, %v3065
    %3067 = vst [vmem:[#allocation2] sm:$0xff] %v3066
    %3068 = vst [vmem:[#allocation3] sm:$0xff] %v3064
    %v3069 = vld [vmem:[%s714] sm:$0xff]
    %v3070 = vld [vmem:[%s716] sm:$0xff]
    %v3071 = vpack.c.bf16 %v3066, %v3066
    %v3072 = vld [vmem:[#allocation12] sm:$0xff]
    %v3073 = vld [vmem:[#allocation12 + $0x8] sm:$0xff]
    %v3074 = vld [vmem:[#allocation12 + $0x10] sm:$0xff]
    %v3075 = vld [vmem:[#allocation12 + $0x18] sm:$0xff]
    %v3076 = vld [vmem:[#allocation12 + $0x20] sm:$0xff]
    %v3077 = vld [vmem:[#allocation12 + $0x28] sm:$0xff]
    %v3078 = vld [vmem:[#allocation12 + $0x30] sm:$0xff]
    %v3079 = vld [vmem:[#allocation12 + $0x38] sm:$0xff]
    %v3080 = vld [vmem:[#allocation12 + $0x40] sm:$0xff]
    %v3081 = vld [vmem:[#allocation12 + $0x48] sm:$0xff]
    %v3082 = vld [vmem:[#allocation12 + $0x50] sm:$0xff]
    %v3083 = vld [vmem:[#allocation12 + $0x58] sm:$0xff]
    %v3084 = vld [vmem:[#allocation12 + $0x60] sm:$0xff]
    %v3085 = vld [vmem:[#allocation12 + $0x68] sm:$0xff]
    %v3086 = vld [vmem:[#allocation12 + $0x70] sm:$0xff]
    %v3087 = vld [vmem:[#allocation12 + $0x78] sm:$0xff]
    %v3088 = vld [vmem:[#allocation12 + $0x80] sm:$0xff]
    %v3089 = vld [vmem:[#allocation12 + $0x88] sm:$0xff]
    %v3090 = vld [vmem:[#allocation12 + $0x90] sm:$0xff]
    %v3091 = vld [vmem:[#allocation12 + $0x98] sm:$0xff]
    %v3092 = vld [vmem:[#allocation12 + $0xa0] sm:$0xff]
    %v3093 = vld [vmem:[#allocation12 + $0xa8] sm:$0xff]
    %v3094 = vld [vmem:[#allocation12 + $0xb0] sm:$0xff]
    %v3095 = vld [vmem:[#allocation12 + $0xb8] sm:$0xff]
    %v3096 = vld [vmem:[#allocation12 + $0xc0] sm:$0xff]
    %v3097 = vld [vmem:[#allocation12 + $0xc8] sm:$0xff]
    %v3098 = vld [vmem:[#allocation12 + $0xd0] sm:$0xff]
    %v3099 = vld [vmem:[#allocation12 + $0xd8] sm:$0xff]
    %v3100 = vld [vmem:[#allocation12 + $0xe0] sm:$0xff]
    %v3101 = vld [vmem:[#allocation12 + $0xe8] sm:$0xff]
    %v3102 = vld [vmem:[#allocation12 + $0xf0] sm:$0xff]
    %v3103 = vld [vmem:[#allocation12 + $0xf8] sm:$0xff]
    %v3104 = vpack.c.bf16 %v3069, %v3069
    %v3105 = vld [vmem:[#allocation13] sm:$0xff]
    %v3106 = vld [vmem:[#allocation13 + $0x8] sm:$0xff]
    %v3107 = vld [vmem:[#allocation13 + $0x10] sm:$0xff]
    %v3108 = vld [vmem:[#allocation13 + $0x18] sm:$0xff]
    %v3109 = vld [vmem:[#allocation13 + $0x20] sm:$0xff]
    %v3110 = vld [vmem:[#allocation13 + $0x28] sm:$0xff]
    %v3111 = vld [vmem:[#allocation13 + $0x30] sm:$0xff]
    %v3112 = vld [vmem:[#allocation13 + $0x38] sm:$0xff]
    %v3113 = vld [vmem:[#allocation13 + $0x40] sm:$0xff]
    %v3114 = vld [vmem:[#allocation13 + $0x48] sm:$0xff]
    %v3115 = vld [vmem:[#allocation13 + $0x50] sm:$0xff]
    %v3116 = vld [vmem:[#allocation13 + $0x58] sm:$0xff]
    %v3117 = vld [vmem:[#allocation13 + $0x60] sm:$0xff]
    %v3118 = vld [vmem:[#allocation13 + $0x68] sm:$0xff]
    %v3119 = vld [vmem:[#allocation13 + $0x70] sm:$0xff]
    %v3120 = vld [vmem:[#allocation13 + $0x78] sm:$0xff]
    %v3121 = vld [vmem:[#allocation13 + $0x80] sm:$0xff]
    %v3122 = vld [vmem:[#allocation13 + $0x88] sm:$0xff]
    %v3123 = vld [vmem:[#allocation13 + $0x90] sm:$0xff]
    %v3124 = vld [vmem:[#allocation13 + $0x98] sm:$0xff]
    %v3125 = vld [vmem:[#allocation13 + $0xa0] sm:$0xff]
    %v3126 = vld [vmem:[#allocation13 + $0xa8] sm:$0xff]
    %v3127 = vld [vmem:[#allocation13 + $0xb0] sm:$0xff]
    %v3128 = vld [vmem:[#allocation13 + $0xb8] sm:$0xff]
    %v3129 = vld [vmem:[#allocation13 + $0xc0] sm:$0xff]
    %v3130 = vld [vmem:[#allocation13 + $0xc8] sm:$0xff]
    %v3131 = vld [vmem:[#allocation13 + $0xd0] sm:$0xff]
    %v3132 = vld [vmem:[#allocation13 + $0xd8] sm:$0xff]
    %v3133 = vld [vmem:[#allocation13 + $0xe0] sm:$0xff]
    %v3134 = vld [vmem:[#allocation13 + $0xe8] sm:$0xff]
    %v3135 = vld [vmem:[#allocation13 + $0xf0] sm:$0xff]
    %v3136 = vld [vmem:[#allocation13 + $0xf8] sm:$0xff]
    %v3169 = vunpack.c.l.b16 %v3105
    %v3170 = vunpack.c.h.b16 %v3105
    %v3171 = vunpack.c.l.b16 %v3106
    %v3172 = vunpack.c.h.b16 %v3106
    %v3173 = vunpack.c.l.b16 %v3107
    %v3174 = vunpack.c.h.b16 %v3107
    %v3175 = vunpack.c.l.b16 %v3108
    %v3176 = vunpack.c.h.b16 %v3108
    %v3177 = vunpack.c.l.b16 %v3109
    %v3178 = vunpack.c.h.b16 %v3109
    %v3179 = vunpack.c.l.b16 %v3110
    %v3180 = vunpack.c.h.b16 %v3110
    %v3181 = vunpack.c.l.b16 %v3111
    %v3182 = vunpack.c.h.b16 %v3111
    %v3183 = vunpack.c.l.b16 %v3112
    %v3184 = vunpack.c.h.b16 %v3112
    %v3185 = vunpack.c.l.b16 %v3113
    %v3186 = vunpack.c.h.b16 %v3113
    %v3187 = vunpack.c.l.b16 %v3114
    %v3188 = vunpack.c.h.b16 %v3114
    %v3189 = vunpack.c.l.b16 %v3115
    %v3190 = vunpack.c.h.b16 %v3115
    %v3191 = vunpack.c.l.b16 %v3116
    %v3192 = vunpack.c.h.b16 %v3116
    %v3193 = vunpack.c.l.b16 %v3117
    %v3194 = vunpack.c.h.b16 %v3117
    %v3195 = vunpack.c.l.b16 %v3118
    %v3196 = vunpack.c.h.b16 %v3118
    %v3197 = vunpack.c.l.b16 %v3119
    %v3198 = vunpack.c.h.b16 %v3119
    %v3199 = vunpack.c.l.b16 %v3120
    %v3200 = vunpack.c.h.b16 %v3120
    %v3201 = vunpack.c.l.b16 %v3121
    %v3202 = vunpack.c.h.b16 %v3121
    %v3203 = vunpack.c.l.b16 %v3122
    %v3204 = vunpack.c.h.b16 %v3122
    %v3205 = vunpack.c.l.b16 %v3123
    %v3206 = vunpack.c.h.b16 %v3123
    %v3207 = vunpack.c.l.b16 %v3124
    %v3208 = vunpack.c.h.b16 %v3124
    %v3209 = vunpack.c.l.b16 %v3125
    %v3210 = vunpack.c.h.b16 %v3125
    %v3211 = vunpack.c.l.b16 %v3126
    %v3212 = vunpack.c.h.b16 %v3126
    %v3213 = vunpack.c.l.b16 %v3127
    %v3214 = vunpack.c.h.b16 %v3127
    %v3215 = vunpack.c.l.b16 %v3128
    %v3216 = vunpack.c.h.b16 %v3128
    %v3217 = vunpack.c.l.b16 %v3129
    %v3218 = vunpack.c.h.b16 %v3129
    %v3219 = vunpack.c.l.b16 %v3130
    %v3220 = vunpack.c.h.b16 %v3130
    %v3221 = vunpack.c.l.b16 %v3131
    %v3222 = vunpack.c.h.b16 %v3131
    %v3223 = vunpack.c.l.b16 %v3132
    %v3224 = vunpack.c.h.b16 %v3132
    %v3225 = vunpack.c.l.b16 %v3133
    %v3226 = vunpack.c.h.b16 %v3133
    %v3227 = vunpack.c.l.b16 %v3134
    %v3228 = vunpack.c.h.b16 %v3134
    %v3229 = vunpack.c.l.b16 %v3135
    %v3230 = vunpack.c.h.b16 %v3135
    %v3231 = vunpack.c.l.b16 %v3136
    %v3232 = vunpack.c.h.b16 %v3136
    %v3233 = vpack.c.b16 %v3173, %v3169
    %v3234 = vpack.c.b16 %v3174, %v3170
    %v3235 = vpack.c.b16 %v3175, %v3171
    %v3236 = vpack.c.b16 %v3176, %v3172
    %v3237 = vpack.c.b16 %v3181, %v3177
    %v3238 = vpack.c.b16 %v3182, %v3178
    %v3239 = vpack.c.b16 %v3183, %v3179
    %v3240 = vpack.c.b16 %v3184, %v3180
    %v3241 = vpack.c.b16 %v3189, %v3185
    %v3242 = vpack.c.b16 %v3190, %v3186
    %v3243 = vpack.c.b16 %v3191, %v3187
    %v3244 = vpack.c.b16 %v3192, %v3188
    %v3245 = vpack.c.b16 %v3197, %v3193
    %v3246 = vpack.c.b16 %v3198, %v3194
    %v3247 = vpack.c.b16 %v3199, %v3195
    %v3248 = vpack.c.b16 %v3200, %v3196
    %v3249 = vpack.c.b16 %v3205, %v3201
    %v3250 = vpack.c.b16 %v3206, %v3202
    %v3251 = vpack.c.b16 %v3207, %v3203
    %v3252 = vpack.c.b16 %v3208, %v3204
    %v3253 = vpack.c.b16 %v3213, %v3209
    %v3254 = vpack.c.b16 %v3214, %v3210
    %v3255 = vpack.c.b16 %v3215, %v3211
    %v3256 = vpack.c.b16 %v3216, %v3212
    %v3257 = vpack.c.b16 %v3221, %v3217
    %v3258 = vpack.c.b16 %v3222, %v3218
    %v3259 = vpack.c.b16 %v3223, %v3219
    %v3260 = vpack.c.b16 %v3224, %v3220
    %v3261 = vpack.c.b16 %v3229, %v3225
    %v3262 = vpack.c.b16 %v3230, %v3226
    %v3263 = vpack.c.b16 %v3231, %v3227
    %v3264 = vpack.c.b16 %v3232, %v3228
    %3297 = vmatprep.subr.bf16.mxu0 %v3262
    %3298 = vmatpush1.bf16.msra.mxu0 %v3261
    %3299 = vmatprep.subr.bf16.mxu0 %v3258
    %3300 = vmatpush1.bf16.msra.mxu0 %v3257
    %3301 = vmatprep.subr.bf16.mxu0 %v3254
    %3302 = vmatpush1.bf16.msra.mxu0 %v3253
    %3303 = vmatprep.subr.bf16.mxu0 %v3250
    %3304 = vmatpush1.bf16.msra.mxu0 %v3249
    %3305 = vmatprep.subr.bf16.mxu0 %v3246
    %3306 = vmatpush1.bf16.msra.mxu0 %v3245
    %3307 = vmatprep.subr.bf16.mxu0 %v3242
    %3308 = vmatpush1.bf16.msra.mxu0 %v3241
    %3309 = vmatprep.subr.bf16.mxu0 %v3238
    %3310 = vmatpush1.bf16.msra.mxu0 %v3237
    %3311 = vmatprep.subr.bf16.mxu0 %v3234
    %3312 = vmatpush1.bf16.msra.mxu0 %v3233
    %3313 = vmatprep.subr.bf16.mxu0 0
    %3314 = vmatpush2.bf16.msra.mxu0 0
    %3315 = vmatprep.subr.bf16.mxu0 0
    %3316 = vmatpush2.bf16.msra.mxu0 0
    %3317 = vmatprep.subr.bf16.mxu0 0
    %3318 = vmatpush2.bf16.msra.mxu0 0
    %3319 = vmatprep.subr.bf16.mxu0 0
    %3320 = vmatpush2.bf16.msra.mxu0 0
    %3321 = vmatprep.subr.bf16.mxu0 0
    %3322 = vmatpush2.bf16.msra.mxu0 0
    %3323 = vmatprep.subr.bf16.mxu0 0
    %3324 = vmatpush2.bf16.msra.mxu0 0
    %3325 = vmatprep.subr.bf16.mxu0 0
    %3326 = vmatpush2.bf16.msra.mxu0 0
    %3327 = vmatprep.subr.bf16.mxu0 0
    %3328 = vmatpush2.bf16.msra.mxu0 0
    %3329 = vmatprep.mubr.bf16.mxu0 0
    %3330 = vmatmul.mubr.bf16.gmra.mxu0 %v3104
    %v3331 = vpop.f32.mrf.mxu0
    %v3332 = vadd.f32 0.0, %v3331
    %v3333 = vpop.f32.mrf.mxu0
    %v3334 = vadd.f32 0.0, %v3333
    %v3335 = vpop.f32.mrf.mxu0
    %v3336 = vpop.f32.mrf.mxu0
    %3337 = vdwg.mxu0
    %3338 = vmatprep.subr.bf16.mxu0 %v3264
    %3339 = vmatpush1.bf16.msra.mxu0 %v3263
    %3340 = vmatprep.subr.bf16.mxu0 %v3260
    %3341 = vmatpush1.bf16.msra.mxu0 %v3259
    %3342 = vmatprep.subr.bf16.mxu0 %v3256
    %3343 = vmatpush1.bf16.msra.mxu0 %v3255
    %3344 = vmatprep.subr.bf16.mxu0 %v3252
    %3345 = vmatpush1.bf16.msra.mxu0 %v3251
    %3346 = vmatprep.subr.bf16.mxu0 %v3248
    %3347 = vmatpush1.bf16.msra.mxu0 %v3247
    %3348 = vmatprep.subr.bf16.mxu0 %v3244
    %3349 = vmatpush1.bf16.msra.mxu0 %v3243
    %3350 = vmatprep.subr.bf16.mxu0 %v3240
    %3351 = vmatpush1.bf16.msra.mxu0 %v3239
    %3352 = vmatprep.subr.bf16.mxu0 %v3236
    %3353 = vmatpush1.bf16.msra.mxu0 %v3235
    %3354 = vmatprep.subr.bf16.mxu0 0
    %3355 = vmatpush2.bf16.msra.mxu0 0
    %3356 = vmatprep.subr.bf16.mxu0 0
    %3357 = vmatpush2.bf16.msra.mxu0 0
    %3358 = vmatprep.subr.bf16.mxu0 0
    %3359 = vmatpush2.bf16.msra.mxu0 0
    %3360 = vmatprep.subr.bf16.mxu0 0
    %3361 = vmatpush2.bf16.msra.mxu0 0
    %3362 = vmatprep.subr.bf16.mxu0 0
    %3363 = vmatpush2.bf16.msra.mxu0 0
    %3364 = vmatprep.subr.bf16.mxu0 0
    %3365 = vmatpush2.bf16.msra.mxu0 0
    %3366 = vmatprep.subr.bf16.mxu0 0
    %3367 = vmatpush2.bf16.msra.mxu0 0
    %3368 = vmatprep.subr.bf16.mxu0 0
    %3369 = vmatpush2.bf16.msra.mxu0 0
    %3370 = vmatprep.mubr.bf16.mxu0 0
    %3371 = vmatmul.mubr.bf16.gmra.mxu0 %v3104
    %v3372 = vpop.f32.mrf.mxu0
    %v3373 = vadd.f32 0.0, %v3372
    %v3374 = vpop.f32.mrf.mxu0
    %v3375 = vadd.f32 0.0, %v3374
    %v3376 = vpop.f32.mrf.mxu0
    %v3377 = vpop.f32.mrf.mxu0
    %3378 = vdwg.mxu0
    %v3411 = vunpack.c.l.b16 %v3072
    %v3412 = vunpack.c.h.b16 %v3072
    %v3413 = vunpack.c.l.b16 %v3073
    %v3414 = vunpack.c.h.b16 %v3073
    %v3415 = vunpack.c.l.b16 %v3074
    %v3416 = vunpack.c.h.b16 %v3074
    %v3417 = vunpack.c.l.b16 %v3075
    %v3418 = vunpack.c.h.b16 %v3075
    %v3419 = vunpack.c.l.b16 %v3076
    %v3420 = vunpack.c.h.b16 %v3076
    %v3421 = vunpack.c.l.b16 %v3077
    %v3422 = vunpack.c.h.b16 %v3077
    %v3423 = vunpack.c.l.b16 %v3078
    %v3424 = vunpack.c.h.b16 %v3078
    %v3425 = vunpack.c.l.b16 %v3079
    %v3426 = vunpack.c.h.b16 %v3079
    %v3427 = vunpack.c.l.b16 %v3080
    %v3428 = vunpack.c.h.b16 %v3080
    %v3429 = vunpack.c.l.b16 %v3081
    %v3430 = vunpack.c.h.b16 %v3081
    %v3431 = vunpack.c.l.b16 %v3082
    %v3432 = vunpack.c.h.b16 %v3082
    %v3433 = vunpack.c.l.b16 %v3083
    %v3434 = vunpack.c.h.b16 %v3083
    %v3435 = vunpack.c.l.b16 %v3084
    %v3436 = vunpack.c.h.b16 %v3084
    %v3437 = vunpack.c.l.b16 %v3085
    %v3438 = vunpack.c.h.b16 %v3085
    %v3439 = vunpack.c.l.b16 %v3086
    %v3440 = vunpack.c.h.b16 %v3086
    %v3441 = vunpack.c.l.b16 %v3087
    %v3442 = vunpack.c.h.b16 %v3087
    %v3443 = vunpack.c.l.b16 %v3088
    %v3444 = vunpack.c.h.b16 %v3088
    %v3445 = vunpack.c.l.b16 %v3089
    %v3446 = vunpack.c.h.b16 %v3089
    %v3447 = vunpack.c.l.b16 %v3090
    %v3448 = vunpack.c.h.b16 %v3090
    %v3449 = vunpack.c.l.b16 %v3091
    %v3450 = vunpack.c.h.b16 %v3091
    %v3451 = vunpack.c.l.b16 %v3092
    %v3452 = vunpack.c.h.b16 %v3092
    %v3453 = vunpack.c.l.b16 %v3093
    %v3454 = vunpack.c.h.b16 %v3093
    %v3455 = vunpack.c.l.b16 %v3094
    %v3456 = vunpack.c.h.b16 %v3094
    %v3457 = vunpack.c.l.b16 %v3095
    %v3458 = vunpack.c.h.b16 %v3095
    %v3459 = vunpack.c.l.b16 %v3096
    %v3460 = vunpack.c.h.b16 %v3096
    %v3461 = vunpack.c.l.b16 %v3097
    %v3462 = vunpack.c.h.b16 %v3097
    %v3463 = vunpack.c.l.b16 %v3098
    %v3464 = vunpack.c.h.b16 %v3098
    %v3465 = vunpack.c.l.b16 %v3099
    %v3466 = vunpack.c.h.b16 %v3099
    %v3467 = vunpack.c.l.b16 %v3100
    %v3468 = vunpack.c.h.b16 %v3100
    %v3469 = vunpack.c.l.b16 %v3101
    %v3470 = vunpack.c.h.b16 %v3101
    %v3471 = vunpack.c.l.b16 %v3102
    %v3472 = vunpack.c.h.b16 %v3102
    %v3473 = vunpack.c.l.b16 %v3103
    %v3474 = vunpack.c.h.b16 %v3103
    %v3475 = vpack.c.b16 %v3415, %v3411
    %v3476 = vpack.c.b16 %v3416, %v3412
    %v3477 = vpack.c.b16 %v3417, %v3413
    %v3478 = vpack.c.b16 %v3418, %v3414
    %v3479 = vpack.c.b16 %v3423, %v3419
    %v3480 = vpack.c.b16 %v3424, %v3420
    %v3481 = vpack.c.b16 %v3425, %v3421
    %v3482 = vpack.c.b16 %v3426, %v3422
    %v3483 = vpack.c.b16 %v3431, %v3427
    %v3484 = vpack.c.b16 %v3432, %v3428
    %v3485 = vpack.c.b16 %v3433, %v3429
    %v3486 = vpack.c.b16 %v3434, %v3430
    %v3487 = vpack.c.b16 %v3439, %v3435
    %v3488 = vpack.c.b16 %v3440, %v3436
    %v3489 = vpack.c.b16 %v3441, %v3437
    %v3490 = vpack.c.b16 %v3442, %v3438
    %v3491 = vpack.c.b16 %v3447, %v3443
    %v3492 = vpack.c.b16 %v3448, %v3444
    %v3493 = vpack.c.b16 %v3449, %v3445
    %v3494 = vpack.c.b16 %v3450, %v3446
    %v3495 = vpack.c.b16 %v3455, %v3451
    %v3496 = vpack.c.b16 %v3456, %v3452
    %v3497 = vpack.c.b16 %v3457, %v3453
    %v3498 = vpack.c.b16 %v3458, %v3454
    %v3499 = vpack.c.b16 %v3463, %v3459
    %v3500 = vpack.c.b16 %v3464, %v3460
    %v3501 = vpack.c.b16 %v3465, %v3461
    %v3502 = vpack.c.b16 %v3466, %v3462
    %v3503 = vpack.c.b16 %v3471, %v3467
    %v3504 = vpack.c.b16 %v3472, %v3468
    %v3505 = vpack.c.b16 %v3473, %v3469
    %v3506 = vpack.c.b16 %v3474, %v3470
    %3539 = vmatprep.subr.bf16.mxu0 %v3504
    %3540 = vmatpush1.bf16.msra.mxu0 %v3503
    %3541 = vmatprep.subr.bf16.mxu0 %v3500
    %3542 = vmatpush1.bf16.msra.mxu0 %v3499
    %3543 = vmatprep.subr.bf16.mxu0 %v3496
    %3544 = vmatpush1.bf16.msra.mxu0 %v3495
    %3545 = vmatprep.subr.bf16.mxu0 %v3492
    %3546 = vmatpush1.bf16.msra.mxu0 %v3491
    %3547 = vmatprep.subr.bf16.mxu0 %v3488
    %3548 = vmatpush1.bf16.msra.mxu0 %v3487
    %3549 = vmatprep.subr.bf16.mxu0 %v3484
    %3550 = vmatpush1.bf16.msra.mxu0 %v3483
    %3551 = vmatprep.subr.bf16.mxu0 %v3480
    %3552 = vmatpush1.bf16.msra.mxu0 %v3479
    %3553 = vmatprep.subr.bf16.mxu0 %v3476
    %3554 = vmatpush1.bf16.msra.mxu0 %v3475
    %3555 = vmatprep.subr.bf16.mxu0 0
    %3556 = vmatpush2.bf16.msra.mxu0 0
    %3557 = vmatprep.subr.bf16.mxu0 0
    %3558 = vmatpush2.bf16.msra.mxu0 0
    %3559 = vmatprep.subr.bf16.mxu0 0
    %3560 = vmatpush2.bf16.msra.mxu0 0
    %3561 = vmatprep.subr.bf16.mxu0 0
    %3562 = vmatpush2.bf16.msra.mxu0 0
    %3563 = vmatprep.subr.bf16.mxu0 0
    %3564 = vmatpush2.bf16.msra.mxu0 0
    %3565 = vmatprep.subr.bf16.mxu0 0
    %3566 = vmatpush2.bf16.msra.mxu0 0
    %3567 = vmatprep.subr.bf16.mxu0 0
    %3568 = vmatpush2.bf16.msra.mxu0 0
    %3569 = vmatprep.subr.bf16.mxu0 0
    %3570 = vmatpush2.bf16.msra.mxu0 0
    %3571 = vmatprep.mubr.bf16.mxu0 0
    %3572 = vmatmul.mubr.bf16.gmra.mxu0 %v3071
    %v3573 = vpop.f32.mrf.mxu0
    %v3574 = vadd.f32 %v3332, %v3573
    %v3575 = vpop.f32.mrf.mxu0
    %v3576 = vadd.f32 %v3334, %v3575
    %v3577 = vpop.f32.mrf.mxu0
    %v3578 = vpop.f32.mrf.mxu0
    %3579 = vdwg.mxu0
    %3580 = vmatprep.subr.bf16.mxu0 %v3506
    %3581 = vmatpush1.bf16.msra.mxu0 %v3505
    %3582 = vmatprep.subr.bf16.mxu0 %v3502
    %3583 = vmatpush1.bf16.msra.mxu0 %v3501
    %3584 = vmatprep.subr.bf16.mxu0 %v3498
    %3585 = vmatpush1.bf16.msra.mxu0 %v3497
    %3586 = vmatprep.subr.bf16.mxu0 %v3494
    %3587 = vmatpush1.bf16.msra.mxu0 %v3493
    %3588 = vmatprep.subr.bf16.mxu0 %v3490
    %3589 = vmatpush1.bf16.msra.mxu0 %v3489
    %3590 = vmatprep.subr.bf16.mxu0 %v3486
    %3591 = vmatpush1.bf16.msra.mxu0 %v3485
    %3592 = vmatprep.subr.bf16.mxu0 %v3482
    %3593 = vmatpush1.bf16.msra.mxu0 %v3481
    %3594 = vmatprep.subr.bf16.mxu0 %v3478
    %3595 = vmatpush1.bf16.msra.mxu0 %v3477
    %3596 = vmatprep.subr.bf16.mxu0 0
    %3597 = vmatpush2.bf16.msra.mxu0 0
    %3598 = vmatprep.subr.bf16.mxu0 0
    %3599 = vmatpush2.bf16.msra.mxu0 0
    %3600 = vmatprep.subr.bf16.mxu0 0
    %3601 = vmatpush2.bf16.msra.mxu0 0
    %3602 = vmatprep.subr.bf16.mxu0 0
    %3603 = vmatpush2.bf16.msra.mxu0 0
    %3604 = vmatprep.subr.bf16.mxu0 0
    %3605 = vmatpush2.bf16.msra.mxu0 0
    %3606 = vmatprep.subr.bf16.mxu0 0
    %3607 = vmatpush2.bf16.msra.mxu0 0
    %3608 = vmatprep.subr.bf16.mxu0 0
    %3609 = vmatpush2.bf16.msra.mxu0 0
    %3610 = vmatprep.subr.bf16.mxu0 0
    %3611 = vmatpush2.bf16.msra.mxu0 0
    %3612 = vmatprep.mubr.bf16.mxu0 0
    %3613 = vmatmul.mubr.bf16.gmra.mxu0 %v3071
    %v3614 = vpop.f32.mrf.mxu0
    %v3615 = vadd.f32 %v3373, %v3614
    %v3616 = vpop.f32.mrf.mxu0
    %v3617 = vadd.f32 %v3375, %v3616
    %v3618 = vpop.f32.mrf.mxu0
    %v3619 = vpop.f32.mrf.mxu0
    %3620 = vdwg.mxu0
    %v3621 = vld [vmem:[#allocation15] sm:$0xff]
    %v3622 = vld [vmem:[#allocation15 + $0x8] sm:$0xff]
    %v3623 = vld [vmem:[#allocation15 + $0x10] sm:$0xff]
    %v3624 = vld [vmem:[#allocation15 + $0x18] sm:$0xff]
    %v3625 = vadd.f32 %v3574, %v3621
    %v3626 = vadd.f32 %v3576, %v3622
    %v3627 = vadd.f32 %v3615, %v3623
    %v3628 = vadd.f32 %v3617, %v3624
    %v3629 = vxor.u32 %v3625, 2147483648
    %v3630 = vmul.f32 %v3629, 1.442695
    %v3631 = vpow.pop %v3630
    %v3632 = vadd.f32 %v3631, 1.0
    %v3633 = vrcp.pop %v3632
    %v3634 = vmul.f32 1.0, %v3633
    %v3635 = vxor.u32 %v3626, 2147483648
    %v3636 = vmul.f32 %v3635, 1.442695
    %v3637 = vpow.pop %v3636
    %v3638 = vadd.f32 %v3637, 1.0
    %v3639 = vrcp.pop %v3638
    %v3640 = vmul.f32 1.0, %v3639
    %v3641 = vtanh.pop %v3627
    %v3642 = vxor.u32 %v3628, 2147483648
    %v3643 = vmul.f32 %v3642, 1.442695
    %v3644 = vpow.pop %v3643
    %v3645 = vadd.f32 %v3644, 1.0
    %v3646 = vrcp.pop %v3645
    %v3647 = vmul.f32 1.0, %v3646
    %v3648 = vmul.f32 %v3640, %v3070
    %v3649 = vmul.f32 %v3634, %v3641
    %v3650 = vadd.f32 %v3648, %v3649
    %v3651 = vtanh.pop %v3650
    %v3652 = vmul.f32 %v3647, %v3651
    %3653 = vst [vmem:[%s714] sm:$0xff] %v3652
    %3654 = vst [vmem:[%s716] sm:$0xff] %v3650
    %v3655 = vpack.c.bf16 %v3652, %v3652
    %s3656 = scalar_lea.vmem [#allocation16], 8
    %3657 = vst [vmem:[%s3656] sm:$0xf] %v3655
    %s3658 = scalar_lea.vmem [#allocation4], 24
    %v3659 = vld [vmem:[%s3658] sm:$0xff]
    %v3660 = vld [vmem:[#allocation2] sm:$0xff]
    %v3661 = vld [vmem:[#allocation3] sm:$0xff]
    %v3662 = vpack.c.bf16 %v3659, %v3659
    %v3663 = vld [vmem:[#allocation7] sm:$0xff]
    %v3664 = vld [vmem:[#allocation7 + $0x8] sm:$0xff]
    %v3665 = vld [vmem:[#allocation7 + $0x10] sm:$0xff]
    %v3666 = vld [vmem:[#allocation7 + $0x18] sm:$0xff]
    %v3667 = vld [vmem:[#allocation7 + $0x20] sm:$0xff]
    %v3668 = vld [vmem:[#allocation7 + $0x28] sm:$0xff]
    %v3669 = vld [vmem:[#allocation7 + $0x30] sm:$0xff]
    %v3670 = vld [vmem:[#allocation7 + $0x38] sm:$0xff]
    %v3671 = vld [vmem:[#allocation7 + $0x40] sm:$0xff]
    %v3672 = vld [vmem:[#allocation7 + $0x48] sm:$0xff]
    %v3673 = vld [vmem:[#allocation7 + $0x50] sm:$0xff]
    %v3674 = vld [vmem:[#allocation7 + $0x58] sm:$0xff]
    %v3675 = vld [vmem:[#allocation7 + $0x60] sm:$0xff]
    %v3676 = vld [vmem:[#allocation7 + $0x68] sm:$0xff]
    %v3677 = vld [vmem:[#allocation7 + $0x70] sm:$0xff]
    %v3678 = vld [vmem:[#allocation7 + $0x78] sm:$0xff]
    %v3679 = vld [vmem:[#allocation7 + $0x80] sm:$0xff]
    %v3680 = vld [vmem:[#allocation7 + $0x88] sm:$0xff]
    %v3681 = vld [vmem:[#allocation7 + $0x90] sm:$0xff]
    %v3682 = vld [vmem:[#allocation7 + $0x98] sm:$0xff]
    %v3683 = vld [vmem:[#allocation7 + $0xa0] sm:$0xff]
    %v3684 = vld [vmem:[#allocation7 + $0xa8] sm:$0xff]
    %v3685 = vld [vmem:[#allocation7 + $0xb0] sm:$0xff]
    %v3686 = vld [vmem:[#allocation7 + $0xb8] sm:$0xff]
    %v3687 = vld [vmem:[#allocation7 + $0xc0] sm:$0xff]
    %v3688 = vld [vmem:[#allocation7 + $0xc8] sm:$0xff]
    %v3689 = vld [vmem:[#allocation7 + $0xd0] sm:$0xff]
    %v3690 = vld [vmem:[#allocation7 + $0xd8] sm:$0xff]
    %v3691 = vld [vmem:[#allocation7 + $0xe0] sm:$0xff]
    %v3692 = vld [vmem:[#allocation7 + $0xe8] sm:$0xff]
    %v3693 = vld [vmem:[#allocation7 + $0xf0] sm:$0xff]
    %v3694 = vld [vmem:[#allocation7 + $0xf8] sm:$0xff]
    %v3695 = vpack.c.bf16 %v3660, %v3660
    %v3696 = vld [vmem:[#allocation9] sm:$0xff]
    %v3697 = vld [vmem:[#allocation9 + $0x8] sm:$0xff]
    %v3698 = vld [vmem:[#allocation9 + $0x10] sm:$0xff]
    %v3699 = vld [vmem:[#allocation9 + $0x18] sm:$0xff]
    %v3700 = vld [vmem:[#allocation9 + $0x20] sm:$0xff]
    %v3701 = vld [vmem:[#allocation9 + $0x28] sm:$0xff]
    %v3702 = vld [vmem:[#allocation9 + $0x30] sm:$0xff]
    %v3703 = vld [vmem:[#allocation9 + $0x38] sm:$0xff]
    %v3704 = vld [vmem:[#allocation9 + $0x40] sm:$0xff]
    %v3705 = vld [vmem:[#allocation9 + $0x48] sm:$0xff]
    %v3706 = vld [vmem:[#allocation9 + $0x50] sm:$0xff]
    %v3707 = vld [vmem:[#allocation9 + $0x58] sm:$0xff]
    %v3708 = vld [vmem:[#allocation9 + $0x60] sm:$0xff]
    %v3709 = vld [vmem:[#allocation9 + $0x68] sm:$0xff]
    %v3710 = vld [vmem:[#allocation9 + $0x70] sm:$0xff]
    %v3711 = vld [vmem:[#allocation9 + $0x78] sm:$0xff]
    %v3712 = vld [vmem:[#allocation9 + $0x80] sm:$0xff]
    %v3713 = vld [vmem:[#allocation9 + $0x88] sm:$0xff]
    %v3714 = vld [vmem:[#allocation9 + $0x90] sm:$0xff]
    %v3715 = vld [vmem:[#allocation9 + $0x98] sm:$0xff]
    %v3716 = vld [vmem:[#allocation9 + $0xa0] sm:$0xff]
    %v3717 = vld [vmem:[#allocation9 + $0xa8] sm:$0xff]
    %v3718 = vld [vmem:[#allocation9 + $0xb0] sm:$0xff]
    %v3719 = vld [vmem:[#allocation9 + $0xb8] sm:$0xff]
    %v3720 = vld [vmem:[#allocation9 + $0xc0] sm:$0xff]
    %v3721 = vld [vmem:[#allocation9 + $0xc8] sm:$0xff]
    %v3722 = vld [vmem:[#allocation9 + $0xd0] sm:$0xff]
    %v3723 = vld [vmem:[#allocation9 + $0xd8] sm:$0xff]
    %v3724 = vld [vmem:[#allocation9 + $0xe0] sm:$0xff]
    %v3725 = vld [vmem:[#allocation9 + $0xe8] sm:$0xff]
    %v3726 = vld [vmem:[#allocation9 + $0xf0] sm:$0xff]
    %v3727 = vld [vmem:[#allocation9 + $0xf8] sm:$0xff]
    %v3760 = vunpack.c.l.b16 %v3696
    %v3761 = vunpack.c.h.b16 %v3696
    %v3762 = vunpack.c.l.b16 %v3697
    %v3763 = vunpack.c.h.b16 %v3697
    %v3764 = vunpack.c.l.b16 %v3698
    %v3765 = vunpack.c.h.b16 %v3698
    %v3766 = vunpack.c.l.b16 %v3699
    %v3767 = vunpack.c.h.b16 %v3699
    %v3768 = vunpack.c.l.b16 %v3700
    %v3769 = vunpack.c.h.b16 %v3700
    %v3770 = vunpack.c.l.b16 %v3701
    %v3771 = vunpack.c.h.b16 %v3701
    %v3772 = vunpack.c.l.b16 %v3702
    %v3773 = vunpack.c.h.b16 %v3702
    %v3774 = vunpack.c.l.b16 %v3703
    %v3775 = vunpack.c.h.b16 %v3703
    %v3776 = vunpack.c.l.b16 %v3704
    %v3777 = vunpack.c.h.b16 %v3704
    %v3778 = vunpack.c.l.b16 %v3705
    %v3779 = vunpack.c.h.b16 %v3705
    %v3780 = vunpack.c.l.b16 %v3706
    %v3781 = vunpack.c.h.b16 %v3706
    %v3782 = vunpack.c.l.b16 %v3707
    %v3783 = vunpack.c.h.b16 %v3707
    %v3784 = vunpack.c.l.b16 %v3708
    %v3785 = vunpack.c.h.b16 %v3708
    %v3786 = vunpack.c.l.b16 %v3709
    %v3787 = vunpack.c.h.b16 %v3709
    %v3788 = vunpack.c.l.b16 %v3710
    %v3789 = vunpack.c.h.b16 %v3710
    %v3790 = vunpack.c.l.b16 %v3711
    %v3791 = vunpack.c.h.b16 %v3711
    %v3792 = vunpack.c.l.b16 %v3712
    %v3793 = vunpack.c.h.b16 %v3712
    %v3794 = vunpack.c.l.b16 %v3713
    %v3795 = vunpack.c.h.b16 %v3713
    %v3796 = vunpack.c.l.b16 %v3714
    %v3797 = vunpack.c.h.b16 %v3714
    %v3798 = vunpack.c.l.b16 %v3715
    %v3799 = vunpack.c.h.b16 %v3715
    %v3800 = vunpack.c.l.b16 %v3716
    %v3801 = vunpack.c.h.b16 %v3716
    %v3802 = vunpack.c.l.b16 %v3717
    %v3803 = vunpack.c.h.b16 %v3717
    %v3804 = vunpack.c.l.b16 %v3718
    %v3805 = vunpack.c.h.b16 %v3718
    %v3806 = vunpack.c.l.b16 %v3719
    %v3807 = vunpack.c.h.b16 %v3719
    %v3808 = vunpack.c.l.b16 %v3720
    %v3809 = vunpack.c.h.b16 %v3720
    %v3810 = vunpack.c.l.b16 %v3721
    %v3811 = vunpack.c.h.b16 %v3721
    %v3812 = vunpack.c.l.b16 %v3722
    %v3813 = vunpack.c.h.b16 %v3722
    %v3814 = vunpack.c.l.b16 %v3723
    %v3815 = vunpack.c.h.b16 %v3723
    %v3816 = vunpack.c.l.b16 %v3724
    %v3817 = vunpack.c.h.b16 %v3724
    %v3818 = vunpack.c.l.b16 %v3725
    %v3819 = vunpack.c.h.b16 %v3725
    %v3820 = vunpack.c.l.b16 %v3726
    %v3821 = vunpack.c.h.b16 %v3726
    %v3822 = vunpack.c.l.b16 %v3727
    %v3823 = vunpack.c.h.b16 %v3727
    %v3824 = vpack.c.b16 %v3764, %v3760
    %v3825 = vpack.c.b16 %v3765, %v3761
    %v3826 = vpack.c.b16 %v3766, %v3762
    %v3827 = vpack.c.b16 %v3767, %v3763
    %v3828 = vpack.c.b16 %v3772, %v3768
    %v3829 = vpack.c.b16 %v3773, %v3769
    %v3830 = vpack.c.b16 %v3774, %v3770
    %v3831 = vpack.c.b16 %v3775, %v3771
    %v3832 = vpack.c.b16 %v3780, %v3776
    %v3833 = vpack.c.b16 %v3781, %v3777
    %v3834 = vpack.c.b16 %v3782, %v3778
    %v3835 = vpack.c.b16 %v3783, %v3779
    %v3836 = vpack.c.b16 %v3788, %v3784
    %v3837 = vpack.c.b16 %v3789, %v3785
    %v3838 = vpack.c.b16 %v3790, %v3786
    %v3839 = vpack.c.b16 %v3791, %v3787
    %v3840 = vpack.c.b16 %v3796, %v3792
    %v3841 = vpack.c.b16 %v3797, %v3793
    %v3842 = vpack.c.b16 %v3798, %v3794
    %v3843 = vpack.c.b16 %v3799, %v3795
    %v3844 = vpack.c.b16 %v3804, %v3800
    %v3845 = vpack.c.b16 %v3805, %v3801
    %v3846 = vpack.c.b16 %v3806, %v3802
    %v3847 = vpack.c.b16 %v3807, %v3803
    %v3848 = vpack.c.b16 %v3812, %v3808
    %v3849 = vpack.c.b16 %v3813, %v3809
    %v3850 = vpack.c.b16 %v3814, %v3810
    %v3851 = vpack.c.b16 %v3815, %v3811
    %v3852 = vpack.c.b16 %v3820, %v3816
    %v3853 = vpack.c.b16 %v3821, %v3817
    %v3854 = vpack.c.b16 %v3822, %v3818
    %v3855 = vpack.c.b16 %v3823, %v3819
    %3888 = vmatprep.subr.bf16.mxu0 %v3853
    %3889 = vmatpush1.bf16.msra.mxu0 %v3852
    %3890 = vmatprep.subr.bf16.mxu0 %v3849
    %3891 = vmatpush1.bf16.msra.mxu0 %v3848
    %3892 = vmatprep.subr.bf16.mxu0 %v3845
    %3893 = vmatpush1.bf16.msra.mxu0 %v3844
    %3894 = vmatprep.subr.bf16.mxu0 %v3841
    %3895 = vmatpush1.bf16.msra.mxu0 %v3840
    %3896 = vmatprep.subr.bf16.mxu0 %v3837
    %3897 = vmatpush1.bf16.msra.mxu0 %v3836
    %3898 = vmatprep.subr.bf16.mxu0 %v3833
    %3899 = vmatpush1.bf16.msra.mxu0 %v3832
    %3900 = vmatprep.subr.bf16.mxu0 %v3829
    %3901 = vmatpush1.bf16.msra.mxu0 %v3828
    %3902 = vmatprep.subr.bf16.mxu0 %v3825
    %3903 = vmatpush1.bf16.msra.mxu0 %v3824
    %3904 = vmatprep.subr.bf16.mxu0 0
    %3905 = vmatpush2.bf16.msra.mxu0 0
    %3906 = vmatprep.subr.bf16.mxu0 0
    %3907 = vmatpush2.bf16.msra.mxu0 0
    %3908 = vmatprep.subr.bf16.mxu0 0
    %3909 = vmatpush2.bf16.msra.mxu0 0
    %3910 = vmatprep.subr.bf16.mxu0 0
    %3911 = vmatpush2.bf16.msra.mxu0 0
    %3912 = vmatprep.subr.bf16.mxu0 0
    %3913 = vmatpush2.bf16.msra.mxu0 0
    %3914 = vmatprep.subr.bf16.mxu0 0
    %3915 = vmatpush2.bf16.msra.mxu0 0
    %3916 = vmatprep.subr.bf16.mxu0 0
    %3917 = vmatpush2.bf16.msra.mxu0 0
    %3918 = vmatprep.subr.bf16.mxu0 0
    %3919 = vmatpush2.bf16.msra.mxu0 0
    %3920 = vmatprep.mubr.bf16.mxu0 0
    %3921 = vmatmul.mubr.bf16.gmra.mxu0 %v3695
    %v3922 = vpop.f32.mrf.mxu0
    %v3923 = vadd.f32 0.0, %v3922
    %v3924 = vpop.f32.mrf.mxu0
    %v3925 = vadd.f32 0.0, %v3924
    %v3926 = vpop.f32.mrf.mxu0
    %v3927 = vpop.f32.mrf.mxu0
    %3928 = vdwg.mxu0
    %3929 = vmatprep.subr.bf16.mxu0 %v3855
    %3930 = vmatpush1.bf16.msra.mxu0 %v3854
    %3931 = vmatprep.subr.bf16.mxu0 %v3851
    %3932 = vmatpush1.bf16.msra.mxu0 %v3850
    %3933 = vmatprep.subr.bf16.mxu0 %v3847
    %3934 = vmatpush1.bf16.msra.mxu0 %v3846
    %3935 = vmatprep.subr.bf16.mxu0 %v3843
    %3936 = vmatpush1.bf16.msra.mxu0 %v3842
    %3937 = vmatprep.subr.bf16.mxu0 %v3839
    %3938 = vmatpush1.bf16.msra.mxu0 %v3838
    %3939 = vmatprep.subr.bf16.mxu0 %v3835
    %3940 = vmatpush1.bf16.msra.mxu0 %v3834
    %3941 = vmatprep.subr.bf16.mxu0 %v3831
    %3942 = vmatpush1.bf16.msra.mxu0 %v3830
    %3943 = vmatprep.subr.bf16.mxu0 %v3827
    %3944 = vmatpush1.bf16.msra.mxu0 %v3826
    %3945 = vmatprep.subr.bf16.mxu0 0
    %3946 = vmatpush2.bf16.msra.mxu0 0
    %3947 = vmatprep.subr.bf16.mxu0 0
    %3948 = vmatpush2.bf16.msra.mxu0 0
    %3949 = vmatprep.subr.bf16.mxu0 0
    %3950 = vmatpush2.bf16.msra.mxu0 0
    %3951 = vmatprep.subr.bf16.mxu0 0
    %3952 = vmatpush2.bf16.msra.mxu0 0
    %3953 = vmatprep.subr.bf16.mxu0 0
    %3954 = vmatpush2.bf16.msra.mxu0 0
    %3955 = vmatprep.subr.bf16.mxu0 0
    %3956 = vmatpush2.bf16.msra.mxu0 0
    %3957 = vmatprep.subr.bf16.mxu0 0
    %3958 = vmatpush2.bf16.msra.mxu0 0
    %3959 = vmatprep.subr.bf16.mxu0 0
    %3960 = vmatpush2.bf16.msra.mxu0 0
    %3961 = vmatprep.mubr.bf16.mxu0 0
    %3962 = vmatmul.mubr.bf16.gmra.mxu0 %v3695
    %v3963 = vpop.f32.mrf.mxu0
    %v3964 = vadd.f32 0.0, %v3963
    %v3965 = vpop.f32.mrf.mxu0
    %v3966 = vadd.f32 0.0, %v3965
    %v3967 = vpop.f32.mrf.mxu0
    %v3968 = vpop.f32.mrf.mxu0
    %3969 = vdwg.mxu0
    %v4002 = vunpack.c.l.b16 %v3663
    %v4003 = vunpack.c.h.b16 %v3663
    %v4004 = vunpack.c.l.b16 %v3664
    %v4005 = vunpack.c.h.b16 %v3664
    %v4006 = vunpack.c.l.b16 %v3665
    %v4007 = vunpack.c.h.b16 %v3665
    %v4008 = vunpack.c.l.b16 %v3666
    %v4009 = vunpack.c.h.b16 %v3666
    %v4010 = vunpack.c.l.b16 %v3667
    %v4011 = vunpack.c.h.b16 %v3667
    %v4012 = vunpack.c.l.b16 %v3668
    %v4013 = vunpack.c.h.b16 %v3668
    %v4014 = vunpack.c.l.b16 %v3669
    %v4015 = vunpack.c.h.b16 %v3669
    %v4016 = vunpack.c.l.b16 %v3670
    %v4017 = vunpack.c.h.b16 %v3670
    %v4018 = vunpack.c.l.b16 %v3671
    %v4019 = vunpack.c.h.b16 %v3671
    %v4020 = vunpack.c.l.b16 %v3672
    %v4021 = vunpack.c.h.b16 %v3672
    %v4022 = vunpack.c.l.b16 %v3673
    %v4023 = vunpack.c.h.b16 %v3673
    %v4024 = vunpack.c.l.b16 %v3674
    %v4025 = vunpack.c.h.b16 %v3674
    %v4026 = vunpack.c.l.b16 %v3675
    %v4027 = vunpack.c.h.b16 %v3675
    %v4028 = vunpack.c.l.b16 %v3676
    %v4029 = vunpack.c.h.b16 %v3676
    %v4030 = vunpack.c.l.b16 %v3677
    %v4031 = vunpack.c.h.b16 %v3677
    %v4032 = vunpack.c.l.b16 %v3678
    %v4033 = vunpack.c.h.b16 %v3678
    %v4034 = vunpack.c.l.b16 %v3679
    %v4035 = vunpack.c.h.b16 %v3679
    %v4036 = vunpack.c.l.b16 %v3680
    %v4037 = vunpack.c.h.b16 %v3680
    %v4038 = vunpack.c.l.b16 %v3681
    %v4039 = vunpack.c.h.b16 %v3681
    %v4040 = vunpack.c.l.b16 %v3682
    %v4041 = vunpack.c.h.b16 %v3682
    %v4042 = vunpack.c.l.b16 %v3683
    %v4043 = vunpack.c.h.b16 %v3683
    %v4044 = vunpack.c.l.b16 %v3684
    %v4045 = vunpack.c.h.b16 %v3684
    %v4046 = vunpack.c.l.b16 %v3685
    %v4047 = vunpack.c.h.b16 %v3685
    %v4048 = vunpack.c.l.b16 %v3686
    %v4049 = vunpack.c.h.b16 %v3686
    %v4050 = vunpack.c.l.b16 %v3687
    %v4051 = vunpack.c.h.b16 %v3687
    %v4052 = vunpack.c.l.b16 %v3688
    %v4053 = vunpack.c.h.b16 %v3688
    %v4054 = vunpack.c.l.b16 %v3689
    %v4055 = vunpack.c.h.b16 %v3689
    %v4056 = vunpack.c.l.b16 %v3690
    %v4057 = vunpack.c.h.b16 %v3690
    %v4058 = vunpack.c.l.b16 %v3691
    %v4059 = vunpack.c.h.b16 %v3691
    %v4060 = vunpack.c.l.b16 %v3692
    %v4061 = vunpack.c.h.b16 %v3692
    %v4062 = vunpack.c.l.b16 %v3693
    %v4063 = vunpack.c.h.b16 %v3693
    %v4064 = vunpack.c.l.b16 %v3694
    %v4065 = vunpack.c.h.b16 %v3694
    %v4066 = vpack.c.b16 %v4006, %v4002
    %v4067 = vpack.c.b16 %v4007, %v4003
    %v4068 = vpack.c.b16 %v4008, %v4004
    %v4069 = vpack.c.b16 %v4009, %v4005
    %v4070 = vpack.c.b16 %v4014, %v4010
    %v4071 = vpack.c.b16 %v4015, %v4011
    %v4072 = vpack.c.b16 %v4016, %v4012
    %v4073 = vpack.c.b16 %v4017, %v4013
    %v4074 = vpack.c.b16 %v4022, %v4018
    %v4075 = vpack.c.b16 %v4023, %v4019
    %v4076 = vpack.c.b16 %v4024, %v4020
    %v4077 = vpack.c.b16 %v4025, %v4021
    %v4078 = vpack.c.b16 %v4030, %v4026
    %v4079 = vpack.c.b16 %v4031, %v4027
    %v4080 = vpack.c.b16 %v4032, %v4028
    %v4081 = vpack.c.b16 %v4033, %v4029
    %v4082 = vpack.c.b16 %v4038, %v4034
    %v4083 = vpack.c.b16 %v4039, %v4035
    %v4084 = vpack.c.b16 %v4040, %v4036
    %v4085 = vpack.c.b16 %v4041, %v4037
    %v4086 = vpack.c.b16 %v4046, %v4042
    %v4087 = vpack.c.b16 %v4047, %v4043
    %v4088 = vpack.c.b16 %v4048, %v4044
    %v4089 = vpack.c.b16 %v4049, %v4045
    %v4090 = vpack.c.b16 %v4054, %v4050
    %v4091 = vpack.c.b16 %v4055, %v4051
    %v4092 = vpack.c.b16 %v4056, %v4052
    %v4093 = vpack.c.b16 %v4057, %v4053
    %v4094 = vpack.c.b16 %v4062, %v4058
    %v4095 = vpack.c.b16 %v4063, %v4059
    %v4096 = vpack.c.b16 %v4064, %v4060
    %v4097 = vpack.c.b16 %v4065, %v4061
    %4130 = vmatprep.subr.bf16.mxu0 %v4095
    %4131 = vmatpush1.bf16.msra.mxu0 %v4094
    %4132 = vmatprep.subr.bf16.mxu0 %v4091
    %4133 = vmatpush1.bf16.msra.mxu0 %v4090
    %4134 = vmatprep.subr.bf16.mxu0 %v4087
    %4135 = vmatpush1.bf16.msra.mxu0 %v4086
    %4136 = vmatprep.subr.bf16.mxu0 %v4083
    %4137 = vmatpush1.bf16.msra.mxu0 %v4082
    %4138 = vmatprep.subr.bf16.mxu0 %v4079
    %4139 = vmatpush1.bf16.msra.mxu0 %v4078
    %4140 = vmatprep.subr.bf16.mxu0 %v4075
    %4141 = vmatpush1.bf16.msra.mxu0 %v4074
    %4142 = vmatprep.subr.bf16.mxu0 %v4071
    %4143 = vmatpush1.bf16.msra.mxu0 %v4070
    %4144 = vmatprep.subr.bf16.mxu0 %v4067
    %4145 = vmatpush1.bf16.msra.mxu0 %v4066
    %4146 = vmatprep.subr.bf16.mxu0 0
    %4147 = vmatpush2.bf16.msra.mxu0 0
    %4148 = vmatprep.subr.bf16.mxu0 0
    %4149 = vmatpush2.bf16.msra.mxu0 0
    %4150 = vmatprep.subr.bf16.mxu0 0
    %4151 = vmatpush2.bf16.msra.mxu0 0
    %4152 = vmatprep.subr.bf16.mxu0 0
    %4153 = vmatpush2.bf16.msra.mxu0 0
    %4154 = vmatprep.subr.bf16.mxu0 0
    %4155 = vmatpush2.bf16.msra.mxu0 0
    %4156 = vmatprep.subr.bf16.mxu0 0
    %4157 = vmatpush2.bf16.msra.mxu0 0
    %4158 = vmatprep.subr.bf16.mxu0 0
    %4159 = vmatpush2.bf16.msra.mxu0 0
    %4160 = vmatprep.subr.bf16.mxu0 0
    %4161 = vmatpush2.bf16.msra.mxu0 0
    %4162 = vmatprep.mubr.bf16.mxu0 0
    %4163 = vmatmul.mubr.bf16.gmra.mxu0 %v3662
    %v4164 = vpop.f32.mrf.mxu0
    %v4165 = vadd.f32 %v3923, %v4164
    %v4166 = vpop.f32.mrf.mxu0
    %v4167 = vadd.f32 %v3925, %v4166
    %v4168 = vpop.f32.mrf.mxu0
    %v4169 = vpop.f32.mrf.mxu0
    %4170 = vdwg.mxu0
    %4171 = vmatprep.subr.bf16.mxu0 %v4097
    %4172 = vmatpush1.bf16.msra.mxu0 %v4096
    %4173 = vmatprep.subr.bf16.mxu0 %v4093
    %4174 = vmatpush1.bf16.msra.mxu0 %v4092
    %4175 = vmatprep.subr.bf16.mxu0 %v4089
    %4176 = vmatpush1.bf16.msra.mxu0 %v4088
    %4177 = vmatprep.subr.bf16.mxu0 %v4085
    %4178 = vmatpush1.bf16.msra.mxu0 %v4084
    %4179 = vmatprep.subr.bf16.mxu0 %v4081
    %4180 = vmatpush1.bf16.msra.mxu0 %v4080
    %4181 = vmatprep.subr.bf16.mxu0 %v4077
    %4182 = vmatpush1.bf16.msra.mxu0 %v4076
    %4183 = vmatprep.subr.bf16.mxu0 %v4073
    %4184 = vmatpush1.bf16.msra.mxu0 %v4072
    %4185 = vmatprep.subr.bf16.mxu0 %v4069
    %4186 = vmatpush1.bf16.msra.mxu0 %v4068
    %4187 = vmatprep.subr.bf16.mxu0 0
    %4188 = vmatpush2.bf16.msra.mxu0 0
    %4189 = vmatprep.subr.bf16.mxu0 0
    %4190 = vmatpush2.bf16.msra.mxu0 0
    %4191 = vmatprep.subr.bf16.mxu0 0
    %4192 = vmatpush2.bf16.msra.mxu0 0
    %4193 = vmatprep.subr.bf16.mxu0 0
    %4194 = vmatpush2.bf16.msra.mxu0 0
    %4195 = vmatprep.subr.bf16.mxu0 0
    %4196 = vmatpush2.bf16.msra.mxu0 0
    %4197 = vmatprep.subr.bf16.mxu0 0
    %4198 = vmatpush2.bf16.msra.mxu0 0
    %4199 = vmatprep.subr.bf16.mxu0 0
    %4200 = vmatpush2.bf16.msra.mxu0 0
    %4201 = vmatprep.subr.bf16.mxu0 0
    %4202 = vmatpush2.bf16.msra.mxu0 0
    %4203 = vmatprep.mubr.bf16.mxu0 0
    %4204 = vmatmul.mubr.bf16.gmra.mxu0 %v3662
    %v4205 = vpop.f32.mrf.mxu0
    %v4206 = vadd.f32 %v3964, %v4205
    %v4207 = vpop.f32.mrf.mxu0
    %v4208 = vadd.f32 %v3966, %v4207
    %v4209 = vpop.f32.mrf.mxu0
    %v4210 = vpop.f32.mrf.mxu0
    %4211 = vdwg.mxu0
    %v4212 = vld [vmem:[#allocation10] sm:$0xff]
    %v4213 = vld [vmem:[#allocation10 + $0x8] sm:$0xff]
    %v4214 = vld [vmem:[#allocation10 + $0x10] sm:$0xff]
    %v4215 = vld [vmem:[#allocation10 + $0x18] sm:$0xff]
    %v4216 = vadd.f32 %v4165, %v4212
    %v4217 = vadd.f32 %v4167, %v4213
    %v4218 = vadd.f32 %v4206, %v4214
    %v4219 = vadd.f32 %v4208, %v4215
    %v4220 = vxor.u32 %v4216, 2147483648
    %v4221 = vmul.f32 %v4220, 1.442695
    %v4222 = vpow.pop %v4221
    %v4223 = vadd.f32 %v4222, 1.0
    %v4224 = vrcp.pop %v4223
    %v4225 = vmul.f32 1.0, %v4224
    %v4226 = vxor.u32 %v4217, 2147483648
    %v4227 = vmul.f32 %v4226, 1.442695
    %v4228 = vpow.pop %v4227
    %v4229 = vadd.f32 %v4228, 1.0
    %v4230 = vrcp.pop %v4229
    %v4231 = vmul.f32 1.0, %v4230
    %v4232 = vtanh.pop %v4218
    %v4233 = vxor.u32 %v4219, 2147483648
    %v4234 = vmul.f32 %v4233, 1.442695
    %v4235 = vpow.pop %v4234
    %v4236 = vadd.f32 %v4235, 1.0
    %v4237 = vrcp.pop %v4236
    %v4238 = vmul.f32 1.0, %v4237
    %v4239 = vmul.f32 %v4231, %v3661
    %v4240 = vmul.f32 %v4225, %v4232
    %v4241 = vadd.f32 %v4239, %v4240
    %v4242 = vtanh.pop %v4241
    %v4243 = vmul.f32 %v4238, %v4242
    %4244 = vst [vmem:[#allocation2] sm:$0xff] %v4243
    %4245 = vst [vmem:[#allocation3] sm:$0xff] %v4241
    %v4246 = vld [vmem:[%s714] sm:$0xff]
    %v4247 = vld [vmem:[%s716] sm:$0xff]
    %v4248 = vpack.c.bf16 %v4243, %v4243
    %v4249 = vld [vmem:[#allocation12] sm:$0xff]
    %v4250 = vld [vmem:[#allocation12 + $0x8] sm:$0xff]
    %v4251 = vld [vmem:[#allocation12 + $0x10] sm:$0xff]
    %v4252 = vld [vmem:[#allocation12 + $0x18] sm:$0xff]
    %v4253 = vld [vmem:[#allocation12 + $0x20] sm:$0xff]
    %v4254 = vld [vmem:[#allocation12 + $0x28] sm:$0xff]
    %v4255 = vld [vmem:[#allocation12 + $0x30] sm:$0xff]
    %v4256 = vld [vmem:[#allocation12 + $0x38] sm:$0xff]
    %v4257 = vld [vmem:[#allocation12 + $0x40] sm:$0xff]
    %v4258 = vld [vmem:[#allocation12 + $0x48] sm:$0xff]
    %v4259 = vld [vmem:[#allocation12 + $0x50] sm:$0xff]
    %v4260 = vld [vmem:[#allocation12 + $0x58] sm:$0xff]
    %v4261 = vld [vmem:[#allocation12 + $0x60] sm:$0xff]
    %v4262 = vld [vmem:[#allocation12 + $0x68] sm:$0xff]
    %v4263 = vld [vmem:[#allocation12 + $0x70] sm:$0xff]
    %v4264 = vld [vmem:[#allocation12 + $0x78] sm:$0xff]
    %v4265 = vld [vmem:[#allocation12 + $0x80] sm:$0xff]
    %v4266 = vld [vmem:[#allocation12 + $0x88] sm:$0xff]
    %v4267 = vld [vmem:[#allocation12 + $0x90] sm:$0xff]
    %v4268 = vld [vmem:[#allocation12 + $0x98] sm:$0xff]
    %v4269 = vld [vmem:[#allocation12 + $0xa0] sm:$0xff]
    %v4270 = vld [vmem:[#allocation12 + $0xa8] sm:$0xff]
    %v4271 = vld [vmem:[#allocation12 + $0xb0] sm:$0xff]
    %v4272 = vld [vmem:[#allocation12 + $0xb8] sm:$0xff]
    %v4273 = vld [vmem:[#allocation12 + $0xc0] sm:$0xff]
    %v4274 = vld [vmem:[#allocation12 + $0xc8] sm:$0xff]
    %v4275 = vld [vmem:[#allocation12 + $0xd0] sm:$0xff]
    %v4276 = vld [vmem:[#allocation12 + $0xd8] sm:$0xff]
    %v4277 = vld [vmem:[#allocation12 + $0xe0] sm:$0xff]
    %v4278 = vld [vmem:[#allocation12 + $0xe8] sm:$0xff]
    %v4279 = vld [vmem:[#allocation12 + $0xf0] sm:$0xff]
    %v4280 = vld [vmem:[#allocation12 + $0xf8] sm:$0xff]
    %v4281 = vpack.c.bf16 %v4246, %v4246
    %v4282 = vld [vmem:[#allocation13] sm:$0xff]
    %v4283 = vld [vmem:[#allocation13 + $0x8] sm:$0xff]
    %v4284 = vld [vmem:[#allocation13 + $0x10] sm:$0xff]
    %v4285 = vld [vmem:[#allocation13 + $0x18] sm:$0xff]
    %v4286 = vld [vmem:[#allocation13 + $0x20] sm:$0xff]
    %v4287 = vld [vmem:[#allocation13 + $0x28] sm:$0xff]
    %v4288 = vld [vmem:[#allocation13 + $0x30] sm:$0xff]
    %v4289 = vld [vmem:[#allocation13 + $0x38] sm:$0xff]
    %v4290 = vld [vmem:[#allocation13 + $0x40] sm:$0xff]
    %v4291 = vld [vmem:[#allocation13 + $0x48] sm:$0xff]
    %v4292 = vld [vmem:[#allocation13 + $0x50] sm:$0xff]
    %v4293 = vld [vmem:[#allocation13 + $0x58] sm:$0xff]
    %v4294 = vld [vmem:[#allocation13 + $0x60] sm:$0xff]
    %v4295 = vld [vmem:[#allocation13 + $0x68] sm:$0xff]
    %v4296 = vld [vmem:[#allocation13 + $0x70] sm:$0xff]
    %v4297 = vld [vmem:[#allocation13 + $0x78] sm:$0xff]
    %v4298 = vld [vmem:[#allocation13 + $0x80] sm:$0xff]
    %v4299 = vld [vmem:[#allocation13 + $0x88] sm:$0xff]
    %v4300 = vld [vmem:[#allocation13 + $0x90] sm:$0xff]
    %v4301 = vld [vmem:[#allocation13 + $0x98] sm:$0xff]
    %v4302 = vld [vmem:[#allocation13 + $0xa0] sm:$0xff]
    %v4303 = vld [vmem:[#allocation13 + $0xa8] sm:$0xff]
    %v4304 = vld [vmem:[#allocation13 + $0xb0] sm:$0xff]
    %v4305 = vld [vmem:[#allocation13 + $0xb8] sm:$0xff]
    %v4306 = vld [vmem:[#allocation13 + $0xc0] sm:$0xff]
    %v4307 = vld [vmem:[#allocation13 + $0xc8] sm:$0xff]
    %v4308 = vld [vmem:[#allocation13 + $0xd0] sm:$0xff]
    %v4309 = vld [vmem:[#allocation13 + $0xd8] sm:$0xff]
    %v4310 = vld [vmem:[#allocation13 + $0xe0] sm:$0xff]
    %v4311 = vld [vmem:[#allocation13 + $0xe8] sm:$0xff]
    %v4312 = vld [vmem:[#allocation13 + $0xf0] sm:$0xff]
    %v4313 = vld [vmem:[#allocation13 + $0xf8] sm:$0xff]
    %v4346 = vunpack.c.l.b16 %v4282
    %v4347 = vunpack.c.h.b16 %v4282
    %v4348 = vunpack.c.l.b16 %v4283
    %v4349 = vunpack.c.h.b16 %v4283
    %v4350 = vunpack.c.l.b16 %v4284
    %v4351 = vunpack.c.h.b16 %v4284
    %v4352 = vunpack.c.l.b16 %v4285
    %v4353 = vunpack.c.h.b16 %v4285
    %v4354 = vunpack.c.l.b16 %v4286
    %v4355 = vunpack.c.h.b16 %v4286
    %v4356 = vunpack.c.l.b16 %v4287
    %v4357 = vunpack.c.h.b16 %v4287
    %v4358 = vunpack.c.l.b16 %v4288
    %v4359 = vunpack.c.h.b16 %v4288
    %v4360 = vunpack.c.l.b16 %v4289
    %v4361 = vunpack.c.h.b16 %v4289
    %v4362 = vunpack.c.l.b16 %v4290
    %v4363 = vunpack.c.h.b16 %v4290
    %v4364 = vunpack.c.l.b16 %v4291
    %v4365 = vunpack.c.h.b16 %v4291
    %v4366 = vunpack.c.l.b16 %v4292
    %v4367 = vunpack.c.h.b16 %v4292
    %v4368 = vunpack.c.l.b16 %v4293
    %v4369 = vunpack.c.h.b16 %v4293
    %v4370 = vunpack.c.l.b16 %v4294
    %v4371 = vunpack.c.h.b16 %v4294
    %v4372 = vunpack.c.l.b16 %v4295
    %v4373 = vunpack.c.h.b16 %v4295
    %v4374 = vunpack.c.l.b16 %v4296
    %v4375 = vunpack.c.h.b16 %v4296
    %v4376 = vunpack.c.l.b16 %v4297
    %v4377 = vunpack.c.h.b16 %v4297
    %v4378 = vunpack.c.l.b16 %v4298
    %v4379 = vunpack.c.h.b16 %v4298
    %v4380 = vunpack.c.l.b16 %v4299
    %v4381 = vunpack.c.h.b16 %v4299
    %v4382 = vunpack.c.l.b16 %v4300
    %v4383 = vunpack.c.h.b16 %v4300
    %v4384 = vunpack.c.l.b16 %v4301
    %v4385 = vunpack.c.h.b16 %v4301
    %v4386 = vunpack.c.l.b16 %v4302
    %v4387 = vunpack.c.h.b16 %v4302
    %v4388 = vunpack.c.l.b16 %v4303
    %v4389 = vunpack.c.h.b16 %v4303
    %v4390 = vunpack.c.l.b16 %v4304
    %v4391 = vunpack.c.h.b16 %v4304
    %v4392 = vunpack.c.l.b16 %v4305
    %v4393 = vunpack.c.h.b16 %v4305
    %v4394 = vunpack.c.l.b16 %v4306
    %v4395 = vunpack.c.h.b16 %v4306
    %v4396 = vunpack.c.l.b16 %v4307
    %v4397 = vunpack.c.h.b16 %v4307
    %v4398 = vunpack.c.l.b16 %v4308
    %v4399 = vunpack.c.h.b16 %v4308
    %v4400 = vunpack.c.l.b16 %v4309
    %v4401 = vunpack.c.h.b16 %v4309
    %v4402 = vunpack.c.l.b16 %v4310
    %v4403 = vunpack.c.h.b16 %v4310
    %v4404 = vunpack.c.l.b16 %v4311
    %v4405 = vunpack.c.h.b16 %v4311
    %v4406 = vunpack.c.l.b16 %v4312
    %v4407 = vunpack.c.h.b16 %v4312
    %v4408 = vunpack.c.l.b16 %v4313
    %v4409 = vunpack.c.h.b16 %v4313
    %v4410 = vpack.c.b16 %v4350, %v4346
    %v4411 = vpack.c.b16 %v4351, %v4347
    %v4412 = vpack.c.b16 %v4352, %v4348
    %v4413 = vpack.c.b16 %v4353, %v4349
    %v4414 = vpack.c.b16 %v4358, %v4354
    %v4415 = vpack.c.b16 %v4359, %v4355
    %v4416 = vpack.c.b16 %v4360, %v4356
    %v4417 = vpack.c.b16 %v4361, %v4357
    %v4418 = vpack.c.b16 %v4366, %v4362
    %v4419 = vpack.c.b16 %v4367, %v4363
    %v4420 = vpack.c.b16 %v4368, %v4364
    %v4421 = vpack.c.b16 %v4369, %v4365
    %v4422 = vpack.c.b16 %v4374, %v4370
    %v4423 = vpack.c.b16 %v4375, %v4371
    %v4424 = vpack.c.b16 %v4376, %v4372
    %v4425 = vpack.c.b16 %v4377, %v4373
    %v4426 = vpack.c.b16 %v4382, %v4378
    %v4427 = vpack.c.b16 %v4383, %v4379
    %v4428 = vpack.c.b16 %v4384, %v4380
    %v4429 = vpack.c.b16 %v4385, %v4381
    %v4430 = vpack.c.b16 %v4390, %v4386
    %v4431 = vpack.c.b16 %v4391, %v4387
    %v4432 = vpack.c.b16 %v4392, %v4388
    %v4433 = vpack.c.b16 %v4393, %v4389
    %v4434 = vpack.c.b16 %v4398, %v4394
    %v4435 = vpack.c.b16 %v4399, %v4395
    %v4436 = vpack.c.b16 %v4400, %v4396
    %v4437 = vpack.c.b16 %v4401, %v4397
    %v4438 = vpack.c.b16 %v4406, %v4402
    %v4439 = vpack.c.b16 %v4407, %v4403
    %v4440 = vpack.c.b16 %v4408, %v4404
    %v4441 = vpack.c.b16 %v4409, %v4405
    %4474 = vmatprep.subr.bf16.mxu0 %v4439
    %4475 = vmatpush1.bf16.msra.mxu0 %v4438
    %4476 = vmatprep.subr.bf16.mxu0 %v4435
    %4477 = vmatpush1.bf16.msra.mxu0 %v4434
    %4478 = vmatprep.subr.bf16.mxu0 %v4431
    %4479 = vmatpush1.bf16.msra.mxu0 %v4430
    %4480 = vmatprep.subr.bf16.mxu0 %v4427
    %4481 = vmatpush1.bf16.msra.mxu0 %v4426
    %4482 = vmatprep.subr.bf16.mxu0 %v4423
    %4483 = vmatpush1.bf16.msra.mxu0 %v4422
    %4484 = vmatprep.subr.bf16.mxu0 %v4419
    %4485 = vmatpush1.bf16.msra.mxu0 %v4418
    %4486 = vmatprep.subr.bf16.mxu0 %v4415
    %4487 = vmatpush1.bf16.msra.mxu0 %v4414
    %4488 = vmatprep.subr.bf16.mxu0 %v4411
    %4489 = vmatpush1.bf16.msra.mxu0 %v4410
    %4490 = vmatprep.subr.bf16.mxu0 0
    %4491 = vmatpush2.bf16.msra.mxu0 0
    %4492 = vmatprep.subr.bf16.mxu0 0
    %4493 = vmatpush2.bf16.msra.mxu0 0
    %4494 = vmatprep.subr.bf16.mxu0 0
    %4495 = vmatpush2.bf16.msra.mxu0 0
    %4496 = vmatprep.subr.bf16.mxu0 0
    %4497 = vmatpush2.bf16.msra.mxu0 0
    %4498 = vmatprep.subr.bf16.mxu0 0
    %4499 = vmatpush2.bf16.msra.mxu0 0
    %4500 = vmatprep.subr.bf16.mxu0 0
    %4501 = vmatpush2.bf16.msra.mxu0 0
    %4502 = vmatprep.subr.bf16.mxu0 0
    %4503 = vmatpush2.bf16.msra.mxu0 0
    %4504 = vmatprep.subr.bf16.mxu0 0
    %4505 = vmatpush2.bf16.msra.mxu0 0
    %4506 = vmatprep.mubr.bf16.mxu0 0
    %4507 = vmatmul.mubr.bf16.gmra.mxu0 %v4281
    %v4508 = vpop.f32.mrf.mxu0
    %v4509 = vadd.f32 0.0, %v4508
    %v4510 = vpop.f32.mrf.mxu0
    %v4511 = vadd.f32 0.0, %v4510
    %v4512 = vpop.f32.mrf.mxu0
    %v4513 = vpop.f32.mrf.mxu0
    %4514 = vdwg.mxu0
    %4515 = vmatprep.subr.bf16.mxu0 %v4441
    %4516 = vmatpush1.bf16.msra.mxu0 %v4440
    %4517 = vmatprep.subr.bf16.mxu0 %v4437
    %4518 = vmatpush1.bf16.msra.mxu0 %v4436
    %4519 = vmatprep.subr.bf16.mxu0 %v4433
    %4520 = vmatpush1.bf16.msra.mxu0 %v4432
    %4521 = vmatprep.subr.bf16.mxu0 %v4429
    %4522 = vmatpush1.bf16.msra.mxu0 %v4428
    %4523 = vmatprep.subr.bf16.mxu0 %v4425
    %4524 = vmatpush1.bf16.msra.mxu0 %v4424
    %4525 = vmatprep.subr.bf16.mxu0 %v4421
    %4526 = vmatpush1.bf16.msra.mxu0 %v4420
    %4527 = vmatprep.subr.bf16.mxu0 %v4417
    %4528 = vmatpush1.bf16.msra.mxu0 %v4416
    %4529 = vmatprep.subr.bf16.mxu0 %v4413
    %4530 = vmatpush1.bf16.msra.mxu0 %v4412
    %4531 = vmatprep.subr.bf16.mxu0 0
    %4532 = vmatpush2.bf16.msra.mxu0 0
    %4533 = vmatprep.subr.bf16.mxu0 0
    %4534 = vmatpush2.bf16.msra.mxu0 0
    %4535 = vmatprep.subr.bf16.mxu0 0
    %4536 = vmatpush2.bf16.msra.mxu0 0
    %4537 = vmatprep.subr.bf16.mxu0 0
    %4538 = vmatpush2.bf16.msra.mxu0 0
    %4539 = vmatprep.subr.bf16.mxu0 0
    %4540 = vmatpush2.bf16.msra.mxu0 0
    %4541 = vmatprep.subr.bf16.mxu0 0
    %4542 = vmatpush2.bf16.msra.mxu0 0
    %4543 = vmatprep.subr.bf16.mxu0 0
    %4544 = vmatpush2.bf16.msra.mxu0 0
    %4545 = vmatprep.subr.bf16.mxu0 0
    %4546 = vmatpush2.bf16.msra.mxu0 0
    %4547 = vmatprep.mubr.bf16.mxu0 0
    %4548 = vmatmul.mubr.bf16.gmra.mxu0 %v4281
    %v4549 = vpop.f32.mrf.mxu0
    %v4550 = vadd.f32 0.0, %v4549
    %v4551 = vpop.f32.mrf.mxu0
    %v4552 = vadd.f32 0.0, %v4551
    %v4553 = vpop.f32.mrf.mxu0
    %v4554 = vpop.f32.mrf.mxu0
    %4555 = vdwg.mxu0
    %v4588 = vunpack.c.l.b16 %v4249
    %v4589 = vunpack.c.h.b16 %v4249
    %v4590 = vunpack.c.l.b16 %v4250
    %v4591 = vunpack.c.h.b16 %v4250
    %v4592 = vunpack.c.l.b16 %v4251
    %v4593 = vunpack.c.h.b16 %v4251
    %v4594 = vunpack.c.l.b16 %v4252
    %v4595 = vunpack.c.h.b16 %v4252
    %v4596 = vunpack.c.l.b16 %v4253
    %v4597 = vunpack.c.h.b16 %v4253
    %v4598 = vunpack.c.l.b16 %v4254
    %v4599 = vunpack.c.h.b16 %v4254
    %v4600 = vunpack.c.l.b16 %v4255
    %v4601 = vunpack.c.h.b16 %v4255
    %v4602 = vunpack.c.l.b16 %v4256
    %v4603 = vunpack.c.h.b16 %v4256
    %v4604 = vunpack.c.l.b16 %v4257
    %v4605 = vunpack.c.h.b16 %v4257
    %v4606 = vunpack.c.l.b16 %v4258
    %v4607 = vunpack.c.h.b16 %v4258
    %v4608 = vunpack.c.l.b16 %v4259
    %v4609 = vunpack.c.h.b16 %v4259
    %v4610 = vunpack.c.l.b16 %v4260
    %v4611 = vunpack.c.h.b16 %v4260
    %v4612 = vunpack.c.l.b16 %v4261
    %v4613 = vunpack.c.h.b16 %v4261
    %v4614 = vunpack.c.l.b16 %v4262
    %v4615 = vunpack.c.h.b16 %v4262
    %v4616 = vunpack.c.l.b16 %v4263
    %v4617 = vunpack.c.h.b16 %v4263
    %v4618 = vunpack.c.l.b16 %v4264
    %v4619 = vunpack.c.h.b16 %v4264
    %v4620 = vunpack.c.l.b16 %v4265
    %v4621 = vunpack.c.h.b16 %v4265
    %v4622 = vunpack.c.l.b16 %v4266
    %v4623 = vunpack.c.h.b16 %v4266
    %v4624 = vunpack.c.l.b16 %v4267
    %v4625 = vunpack.c.h.b16 %v4267
    %v4626 = vunpack.c.l.b16 %v4268
    %v4627 = vunpack.c.h.b16 %v4268
    %v4628 = vunpack.c.l.b16 %v4269
    %v4629 = vunpack.c.h.b16 %v4269
    %v4630 = vunpack.c.l.b16 %v4270
    %v4631 = vunpack.c.h.b16 %v4270
    %v4632 = vunpack.c.l.b16 %v4271
    %v4633 = vunpack.c.h.b16 %v4271
    %v4634 = vunpack.c.l.b16 %v4272
    %v4635 = vunpack.c.h.b16 %v4272
    %v4636 = vunpack.c.l.b16 %v4273
    %v4637 = vunpack.c.h.b16 %v4273
    %v4638 = vunpack.c.l.b16 %v4274
    %v4639 = vunpack.c.h.b16 %v4274
    %v4640 = vunpack.c.l.b16 %v4275
    %v4641 = vunpack.c.h.b16 %v4275
    %v4642 = vunpack.c.l.b16 %v4276
    %v4643 = vunpack.c.h.b16 %v4276
    %v4644 = vunpack.c.l.b16 %v4277
    %v4645 = vunpack.c.h.b16 %v4277
    %v4646 = vunpack.c.l.b16 %v4278
    %v4647 = vunpack.c.h.b16 %v4278
    %v4648 = vunpack.c.l.b16 %v4279
    %v4649 = vunpack.c.h.b16 %v4279
    %v4650 = vunpack.c.l.b16 %v4280
    %v4651 = vunpack.c.h.b16 %v4280
    %v4652 = vpack.c.b16 %v4592, %v4588
    %v4653 = vpack.c.b16 %v4593, %v4589
    %v4654 = vpack.c.b16 %v4594, %v4590
    %v4655 = vpack.c.b16 %v4595, %v4591
    %v4656 = vpack.c.b16 %v4600, %v4596
    %v4657 = vpack.c.b16 %v4601, %v4597
    %v4658 = vpack.c.b16 %v4602, %v4598
    %v4659 = vpack.c.b16 %v4603, %v4599
    %v4660 = vpack.c.b16 %v4608, %v4604
    %v4661 = vpack.c.b16 %v4609, %v4605
    %v4662 = vpack.c.b16 %v4610, %v4606
    %v4663 = vpack.c.b16 %v4611, %v4607
    %v4664 = vpack.c.b16 %v4616, %v4612
    %v4665 = vpack.c.b16 %v4617, %v4613
    %v4666 = vpack.c.b16 %v4618, %v4614
    %v4667 = vpack.c.b16 %v4619, %v4615
    %v4668 = vpack.c.b16 %v4624, %v4620
    %v4669 = vpack.c.b16 %v4625, %v4621
    %v4670 = vpack.c.b16 %v4626, %v4622
    %v4671 = vpack.c.b16 %v4627, %v4623
    %v4672 = vpack.c.b16 %v4632, %v4628
    %v4673 = vpack.c.b16 %v4633, %v4629
    %v4674 = vpack.c.b16 %v4634, %v4630
    %v4675 = vpack.c.b16 %v4635, %v4631
    %v4676 = vpack.c.b16 %v4640, %v4636
    %v4677 = vpack.c.b16 %v4641, %v4637
    %v4678 = vpack.c.b16 %v4642, %v4638
    %v4679 = vpack.c.b16 %v4643, %v4639
    %v4680 = vpack.c.b16 %v4648, %v4644
    %v4681 = vpack.c.b16 %v4649, %v4645
    %v4682 = vpack.c.b16 %v4650, %v4646
    %v4683 = vpack.c.b16 %v4651, %v4647
    %4716 = vmatprep.subr.bf16.mxu0 %v4681
    %4717 = vmatpush1.bf16.msra.mxu0 %v4680
    %4718 = vmatprep.subr.bf16.mxu0 %v4677
    %4719 = vmatpush1.bf16.msra.mxu0 %v4676
    %4720 = vmatprep.subr.bf16.mxu0 %v4673
    %4721 = vmatpush1.bf16.msra.mxu0 %v4672
    %4722 = vmatprep.subr.bf16.mxu0 %v4669
    %4723 = vmatpush1.bf16.msra.mxu0 %v4668
    %4724 = vmatprep.subr.bf16.mxu0 %v4665
    %4725 = vmatpush1.bf16.msra.mxu0 %v4664
    %4726 = vmatprep.subr.bf16.mxu0 %v4661
    %4727 = vmatpush1.bf16.msra.mxu0 %v4660
    %4728 = vmatprep.subr.bf16.mxu0 %v4657
    %4729 = vmatpush1.bf16.msra.mxu0 %v4656
    %4730 = vmatprep.subr.bf16.mxu0 %v4653
    %4731 = vmatpush1.bf16.msra.mxu0 %v4652
    %4732 = vmatprep.subr.bf16.mxu0 0
    %4733 = vmatpush2.bf16.msra.mxu0 0
    %4734 = vmatprep.subr.bf16.mxu0 0
    %4735 = vmatpush2.bf16.msra.mxu0 0
    %4736 = vmatprep.subr.bf16.mxu0 0
    %4737 = vmatpush2.bf16.msra.mxu0 0
    %4738 = vmatprep.subr.bf16.mxu0 0
    %4739 = vmatpush2.bf16.msra.mxu0 0
    %4740 = vmatprep.subr.bf16.mxu0 0
    %4741 = vmatpush2.bf16.msra.mxu0 0
    %4742 = vmatprep.subr.bf16.mxu0 0
    %4743 = vmatpush2.bf16.msra.mxu0 0
    %4744 = vmatprep.subr.bf16.mxu0 0
    %4745 = vmatpush2.bf16.msra.mxu0 0
    %4746 = vmatprep.subr.bf16.mxu0 0
    %4747 = vmatpush2.bf16.msra.mxu0 0
    %4748 = vmatprep.mubr.bf16.mxu0 0
    %4749 = vmatmul.mubr.bf16.gmra.mxu0 %v4248
    %v4750 = vpop.f32.mrf.mxu0
    %v4751 = vadd.f32 %v4509, %v4750
    %v4752 = vpop.f32.mrf.mxu0
    %v4753 = vadd.f32 %v4511, %v4752
    %v4754 = vpop.f32.mrf.mxu0
    %v4755 = vpop.f32.mrf.mxu0
    %4756 = vdwg.mxu0
    %4757 = vmatprep.subr.bf16.mxu0 %v4683
    %4758 = vmatpush1.bf16.msra.mxu0 %v4682
    %4759 = vmatprep.subr.bf16.mxu0 %v4679
    %4760 = vmatpush1.bf16.msra.mxu0 %v4678
    %4761 = vmatprep.subr.bf16.mxu0 %v4675
    %4762 = vmatpush1.bf16.msra.mxu0 %v4674
    %4763 = vmatprep.subr.bf16.mxu0 %v4671
    %4764 = vmatpush1.bf16.msra.mxu0 %v4670
    %4765 = vmatprep.subr.bf16.mxu0 %v4667
    %4766 = vmatpush1.bf16.msra.mxu0 %v4666
    %4767 = vmatprep.subr.bf16.mxu0 %v4663
    %4768 = vmatpush1.bf16.msra.mxu0 %v4662
    %4769 = vmatprep.subr.bf16.mxu0 %v4659
    %4770 = vmatpush1.bf16.msra.mxu0 %v4658
    %4771 = vmatprep.subr.bf16.mxu0 %v4655
    %4772 = vmatpush1.bf16.msra.mxu0 %v4654
    %4773 = vmatprep.subr.bf16.mxu0 0
    %4774 = vmatpush2.bf16.msra.mxu0 0
    %4775 = vmatprep.subr.bf16.mxu0 0
    %4776 = vmatpush2.bf16.msra.mxu0 0
    %4777 = vmatprep.subr.bf16.mxu0 0
    %4778 = vmatpush2.bf16.msra.mxu0 0
    %4779 = vmatprep.subr.bf16.mxu0 0
    %4780 = vmatpush2.bf16.msra.mxu0 0
    %4781 = vmatprep.subr.bf16.mxu0 0
    %4782 = vmatpush2.bf16.msra.mxu0 0
    %4783 = vmatprep.subr.bf16.mxu0 0
    %4784 = vmatpush2.bf16.msra.mxu0 0
    %4785 = vmatprep.subr.bf16.mxu0 0
    %4786 = vmatpush2.bf16.msra.mxu0 0
    %4787 = vmatprep.subr.bf16.mxu0 0
    %4788 = vmatpush2.bf16.msra.mxu0 0
    %4789 = vmatprep.mubr.bf16.mxu0 0
    %4790 = vmatmul.mubr.bf16.gmra.mxu0 %v4248
    %v4791 = vpop.f32.mrf.mxu0
    %v4792 = vadd.f32 %v4550, %v4791
    %v4793 = vpop.f32.mrf.mxu0
    %v4794 = vadd.f32 %v4552, %v4793
    %v4795 = vpop.f32.mrf.mxu0
    %v4796 = vpop.f32.mrf.mxu0
    %4797 = vdwg.mxu0
    %v4798 = vld [vmem:[#allocation15] sm:$0xff]
    %v4799 = vld [vmem:[#allocation15 + $0x8] sm:$0xff]
    %v4800 = vld [vmem:[#allocation15 + $0x10] sm:$0xff]
    %v4801 = vld [vmem:[#allocation15 + $0x18] sm:$0xff]
    %v4802 = vadd.f32 %v4751, %v4798
    %v4803 = vadd.f32 %v4753, %v4799
    %v4804 = vadd.f32 %v4792, %v4800
    %v4805 = vadd.f32 %v4794, %v4801
    %v4806 = vxor.u32 %v4802, 2147483648
    %v4807 = vmul.f32 %v4806, 1.442695
    %v4808 = vpow.pop %v4807
    %v4809 = vadd.f32 %v4808, 1.0
    %v4810 = vrcp.pop %v4809
    %v4811 = vmul.f32 1.0, %v4810
    %v4812 = vxor.u32 %v4803, 2147483648
    %v4813 = vmul.f32 %v4812, 1.442695
    %v4814 = vpow.pop %v4813
    %v4815 = vadd.f32 %v4814, 1.0
    %v4816 = vrcp.pop %v4815
    %v4817 = vmul.f32 1.0, %v4816
    %v4818 = vtanh.pop %v4804
    %v4819 = vxor.u32 %v4805, 2147483648
    %v4820 = vmul.f32 %v4819, 1.442695
    %v4821 = vpow.pop %v4820
    %v4822 = vadd.f32 %v4821, 1.0
    %v4823 = vrcp.pop %v4822
    %v4824 = vmul.f32 1.0, %v4823
    %v4825 = vmul.f32 %v4817, %v4247
    %v4826 = vmul.f32 %v4811, %v4818
    %v4827 = vadd.f32 %v4825, %v4826
    %v4828 = vtanh.pop %v4827
    %v4829 = vmul.f32 %v4824, %v4828
    %4830 = vst [vmem:[%s714] sm:$0xff] %v4829
    %4831 = vst [vmem:[%s716] sm:$0xff] %v4827
    %v4832 = vpack.c.bf16 %v4829, %v4829
    %s4833 = scalar_lea.vmem [#allocation16], 12
    %4834 = vst [vmem:[%s4833] sm:$0xf] %v4832
    %s4835 = scalar_lea.vmem [#allocation4], 32
    %v4836 = vld [vmem:[%s4835] sm:$0xff]
    %v4837 = vld [vmem:[#allocation2] sm:$0xff]
    %v4838 = vld [vmem:[#allocation3] sm:$0xff]
    %v4839 = vpack.c.bf16 %v4836, %v4836
    %v4840 = vld [vmem:[#allocation7] sm:$0xff]
    %v4841 = vld [vmem:[#allocation7 + $0x8] sm:$0xff]
    %v4842 = vld [vmem:[#allocation7 + $0x10] sm:$0xff]
    %v4843 = vld [vmem:[#allocation7 + $0x18] sm:$0xff]
    %v4844 = vld [vmem:[#allocation7 + $0x20] sm:$0xff]
    %v4845 = vld [vmem:[#allocation7 + $0x28] sm:$0xff]
    %v4846 = vld [vmem:[#allocation7 + $0x30] sm:$0xff]
    %v4847 = vld [vmem:[#allocation7 + $0x38] sm:$0xff]
    %v4848 = vld [vmem:[#allocation7 + $0x40] sm:$0xff]
    %v4849 = vld [vmem:[#allocation7 + $0x48] sm:$0xff]
    %v4850 = vld [vmem:[#allocation7 + $0x50] sm:$0xff]
    %v4851 = vld [vmem:[#allocation7 + $0x58] sm:$0xff]
    %v4852 = vld [vmem:[#allocation7 + $0x60] sm:$0xff]
    %v4853 = vld [vmem:[#allocation7 + $0x68] sm:$0xff]
    %v4854 = vld [vmem:[#allocation7 + $0x70] sm:$0xff]
    %v4855 = vld [vmem:[#allocation7 + $0x78] sm:$0xff]
    %v4856 = vld [vmem:[#allocation7 + $0x80] sm:$0xff]
    %v4857 = vld [vmem:[#allocation7 + $0x88] sm:$0xff]
    %v4858 = vld [vmem:[#allocation7 + $0x90] sm:$0xff]
    %v4859 = vld [vmem:[#allocation7 + $0x98] sm:$0xff]
    %v4860 = vld [vmem:[#allocation7 + $0xa0] sm:$0xff]
    %v4861 = vld [vmem:[#allocation7 + $0xa8] sm:$0xff]
    %v4862 = vld [vmem:[#allocation7 + $0xb0] sm:$0xff]
    %v4863 = vld [vmem:[#allocation7 + $0xb8] sm:$0xff]
    %v4864 = vld [vmem:[#allocation7 + $0xc0] sm:$0xff]
    %v4865 = vld [vmem:[#allocation7 + $0xc8] sm:$0xff]
    %v4866 = vld [vmem:[#allocation7 + $0xd0] sm:$0xff]
    %v4867 = vld [vmem:[#allocation7 + $0xd8] sm:$0xff]
    %v4868 = vld [vmem:[#allocation7 + $0xe0] sm:$0xff]
    %v4869 = vld [vmem:[#allocation7 + $0xe8] sm:$0xff]
    %v4870 = vld [vmem:[#allocation7 + $0xf0] sm:$0xff]
    %v4871 = vld [vmem:[#allocation7 + $0xf8] sm:$0xff]
    %v4872 = vpack.c.bf16 %v4837, %v4837
    %v4873 = vld [vmem:[#allocation9] sm:$0xff]
    %v4874 = vld [vmem:[#allocation9 + $0x8] sm:$0xff]
    %v4875 = vld [vmem:[#allocation9 + $0x10] sm:$0xff]
    %v4876 = vld [vmem:[#allocation9 + $0x18] sm:$0xff]
    %v4877 = vld [vmem:[#allocation9 + $0x20] sm:$0xff]
    %v4878 = vld [vmem:[#allocation9 + $0x28] sm:$0xff]
    %v4879 = vld [vmem:[#allocation9 + $0x30] sm:$0xff]
    %v4880 = vld [vmem:[#allocation9 + $0x38] sm:$0xff]
    %v4881 = vld [vmem:[#allocation9 + $0x40] sm:$0xff]
    %v4882 = vld [vmem:[#allocation9 + $0x48] sm:$0xff]
    %v4883 = vld [vmem:[#allocation9 + $0x50] sm:$0xff]
    %v4884 = vld [vmem:[#allocation9 + $0x58] sm:$0xff]
    %v4885 = vld [vmem:[#allocation9 + $0x60] sm:$0xff]
    %v4886 = vld [vmem:[#allocation9 + $0x68] sm:$0xff]
    %v4887 = vld [vmem:[#allocation9 + $0x70] sm:$0xff]
    %v4888 = vld [vmem:[#allocation9 + $0x78] sm:$0xff]
    %v4889 = vld [vmem:[#allocation9 + $0x80] sm:$0xff]
    %v4890 = vld [vmem:[#allocation9 + $0x88] sm:$0xff]
    %v4891 = vld [vmem:[#allocation9 + $0x90] sm:$0xff]
    %v4892 = vld [vmem:[#allocation9 + $0x98] sm:$0xff]
    %v4893 = vld [vmem:[#allocation9 + $0xa0] sm:$0xff]
    %v4894 = vld [vmem:[#allocation9 + $0xa8] sm:$0xff]
    %v4895 = vld [vmem:[#allocation9 + $0xb0] sm:$0xff]
    %v4896 = vld [vmem:[#allocation9 + $0xb8] sm:$0xff]
    %v4897 = vld [vmem:[#allocation9 + $0xc0] sm:$0xff]
    %v4898 = vld [vmem:[#allocation9 + $0xc8] sm:$0xff]
    %v4899 = vld [vmem:[#allocation9 + $0xd0] sm:$0xff]
    %v4900 = vld [vmem:[#allocation9 + $0xd8] sm:$0xff]
    %v4901 = vld [vmem:[#allocation9 + $0xe0] sm:$0xff]
    %v4902 = vld [vmem:[#allocation9 + $0xe8] sm:$0xff]
    %v4903 = vld [vmem:[#allocation9 + $0xf0] sm:$0xff]
    %v4904 = vld [vmem:[#allocation9 + $0xf8] sm:$0xff]
    %v4937 = vunpack.c.l.b16 %v4873
    %v4938 = vunpack.c.h.b16 %v4873
    %v4939 = vunpack.c.l.b16 %v4874
    %v4940 = vunpack.c.h.b16 %v4874
    %v4941 = vunpack.c.l.b16 %v4875
    %v4942 = vunpack.c.h.b16 %v4875
    %v4943 = vunpack.c.l.b16 %v4876
    %v4944 = vunpack.c.h.b16 %v4876
    %v4945 = vunpack.c.l.b16 %v4877
    %v4946 = vunpack.c.h.b16 %v4877
    %v4947 = vunpack.c.l.b16 %v4878
    %v4948 = vunpack.c.h.b16 %v4878
    %v4949 = vunpack.c.l.b16 %v4879
    %v4950 = vunpack.c.h.b16 %v4879
    %v4951 = vunpack.c.l.b16 %v4880
    %v4952 = vunpack.c.h.b16 %v4880
    %v4953 = vunpack.c.l.b16 %v4881
    %v4954 = vunpack.c.h.b16 %v4881
    %v4955 = vunpack.c.l.b16 %v4882
    %v4956 = vunpack.c.h.b16 %v4882
    %v4957 = vunpack.c.l.b16 %v4883
    %v4958 = vunpack.c.h.b16 %v4883
    %v4959 = vunpack.c.l.b16 %v4884
    %v4960 = vunpack.c.h.b16 %v4884
    %v4961 = vunpack.c.l.b16 %v4885
    %v4962 = vunpack.c.h.b16 %v4885
    %v4963 = vunpack.c.l.b16 %v4886
    %v4964 = vunpack.c.h.b16 %v4886
    %v4965 = vunpack.c.l.b16 %v4887
    %v4966 = vunpack.c.h.b16 %v4887
    %v4967 = vunpack.c.l.b16 %v4888
    %v4968 = vunpack.c.h.b16 %v4888
    %v4969 = vunpack.c.l.b16 %v4889
    %v4970 = vunpack.c.h.b16 %v4889
    %v4971 = vunpack.c.l.b16 %v4890
    %v4972 = vunpack.c.h.b16 %v4890
    %v4973 = vunpack.c.l.b16 %v4891
    %v4974 = vunpack.c.h.b16 %v4891
    %v4975 = vunpack.c.l.b16 %v4892
    %v4976 = vunpack.c.h.b16 %v4892
    %v4977 = vunpack.c.l.b16 %v4893
    %v4978 = vunpack.c.h.b16 %v4893
    %v4979 = vunpack.c.l.b16 %v4894
    %v4980 = vunpack.c.h.b16 %v4894
    %v4981 = vunpack.c.l.b16 %v4895
    %v4982 = vunpack.c.h.b16 %v4895
    %v4983 = vunpack.c.l.b16 %v4896
    %v4984 = vunpack.c.h.b16 %v4896
    %v4985 = vunpack.c.l.b16 %v4897
    %v4986 = vunpack.c.h.b16 %v4897
    %v4987 = vunpack.c.l.b16 %v4898
    %v4988 = vunpack.c.h.b16 %v4898
    %v4989 = vunpack.c.l.b16 %v4899
    %v4990 = vunpack.c.h.b16 %v4899
    %v4991 = vunpack.c.l.b16 %v4900
    %v4992 = vunpack.c.h.b16 %v4900
    %v4993 = vunpack.c.l.b16 %v4901
    %v4994 = vunpack.c.h.b16 %v4901
    %v4995 = vunpack.c.l.b16 %v4902
    %v4996 = vunpack.c.h.b16 %v4902
    %v4997 = vunpack.c.l.b16 %v4903
    %v4998 = vunpack.c.h.b16 %v4903
    %v4999 = vunpack.c.l.b16 %v4904
    %v5000 = vunpack.c.h.b16 %v4904
    %v5001 = vpack.c.b16 %v4941, %v4937
    %v5002 = vpack.c.b16 %v4942, %v4938
    %v5003 = vpack.c.b16 %v4943, %v4939
    %v5004 = vpack.c.b16 %v4944, %v4940
    %v5005 = vpack.c.b16 %v4949, %v4945
    %v5006 = vpack.c.b16 %v4950, %v4946
    %v5007 = vpack.c.b16 %v4951, %v4947
    %v5008 = vpack.c.b16 %v4952, %v4948
    %v5009 = vpack.c.b16 %v4957, %v4953
    %v5010 = vpack.c.b16 %v4958, %v4954
    %v5011 = vpack.c.b16 %v4959, %v4955
    %v5012 = vpack.c.b16 %v4960, %v4956
    %v5013 = vpack.c.b16 %v4965, %v4961
    %v5014 = vpack.c.b16 %v4966, %v4962
    %v5015 = vpack.c.b16 %v4967, %v4963
    %v5016 = vpack.c.b16 %v4968, %v4964
    %v5017 = vpack.c.b16 %v4973, %v4969
    %v5018 = vpack.c.b16 %v4974, %v4970
    %v5019 = vpack.c.b16 %v4975, %v4971
    %v5020 = vpack.c.b16 %v4976, %v4972
    %v5021 = vpack.c.b16 %v4981, %v4977
    %v5022 = vpack.c.b16 %v4982, %v4978
    %v5023 = vpack.c.b16 %v4983, %v4979
    %v5024 = vpack.c.b16 %v4984, %v4980
    %v5025 = vpack.c.b16 %v4989, %v4985
    %v5026 = vpack.c.b16 %v4990, %v4986
    %v5027 = vpack.c.b16 %v4991, %v4987
    %v5028 = vpack.c.b16 %v4992, %v4988
    %v5029 = vpack.c.b16 %v4997, %v4993
    %v5030 = vpack.c.b16 %v4998, %v4994
    %v5031 = vpack.c.b16 %v4999, %v4995
    %v5032 = vpack.c.b16 %v5000, %v4996
    %5065 = vmatprep.subr.bf16.mxu0 %v5030
    %5066 = vmatpush1.bf16.msra.mxu0 %v5029
    %5067 = vmatprep.subr.bf16.mxu0 %v5026
    %5068 = vmatpush1.bf16.msra.mxu0 %v5025
    %5069 = vmatprep.subr.bf16.mxu0 %v5022
    %5070 = vmatpush1.bf16.msra.mxu0 %v5021
    %5071 = vmatprep.subr.bf16.mxu0 %v5018
    %5072 = vmatpush1.bf16.msra.mxu0 %v5017
    %5073 = vmatprep.subr.bf16.mxu0 %v5014
    %5074 = vmatpush1.bf16.msra.mxu0 %v5013
    %5075 = vmatprep.subr.bf16.mxu0 %v5010
    %5076 = vmatpush1.bf16.msra.mxu0 %v5009
    %5077 = vmatprep.subr.bf16.mxu0 %v5006
    %5078 = vmatpush1.bf16.msra.mxu0 %v5005
    %5079 = vmatprep.subr.bf16.mxu0 %v5002
    %5080 = vmatpush1.bf16.msra.mxu0 %v5001
    %5081 = vmatprep.subr.bf16.mxu0 0
    %5082 = vmatpush2.bf16.msra.mxu0 0
    %5083 = vmatprep.subr.bf16.mxu0 0
    %5084 = vmatpush2.bf16.msra.mxu0 0
    %5085 = vmatprep.subr.bf16.mxu0 0
    %5086 = vmatpush2.bf16.msra.mxu0 0
    %5087 = vmatprep.subr.bf16.mxu0 0
    %5088 = vmatpush2.bf16.msra.mxu0 0
    %5089 = vmatprep.subr.bf16.mxu0 0
    %5090 = vmatpush2.bf16.msra.mxu0 0
    %5091 = vmatprep.subr.bf16.mxu0 0
    %5092 = vmatpush2.bf16.msra.mxu0 0
    %5093 = vmatprep.subr.bf16.mxu0 0
    %5094 = vmatpush2.bf16.msra.mxu0 0
    %5095 = vmatprep.subr.bf16.mxu0 0
    %5096 = vmatpush2.bf16.msra.mxu0 0
    %5097 = vmatprep.mubr.bf16.mxu0 0
    %5098 = vmatmul.mubr.bf16.gmra.mxu0 %v4872
    %v5099 = vpop.f32.mrf.mxu0
    %v5100 = vadd.f32 0.0, %v5099
    %v5101 = vpop.f32.mrf.mxu0
    %v5102 = vadd.f32 0.0, %v5101
    %v5103 = vpop.f32.mrf.mxu0
    %v5104 = vpop.f32.mrf.mxu0
    %5105 = vdwg.mxu0
    %5106 = vmatprep.subr.bf16.mxu0 %v5032
    %5107 = vmatpush1.bf16.msra.mxu0 %v5031
    %5108 = vmatprep.subr.bf16.mxu0 %v5028
    %5109 = vmatpush1.bf16.msra.mxu0 %v5027
    %5110 = vmatprep.subr.bf16.mxu0 %v5024
    %5111 = vmatpush1.bf16.msra.mxu0 %v5023
    %5112 = vmatprep.subr.bf16.mxu0 %v5020
    %5113 = vmatpush1.bf16.msra.mxu0 %v5019
    %5114 = vmatprep.subr.bf16.mxu0 %v5016
    %5115 = vmatpush1.bf16.msra.mxu0 %v5015
    %5116 = vmatprep.subr.bf16.mxu0 %v5012
    %5117 = vmatpush1.bf16.msra.mxu0 %v5011
    %5118 = vmatprep.subr.bf16.mxu0 %v5008
    %5119 = vmatpush1.bf16.msra.mxu0 %v5007
    %5120 = vmatprep.subr.bf16.mxu0 %v5004
    %5121 = vmatpush1.bf16.msra.mxu0 %v5003
    %5122 = vmatprep.subr.bf16.mxu0 0
    %5123 = vmatpush2.bf16.msra.mxu0 0
    %5124 = vmatprep.subr.bf16.mxu0 0
    %5125 = vmatpush2.bf16.msra.mxu0 0
    %5126 = vmatprep.subr.bf16.mxu0 0
    %5127 = vmatpush2.bf16.msra.mxu0 0
    %5128 = vmatprep.subr.bf16.mxu0 0
    %5129 = vmatpush2.bf16.msra.mxu0 0
    %5130 = vmatprep.subr.bf16.mxu0 0
    %5131 = vmatpush2.bf16.msra.mxu0 0
    %5132 = vmatprep.subr.bf16.mxu0 0
    %5133 = vmatpush2.bf16.msra.mxu0 0
    %5134 = vmatprep.subr.bf16.mxu0 0
    %5135 = vmatpush2.bf16.msra.mxu0 0
    %5136 = vmatprep.subr.bf16.mxu0 0
    %5137 = vmatpush2.bf16.msra.mxu0 0
    %5138 = vmatprep.mubr.bf16.mxu0 0
    %5139 = vmatmul.mubr.bf16.gmra.mxu0 %v4872
    %v5140 = vpop.f32.mrf.mxu0
    %v5141 = vadd.f32 0.0, %v5140
    %v5142 = vpop.f32.mrf.mxu0
    %v5143 = vadd.f32 0.0, %v5142
    %v5144 = vpop.f32.mrf.mxu0
    %v5145 = vpop.f32.mrf.mxu0
    %5146 = vdwg.mxu0
    %v5179 = vunpack.c.l.b16 %v4840
    %v5180 = vunpack.c.h.b16 %v4840
    %v5181 = vunpack.c.l.b16 %v4841
    %v5182 = vunpack.c.h.b16 %v4841
    %v5183 = vunpack.c.l.b16 %v4842
    %v5184 = vunpack.c.h.b16 %v4842
    %v5185 = vunpack.c.l.b16 %v4843
    %v5186 = vunpack.c.h.b16 %v4843
    %v5187 = vunpack.c.l.b16 %v4844
    %v5188 = vunpack.c.h.b16 %v4844
    %v5189 = vunpack.c.l.b16 %v4845
    %v5190 = vunpack.c.h.b16 %v4845
    %v5191 = vunpack.c.l.b16 %v4846
    %v5192 = vunpack.c.h.b16 %v4846
    %v5193 = vunpack.c.l.b16 %v4847
    %v5194 = vunpack.c.h.b16 %v4847
    %v5195 = vunpack.c.l.b16 %v4848
    %v5196 = vunpack.c.h.b16 %v4848
    %v5197 = vunpack.c.l.b16 %v4849
    %v5198 = vunpack.c.h.b16 %v4849
    %v5199 = vunpack.c.l.b16 %v4850
    %v5200 = vunpack.c.h.b16 %v4850
    %v5201 = vunpack.c.l.b16 %v4851
    %v5202 = vunpack.c.h.b16 %v4851
    %v5203 = vunpack.c.l.b16 %v4852
    %v5204 = vunpack.c.h.b16 %v4852
    %v5205 = vunpack.c.l.b16 %v4853
    %v5206 = vunpack.c.h.b16 %v4853
    %v5207 = vunpack.c.l.b16 %v4854
    %v5208 = vunpack.c.h.b16 %v4854
    %v5209 = vunpack.c.l.b16 %v4855
    %v5210 = vunpack.c.h.b16 %v4855
    %v5211 = vunpack.c.l.b16 %v4856
    %v5212 = vunpack.c.h.b16 %v4856
    %v5213 = vunpack.c.l.b16 %v4857
    %v5214 = vunpack.c.h.b16 %v4857
    %v5215 = vunpack.c.l.b16 %v4858
    %v5216 = vunpack.c.h.b16 %v4858
    %v5217 = vunpack.c.l.b16 %v4859
    %v5218 = vunpack.c.h.b16 %v4859
    %v5219 = vunpack.c.l.b16 %v4860
    %v5220 = vunpack.c.h.b16 %v4860
    %v5221 = vunpack.c.l.b16 %v4861
    %v5222 = vunpack.c.h.b16 %v4861
    %v5223 = vunpack.c.l.b16 %v4862
    %v5224 = vunpack.c.h.b16 %v4862
    %v5225 = vunpack.c.l.b16 %v4863
    %v5226 = vunpack.c.h.b16 %v4863
    %v5227 = vunpack.c.l.b16 %v4864
    %v5228 = vunpack.c.h.b16 %v4864
    %v5229 = vunpack.c.l.b16 %v4865
    %v5230 = vunpack.c.h.b16 %v4865
    %v5231 = vunpack.c.l.b16 %v4866
    %v5232 = vunpack.c.h.b16 %v4866
    %v5233 = vunpack.c.l.b16 %v4867
    %v5234 = vunpack.c.h.b16 %v4867
    %v5235 = vunpack.c.l.b16 %v4868
    %v5236 = vunpack.c.h.b16 %v4868
    %v5237 = vunpack.c.l.b16 %v4869
    %v5238 = vunpack.c.h.b16 %v4869
    %v5239 = vunpack.c.l.b16 %v4870
    %v5240 = vunpack.c.h.b16 %v4870
    %v5241 = vunpack.c.l.b16 %v4871
    %v5242 = vunpack.c.h.b16 %v4871
    %v5243 = vpack.c.b16 %v5183, %v5179
    %v5244 = vpack.c.b16 %v5184, %v5180
    %v5245 = vpack.c.b16 %v5185, %v5181
    %v5246 = vpack.c.b16 %v5186, %v5182
    %v5247 = vpack.c.b16 %v5191, %v5187
    %v5248 = vpack.c.b16 %v5192, %v5188
    %v5249 = vpack.c.b16 %v5193, %v5189
    %v5250 = vpack.c.b16 %v5194, %v5190
    %v5251 = vpack.c.b16 %v5199, %v5195
    %v5252 = vpack.c.b16 %v5200, %v5196
    %v5253 = vpack.c.b16 %v5201, %v5197
    %v5254 = vpack.c.b16 %v5202, %v5198
    %v5255 = vpack.c.b16 %v5207, %v5203
    %v5256 = vpack.c.b16 %v5208, %v5204
    %v5257 = vpack.c.b16 %v5209, %v5205
    %v5258 = vpack.c.b16 %v5210, %v5206
    %v5259 = vpack.c.b16 %v5215, %v5211
    %v5260 = vpack.c.b16 %v5216, %v5212
    %v5261 = vpack.c.b16 %v5217, %v5213
    %v5262 = vpack.c.b16 %v5218, %v5214
    %v5263 = vpack.c.b16 %v5223, %v5219
    %v5264 = vpack.c.b16 %v5224, %v5220
    %v5265 = vpack.c.b16 %v5225, %v5221
    %v5266 = vpack.c.b16 %v5226, %v5222
    %v5267 = vpack.c.b16 %v5231, %v5227
    %v5268 = vpack.c.b16 %v5232, %v5228
    %v5269 = vpack.c.b16 %v5233, %v5229
    %v5270 = vpack.c.b16 %v5234, %v5230
    %v5271 = vpack.c.b16 %v5239, %v5235
    %v5272 = vpack.c.b16 %v5240, %v5236
    %v5273 = vpack.c.b16 %v5241, %v5237
    %v5274 = vpack.c.b16 %v5242, %v5238
    %5307 = vmatprep.subr.bf16.mxu0 %v5272
    %5308 = vmatpush1.bf16.msra.mxu0 %v5271
    %5309 = vmatprep.subr.bf16.mxu0 %v5268
    %5310 = vmatpush1.bf16.msra.mxu0 %v5267
    %5311 = vmatprep.subr.bf16.mxu0 %v5264
    %5312 = vmatpush1.bf16.msra.mxu0 %v5263
    %5313 = vmatprep.subr.bf16.mxu0 %v5260
    %5314 = vmatpush1.bf16.msra.mxu0 %v5259
    %5315 = vmatprep.subr.bf16.mxu0 %v5256
    %5316 = vmatpush1.bf16.msra.mxu0 %v5255
    %5317 = vmatprep.subr.bf16.mxu0 %v5252
    %5318 = vmatpush1.bf16.msra.mxu0 %v5251
    %5319 = vmatprep.subr.bf16.mxu0 %v5248
    %5320 = vmatpush1.bf16.msra.mxu0 %v5247
    %5321 = vmatprep.subr.bf16.mxu0 %v5244
    %5322 = vmatpush1.bf16.msra.mxu0 %v5243
    %5323 = vmatprep.subr.bf16.mxu0 0
    %5324 = vmatpush2.bf16.msra.mxu0 0
    %5325 = vmatprep.subr.bf16.mxu0 0
    %5326 = vmatpush2.bf16.msra.mxu0 0
    %5327 = vmatprep.subr.bf16.mxu0 0
    %5328 = vmatpush2.bf16.msra.mxu0 0
    %5329 = vmatprep.subr.bf16.mxu0 0
    %5330 = vmatpush2.bf16.msra.mxu0 0
    %5331 = vmatprep.subr.bf16.mxu0 0
    %5332 = vmatpush2.bf16.msra.mxu0 0
    %5333 = vmatprep.subr.bf16.mxu0 0
    %5334 = vmatpush2.bf16.msra.mxu0 0
    %5335 = vmatprep.subr.bf16.mxu0 0
    %5336 = vmatpush2.bf16.msra.mxu0 0
    %5337 = vmatprep.subr.bf16.mxu0 0
    %5338 = vmatpush2.bf16.msra.mxu0 0
    %5339 = vmatprep.mubr.bf16.mxu0 0
    %5340 = vmatmul.mubr.bf16.gmra.mxu0 %v4839
    %v5341 = vpop.f32.mrf.mxu0
    %v5342 = vadd.f32 %v5100, %v5341
    %v5343 = vpop.f32.mrf.mxu0
    %v5344 = vadd.f32 %v5102, %v5343
    %v5345 = vpop.f32.mrf.mxu0
    %v5346 = vpop.f32.mrf.mxu0
    %5347 = vdwg.mxu0
    %5348 = vmatprep.subr.bf16.mxu0 %v5274
    %5349 = vmatpush1.bf16.msra.mxu0 %v5273
    %5350 = vmatprep.subr.bf16.mxu0 %v5270
    %5351 = vmatpush1.bf16.msra.mxu0 %v5269
    %5352 = vmatprep.subr.bf16.mxu0 %v5266
    %5353 = vmatpush1.bf16.msra.mxu0 %v5265
    %5354 = vmatprep.subr.bf16.mxu0 %v5262
    %5355 = vmatpush1.bf16.msra.mxu0 %v5261
    %5356 = vmatprep.subr.bf16.mxu0 %v5258
    %5357 = vmatpush1.bf16.msra.mxu0 %v5257
    %5358 = vmatprep.subr.bf16.mxu0 %v5254
    %5359 = vmatpush1.bf16.msra.mxu0 %v5253
    %5360 = vmatprep.subr.bf16.mxu0 %v5250
    %5361 = vmatpush1.bf16.msra.mxu0 %v5249
    %5362 = vmatprep.subr.bf16.mxu0 %v5246
    %5363 = vmatpush1.bf16.msra.mxu0 %v5245
    %5364 = vmatprep.subr.bf16.mxu0 0
    %5365 = vmatpush2.bf16.msra.mxu0 0
    %5366 = vmatprep.subr.bf16.mxu0 0
    %5367 = vmatpush2.bf16.msra.mxu0 0
    %5368 = vmatprep.subr.bf16.mxu0 0
    %5369 = vmatpush2.bf16.msra.mxu0 0
    %5370 = vmatprep.subr.bf16.mxu0 0
    %5371 = vmatpush2.bf16.msra.mxu0 0
    %5372 = vmatprep.subr.bf16.mxu0 0
    %5373 = vmatpush2.bf16.msra.mxu0 0
    %5374 = vmatprep.subr.bf16.mxu0 0
    %5375 = vmatpush2.bf16.msra.mxu0 0
    %5376 = vmatprep.subr.bf16.mxu0 0
    %5377 = vmatpush2.bf16.msra.mxu0 0
    %5378 = vmatprep.subr.bf16.mxu0 0
    %5379 = vmatpush2.bf16.msra.mxu0 0
    %5380 = vmatprep.mubr.bf16.mxu0 0
    %5381 = vmatmul.mubr.bf16.gmra.mxu0 %v4839
    %v5382 = vpop.f32.mrf.mxu0
    %v5383 = vadd.f32 %v5141, %v5382
    %v5384 = vpop.f32.mrf.mxu0
    %v5385 = vadd.f32 %v5143, %v5384
    %v5386 = vpop.f32.mrf.mxu0
    %v5387 = vpop.f32.mrf.mxu0
    %5388 = vdwg.mxu0
    %v5389 = vld [vmem:[#allocation10] sm:$0xff]
    %v5390 = vld [vmem:[#allocation10 + $0x8] sm:$0xff]
    %v5391 = vld [vmem:[#allocation10 + $0x10] sm:$0xff]
    %v5392 = vld [vmem:[#allocation10 + $0x18] sm:$0xff]
    %v5393 = vadd.f32 %v5342, %v5389
    %v5394 = vadd.f32 %v5344, %v5390
    %v5395 = vadd.f32 %v5383, %v5391
    %v5396 = vadd.f32 %v5385, %v5392
    %v5397 = vxor.u32 %v5393, 2147483648
    %v5398 = vmul.f32 %v5397, 1.442695
    %v5399 = vpow.pop %v5398
    %v5400 = vadd.f32 %v5399, 1.0
    %v5401 = vrcp.pop %v5400
    %v5402 = vmul.f32 1.0, %v5401
    %v5403 = vxor.u32 %v5394, 2147483648
    %v5404 = vmul.f32 %v5403, 1.442695
    %v5405 = vpow.pop %v5404
    %v5406 = vadd.f32 %v5405, 1.0
    %v5407 = vrcp.pop %v5406
    %v5408 = vmul.f32 1.0, %v5407
    %v5409 = vtanh.pop %v5395
    %v5410 = vxor.u32 %v5396, 2147483648
    %v5411 = vmul.f32 %v5410, 1.442695
    %v5412 = vpow.pop %v5411
    %v5413 = vadd.f32 %v5412, 1.0
    %v5414 = vrcp.pop %v5413
    %v5415 = vmul.f32 1.0, %v5414
    %v5416 = vmul.f32 %v5408, %v4838
    %v5417 = vmul.f32 %v5402, %v5409
    %v5418 = vadd.f32 %v5416, %v5417
    %v5419 = vtanh.pop %v5418
    %v5420 = vmul.f32 %v5415, %v5419
    %5421 = vst [vmem:[#allocation2] sm:$0xff] %v5420
    %5422 = vst [vmem:[#allocation3] sm:$0xff] %v5418
    %v5423 = vld [vmem:[%s714] sm:$0xff]
    %v5424 = vld [vmem:[%s716] sm:$0xff]
    %v5425 = vpack.c.bf16 %v5420, %v5420
    %v5426 = vld [vmem:[#allocation12] sm:$0xff]
    %v5427 = vld [vmem:[#allocation12 + $0x8] sm:$0xff]
    %v5428 = vld [vmem:[#allocation12 + $0x10] sm:$0xff]
    %v5429 = vld [vmem:[#allocation12 + $0x18] sm:$0xff]
    %v5430 = vld [vmem:[#allocation12 + $0x20] sm:$0xff]
    %v5431 = vld [vmem:[#allocation12 + $0x28] sm:$0xff]
    %v5432 = vld [vmem:[#allocation12 + $0x30] sm:$0xff]
    %v5433 = vld [vmem:[#allocation12 + $0x38] sm:$0xff]
    %v5434 = vld [vmem:[#allocation12 + $0x40] sm:$0xff]
    %v5435 = vld [vmem:[#allocation12 + $0x48] sm:$0xff]
    %v5436 = vld [vmem:[#allocation12 + $0x50] sm:$0xff]
    %v5437 = vld [vmem:[#allocation12 + $0x58] sm:$0xff]
    %v5438 = vld [vmem:[#allocation12 + $0x60] sm:$0xff]
    %v5439 = vld [vmem:[#allocation12 + $0x68] sm:$0xff]
    %v5440 = vld [vmem:[#allocation12 + $0x70] sm:$0xff]
    %v5441 = vld [vmem:[#allocation12 + $0x78] sm:$0xff]
    %v5442 = vld [vmem:[#allocation12 + $0x80] sm:$0xff]
    %v5443 = vld [vmem:[#allocation12 + $0x88] sm:$0xff]
    %v5444 = vld [vmem:[#allocation12 + $0x90] sm:$0xff]
    %v5445 = vld [vmem:[#allocation12 + $0x98] sm:$0xff]
    %v5446 = vld [vmem:[#allocation12 + $0xa0] sm:$0xff]
    %v5447 = vld [vmem:[#allocation12 + $0xa8] sm:$0xff]
    %v5448 = vld [vmem:[#allocation12 + $0xb0] sm:$0xff]
    %v5449 = vld [vmem:[#allocation12 + $0xb8] sm:$0xff]
    %v5450 = vld [vmem:[#allocation12 + $0xc0] sm:$0xff]
    %v5451 = vld [vmem:[#allocation12 + $0xc8] sm:$0xff]
    %v5452 = vld [vmem:[#allocation12 + $0xd0] sm:$0xff]
    %v5453 = vld [vmem:[#allocation12 + $0xd8] sm:$0xff]
    %v5454 = vld [vmem:[#allocation12 + $0xe0] sm:$0xff]
    %v5455 = vld [vmem:[#allocation12 + $0xe8] sm:$0xff]
    %v5456 = vld [vmem:[#allocation12 + $0xf0] sm:$0xff]
    %v5457 = vld [vmem:[#allocation12 + $0xf8] sm:$0xff]
    %v5458 = vpack.c.bf16 %v5423, %v5423
    %v5459 = vld [vmem:[#allocation13] sm:$0xff]
    %v5460 = vld [vmem:[#allocation13 + $0x8] sm:$0xff]
    %v5461 = vld [vmem:[#allocation13 + $0x10] sm:$0xff]
    %v5462 = vld [vmem:[#allocation13 + $0x18] sm:$0xff]
    %v5463 = vld [vmem:[#allocation13 + $0x20] sm:$0xff]
    %v5464 = vld [vmem:[#allocation13 + $0x28] sm:$0xff]
    %v5465 = vld [vmem:[#allocation13 + $0x30] sm:$0xff]
    %v5466 = vld [vmem:[#allocation13 + $0x38] sm:$0xff]
    %v5467 = vld [vmem:[#allocation13 + $0x40] sm:$0xff]
    %v5468 = vld [vmem:[#allocation13 + $0x48] sm:$0xff]
    %v5469 = vld [vmem:[#allocation13 + $0x50] sm:$0xff]
    %v5470 = vld [vmem:[#allocation13 + $0x58] sm:$0xff]
    %v5471 = vld [vmem:[#allocation13 + $0x60] sm:$0xff]
    %v5472 = vld [vmem:[#allocation13 + $0x68] sm:$0xff]
    %v5473 = vld [vmem:[#allocation13 + $0x70] sm:$0xff]
    %v5474 = vld [vmem:[#allocation13 + $0x78] sm:$0xff]
    %v5475 = vld [vmem:[#allocation13 + $0x80] sm:$0xff]
    %v5476 = vld [vmem:[#allocation13 + $0x88] sm:$0xff]
    %v5477 = vld [vmem:[#allocation13 + $0x90] sm:$0xff]
    %v5478 = vld [vmem:[#allocation13 + $0x98] sm:$0xff]
    %v5479 = vld [vmem:[#allocation13 + $0xa0] sm:$0xff]
    %v5480 = vld [vmem:[#allocation13 + $0xa8] sm:$0xff]
    %v5481 = vld [vmem:[#allocation13 + $0xb0] sm:$0xff]
    %v5482 = vld [vmem:[#allocation13 + $0xb8] sm:$0xff]
    %v5483 = vld [vmem:[#allocation13 + $0xc0] sm:$0xff]
    %v5484 = vld [vmem:[#allocation13 + $0xc8] sm:$0xff]
    %v5485 = vld [vmem:[#allocation13 + $0xd0] sm:$0xff]
    %v5486 = vld [vmem:[#allocation13 + $0xd8] sm:$0xff]
    %v5487 = vld [vmem:[#allocation13 + $0xe0] sm:$0xff]
    %v5488 = vld [vmem:[#allocation13 + $0xe8] sm:$0xff]
    %v5489 = vld [vmem:[#allocation13 + $0xf0] sm:$0xff]
    %v5490 = vld [vmem:[#allocation13 + $0xf8] sm:$0xff]
    %v5523 = vunpack.c.l.b16 %v5459
    %v5524 = vunpack.c.h.b16 %v5459
    %v5525 = vunpack.c.l.b16 %v5460
    %v5526 = vunpack.c.h.b16 %v5460
    %v5527 = vunpack.c.l.b16 %v5461
    %v5528 = vunpack.c.h.b16 %v5461
    %v5529 = vunpack.c.l.b16 %v5462
    %v5530 = vunpack.c.h.b16 %v5462
    %v5531 = vunpack.c.l.b16 %v5463
    %v5532 = vunpack.c.h.b16 %v5463
    %v5533 = vunpack.c.l.b16 %v5464
    %v5534 = vunpack.c.h.b16 %v5464
    %v5535 = vunpack.c.l.b16 %v5465
    %v5536 = vunpack.c.h.b16 %v5465
    %v5537 = vunpack.c.l.b16 %v5466
    %v5538 = vunpack.c.h.b16 %v5466
    %v5539 = vunpack.c.l.b16 %v5467
    %v5540 = vunpack.c.h.b16 %v5467
    %v5541 = vunpack.c.l.b16 %v5468
    %v5542 = vunpack.c.h.b16 %v5468
    %v5543 = vunpack.c.l.b16 %v5469
    %v5544 = vunpack.c.h.b16 %v5469
    %v5545 = vunpack.c.l.b16 %v5470
    %v5546 = vunpack.c.h.b16 %v5470
    %v5547 = vunpack.c.l.b16 %v5471
    %v5548 = vunpack.c.h.b16 %v5471
    %v5549 = vunpack.c.l.b16 %v5472
    %v5550 = vunpack.c.h.b16 %v5472
    %v5551 = vunpack.c.l.b16 %v5473
    %v5552 = vunpack.c.h.b16 %v5473
    %v5553 = vunpack.c.l.b16 %v5474
    %v5554 = vunpack.c.h.b16 %v5474
    %v5555 = vunpack.c.l.b16 %v5475
    %v5556 = vunpack.c.h.b16 %v5475
    %v5557 = vunpack.c.l.b16 %v5476
    %v5558 = vunpack.c.h.b16 %v5476
    %v5559 = vunpack.c.l.b16 %v5477
    %v5560 = vunpack.c.h.b16 %v5477
    %v5561 = vunpack.c.l.b16 %v5478
    %v5562 = vunpack.c.h.b16 %v5478
    %v5563 = vunpack.c.l.b16 %v5479
    %v5564 = vunpack.c.h.b16 %v5479
    %v5565 = vunpack.c.l.b16 %v5480
    %v5566 = vunpack.c.h.b16 %v5480
    %v5567 = vunpack.c.l.b16 %v5481
    %v5568 = vunpack.c.h.b16 %v5481
    %v5569 = vunpack.c.l.b16 %v5482
    %v5570 = vunpack.c.h.b16 %v5482
    %v5571 = vunpack.c.l.b16 %v5483
    %v5572 = vunpack.c.h.b16 %v5483
    %v5573 = vunpack.c.l.b16 %v5484
    %v5574 = vunpack.c.h.b16 %v5484
    %v5575 = vunpack.c.l.b16 %v5485
    %v5576 = vunpack.c.h.b16 %v5485
    %v5577 = vunpack.c.l.b16 %v5486
    %v5578 = vunpack.c.h.b16 %v5486
    %v5579 = vunpack.c.l.b16 %v5487
    %v5580 = vunpack.c.h.b16 %v5487
    %v5581 = vunpack.c.l.b16 %v5488
    %v5582 = vunpack.c.h.b16 %v5488
    %v5583 = vunpack.c.l.b16 %v5489
    %v5584 = vunpack.c.h.b16 %v5489
    %v5585 = vunpack.c.l.b16 %v5490
    %v5586 = vunpack.c.h.b16 %v5490
    %v5587 = vpack.c.b16 %v5527, %v5523
    %v5588 = vpack.c.b16 %v5528, %v5524
    %v5589 = vpack.c.b16 %v5529, %v5525
    %v5590 = vpack.c.b16 %v5530, %v5526
    %v5591 = vpack.c.b16 %v5535, %v5531
    %v5592 = vpack.c.b16 %v5536, %v5532
    %v5593 = vpack.c.b16 %v5537, %v5533
    %v5594 = vpack.c.b16 %v5538, %v5534
    %v5595 = vpack.c.b16 %v5543, %v5539
    %v5596 = vpack.c.b16 %v5544, %v5540
    %v5597 = vpack.c.b16 %v5545, %v5541
    %v5598 = vpack.c.b16 %v5546, %v5542
    %v5599 = vpack.c.b16 %v5551, %v5547
    %v5600 = vpack.c.b16 %v5552, %v5548
    %v5601 = vpack.c.b16 %v5553, %v5549
    %v5602 = vpack.c.b16 %v5554, %v5550
    %v5603 = vpack.c.b16 %v5559, %v5555
    %v5604 = vpack.c.b16 %v5560, %v5556
    %v5605 = vpack.c.b16 %v5561, %v5557
    %v5606 = vpack.c.b16 %v5562, %v5558
    %v5607 = vpack.c.b16 %v5567, %v5563
    %v5608 = vpack.c.b16 %v5568, %v5564
    %v5609 = vpack.c.b16 %v5569, %v5565
    %v5610 = vpack.c.b16 %v5570, %v5566
    %v5611 = vpack.c.b16 %v5575, %v5571
    %v5612 = vpack.c.b16 %v5576, %v5572
    %v5613 = vpack.c.b16 %v5577, %v5573
    %v5614 = vpack.c.b16 %v5578, %v5574
    %v5615 = vpack.c.b16 %v5583, %v5579
    %v5616 = vpack.c.b16 %v5584, %v5580
    %v5617 = vpack.c.b16 %v5585, %v5581
    %v5618 = vpack.c.b16 %v5586, %v5582
    %5651 = vmatprep.subr.bf16.mxu0 %v5616
    %5652 = vmatpush1.bf16.msra.mxu0 %v5615
    %5653 = vmatprep.subr.bf16.mxu0 %v5612
    %5654 = vmatpush1.bf16.msra.mxu0 %v5611
    %5655 = vmatprep.subr.bf16.mxu0 %v5608
    %5656 = vmatpush1.bf16.msra.mxu0 %v5607
    %5657 = vmatprep.subr.bf16.mxu0 %v5604
    %5658 = vmatpush1.bf16.msra.mxu0 %v5603
    %5659 = vmatprep.subr.bf16.mxu0 %v5600
    %5660 = vmatpush1.bf16.msra.mxu0 %v5599
    %5661 = vmatprep.subr.bf16.mxu0 %v5596
    %5662 = vmatpush1.bf16.msra.mxu0 %v5595
    %5663 = vmatprep.subr.bf16.mxu0 %v5592
    %5664 = vmatpush1.bf16.msra.mxu0 %v5591
    %5665 = vmatprep.subr.bf16.mxu0 %v5588
    %5666 = vmatpush1.bf16.msra.mxu0 %v5587
    %5667 = vmatprep.subr.bf16.mxu0 0
    %5668 = vmatpush2.bf16.msra.mxu0 0
    %5669 = vmatprep.subr.bf16.mxu0 0
    %5670 = vmatpush2.bf16.msra.mxu0 0
    %5671 = vmatprep.subr.bf16.mxu0 0
    %5672 = vmatpush2.bf16.msra.mxu0 0
    %5673 = vmatprep.subr.bf16.mxu0 0
    %5674 = vmatpush2.bf16.msra.mxu0 0
    %5675 = vmatprep.subr.bf16.mxu0 0
    %5676 = vmatpush2.bf16.msra.mxu0 0
    %5677 = vmatprep.subr.bf16.mxu0 0
    %5678 = vmatpush2.bf16.msra.mxu0 0
    %5679 = vmatprep.subr.bf16.mxu0 0
    %5680 = vmatpush2.bf16.msra.mxu0 0
    %5681 = vmatprep.subr.bf16.mxu0 0
    %5682 = vmatpush2.bf16.msra.mxu0 0
    %5683 = vmatprep.mubr.bf16.mxu0 0
    %5684 = vmatmul.mubr.bf16.gmra.mxu0 %v5458
    %v5685 = vpop.f32.mrf.mxu0
    %v5686 = vadd.f32 0.0, %v5685
    %v5687 = vpop.f32.mrf.mxu0
    %v5688 = vadd.f32 0.0, %v5687
    %v5689 = vpop.f32.mrf.mxu0
    %v5690 = vpop.f32.mrf.mxu0
    %5691 = vdwg.mxu0
    %5692 = vmatprep.subr.bf16.mxu0 %v5618
    %5693 = vmatpush1.bf16.msra.mxu0 %v5617
    %5694 = vmatprep.subr.bf16.mxu0 %v5614
    %5695 = vmatpush1.bf16.msra.mxu0 %v5613
    %5696 = vmatprep.subr.bf16.mxu0 %v5610
    %5697 = vmatpush1.bf16.msra.mxu0 %v5609
    %5698 = vmatprep.subr.bf16.mxu0 %v5606
    %5699 = vmatpush1.bf16.msra.mxu0 %v5605
    %5700 = vmatprep.subr.bf16.mxu0 %v5602
    %5701 = vmatpush1.bf16.msra.mxu0 %v5601
    %5702 = vmatprep.subr.bf16.mxu0 %v5598
    %5703 = vmatpush1.bf16.msra.mxu0 %v5597
    %5704 = vmatprep.subr.bf16.mxu0 %v5594
    %5705 = vmatpush1.bf16.msra.mxu0 %v5593
    %5706 = vmatprep.subr.bf16.mxu0 %v5590
    %5707 = vmatpush1.bf16.msra.mxu0 %v5589
    %5708 = vmatprep.subr.bf16.mxu0 0
    %5709 = vmatpush2.bf16.msra.mxu0 0
    %5710 = vmatprep.subr.bf16.mxu0 0
    %5711 = vmatpush2.bf16.msra.mxu0 0
    %5712 = vmatprep.subr.bf16.mxu0 0
    %5713 = vmatpush2.bf16.msra.mxu0 0
    %5714 = vmatprep.subr.bf16.mxu0 0
    %5715 = vmatpush2.bf16.msra.mxu0 0
    %5716 = vmatprep.subr.bf16.mxu0 0
    %5717 = vmatpush2.bf16.msra.mxu0 0
    %5718 = vmatprep.subr.bf16.mxu0 0
    %5719 = vmatpush2.bf16.msra.mxu0 0
    %5720 = vmatprep.subr.bf16.mxu0 0
    %5721 = vmatpush2.bf16.msra.mxu0 0
    %5722 = vmatprep.subr.bf16.mxu0 0
    %5723 = vmatpush2.bf16.msra.mxu0 0
    %5724 = vmatprep.mubr.bf16.mxu0 0
    %5725 = vmatmul.mubr.bf16.gmra.mxu0 %v5458
    %v5726 = vpop.f32.mrf.mxu0
    %v5727 = vadd.f32 0.0, %v5726
    %v5728 = vpop.f32.mrf.mxu0
    %v5729 = vadd.f32 0.0, %v5728
    %v5730 = vpop.f32.mrf.mxu0
    %v5731 = vpop.f32.mrf.mxu0
    %5732 = vdwg.mxu0
    %v5765 = vunpack.c.l.b16 %v5426
    %v5766 = vunpack.c.h.b16 %v5426
    %v5767 = vunpack.c.l.b16 %v5427
    %v5768 = vunpack.c.h.b16 %v5427
    %v5769 = vunpack.c.l.b16 %v5428
    %v5770 = vunpack.c.h.b16 %v5428
    %v5771 = vunpack.c.l.b16 %v5429
    %v5772 = vunpack.c.h.b16 %v5429
    %v5773 = vunpack.c.l.b16 %v5430
    %v5774 = vunpack.c.h.b16 %v5430
    %v5775 = vunpack.c.l.b16 %v5431
    %v5776 = vunpack.c.h.b16 %v5431
    %v5777 = vunpack.c.l.b16 %v5432
    %v5778 = vunpack.c.h.b16 %v5432
    %v5779 = vunpack.c.l.b16 %v5433
    %v5780 = vunpack.c.h.b16 %v5433
    %v5781 = vunpack.c.l.b16 %v5434
    %v5782 = vunpack.c.h.b16 %v5434
    %v5783 = vunpack.c.l.b16 %v5435
    %v5784 = vunpack.c.h.b16 %v5435
    %v5785 = vunpack.c.l.b16 %v5436
    %v5786 = vunpack.c.h.b16 %v5436
    %v5787 = vunpack.c.l.b16 %v5437
    %v5788 = vunpack.c.h.b16 %v5437
    %v5789 = vunpack.c.l.b16 %v5438
    %v5790 = vunpack.c.h.b16 %v5438
    %v5791 = vunpack.c.l.b16 %v5439
    %v5792 = vunpack.c.h.b16 %v5439
    %v5793 = vunpack.c.l.b16 %v5440
    %v5794 = vunpack.c.h.b16 %v5440
    %v5795 = vunpack.c.l.b16 %v5441
    %v5796 = vunpack.c.h.b16 %v5441
    %v5797 = vunpack.c.l.b16 %v5442
    %v5798 = vunpack.c.h.b16 %v5442
    %v5799 = vunpack.c.l.b16 %v5443
    %v5800 = vunpack.c.h.b16 %v5443
    %v5801 = vunpack.c.l.b16 %v5444
    %v5802 = vunpack.c.h.b16 %v5444
    %v5803 = vunpack.c.l.b16 %v5445
    %v5804 = vunpack.c.h.b16 %v5445
    %v5805 = vunpack.c.l.b16 %v5446
    %v5806 = vunpack.c.h.b16 %v5446
    %v5807 = vunpack.c.l.b16 %v5447
    %v5808 = vunpack.c.h.b16 %v5447
    %v5809 = vunpack.c.l.b16 %v5448
    %v5810 = vunpack.c.h.b16 %v5448
    %v5811 = vunpack.c.l.b16 %v5449
    %v5812 = vunpack.c.h.b16 %v5449
    %v5813 = vunpack.c.l.b16 %v5450
    %v5814 = vunpack.c.h.b16 %v5450
    %v5815 = vunpack.c.l.b16 %v5451
    %v5816 = vunpack.c.h.b16 %v5451
    %v5817 = vunpack.c.l.b16 %v5452
    %v5818 = vunpack.c.h.b16 %v5452
    %v5819 = vunpack.c.l.b16 %v5453
    %v5820 = vunpack.c.h.b16 %v5453
    %v5821 = vunpack.c.l.b16 %v5454
    %v5822 = vunpack.c.h.b16 %v5454
    %v5823 = vunpack.c.l.b16 %v5455
    %v5824 = vunpack.c.h.b16 %v5455
    %v5825 = vunpack.c.l.b16 %v5456
    %v5826 = vunpack.c.h.b16 %v5456
    %v5827 = vunpack.c.l.b16 %v5457
    %v5828 = vunpack.c.h.b16 %v5457
    %v5829 = vpack.c.b16 %v5769, %v5765
    %v5830 = vpack.c.b16 %v5770, %v5766
    %v5831 = vpack.c.b16 %v5771, %v5767
    %v5832 = vpack.c.b16 %v5772, %v5768
    %v5833 = vpack.c.b16 %v5777, %v5773
    %v5834 = vpack.c.b16 %v5778, %v5774
    %v5835 = vpack.c.b16 %v5779, %v5775
    %v5836 = vpack.c.b16 %v5780, %v5776
    %v5837 = vpack.c.b16 %v5785, %v5781
    %v5838 = vpack.c.b16 %v5786, %v5782
    %v5839 = vpack.c.b16 %v5787, %v5783
    %v5840 = vpack.c.b16 %v5788, %v5784
    %v5841 = vpack.c.b16 %v5793, %v5789
    %v5842 = vpack.c.b16 %v5794, %v5790
    %v5843 = vpack.c.b16 %v5795, %v5791
    %v5844 = vpack.c.b16 %v5796, %v5792
    %v5845 = vpack.c.b16 %v5801, %v5797
    %v5846 = vpack.c.b16 %v5802, %v5798
    %v5847 = vpack.c.b16 %v5803, %v5799
    %v5848 = vpack.c.b16 %v5804, %v5800
    %v5849 = vpack.c.b16 %v5809, %v5805
    %v5850 = vpack.c.b16 %v5810, %v5806
    %v5851 = vpack.c.b16 %v5811, %v5807
    %v5852 = vpack.c.b16 %v5812, %v5808
    %v5853 = vpack.c.b16 %v5817, %v5813
    %v5854 = vpack.c.b16 %v5818, %v5814
    %v5855 = vpack.c.b16 %v5819, %v5815
    %v5856 = vpack.c.b16 %v5820, %v5816
    %v5857 = vpack.c.b16 %v5825, %v5821
    %v5858 = vpack.c.b16 %v5826, %v5822
    %v5859 = vpack.c.b16 %v5827, %v5823
    %v5860 = vpack.c.b16 %v5828, %v5824
    %5893 = vmatprep.subr.bf16.mxu0 %v5858
    %5894 = vmatpush1.bf16.msra.mxu0 %v5857
    %5895 = vmatprep.subr.bf16.mxu0 %v5854
    %5896 = vmatpush1.bf16.msra.mxu0 %v5853
    %5897 = vmatprep.subr.bf16.mxu0 %v5850
    %5898 = vmatpush1.bf16.msra.mxu0 %v5849
    %5899 = vmatprep.subr.bf16.mxu0 %v5846
    %5900 = vmatpush1.bf16.msra.mxu0 %v5845
    %5901 = vmatprep.subr.bf16.mxu0 %v5842
    %5902 = vmatpush1.bf16.msra.mxu0 %v5841
    %5903 = vmatprep.subr.bf16.mxu0 %v5838
    %5904 = vmatpush1.bf16.msra.mxu0 %v5837
    %5905 = vmatprep.subr.bf16.mxu0 %v5834
    %5906 = vmatpush1.bf16.msra.mxu0 %v5833
    %5907 = vmatprep.subr.bf16.mxu0 %v5830
    %5908 = vmatpush1.bf16.msra.mxu0 %v5829
    %5909 = vmatprep.subr.bf16.mxu0 0
    %5910 = vmatpush2.bf16.msra.mxu0 0
    %5911 = vmatprep.subr.bf16.mxu0 0
    %5912 = vmatpush2.bf16.msra.mxu0 0
    %5913 = vmatprep.subr.bf16.mxu0 0
    %5914 = vmatpush2.bf16.msra.mxu0 0
    %5915 = vmatprep.subr.bf16.mxu0 0
    %5916 = vmatpush2.bf16.msra.mxu0 0
    %5917 = vmatprep.subr.bf16.mxu0 0
    %5918 = vmatpush2.bf16.msra.mxu0 0
    %5919 = vmatprep.subr.bf16.mxu0 0
    %5920 = vmatpush2.bf16.msra.mxu0 0
    %5921 = vmatprep.subr.bf16.mxu0 0
    %5922 = vmatpush2.bf16.msra.mxu0 0
    %5923 = vmatprep.subr.bf16.mxu0 0
    %5924 = vmatpush2.bf16.msra.mxu0 0
    %5925 = vmatprep.mubr.bf16.mxu0 0
    %5926 = vmatmul.mubr.bf16.gmra.mxu0 %v5425
    %v5927 = vpop.f32.mrf.mxu0
    %v5928 = vadd.f32 %v5686, %v5927
    %v5929 = vpop.f32.mrf.mxu0
    %v5930 = vadd.f32 %v5688, %v5929
    %v5931 = vpop.f32.mrf.mxu0
    %v5932 = vpop.f32.mrf.mxu0
    %5933 = vdwg.mxu0
    %5934 = vmatprep.subr.bf16.mxu0 %v5860
    %5935 = vmatpush1.bf16.msra.mxu0 %v5859
    %5936 = vmatprep.subr.bf16.mxu0 %v5856
    %5937 = vmatpush1.bf16.msra.mxu0 %v5855
    %5938 = vmatprep.subr.bf16.mxu0 %v5852
    %5939 = vmatpush1.bf16.msra.mxu0 %v5851
    %5940 = vmatprep.subr.bf16.mxu0 %v5848
    %5941 = vmatpush1.bf16.msra.mxu0 %v5847
    %5942 = vmatprep.subr.bf16.mxu0 %v5844
    %5943 = vmatpush1.bf16.msra.mxu0 %v5843
    %5944 = vmatprep.subr.bf16.mxu0 %v5840
    %5945 = vmatpush1.bf16.msra.mxu0 %v5839
    %5946 = vmatprep.subr.bf16.mxu0 %v5836
    %5947 = vmatpush1.bf16.msra.mxu0 %v5835
    %5948 = vmatprep.subr.bf16.mxu0 %v5832
    %5949 = vmatpush1.bf16.msra.mxu0 %v5831
    %5950 = vmatprep.subr.bf16.mxu0 0
    %5951 = vmatpush2.bf16.msra.mxu0 0
    %5952 = vmatprep.subr.bf16.mxu0 0
    %5953 = vmatpush2.bf16.msra.mxu0 0
    %5954 = vmatprep.subr.bf16.mxu0 0
    %5955 = vmatpush2.bf16.msra.mxu0 0
    %5956 = vmatprep.subr.bf16.mxu0 0
    %5957 = vmatpush2.bf16.msra.mxu0 0
    %5958 = vmatprep.subr.bf16.mxu0 0
    %5959 = vmatpush2.bf16.msra.mxu0 0
    %5960 = vmatprep.subr.bf16.mxu0 0
    %5961 = vmatpush2.bf16.msra.mxu0 0
    %5962 = vmatprep.subr.bf16.mxu0 0
    %5963 = vmatpush2.bf16.msra.mxu0 0
    %5964 = vmatprep.subr.bf16.mxu0 0
    %5965 = vmatpush2.bf16.msra.mxu0 0
    %5966 = vmatprep.mubr.bf16.mxu0 0
    %5967 = vmatmul.mubr.bf16.gmra.mxu0 %v5425
    %v5968 = vpop.f32.mrf.mxu0
    %v5969 = vadd.f32 %v5727, %v5968
    %v5970 = vpop.f32.mrf.mxu0
    %v5971 = vadd.f32 %v5729, %v5970
    %v5972 = vpop.f32.mrf.mxu0
    %v5973 = vpop.f32.mrf.mxu0
    %5974 = vdwg.mxu0
    %v5975 = vld [vmem:[#allocation15] sm:$0xff]
    %v5976 = vld [vmem:[#allocation15 + $0x8] sm:$0xff]
    %v5977 = vld [vmem:[#allocation15 + $0x10] sm:$0xff]
    %v5978 = vld [vmem:[#allocation15 + $0x18] sm:$0xff]
    %v5979 = vadd.f32 %v5928, %v5975
    %v5980 = vadd.f32 %v5930, %v5976
    %v5981 = vadd.f32 %v5969, %v5977
    %v5982 = vadd.f32 %v5971, %v5978
    %v5983 = vxor.u32 %v5979, 2147483648
    %v5984 = vmul.f32 %v5983, 1.442695
    %v5985 = vpow.pop %v5984
    %v5986 = vadd.f32 %v5985, 1.0
    %v5987 = vrcp.pop %v5986
    %v5988 = vmul.f32 1.0, %v5987
    %v5989 = vxor.u32 %v5980, 2147483648
    %v5990 = vmul.f32 %v5989, 1.442695
    %v5991 = vpow.pop %v5990
    %v5992 = vadd.f32 %v5991, 1.0
    %v5993 = vrcp.pop %v5992
    %v5994 = vmul.f32 1.0, %v5993
    %v5995 = vtanh.pop %v5981
    %v5996 = vxor.u32 %v5982, 2147483648
    %v5997 = vmul.f32 %v5996, 1.442695
    %v5998 = vpow.pop %v5997
    %v5999 = vadd.f32 %v5998, 1.0
    %v6000 = vrcp.pop %v5999
    %v6001 = vmul.f32 1.0, %v6000
    %v6002 = vmul.f32 %v5994, %v5424
    %v6003 = vmul.f32 %v5988, %v5995
    %v6004 = vadd.f32 %v6002, %v6003
    %v6005 = vtanh.pop %v6004
    %v6006 = vmul.f32 %v6001, %v6005
    %6007 = vst [vmem:[%s714] sm:$0xff] %v6006
    %6008 = vst [vmem:[%s716] sm:$0xff] %v6004
    %v6009 = vpack.c.bf16 %v6006, %v6006
    %s6010 = scalar_lea.vmem [#allocation16], 16
    %6011 = vst [vmem:[%s6010] sm:$0xf] %v6009
    %s6012 = scalar_lea.vmem [#allocation4], 40
    %v6013 = vld [vmem:[%s6012] sm:$0xff]
    %v6014 = vld [vmem:[#allocation2] sm:$0xff]
    %v6015 = vld [vmem:[#allocation3] sm:$0xff]
    %v6016 = vpack.c.bf16 %v6013, %v6013
    %v6017 = vld [vmem:[#allocation7] sm:$0xff]
    %v6018 = vld [vmem:[#allocation7 + $0x8] sm:$0xff]
    %v6019 = vld [vmem:[#allocation7 + $0x10] sm:$0xff]
    %v6020 = vld [vmem:[#allocation7 + $0x18] sm:$0xff]
    %v6021 = vld [vmem:[#allocation7 + $0x20] sm:$0xff]
    %v6022 = vld [vmem:[#allocation7 + $0x28] sm:$0xff]
    %v6023 = vld [vmem:[#allocation7 + $0x30] sm:$0xff]
    %v6024 = vld [vmem:[#allocation7 + $0x38] sm:$0xff]
    %v6025 = vld [vmem:[#allocation7 + $0x40] sm:$0xff]
    %v6026 = vld [vmem:[#allocation7 + $0x48] sm:$0xff]
    %v6027 = vld [vmem:[#allocation7 + $0x50] sm:$0xff]
    %v6028 = vld [vmem:[#allocation7 + $0x58] sm:$0xff]
    %v6029 = vld [vmem:[#allocation7 + $0x60] sm:$0xff]
    %v6030 = vld [vmem:[#allocation7 + $0x68] sm:$0xff]
    %v6031 = vld [vmem:[#allocation7 + $0x70] sm:$0xff]
    %v6032 = vld [vmem:[#allocation7 + $0x78] sm:$0xff]
    %v6033 = vld [vmem:[#allocation7 + $0x80] sm:$0xff]
    %v6034 = vld [vmem:[#allocation7 + $0x88] sm:$0xff]
    %v6035 = vld [vmem:[#allocation7 + $0x90] sm:$0xff]
    %v6036 = vld [vmem:[#allocation7 + $0x98] sm:$0xff]
    %v6037 = vld [vmem:[#allocation7 + $0xa0] sm:$0xff]
    %v6038 = vld [vmem:[#allocation7 + $0xa8] sm:$0xff]
    %v6039 = vld [vmem:[#allocation7 + $0xb0] sm:$0xff]
    %v6040 = vld [vmem:[#allocation7 + $0xb8] sm:$0xff]
    %v6041 = vld [vmem:[#allocation7 + $0xc0] sm:$0xff]
    %v6042 = vld [vmem:[#allocation7 + $0xc8] sm:$0xff]
    %v6043 = vld [vmem:[#allocation7 + $0xd0] sm:$0xff]
    %v6044 = vld [vmem:[#allocation7 + $0xd8] sm:$0xff]
    %v6045 = vld [vmem:[#allocation7 + $0xe0] sm:$0xff]
    %v6046 = vld [vmem:[#allocation7 + $0xe8] sm:$0xff]
    %v6047 = vld [vmem:[#allocation7 + $0xf0] sm:$0xff]
    %v6048 = vld [vmem:[#allocation7 + $0xf8] sm:$0xff]
    %v6049 = vpack.c.bf16 %v6014, %v6014
    %v6050 = vld [vmem:[#allocation9] sm:$0xff]
    %v6051 = vld [vmem:[#allocation9 + $0x8] sm:$0xff]
    %v6052 = vld [vmem:[#allocation9 + $0x10] sm:$0xff]
    %v6053 = vld [vmem:[#allocation9 + $0x18] sm:$0xff]
    %v6054 = vld [vmem:[#allocation9 + $0x20] sm:$0xff]
    %v6055 = vld [vmem:[#allocation9 + $0x28] sm:$0xff]
    %v6056 = vld [vmem:[#allocation9 + $0x30] sm:$0xff]
    %v6057 = vld [vmem:[#allocation9 + $0x38] sm:$0xff]
    %v6058 = vld [vmem:[#allocation9 + $0x40] sm:$0xff]
    %v6059 = vld [vmem:[#allocation9 + $0x48] sm:$0xff]
    %v6060 = vld [vmem:[#allocation9 + $0x50] sm:$0xff]
    %v6061 = vld [vmem:[#allocation9 + $0x58] sm:$0xff]
    %v6062 = vld [vmem:[#allocation9 + $0x60] sm:$0xff]
    %v6063 = vld [vmem:[#allocation9 + $0x68] sm:$0xff]
    %v6064 = vld [vmem:[#allocation9 + $0x70] sm:$0xff]
    %v6065 = vld [vmem:[#allocation9 + $0x78] sm:$0xff]
    %v6066 = vld [vmem:[#allocation9 + $0x80] sm:$0xff]
    %v6067 = vld [vmem:[#allocation9 + $0x88] sm:$0xff]
    %v6068 = vld [vmem:[#allocation9 + $0x90] sm:$0xff]
    %v6069 = vld [vmem:[#allocation9 + $0x98] sm:$0xff]
    %v6070 = vld [vmem:[#allocation9 + $0xa0] sm:$0xff]
    %v6071 = vld [vmem:[#allocation9 + $0xa8] sm:$0xff]
    %v6072 = vld [vmem:[#allocation9 + $0xb0] sm:$0xff]
    %v6073 = vld [vmem:[#allocation9 + $0xb8] sm:$0xff]
    %v6074 = vld [vmem:[#allocation9 + $0xc0] sm:$0xff]
    %v6075 = vld [vmem:[#allocation9 + $0xc8] sm:$0xff]
    %v6076 = vld [vmem:[#allocation9 + $0xd0] sm:$0xff]
    %v6077 = vld [vmem:[#allocation9 + $0xd8] sm:$0xff]
    %v6078 = vld [vmem:[#allocation9 + $0xe0] sm:$0xff]
    %v6079 = vld [vmem:[#allocation9 + $0xe8] sm:$0xff]
    %v6080 = vld [vmem:[#allocation9 + $0xf0] sm:$0xff]
    %v6081 = vld [vmem:[#allocation9 + $0xf8] sm:$0xff]
    %v6114 = vunpack.c.l.b16 %v6050
    %v6115 = vunpack.c.h.b16 %v6050
    %v6116 = vunpack.c.l.b16 %v6051
    %v6117 = vunpack.c.h.b16 %v6051
    %v6118 = vunpack.c.l.b16 %v6052
    %v6119 = vunpack.c.h.b16 %v6052
    %v6120 = vunpack.c.l.b16 %v6053
    %v6121 = vunpack.c.h.b16 %v6053
    %v6122 = vunpack.c.l.b16 %v6054
    %v6123 = vunpack.c.h.b16 %v6054
    %v6124 = vunpack.c.l.b16 %v6055
    %v6125 = vunpack.c.h.b16 %v6055
    %v6126 = vunpack.c.l.b16 %v6056
    %v6127 = vunpack.c.h.b16 %v6056
    %v6128 = vunpack.c.l.b16 %v6057
    %v6129 = vunpack.c.h.b16 %v6057
    %v6130 = vunpack.c.l.b16 %v6058
    %v6131 = vunpack.c.h.b16 %v6058
    %v6132 = vunpack.c.l.b16 %v6059
    %v6133 = vunpack.c.h.b16 %v6059
    %v6134 = vunpack.c.l.b16 %v6060
    %v6135 = vunpack.c.h.b16 %v6060
    %v6136 = vunpack.c.l.b16 %v6061
    %v6137 = vunpack.c.h.b16 %v6061
    %v6138 = vunpack.c.l.b16 %v6062
    %v6139 = vunpack.c.h.b16 %v6062
    %v6140 = vunpack.c.l.b16 %v6063
    %v6141 = vunpack.c.h.b16 %v6063
    %v6142 = vunpack.c.l.b16 %v6064
    %v6143 = vunpack.c.h.b16 %v6064
    %v6144 = vunpack.c.l.b16 %v6065
    %v6145 = vunpack.c.h.b16 %v6065
    %v6146 = vunpack.c.l.b16 %v6066
    %v6147 = vunpack.c.h.b16 %v6066
    %v6148 = vunpack.c.l.b16 %v6067
    %v6149 = vunpack.c.h.b16 %v6067
    %v6150 = vunpack.c.l.b16 %v6068
    %v6151 = vunpack.c.h.b16 %v6068
    %v6152 = vunpack.c.l.b16 %v6069
    %v6153 = vunpack.c.h.b16 %v6069
    %v6154 = vunpack.c.l.b16 %v6070
    %v6155 = vunpack.c.h.b16 %v6070
    %v6156 = vunpack.c.l.b16 %v6071
    %v6157 = vunpack.c.h.b16 %v6071
    %v6158 = vunpack.c.l.b16 %v6072
    %v6159 = vunpack.c.h.b16 %v6072
    %v6160 = vunpack.c.l.b16 %v6073
    %v6161 = vunpack.c.h.b16 %v6073
    %v6162 = vunpack.c.l.b16 %v6074
    %v6163 = vunpack.c.h.b16 %v6074
    %v6164 = vunpack.c.l.b16 %v6075
    %v6165 = vunpack.c.h.b16 %v6075
    %v6166 = vunpack.c.l.b16 %v6076
    %v6167 = vunpack.c.h.b16 %v6076
    %v6168 = vunpack.c.l.b16 %v6077
    %v6169 = vunpack.c.h.b16 %v6077
    %v6170 = vunpack.c.l.b16 %v6078
    %v6171 = vunpack.c.h.b16 %v6078
    %v6172 = vunpack.c.l.b16 %v6079
    %v6173 = vunpack.c.h.b16 %v6079
    %v6174 = vunpack.c.l.b16 %v6080
    %v6175 = vunpack.c.h.b16 %v6080
    %v6176 = vunpack.c.l.b16 %v6081
    %v6177 = vunpack.c.h.b16 %v6081
    %v6178 = vpack.c.b16 %v6118, %v6114
    %v6179 = vpack.c.b16 %v6119, %v6115
    %v6180 = vpack.c.b16 %v6120, %v6116
    %v6181 = vpack.c.b16 %v6121, %v6117
    %v6182 = vpack.c.b16 %v6126, %v6122
    %v6183 = vpack.c.b16 %v6127, %v6123
    %v6184 = vpack.c.b16 %v6128, %v6124
    %v6185 = vpack.c.b16 %v6129, %v6125
    %v6186 = vpack.c.b16 %v6134, %v6130
    %v6187 = vpack.c.b16 %v6135, %v6131
    %v6188 = vpack.c.b16 %v6136, %v6132
    %v6189 = vpack.c.b16 %v6137, %v6133
    %v6190 = vpack.c.b16 %v6142, %v6138
    %v6191 = vpack.c.b16 %v6143, %v6139
    %v6192 = vpack.c.b16 %v6144, %v6140
    %v6193 = vpack.c.b16 %v6145, %v6141
    %v6194 = vpack.c.b16 %v6150, %v6146
    %v6195 = vpack.c.b16 %v6151, %v6147
    %v6196 = vpack.c.b16 %v6152, %v6148
    %v6197 = vpack.c.b16 %v6153, %v6149
    %v6198 = vpack.c.b16 %v6158, %v6154
    %v6199 = vpack.c.b16 %v6159, %v6155
    %v6200 = vpack.c.b16 %v6160, %v6156
    %v6201 = vpack.c.b16 %v6161, %v6157
    %v6202 = vpack.c.b16 %v6166, %v6162
    %v6203 = vpack.c.b16 %v6167, %v6163
    %v6204 = vpack.c.b16 %v6168, %v6164
    %v6205 = vpack.c.b16 %v6169, %v6165
    %v6206 = vpack.c.b16 %v6174, %v6170
    %v6207 = vpack.c.b16 %v6175, %v6171
    %v6208 = vpack.c.b16 %v6176, %v6172
    %v6209 = vpack.c.b16 %v6177, %v6173
    %6242 = vmatprep.subr.bf16.mxu0 %v6207
    %6243 = vmatpush1.bf16.msra.mxu0 %v6206
    %6244 = vmatprep.subr.bf16.mxu0 %v6203
    %6245 = vmatpush1.bf16.msra.mxu0 %v6202
    %6246 = vmatprep.subr.bf16.mxu0 %v6199
    %6247 = vmatpush1.bf16.msra.mxu0 %v6198
    %6248 = vmatprep.subr.bf16.mxu0 %v6195
    %6249 = vmatpush1.bf16.msra.mxu0 %v6194
    %6250 = vmatprep.subr.bf16.mxu0 %v6191
    %6251 = vmatpush1.bf16.msra.mxu0 %v6190
    %6252 = vmatprep.subr.bf16.mxu0 %v6187
    %6253 = vmatpush1.bf16.msra.mxu0 %v6186
    %6254 = vmatprep.subr.bf16.mxu0 %v6183
    %6255 = vmatpush1.bf16.msra.mxu0 %v6182
    %6256 = vmatprep.subr.bf16.mxu0 %v6179
    %6257 = vmatpush1.bf16.msra.mxu0 %v6178
    %6258 = vmatprep.subr.bf16.mxu0 0
    %6259 = vmatpush2.bf16.msra.mxu0 0
    %6260 = vmatprep.subr.bf16.mxu0 0
    %6261 = vmatpush2.bf16.msra.mxu0 0
    %6262 = vmatprep.subr.bf16.mxu0 0
    %6263 = vmatpush2.bf16.msra.mxu0 0
    %6264 = vmatprep.subr.bf16.mxu0 0
    %6265 = vmatpush2.bf16.msra.mxu0 0
    %6266 = vmatprep.subr.bf16.mxu0 0
    %6267 = vmatpush2.bf16.msra.mxu0 0
    %6268 = vmatprep.subr.bf16.mxu0 0
    %6269 = vmatpush2.bf16.msra.mxu0 0
    %6270 = vmatprep.subr.bf16.mxu0 0
    %6271 = vmatpush2.bf16.msra.mxu0 0
    %6272 = vmatprep.subr.bf16.mxu0 0
    %6273 = vmatpush2.bf16.msra.mxu0 0
    %6274 = vmatprep.mubr.bf16.mxu0 0
    %6275 = vmatmul.mubr.bf16.gmra.mxu0 %v6049
    %v6276 = vpop.f32.mrf.mxu0
    %v6277 = vadd.f32 0.0, %v6276
    %v6278 = vpop.f32.mrf.mxu0
    %v6279 = vadd.f32 0.0, %v6278
    %v6280 = vpop.f32.mrf.mxu0
    %v6281 = vpop.f32.mrf.mxu0
    %6282 = vdwg.mxu0
    %6283 = vmatprep.subr.bf16.mxu0 %v6209
    %6284 = vmatpush1.bf16.msra.mxu0 %v6208
    %6285 = vmatprep.subr.bf16.mxu0 %v6205
    %6286 = vmatpush1.bf16.msra.mxu0 %v6204
    %6287 = vmatprep.subr.bf16.mxu0 %v6201
    %6288 = vmatpush1.bf16.msra.mxu0 %v6200
    %6289 = vmatprep.subr.bf16.mxu0 %v6197
    %6290 = vmatpush1.bf16.msra.mxu0 %v6196
    %6291 = vmatprep.subr.bf16.mxu0 %v6193
    %6292 = vmatpush1.bf16.msra.mxu0 %v6192
    %6293 = vmatprep.subr.bf16.mxu0 %v6189
    %6294 = vmatpush1.bf16.msra.mxu0 %v6188
    %6295 = vmatprep.subr.bf16.mxu0 %v6185
    %6296 = vmatpush1.bf16.msra.mxu0 %v6184
    %6297 = vmatprep.subr.bf16.mxu0 %v6181
    %6298 = vmatpush1.bf16.msra.mxu0 %v6180
    %6299 = vmatprep.subr.bf16.mxu0 0
    %6300 = vmatpush2.bf16.msra.mxu0 0
    %6301 = vmatprep.subr.bf16.mxu0 0
    %6302 = vmatpush2.bf16.msra.mxu0 0
    %6303 = vmatprep.subr.bf16.mxu0 0
    %6304 = vmatpush2.bf16.msra.mxu0 0
    %6305 = vmatprep.subr.bf16.mxu0 0
    %6306 = vmatpush2.bf16.msra.mxu0 0
    %6307 = vmatprep.subr.bf16.mxu0 0
    %6308 = vmatpush2.bf16.msra.mxu0 0
    %6309 = vmatprep.subr.bf16.mxu0 0
    %6310 = vmatpush2.bf16.msra.mxu0 0
    %6311 = vmatprep.subr.bf16.mxu0 0
    %6312 = vmatpush2.bf16.msra.mxu0 0
    %6313 = vmatprep.subr.bf16.mxu0 0
    %6314 = vmatpush2.bf16.msra.mxu0 0
    %6315 = vmatprep.mubr.bf16.mxu0 0
    %6316 = vmatmul.mubr.bf16.gmra.mxu0 %v6049
    %v6317 = vpop.f32.mrf.mxu0
    %v6318 = vadd.f32 0.0, %v6317
    %v6319 = vpop.f32.mrf.mxu0
    %v6320 = vadd.f32 0.0, %v6319
    %v6321 = vpop.f32.mrf.mxu0
    %v6322 = vpop.f32.mrf.mxu0
    %6323 = vdwg.mxu0
    %v6356 = vunpack.c.l.b16 %v6017
    %v6357 = vunpack.c.h.b16 %v6017
    %v6358 = vunpack.c.l.b16 %v6018
    %v6359 = vunpack.c.h.b16 %v6018
    %v6360 = vunpack.c.l.b16 %v6019
    %v6361 = vunpack.c.h.b16 %v6019
    %v6362 = vunpack.c.l.b16 %v6020
    %v6363 = vunpack.c.h.b16 %v6020
    %v6364 = vunpack.c.l.b16 %v6021
    %v6365 = vunpack.c.h.b16 %v6021
    %v6366 = vunpack.c.l.b16 %v6022
    %v6367 = vunpack.c.h.b16 %v6022
    %v6368 = vunpack.c.l.b16 %v6023
    %v6369 = vunpack.c.h.b16 %v6023
    %v6370 = vunpack.c.l.b16 %v6024
    %v6371 = vunpack.c.h.b16 %v6024
    %v6372 = vunpack.c.l.b16 %v6025
    %v6373 = vunpack.c.h.b16 %v6025
    %v6374 = vunpack.c.l.b16 %v6026
    %v6375 = vunpack.c.h.b16 %v6026
    %v6376 = vunpack.c.l.b16 %v6027
    %v6377 = vunpack.c.h.b16 %v6027
    %v6378 = vunpack.c.l.b16 %v6028
    %v6379 = vunpack.c.h.b16 %v6028
    %v6380 = vunpack.c.l.b16 %v6029
    %v6381 = vunpack.c.h.b16 %v6029
    %v6382 = vunpack.c.l.b16 %v6030
    %v6383 = vunpack.c.h.b16 %v6030
    %v6384 = vunpack.c.l.b16 %v6031
    %v6385 = vunpack.c.h.b16 %v6031
    %v6386 = vunpack.c.l.b16 %v6032
    %v6387 = vunpack.c.h.b16 %v6032
    %v6388 = vunpack.c.l.b16 %v6033
    %v6389 = vunpack.c.h.b16 %v6033
    %v6390 = vunpack.c.l.b16 %v6034
    %v6391 = vunpack.c.h.b16 %v6034
    %v6392 = vunpack.c.l.b16 %v6035
    %v6393 = vunpack.c.h.b16 %v6035
    %v6394 = vunpack.c.l.b16 %v6036
    %v6395 = vunpack.c.h.b16 %v6036
    %v6396 = vunpack.c.l.b16 %v6037
    %v6397 = vunpack.c.h.b16 %v6037
    %v6398 = vunpack.c.l.b16 %v6038
    %v6399 = vunpack.c.h.b16 %v6038
    %v6400 = vunpack.c.l.b16 %v6039
    %v6401 = vunpack.c.h.b16 %v6039
    %v6402 = vunpack.c.l.b16 %v6040
    %v6403 = vunpack.c.h.b16 %v6040
    %v6404 = vunpack.c.l.b16 %v6041
    %v6405 = vunpack.c.h.b16 %v6041
    %v6406 = vunpack.c.l.b16 %v6042
    %v6407 = vunpack.c.h.b16 %v6042
    %v6408 = vunpack.c.l.b16 %v6043
    %v6409 = vunpack.c.h.b16 %v6043
    %v6410 = vunpack.c.l.b16 %v6044
    %v6411 = vunpack.c.h.b16 %v6044
    %v6412 = vunpack.c.l.b16 %v6045
    %v6413 = vunpack.c.h.b16 %v6045
    %v6414 = vunpack.c.l.b16 %v6046
    %v6415 = vunpack.c.h.b16 %v6046
    %v6416 = vunpack.c.l.b16 %v6047
    %v6417 = vunpack.c.h.b16 %v6047
    %v6418 = vunpack.c.l.b16 %v6048
    %v6419 = vunpack.c.h.b16 %v6048
    %v6420 = vpack.c.b16 %v6360, %v6356
    %v6421 = vpack.c.b16 %v6361, %v6357
    %v6422 = vpack.c.b16 %v6362, %v6358
    %v6423 = vpack.c.b16 %v6363, %v6359
    %v6424 = vpack.c.b16 %v6368, %v6364
    %v6425 = vpack.c.b16 %v6369, %v6365
    %v6426 = vpack.c.b16 %v6370, %v6366
    %v6427 = vpack.c.b16 %v6371, %v6367
    %v6428 = vpack.c.b16 %v6376, %v6372
    %v6429 = vpack.c.b16 %v6377, %v6373
    %v6430 = vpack.c.b16 %v6378, %v6374
    %v6431 = vpack.c.b16 %v6379, %v6375
    %v6432 = vpack.c.b16 %v6384, %v6380
    %v6433 = vpack.c.b16 %v6385, %v6381
    %v6434 = vpack.c.b16 %v6386, %v6382
    %v6435 = vpack.c.b16 %v6387, %v6383
    %v6436 = vpack.c.b16 %v6392, %v6388
    %v6437 = vpack.c.b16 %v6393, %v6389
    %v6438 = vpack.c.b16 %v6394, %v6390
    %v6439 = vpack.c.b16 %v6395, %v6391
    %v6440 = vpack.c.b16 %v6400, %v6396
    %v6441 = vpack.c.b16 %v6401, %v6397
    %v6442 = vpack.c.b16 %v6402, %v6398
    %v6443 = vpack.c.b16 %v6403, %v6399
    %v6444 = vpack.c.b16 %v6408, %v6404
    %v6445 = vpack.c.b16 %v6409, %v6405
    %v6446 = vpack.c.b16 %v6410, %v6406
    %v6447 = vpack.c.b16 %v6411, %v6407
    %v6448 = vpack.c.b16 %v6416, %v6412
    %v6449 = vpack.c.b16 %v6417, %v6413
    %v6450 = vpack.c.b16 %v6418, %v6414
    %v6451 = vpack.c.b16 %v6419, %v6415
    %6484 = vmatprep.subr.bf16.mxu0 %v6449
    %6485 = vmatpush1.bf16.msra.mxu0 %v6448
    %6486 = vmatprep.subr.bf16.mxu0 %v6445
    %6487 = vmatpush1.bf16.msra.mxu0 %v6444
    %6488 = vmatprep.subr.bf16.mxu0 %v6441
    %6489 = vmatpush1.bf16.msra.mxu0 %v6440
    %6490 = vmatprep.subr.bf16.mxu0 %v6437
    %6491 = vmatpush1.bf16.msra.mxu0 %v6436
    %6492 = vmatprep.subr.bf16.mxu0 %v6433
    %6493 = vmatpush1.bf16.msra.mxu0 %v6432
    %6494 = vmatprep.subr.bf16.mxu0 %v6429
    %6495 = vmatpush1.bf16.msra.mxu0 %v6428
    %6496 = vmatprep.subr.bf16.mxu0 %v6425
    %6497 = vmatpush1.bf16.msra.mxu0 %v6424
    %6498 = vmatprep.subr.bf16.mxu0 %v6421
    %6499 = vmatpush1.bf16.msra.mxu0 %v6420
    %6500 = vmatprep.subr.bf16.mxu0 0
    %6501 = vmatpush2.bf16.msra.mxu0 0
    %6502 = vmatprep.subr.bf16.mxu0 0
    %6503 = vmatpush2.bf16.msra.mxu0 0
    %6504 = vmatprep.subr.bf16.mxu0 0
    %6505 = vmatpush2.bf16.msra.mxu0 0
    %6506 = vmatprep.subr.bf16.mxu0 0
    %6507 = vmatpush2.bf16.msra.mxu0 0
    %6508 = vmatprep.subr.bf16.mxu0 0
    %6509 = vmatpush2.bf16.msra.mxu0 0
    %6510 = vmatprep.subr.bf16.mxu0 0
    %6511 = vmatpush2.bf16.msra.mxu0 0
    %6512 = vmatprep.subr.bf16.mxu0 0
    %6513 = vmatpush2.bf16.msra.mxu0 0
    %6514 = vmatprep.subr.bf16.mxu0 0
    %6515 = vmatpush2.bf16.msra.mxu0 0
    %6516 = vmatprep.mubr.bf16.mxu0 0
    %6517 = vmatmul.mubr.bf16.gmra.mxu0 %v6016
    %v6518 = vpop.f32.mrf.mxu0
    %v6519 = vadd.f32 %v6277, %v6518
    %v6520 = vpop.f32.mrf.mxu0
    %v6521 = vadd.f32 %v6279, %v6520
    %v6522 = vpop.f32.mrf.mxu0
    %v6523 = vpop.f32.mrf.mxu0
    %6524 = vdwg.mxu0
    %6525 = vmatprep.subr.bf16.mxu0 %v6451
    %6526 = vmatpush1.bf16.msra.mxu0 %v6450
    %6527 = vmatprep.subr.bf16.mxu0 %v6447
    %6528 = vmatpush1.bf16.msra.mxu0 %v6446
    %6529 = vmatprep.subr.bf16.mxu0 %v6443
    %6530 = vmatpush1.bf16.msra.mxu0 %v6442
    %6531 = vmatprep.subr.bf16.mxu0 %v6439
    %6532 = vmatpush1.bf16.msra.mxu0 %v6438
    %6533 = vmatprep.subr.bf16.mxu0 %v6435
    %6534 = vmatpush1.bf16.msra.mxu0 %v6434
    %6535 = vmatprep.subr.bf16.mxu0 %v6431
    %6536 = vmatpush1.bf16.msra.mxu0 %v6430
    %6537 = vmatprep.subr.bf16.mxu0 %v6427
    %6538 = vmatpush1.bf16.msra.mxu0 %v6426
    %6539 = vmatprep.subr.bf16.mxu0 %v6423
    %6540 = vmatpush1.bf16.msra.mxu0 %v6422
    %6541 = vmatprep.subr.bf16.mxu0 0
    %6542 = vmatpush2.bf16.msra.mxu0 0
    %6543 = vmatprep.subr.bf16.mxu0 0
    %6544 = vmatpush2.bf16.msra.mxu0 0
    %6545 = vmatprep.subr.bf16.mxu0 0
    %6546 = vmatpush2.bf16.msra.mxu0 0
    %6547 = vmatprep.subr.bf16.mxu0 0
    %6548 = vmatpush2.bf16.msra.mxu0 0
    %6549 = vmatprep.subr.bf16.mxu0 0
    %6550 = vmatpush2.bf16.msra.mxu0 0
    %6551 = vmatprep.subr.bf16.mxu0 0
    %6552 = vmatpush2.bf16.msra.mxu0 0
    %6553 = vmatprep.subr.bf16.mxu0 0
    %6554 = vmatpush2.bf16.msra.mxu0 0
    %6555 = vmatprep.subr.bf16.mxu0 0
    %6556 = vmatpush2.bf16.msra.mxu0 0
    %6557 = vmatprep.mubr.bf16.mxu0 0
    %6558 = vmatmul.mubr.bf16.gmra.mxu0 %v6016
    %v6559 = vpop.f32.mrf.mxu0
    %v6560 = vadd.f32 %v6318, %v6559
    %v6561 = vpop.f32.mrf.mxu0
    %v6562 = vadd.f32 %v6320, %v6561
    %v6563 = vpop.f32.mrf.mxu0
    %v6564 = vpop.f32.mrf.mxu0
    %6565 = vdwg.mxu0
    %v6566 = vld [vmem:[#allocation10] sm:$0xff]
    %v6567 = vld [vmem:[#allocation10 + $0x8] sm:$0xff]
    %v6568 = vld [vmem:[#allocation10 + $0x10] sm:$0xff]
    %v6569 = vld [vmem:[#allocation10 + $0x18] sm:$0xff]
    %v6570 = vadd.f32 %v6519, %v6566
    %v6571 = vadd.f32 %v6521, %v6567
    %v6572 = vadd.f32 %v6560, %v6568
    %v6573 = vadd.f32 %v6562, %v6569
    %v6574 = vxor.u32 %v6570, 2147483648
    %v6575 = vmul.f32 %v6574, 1.442695
    %v6576 = vpow.pop %v6575
    %v6577 = vadd.f32 %v6576, 1.0
    %v6578 = vrcp.pop %v6577
    %v6579 = vmul.f32 1.0, %v6578
    %v6580 = vxor.u32 %v6571, 2147483648
    %v6581 = vmul.f32 %v6580, 1.442695
    %v6582 = vpow.pop %v6581
    %v6583 = vadd.f32 %v6582, 1.0
    %v6584 = vrcp.pop %v6583
    %v6585 = vmul.f32 1.0, %v6584
    %v6586 = vtanh.pop %v6572
    %v6587 = vxor.u32 %v6573, 2147483648
    %v6588 = vmul.f32 %v6587, 1.442695
    %v6589 = vpow.pop %v6588
    %v6590 = vadd.f32 %v6589, 1.0
    %v6591 = vrcp.pop %v6590
    %v6592 = vmul.f32 1.0, %v6591
    %v6593 = vmul.f32 %v6585, %v6015
    %v6594 = vmul.f32 %v6579, %v6586
    %v6595 = vadd.f32 %v6593, %v6594
    %v6596 = vtanh.pop %v6595
    %v6597 = vmul.f32 %v6592, %v6596
    %6598 = vst [vmem:[#allocation2] sm:$0xff] %v6597
    %6599 = vst [vmem:[#allocation3] sm:$0xff] %v6595
    %v6600 = vld [vmem:[%s714] sm:$0xff]
    %v6601 = vld [vmem:[%s716] sm:$0xff]
    %v6602 = vpack.c.bf16 %v6597, %v6597
    %v6603 = vld [vmem:[#allocation12] sm:$0xff]
    %v6604 = vld [vmem:[#allocation12 + $0x8] sm:$0xff]
    %v6605 = vld [vmem:[#allocation12 + $0x10] sm:$0xff]
    %v6606 = vld [vmem:[#allocation12 + $0x18] sm:$0xff]
    %v6607 = vld [vmem:[#allocation12 + $0x20] sm:$0xff]
    %v6608 = vld [vmem:[#allocation12 + $0x28] sm:$0xff]
    %v6609 = vld [vmem:[#allocation12 + $0x30] sm:$0xff]
    %v6610 = vld [vmem:[#allocation12 + $0x38] sm:$0xff]
    %v6611 = vld [vmem:[#allocation12 + $0x40] sm:$0xff]
    %v6612 = vld [vmem:[#allocation12 + $0x48] sm:$0xff]
    %v6613 = vld [vmem:[#allocation12 + $0x50] sm:$0xff]
    %v6614 = vld [vmem:[#allocation12 + $0x58] sm:$0xff]
    %v6615 = vld [vmem:[#allocation12 + $0x60] sm:$0xff]
    %v6616 = vld [vmem:[#allocation12 + $0x68] sm:$0xff]
    %v6617 = vld [vmem:[#allocation12 + $0x70] sm:$0xff]
    %v6618 = vld [vmem:[#allocation12 + $0x78] sm:$0xff]
    %v6619 = vld [vmem:[#allocation12 + $0x80] sm:$0xff]
    %v6620 = vld [vmem:[#allocation12 + $0x88] sm:$0xff]
    %v6621 = vld [vmem:[#allocation12 + $0x90] sm:$0xff]
    %v6622 = vld [vmem:[#allocation12 + $0x98] sm:$0xff]
    %v6623 = vld [vmem:[#allocation12 + $0xa0] sm:$0xff]
    %v6624 = vld [vmem:[#allocation12 + $0xa8] sm:$0xff]
    %v6625 = vld [vmem:[#allocation12 + $0xb0] sm:$0xff]
    %v6626 = vld [vmem:[#allocation12 + $0xb8] sm:$0xff]
    %v6627 = vld [vmem:[#allocation12 + $0xc0] sm:$0xff]
    %v6628 = vld [vmem:[#allocation12 + $0xc8] sm:$0xff]
    %v6629 = vld [vmem:[#allocation12 + $0xd0] sm:$0xff]
    %v6630 = vld [vmem:[#allocation12 + $0xd8] sm:$0xff]
    %v6631 = vld [vmem:[#allocation12 + $0xe0] sm:$0xff]
    %v6632 = vld [vmem:[#allocation12 + $0xe8] sm:$0xff]
    %v6633 = vld [vmem:[#allocation12 + $0xf0] sm:$0xff]
    %v6634 = vld [vmem:[#allocation12 + $0xf8] sm:$0xff]
    %v6635 = vpack.c.bf16 %v6600, %v6600
    %v6636 = vld [vmem:[#allocation13] sm:$0xff]
    %v6637 = vld [vmem:[#allocation13 + $0x8] sm:$0xff]
    %v6638 = vld [vmem:[#allocation13 + $0x10] sm:$0xff]
    %v6639 = vld [vmem:[#allocation13 + $0x18] sm:$0xff]
    %v6640 = vld [vmem:[#allocation13 + $0x20] sm:$0xff]
    %v6641 = vld [vmem:[#allocation13 + $0x28] sm:$0xff]
    %v6642 = vld [vmem:[#allocation13 + $0x30] sm:$0xff]
    %v6643 = vld [vmem:[#allocation13 + $0x38] sm:$0xff]
    %v6644 = vld [vmem:[#allocation13 + $0x40] sm:$0xff]
    %v6645 = vld [vmem:[#allocation13 + $0x48] sm:$0xff]
    %v6646 = vld [vmem:[#allocation13 + $0x50] sm:$0xff]
    %v6647 = vld [vmem:[#allocation13 + $0x58] sm:$0xff]
    %v6648 = vld [vmem:[#allocation13 + $0x60] sm:$0xff]
    %v6649 = vld [vmem:[#allocation13 + $0x68] sm:$0xff]
    %v6650 = vld [vmem:[#allocation13 + $0x70] sm:$0xff]
    %v6651 = vld [vmem:[#allocation13 + $0x78] sm:$0xff]
    %v6652 = vld [vmem:[#allocation13 + $0x80] sm:$0xff]
    %v6653 = vld [vmem:[#allocation13 + $0x88] sm:$0xff]
    %v6654 = vld [vmem:[#allocation13 + $0x90] sm:$0xff]
    %v6655 = vld [vmem:[#allocation13 + $0x98] sm:$0xff]
    %v6656 = vld [vmem:[#allocation13 + $0xa0] sm:$0xff]
    %v6657 = vld [vmem:[#allocation13 + $0xa8] sm:$0xff]
    %v6658 = vld [vmem:[#allocation13 + $0xb0] sm:$0xff]
    %v6659 = vld [vmem:[#allocation13 + $0xb8] sm:$0xff]
    %v6660 = vld [vmem:[#allocation13 + $0xc0] sm:$0xff]
    %v6661 = vld [vmem:[#allocation13 + $0xc8] sm:$0xff]
    %v6662 = vld [vmem:[#allocation13 + $0xd0] sm:$0xff]
    %v6663 = vld [vmem:[#allocation13 + $0xd8] sm:$0xff]
    %v6664 = vld [vmem:[#allocation13 + $0xe0] sm:$0xff]
    %v6665 = vld [vmem:[#allocation13 + $0xe8] sm:$0xff]
    %v6666 = vld [vmem:[#allocation13 + $0xf0] sm:$0xff]
    %v6667 = vld [vmem:[#allocation13 + $0xf8] sm:$0xff]
    %v6700 = vunpack.c.l.b16 %v6636
    %v6701 = vunpack.c.h.b16 %v6636
    %v6702 = vunpack.c.l.b16 %v6637
    %v6703 = vunpack.c.h.b16 %v6637
    %v6704 = vunpack.c.l.b16 %v6638
    %v6705 = vunpack.c.h.b16 %v6638
    %v6706 = vunpack.c.l.b16 %v6639
    %v6707 = vunpack.c.h.b16 %v6639
    %v6708 = vunpack.c.l.b16 %v6640
    %v6709 = vunpack.c.h.b16 %v6640
    %v6710 = vunpack.c.l.b16 %v6641
    %v6711 = vunpack.c.h.b16 %v6641
    %v6712 = vunpack.c.l.b16 %v6642
    %v6713 = vunpack.c.h.b16 %v6642
    %v6714 = vunpack.c.l.b16 %v6643
    %v6715 = vunpack.c.h.b16 %v6643
    %v6716 = vunpack.c.l.b16 %v6644
    %v6717 = vunpack.c.h.b16 %v6644
    %v6718 = vunpack.c.l.b16 %v6645
    %v6719 = vunpack.c.h.b16 %v6645
    %v6720 = vunpack.c.l.b16 %v6646
    %v6721 = vunpack.c.h.b16 %v6646
    %v6722 = vunpack.c.l.b16 %v6647
    %v6723 = vunpack.c.h.b16 %v6647
    %v6724 = vunpack.c.l.b16 %v6648
    %v6725 = vunpack.c.h.b16 %v6648
    %v6726 = vunpack.c.l.b16 %v6649
    %v6727 = vunpack.c.h.b16 %v6649
    %v6728 = vunpack.c.l.b16 %v6650
    %v6729 = vunpack.c.h.b16 %v6650
    %v6730 = vunpack.c.l.b16 %v6651
    %v6731 = vunpack.c.h.b16 %v6651
    %v6732 = vunpack.c.l.b16 %v6652
    %v6733 = vunpack.c.h.b16 %v6652
    %v6734 = vunpack.c.l.b16 %v6653
    %v6735 = vunpack.c.h.b16 %v6653
    %v6736 = vunpack.c.l.b16 %v6654
    %v6737 = vunpack.c.h.b16 %v6654
    %v6738 = vunpack.c.l.b16 %v6655
    %v6739 = vunpack.c.h.b16 %v6655
    %v6740 = vunpack.c.l.b16 %v6656
    %v6741 = vunpack.c.h.b16 %v6656
    %v6742 = vunpack.c.l.b16 %v6657
    %v6743 = vunpack.c.h.b16 %v6657
    %v6744 = vunpack.c.l.b16 %v6658
    %v6745 = vunpack.c.h.b16 %v6658
    %v6746 = vunpack.c.l.b16 %v6659
    %v6747 = vunpack.c.h.b16 %v6659
    %v6748 = vunpack.c.l.b16 %v6660
    %v6749 = vunpack.c.h.b16 %v6660
    %v6750 = vunpack.c.l.b16 %v6661
    %v6751 = vunpack.c.h.b16 %v6661
    %v6752 = vunpack.c.l.b16 %v6662
    %v6753 = vunpack.c.h.b16 %v6662
    %v6754 = vunpack.c.l.b16 %v6663
    %v6755 = vunpack.c.h.b16 %v6663
    %v6756 = vunpack.c.l.b16 %v6664
    %v6757 = vunpack.c.h.b16 %v6664
    %v6758 = vunpack.c.l.b16 %v6665
    %v6759 = vunpack.c.h.b16 %v6665
    %v6760 = vunpack.c.l.b16 %v6666
    %v6761 = vunpack.c.h.b16 %v6666
    %v6762 = vunpack.c.l.b16 %v6667
    %v6763 = vunpack.c.h.b16 %v6667
    %v6764 = vpack.c.b16 %v6704, %v6700
    %v6765 = vpack.c.b16 %v6705, %v6701
    %v6766 = vpack.c.b16 %v6706, %v6702
    %v6767 = vpack.c.b16 %v6707, %v6703
    %v6768 = vpack.c.b16 %v6712, %v6708
    %v6769 = vpack.c.b16 %v6713, %v6709
    %v6770 = vpack.c.b16 %v6714, %v6710
    %v6771 = vpack.c.b16 %v6715, %v6711
    %v6772 = vpack.c.b16 %v6720, %v6716
    %v6773 = vpack.c.b16 %v6721, %v6717
    %v6774 = vpack.c.b16 %v6722, %v6718
    %v6775 = vpack.c.b16 %v6723, %v6719
    %v6776 = vpack.c.b16 %v6728, %v6724
    %v6777 = vpack.c.b16 %v6729, %v6725
    %v6778 = vpack.c.b16 %v6730, %v6726
    %v6779 = vpack.c.b16 %v6731, %v6727
    %v6780 = vpack.c.b16 %v6736, %v6732
    %v6781 = vpack.c.b16 %v6737, %v6733
    %v6782 = vpack.c.b16 %v6738, %v6734
    %v6783 = vpack.c.b16 %v6739, %v6735
    %v6784 = vpack.c.b16 %v6744, %v6740
    %v6785 = vpack.c.b16 %v6745, %v6741
    %v6786 = vpack.c.b16 %v6746, %v6742
    %v6787 = vpack.c.b16 %v6747, %v6743
    %v6788 = vpack.c.b16 %v6752, %v6748
    %v6789 = vpack.c.b16 %v6753, %v6749
    %v6790 = vpack.c.b16 %v6754, %v6750
    %v6791 = vpack.c.b16 %v6755, %v6751
    %v6792 = vpack.c.b16 %v6760, %v6756
    %v6793 = vpack.c.b16 %v6761, %v6757
    %v6794 = vpack.c.b16 %v6762, %v6758
    %v6795 = vpack.c.b16 %v6763, %v6759
    %6828 = vmatprep.subr.bf16.mxu0 %v6793
    %6829 = vmatpush1.bf16.msra.mxu0 %v6792
    %6830 = vmatprep.subr.bf16.mxu0 %v6789
    %6831 = vmatpush1.bf16.msra.mxu0 %v6788
    %6832 = vmatprep.subr.bf16.mxu0 %v6785
    %6833 = vmatpush1.bf16.msra.mxu0 %v6784
    %6834 = vmatprep.subr.bf16.mxu0 %v6781
    %6835 = vmatpush1.bf16.msra.mxu0 %v6780
    %6836 = vmatprep.subr.bf16.mxu0 %v6777
    %6837 = vmatpush1.bf16.msra.mxu0 %v6776
    %6838 = vmatprep.subr.bf16.mxu0 %v6773
    %6839 = vmatpush1.bf16.msra.mxu0 %v6772
    %6840 = vmatprep.subr.bf16.mxu0 %v6769
    %6841 = vmatpush1.bf16.msra.mxu0 %v6768
    %6842 = vmatprep.subr.bf16.mxu0 %v6765
    %6843 = vmatpush1.bf16.msra.mxu0 %v6764
    %6844 = vmatprep.subr.bf16.mxu0 0
    %6845 = vmatpush2.bf16.msra.mxu0 0
    %6846 = vmatprep.subr.bf16.mxu0 0
    %6847 = vmatpush2.bf16.msra.mxu0 0
    %6848 = vmatprep.subr.bf16.mxu0 0
    %6849 = vmatpush2.bf16.msra.mxu0 0
    %6850 = vmatprep.subr.bf16.mxu0 0
    %6851 = vmatpush2.bf16.msra.mxu0 0
    %6852 = vmatprep.subr.bf16.mxu0 0
    %6853 = vmatpush2.bf16.msra.mxu0 0
    %6854 = vmatprep.subr.bf16.mxu0 0
    %6855 = vmatpush2.bf16.msra.mxu0 0
    %6856 = vmatprep.subr.bf16.mxu0 0
    %6857 = vmatpush2.bf16.msra.mxu0 0
    %6858 = vmatprep.subr.bf16.mxu0 0
    %6859 = vmatpush2.bf16.msra.mxu0 0
    %6860 = vmatprep.mubr.bf16.mxu0 0
    %6861 = vmatmul.mubr.bf16.gmra.mxu0 %v6635
    %v6862 = vpop.f32.mrf.mxu0
    %v6863 = vadd.f32 0.0, %v6862
    %v6864 = vpop.f32.mrf.mxu0
    %v6865 = vadd.f32 0.0, %v6864
    %v6866 = vpop.f32.mrf.mxu0
    %v6867 = vpop.f32.mrf.mxu0
    %6868 = vdwg.mxu0
    %6869 = vmatprep.subr.bf16.mxu0 %v6795
    %6870 = vmatpush1.bf16.msra.mxu0 %v6794
    %6871 = vmatprep.subr.bf16.mxu0 %v6791
    %6872 = vmatpush1.bf16.msra.mxu0 %v6790
    %6873 = vmatprep.subr.bf16.mxu0 %v6787
    %6874 = vmatpush1.bf16.msra.mxu0 %v6786
    %6875 = vmatprep.subr.bf16.mxu0 %v6783
    %6876 = vmatpush1.bf16.msra.mxu0 %v6782
    %6877 = vmatprep.subr.bf16.mxu0 %v6779
    %6878 = vmatpush1.bf16.msra.mxu0 %v6778
    %6879 = vmatprep.subr.bf16.mxu0 %v6775
    %6880 = vmatpush1.bf16.msra.mxu0 %v6774
    %6881 = vmatprep.subr.bf16.mxu0 %v6771
    %6882 = vmatpush1.bf16.msra.mxu0 %v6770
    %6883 = vmatprep.subr.bf16.mxu0 %v6767
    %6884 = vmatpush1.bf16.msra.mxu0 %v6766
    %6885 = vmatprep.subr.bf16.mxu0 0
    %6886 = vmatpush2.bf16.msra.mxu0 0
    %6887 = vmatprep.subr.bf16.mxu0 0
    %6888 = vmatpush2.bf16.msra.mxu0 0
    %6889 = vmatprep.subr.bf16.mxu0 0
    %6890 = vmatpush2.bf16.msra.mxu0 0
    %6891 = vmatprep.subr.bf16.mxu0 0
    %6892 = vmatpush2.bf16.msra.mxu0 0
    %6893 = vmatprep.subr.bf16.mxu0 0
    %6894 = vmatpush2.bf16.msra.mxu0 0
    %6895 = vmatprep.subr.bf16.mxu0 0
    %6896 = vmatpush2.bf16.msra.mxu0 0
    %6897 = vmatprep.subr.bf16.mxu0 0
    %6898 = vmatpush2.bf16.msra.mxu0 0
    %6899 = vmatprep.subr.bf16.mxu0 0
    %6900 = vmatpush2.bf16.msra.mxu0 0
    %6901 = vmatprep.mubr.bf16.mxu0 0
    %6902 = vmatmul.mubr.bf16.gmra.mxu0 %v6635
    %v6903 = vpop.f32.mrf.mxu0
    %v6904 = vadd.f32 0.0, %v6903
    %v6905 = vpop.f32.mrf.mxu0
    %v6906 = vadd.f32 0.0, %v6905
    %v6907 = vpop.f32.mrf.mxu0
    %v6908 = vpop.f32.mrf.mxu0
    %6909 = vdwg.mxu0
    %v6942 = vunpack.c.l.b16 %v6603
    %v6943 = vunpack.c.h.b16 %v6603
    %v6944 = vunpack.c.l.b16 %v6604
    %v6945 = vunpack.c.h.b16 %v6604
    %v6946 = vunpack.c.l.b16 %v6605
    %v6947 = vunpack.c.h.b16 %v6605
    %v6948 = vunpack.c.l.b16 %v6606
    %v6949 = vunpack.c.h.b16 %v6606
    %v6950 = vunpack.c.l.b16 %v6607
    %v6951 = vunpack.c.h.b16 %v6607
    %v6952 = vunpack.c.l.b16 %v6608
    %v6953 = vunpack.c.h.b16 %v6608
    %v6954 = vunpack.c.l.b16 %v6609
    %v6955 = vunpack.c.h.b16 %v6609
    %v6956 = vunpack.c.l.b16 %v6610
    %v6957 = vunpack.c.h.b16 %v6610
    %v6958 = vunpack.c.l.b16 %v6611
    %v6959 = vunpack.c.h.b16 %v6611
    %v6960 = vunpack.c.l.b16 %v6612
    %v6961 = vunpack.c.h.b16 %v6612
    %v6962 = vunpack.c.l.b16 %v6613
    %v6963 = vunpack.c.h.b16 %v6613
    %v6964 = vunpack.c.l.b16 %v6614
    %v6965 = vunpack.c.h.b16 %v6614
    %v6966 = vunpack.c.l.b16 %v6615
    %v6967 = vunpack.c.h.b16 %v6615
    %v6968 = vunpack.c.l.b16 %v6616
    %v6969 = vunpack.c.h.b16 %v6616
    %v6970 = vunpack.c.l.b16 %v6617
    %v6971 = vunpack.c.h.b16 %v6617
    %v6972 = vunpack.c.l.b16 %v6618
    %v6973 = vunpack.c.h.b16 %v6618
    %v6974 = vunpack.c.l.b16 %v6619
    %v6975 = vunpack.c.h.b16 %v6619
    %v6976 = vunpack.c.l.b16 %v6620
    %v6977 = vunpack.c.h.b16 %v6620
    %v6978 = vunpack.c.l.b16 %v6621
    %v6979 = vunpack.c.h.b16 %v6621
    %v6980 = vunpack.c.l.b16 %v6622
    %v6981 = vunpack.c.h.b16 %v6622
    %v6982 = vunpack.c.l.b16 %v6623
    %v6983 = vunpack.c.h.b16 %v6623
    %v6984 = vunpack.c.l.b16 %v6624
    %v6985 = vunpack.c.h.b16 %v6624
    %v6986 = vunpack.c.l.b16 %v6625
    %v6987 = vunpack.c.h.b16 %v6625
    %v6988 = vunpack.c.l.b16 %v6626
    %v6989 = vunpack.c.h.b16 %v6626
    %v6990 = vunpack.c.l.b16 %v6627
    %v6991 = vunpack.c.h.b16 %v6627
    %v6992 = vunpack.c.l.b16 %v6628
    %v6993 = vunpack.c.h.b16 %v6628
    %v6994 = vunpack.c.l.b16 %v6629
    %v6995 = vunpack.c.h.b16 %v6629
    %v6996 = vunpack.c.l.b16 %v6630
    %v6997 = vunpack.c.h.b16 %v6630
    %v6998 = vunpack.c.l.b16 %v6631
    %v6999 = vunpack.c.h.b16 %v6631
    %v7000 = vunpack.c.l.b16 %v6632
    %v7001 = vunpack.c.h.b16 %v6632
    %v7002 = vunpack.c.l.b16 %v6633
    %v7003 = vunpack.c.h.b16 %v6633
    %v7004 = vunpack.c.l.b16 %v6634
    %v7005 = vunpack.c.h.b16 %v6634
    %v7006 = vpack.c.b16 %v6946, %v6942
    %v7007 = vpack.c.b16 %v6947, %v6943
    %v7008 = vpack.c.b16 %v6948, %v6944
    %v7009 = vpack.c.b16 %v6949, %v6945
    %v7010 = vpack.c.b16 %v6954, %v6950
    %v7011 = vpack.c.b16 %v6955, %v6951
    %v7012 = vpack.c.b16 %v6956, %v6952
    %v7013 = vpack.c.b16 %v6957, %v6953
    %v7014 = vpack.c.b16 %v6962, %v6958
    %v7015 = vpack.c.b16 %v6963, %v6959
    %v7016 = vpack.c.b16 %v6964, %v6960
    %v7017 = vpack.c.b16 %v6965, %v6961
    %v7018 = vpack.c.b16 %v6970, %v6966
    %v7019 = vpack.c.b16 %v6971, %v6967
    %v7020 = vpack.c.b16 %v6972, %v6968
    %v7021 = vpack.c.b16 %v6973, %v6969
    %v7022 = vpack.c.b16 %v6978, %v6974
    %v7023 = vpack.c.b16 %v6979, %v6975
    %v7024 = vpack.c.b16 %v6980, %v6976
    %v7025 = vpack.c.b16 %v6981, %v6977
    %v7026 = vpack.c.b16 %v6986, %v6982
    %v7027 = vpack.c.b16 %v6987, %v6983
    %v7028 = vpack.c.b16 %v6988, %v6984
    %v7029 = vpack.c.b16 %v6989, %v6985
    %v7030 = vpack.c.b16 %v6994, %v6990
    %v7031 = vpack.c.b16 %v6995, %v6991
    %v7032 = vpack.c.b16 %v6996, %v6992
    %v7033 = vpack.c.b16 %v6997, %v6993
    %v7034 = vpack.c.b16 %v7002, %v6998
    %v7035 = vpack.c.b16 %v7003, %v6999
    %v7036 = vpack.c.b16 %v7004, %v7000
    %v7037 = vpack.c.b16 %v7005, %v7001
    %7070 = vmatprep.subr.bf16.mxu0 %v7035
    %7071 = vmatpush1.bf16.msra.mxu0 %v7034
    %7072 = vmatprep.subr.bf16.mxu0 %v7031
    %7073 = vmatpush1.bf16.msra.mxu0 %v7030
    %7074 = vmatprep.subr.bf16.mxu0 %v7027
    %7075 = vmatpush1.bf16.msra.mxu0 %v7026
    %7076 = vmatprep.subr.bf16.mxu0 %v7023
    %7077 = vmatpush1.bf16.msra.mxu0 %v7022
    %7078 = vmatprep.subr.bf16.mxu0 %v7019
    %7079 = vmatpush1.bf16.msra.mxu0 %v7018
    %7080 = vmatprep.subr.bf16.mxu0 %v7015
    %7081 = vmatpush1.bf16.msra.mxu0 %v7014
    %7082 = vmatprep.subr.bf16.mxu0 %v7011
    %7083 = vmatpush1.bf16.msra.mxu0 %v7010
    %7084 = vmatprep.subr.bf16.mxu0 %v7007
    %7085 = vmatpush1.bf16.msra.mxu0 %v7006
    %7086 = vmatprep.subr.bf16.mxu0 0
    %7087 = vmatpush2.bf16.msra.mxu0 0
    %7088 = vmatprep.subr.bf16.mxu0 0
    %7089 = vmatpush2.bf16.msra.mxu0 0
    %7090 = vmatprep.subr.bf16.mxu0 0
    %7091 = vmatpush2.bf16.msra.mxu0 0
    %7092 = vmatprep.subr.bf16.mxu0 0
    %7093 = vmatpush2.bf16.msra.mxu0 0
    %7094 = vmatprep.subr.bf16.mxu0 0
    %7095 = vmatpush2.bf16.msra.mxu0 0
    %7096 = vmatprep.subr.bf16.mxu0 0
    %7097 = vmatpush2.bf16.msra.mxu0 0
    %7098 = vmatprep.subr.bf16.mxu0 0
    %7099 = vmatpush2.bf16.msra.mxu0 0
    %7100 = vmatprep.subr.bf16.mxu0 0
    %7101 = vmatpush2.bf16.msra.mxu0 0
    %7102 = vmatprep.mubr.bf16.mxu0 0
    %7103 = vmatmul.mubr.bf16.gmra.mxu0 %v6602
    %v7104 = vpop.f32.mrf.mxu0
    %v7105 = vadd.f32 %v6863, %v7104
    %v7106 = vpop.f32.mrf.mxu0
    %v7107 = vadd.f32 %v6865, %v7106
    %v7108 = vpop.f32.mrf.mxu0
    %v7109 = vpop.f32.mrf.mxu0
    %7110 = vdwg.mxu0
    %7111 = vmatprep.subr.bf16.mxu0 %v7037
    %7112 = vmatpush1.bf16.msra.mxu0 %v7036
    %7113 = vmatprep.subr.bf16.mxu0 %v7033
    %7114 = vmatpush1.bf16.msra.mxu0 %v7032
    %7115 = vmatprep.subr.bf16.mxu0 %v7029
    %7116 = vmatpush1.bf16.msra.mxu0 %v7028
    %7117 = vmatprep.subr.bf16.mxu0 %v7025
    %7118 = vmatpush1.bf16.msra.mxu0 %v7024
    %7119 = vmatprep.subr.bf16.mxu0 %v7021
    %7120 = vmatpush1.bf16.msra.mxu0 %v7020
    %7121 = vmatprep.subr.bf16.mxu0 %v7017
    %7122 = vmatpush1.bf16.msra.mxu0 %v7016
    %7123 = vmatprep.subr.bf16.mxu0 %v7013
    %7124 = vmatpush1.bf16.msra.mxu0 %v7012
    %7125 = vmatprep.subr.bf16.mxu0 %v7009
    %7126 = vmatpush1.bf16.msra.mxu0 %v7008
    %7127 = vmatprep.subr.bf16.mxu0 0
    %7128 = vmatpush2.bf16.msra.mxu0 0
    %7129 = vmatprep.subr.bf16.mxu0 0
    %7130 = vmatpush2.bf16.msra.mxu0 0
    %7131 = vmatprep.subr.bf16.mxu0 0
    %7132 = vmatpush2.bf16.msra.mxu0 0
    %7133 = vmatprep.subr.bf16.mxu0 0
    %7134 = vmatpush2.bf16.msra.mxu0 0
    %7135 = vmatprep.subr.bf16.mxu0 0
    %7136 = vmatpush2.bf16.msra.mxu0 0
    %7137 = vmatprep.subr.bf16.mxu0 0
    %7138 = vmatpush2.bf16.msra.mxu0 0
    %7139 = vmatprep.subr.bf16.mxu0 0
    %7140 = vmatpush2.bf16.msra.mxu0 0
    %7141 = vmatprep.subr.bf16.mxu0 0
    %7142 = vmatpush2.bf16.msra.mxu0 0
    %7143 = vmatprep.mubr.bf16.mxu0 0
    %7144 = vmatmul.mubr.bf16.gmra.mxu0 %v6602
    %v7145 = vpop.f32.mrf.mxu0
    %v7146 = vadd.f32 %v6904, %v7145
    %v7147 = vpop.f32.mrf.mxu0
    %v7148 = vadd.f32 %v6906, %v7147
    %v7149 = vpop.f32.mrf.mxu0
    %v7150 = vpop.f32.mrf.mxu0
    %7151 = vdwg.mxu0
    %v7152 = vld [vmem:[#allocation15] sm:$0xff]
    %v7153 = vld [vmem:[#allocation15 + $0x8] sm:$0xff]
    %v7154 = vld [vmem:[#allocation15 + $0x10] sm:$0xff]
    %v7155 = vld [vmem:[#allocation15 + $0x18] sm:$0xff]
    %v7156 = vadd.f32 %v7105, %v7152
    %v7157 = vadd.f32 %v7107, %v7153
    %v7158 = vadd.f32 %v7146, %v7154
    %v7159 = vadd.f32 %v7148, %v7155
    %v7160 = vxor.u32 %v7156, 2147483648
    %v7161 = vmul.f32 %v7160, 1.442695
    %v7162 = vpow.pop %v7161
    %v7163 = vadd.f32 %v7162, 1.0
    %v7164 = vrcp.pop %v7163
    %v7165 = vmul.f32 1.0, %v7164
    %v7166 = vxor.u32 %v7157, 2147483648
    %v7167 = vmul.f32 %v7166, 1.442695
    %v7168 = vpow.pop %v7167
    %v7169 = vadd.f32 %v7168, 1.0
    %v7170 = vrcp.pop %v7169
    %v7171 = vmul.f32 1.0, %v7170
    %v7172 = vtanh.pop %v7158
    %v7173 = vxor.u32 %v7159, 2147483648
    %v7174 = vmul.f32 %v7173, 1.442695
    %v7175 = vpow.pop %v7174
    %v7176 = vadd.f32 %v7175, 1.0
    %v7177 = vrcp.pop %v7176
    %v7178 = vmul.f32 1.0, %v7177
    %v7179 = vmul.f32 %v7171, %v6601
    %v7180 = vmul.f32 %v7165, %v7172
    %v7181 = vadd.f32 %v7179, %v7180
    %v7182 = vtanh.pop %v7181
    %v7183 = vmul.f32 %v7178, %v7182
    %7184 = vst [vmem:[%s714] sm:$0xff] %v7183
    %7185 = vst [vmem:[%s716] sm:$0xff] %v7181
    %v7186 = vpack.c.bf16 %v7183, %v7183
    %s7187 = scalar_lea.vmem [#allocation16], 20
    %7188 = vst [vmem:[%s7187] sm:$0xf] %v7186
    %s7189 = scalar_lea.vmem [#allocation4], 48
    %v7190 = vld [vmem:[%s7189] sm:$0xff]
    %v7191 = vld [vmem:[#allocation2] sm:$0xff]
    %v7192 = vld [vmem:[#allocation3] sm:$0xff]
    %v7193 = vpack.c.bf16 %v7190, %v7190
    %v7194 = vld [vmem:[#allocation7] sm:$0xff]
    %v7195 = vld [vmem:[#allocation7 + $0x8] sm:$0xff]
    %v7196 = vld [vmem:[#allocation7 + $0x10] sm:$0xff]
    %v7197 = vld [vmem:[#allocation7 + $0x18] sm:$0xff]
    %v7198 = vld [vmem:[#allocation7 + $0x20] sm:$0xff]
    %v7199 = vld [vmem:[#allocation7 + $0x28] sm:$0xff]
    %v7200 = vld [vmem:[#allocation7 + $0x30] sm:$0xff]
    %v7201 = vld [vmem:[#allocation7 + $0x38] sm:$0xff]
    %v7202 = vld [vmem:[#allocation7 + $0x40] sm:$0xff]
    %v7203 = vld [vmem:[#allocation7 + $0x48] sm:$0xff]
    %v7204 = vld [vmem:[#allocation7 + $0x50] sm:$0xff]
    %v7205 = vld [vmem:[#allocation7 + $0x58] sm:$0xff]
    %v7206 = vld [vmem:[#allocation7 + $0x60] sm:$0xff]
    %v7207 = vld [vmem:[#allocation7 + $0x68] sm:$0xff]
    %v7208 = vld [vmem:[#allocation7 + $0x70] sm:$0xff]
    %v7209 = vld [vmem:[#allocation7 + $0x78] sm:$0xff]
    %v7210 = vld [vmem:[#allocation7 + $0x80] sm:$0xff]
    %v7211 = vld [vmem:[#allocation7 + $0x88] sm:$0xff]
    %v7212 = vld [vmem:[#allocation7 + $0x90] sm:$0xff]
    %v7213 = vld [vmem:[#allocation7 + $0x98] sm:$0xff]
    %v7214 = vld [vmem:[#allocation7 + $0xa0] sm:$0xff]
    %v7215 = vld [vmem:[#allocation7 + $0xa8] sm:$0xff]
    %v7216 = vld [vmem:[#allocation7 + $0xb0] sm:$0xff]
    %v7217 = vld [vmem:[#allocation7 + $0xb8] sm:$0xff]
    %v7218 = vld [vmem:[#allocation7 + $0xc0] sm:$0xff]
    %v7219 = vld [vmem:[#allocation7 + $0xc8] sm:$0xff]
    %v7220 = vld [vmem:[#allocation7 + $0xd0] sm:$0xff]
    %v7221 = vld [vmem:[#allocation7 + $0xd8] sm:$0xff]
    %v7222 = vld [vmem:[#allocation7 + $0xe0] sm:$0xff]
    %v7223 = vld [vmem:[#allocation7 + $0xe8] sm:$0xff]
    %v7224 = vld [vmem:[#allocation7 + $0xf0] sm:$0xff]
    %v7225 = vld [vmem:[#allocation7 + $0xf8] sm:$0xff]
    %v7226 = vpack.c.bf16 %v7191, %v7191
    %v7227 = vld [vmem:[#allocation9] sm:$0xff]
    %v7228 = vld [vmem:[#allocation9 + $0x8] sm:$0xff]
    %v7229 = vld [vmem:[#allocation9 + $0x10] sm:$0xff]
    %v7230 = vld [vmem:[#allocation9 + $0x18] sm:$0xff]
    %v7231 = vld [vmem:[#allocation9 + $0x20] sm:$0xff]
    %v7232 = vld [vmem:[#allocation9 + $0x28] sm:$0xff]
    %v7233 = vld [vmem:[#allocation9 + $0x30] sm:$0xff]
    %v7234 = vld [vmem:[#allocation9 + $0x38] sm:$0xff]
    %v7235 = vld [vmem:[#allocation9 + $0x40] sm:$0xff]
    %v7236 = vld [vmem:[#allocation9 + $0x48] sm:$0xff]
    %v7237 = vld [vmem:[#allocation9 + $0x50] sm:$0xff]
    %v7238 = vld [vmem:[#allocation9 + $0x58] sm:$0xff]
    %v7239 = vld [vmem:[#allocation9 + $0x60] sm:$0xff]
    %v7240 = vld [vmem:[#allocation9 + $0x68] sm:$0xff]
    %v7241 = vld [vmem:[#allocation9 + $0x70] sm:$0xff]
    %v7242 = vld [vmem:[#allocation9 + $0x78] sm:$0xff]
    %v7243 = vld [vmem:[#allocation9 + $0x80] sm:$0xff]
    %v7244 = vld [vmem:[#allocation9 + $0x88] sm:$0xff]
    %v7245 = vld [vmem:[#allocation9 + $0x90] sm:$0xff]
    %v7246 = vld [vmem:[#allocation9 + $0x98] sm:$0xff]
    %v7247 = vld [vmem:[#allocation9 + $0xa0] sm:$0xff]
    %v7248 = vld [vmem:[#allocation9 + $0xa8] sm:$0xff]
    %v7249 = vld [vmem:[#allocation9 + $0xb0] sm:$0xff]
    %v7250 = vld [vmem:[#allocation9 + $0xb8] sm:$0xff]
    %v7251 = vld [vmem:[#allocation9 + $0xc0] sm:$0xff]
    %v7252 = vld [vmem:[#allocation9 + $0xc8] sm:$0xff]
    %v7253 = vld [vmem:[#allocation9 + $0xd0] sm:$0xff]
    %v7254 = vld [vmem:[#allocation9 + $0xd8] sm:$0xff]
    %v7255 = vld [vmem:[#allocation9 + $0xe0] sm:$0xff]
    %v7256 = vld [vmem:[#allocation9 + $0xe8] sm:$0xff]
    %v7257 = vld [vmem:[#allocation9 + $0xf0] sm:$0xff]
    %v7258 = vld [vmem:[#allocation9 + $0xf8] sm:$0xff]
    %v7291 = vunpack.c.l.b16 %v7227
    %v7292 = vunpack.c.h.b16 %v7227
    %v7293 = vunpack.c.l.b16 %v7228
    %v7294 = vunpack.c.h.b16 %v7228
    %v7295 = vunpack.c.l.b16 %v7229
    %v7296 = vunpack.c.h.b16 %v7229
    %v7297 = vunpack.c.l.b16 %v7230
    %v7298 = vunpack.c.h.b16 %v7230
    %v7299 = vunpack.c.l.b16 %v7231
    %v7300 = vunpack.c.h.b16 %v7231
    %v7301 = vunpack.c.l.b16 %v7232
    %v7302 = vunpack.c.h.b16 %v7232
    %v7303 = vunpack.c.l.b16 %v7233
    %v7304 = vunpack.c.h.b16 %v7233
    %v7305 = vunpack.c.l.b16 %v7234
    %v7306 = vunpack.c.h.b16 %v7234
    %v7307 = vunpack.c.l.b16 %v7235
    %v7308 = vunpack.c.h.b16 %v7235
    %v7309 = vunpack.c.l.b16 %v7236
    %v7310 = vunpack.c.h.b16 %v7236
    %v7311 = vunpack.c.l.b16 %v7237
    %v7312 = vunpack.c.h.b16 %v7237
    %v7313 = vunpack.c.l.b16 %v7238
    %v7314 = vunpack.c.h.b16 %v7238
    %v7315 = vunpack.c.l.b16 %v7239
    %v7316 = vunpack.c.h.b16 %v7239
    %v7317 = vunpack.c.l.b16 %v7240
    %v7318 = vunpack.c.h.b16 %v7240
    %v7319 = vunpack.c.l.b16 %v7241
    %v7320 = vunpack.c.h.b16 %v7241
    %v7321 = vunpack.c.l.b16 %v7242
    %v7322 = vunpack.c.h.b16 %v7242
    %v7323 = vunpack.c.l.b16 %v7243
    %v7324 = vunpack.c.h.b16 %v7243
    %v7325 = vunpack.c.l.b16 %v7244
    %v7326 = vunpack.c.h.b16 %v7244
    %v7327 = vunpack.c.l.b16 %v7245
    %v7328 = vunpack.c.h.b16 %v7245
    %v7329 = vunpack.c.l.b16 %v7246
    %v7330 = vunpack.c.h.b16 %v7246
    %v7331 = vunpack.c.l.b16 %v7247
    %v7332 = vunpack.c.h.b16 %v7247
    %v7333 = vunpack.c.l.b16 %v7248
    %v7334 = vunpack.c.h.b16 %v7248
    %v7335 = vunpack.c.l.b16 %v7249
    %v7336 = vunpack.c.h.b16 %v7249
    %v7337 = vunpack.c.l.b16 %v7250
    %v7338 = vunpack.c.h.b16 %v7250
    %v7339 = vunpack.c.l.b16 %v7251
    %v7340 = vunpack.c.h.b16 %v7251
    %v7341 = vunpack.c.l.b16 %v7252
    %v7342 = vunpack.c.h.b16 %v7252
    %v7343 = vunpack.c.l.b16 %v7253
    %v7344 = vunpack.c.h.b16 %v7253
    %v7345 = vunpack.c.l.b16 %v7254
    %v7346 = vunpack.c.h.b16 %v7254
    %v7347 = vunpack.c.l.b16 %v7255
    %v7348 = vunpack.c.h.b16 %v7255
    %v7349 = vunpack.c.l.b16 %v7256
    %v7350 = vunpack.c.h.b16 %v7256
    %v7351 = vunpack.c.l.b16 %v7257
    %v7352 = vunpack.c.h.b16 %v7257
    %v7353 = vunpack.c.l.b16 %v7258
    %v7354 = vunpack.c.h.b16 %v7258
    %v7355 = vpack.c.b16 %v7295, %v7291
    %v7356 = vpack.c.b16 %v7296, %v7292
    %v7357 = vpack.c.b16 %v7297, %v7293
    %v7358 = vpack.c.b16 %v7298, %v7294
    %v7359 = vpack.c.b16 %v7303, %v7299
    %v7360 = vpack.c.b16 %v7304, %v7300
    %v7361 = vpack.c.b16 %v7305, %v7301
    %v7362 = vpack.c.b16 %v7306, %v7302
    %v7363 = vpack.c.b16 %v7311, %v7307
    %v7364 = vpack.c.b16 %v7312, %v7308
    %v7365 = vpack.c.b16 %v7313, %v7309
    %v7366 = vpack.c.b16 %v7314, %v7310
    %v7367 = vpack.c.b16 %v7319, %v7315
    %v7368 = vpack.c.b16 %v7320, %v7316
    %v7369 = vpack.c.b16 %v7321, %v7317
    %v7370 = vpack.c.b16 %v7322, %v7318
    %v7371 = vpack.c.b16 %v7327, %v7323
    %v7372 = vpack.c.b16 %v7328, %v7324
    %v7373 = vpack.c.b16 %v7329, %v7325
    %v7374 = vpack.c.b16 %v7330, %v7326
    %v7375 = vpack.c.b16 %v7335, %v7331
    %v7376 = vpack.c.b16 %v7336, %v7332
    %v7377 = vpack.c.b16 %v7337, %v7333
    %v7378 = vpack.c.b16 %v7338, %v7334
    %v7379 = vpack.c.b16 %v7343, %v7339
    %v7380 = vpack.c.b16 %v7344, %v7340
    %v7381 = vpack.c.b16 %v7345, %v7341
    %v7382 = vpack.c.b16 %v7346, %v7342
    %v7383 = vpack.c.b16 %v7351, %v7347
    %v7384 = vpack.c.b16 %v7352, %v7348
    %v7385 = vpack.c.b16 %v7353, %v7349
    %v7386 = vpack.c.b16 %v7354, %v7350
    %7419 = vmatprep.subr.bf16.mxu0 %v7384
    %7420 = vmatpush1.bf16.msra.mxu0 %v7383
    %7421 = vmatprep.subr.bf16.mxu0 %v7380
    %7422 = vmatpush1.bf16.msra.mxu0 %v7379
    %7423 = vmatprep.subr.bf16.mxu0 %v7376
    %7424 = vmatpush1.bf16.msra.mxu0 %v7375
    %7425 = vmatprep.subr.bf16.mxu0 %v7372
    %7426 = vmatpush1.bf16.msra.mxu0 %v7371
    %7427 = vmatprep.subr.bf16.mxu0 %v7368
    %7428 = vmatpush1.bf16.msra.mxu0 %v7367
    %7429 = vmatprep.subr.bf16.mxu0 %v7364
    %7430 = vmatpush1.bf16.msra.mxu0 %v7363
    %7431 = vmatprep.subr.bf16.mxu0 %v7360
    %7432 = vmatpush1.bf16.msra.mxu0 %v7359
    %7433 = vmatprep.subr.bf16.mxu0 %v7356
    %7434 = vmatpush1.bf16.msra.mxu0 %v7355
    %7435 = vmatprep.subr.bf16.mxu0 0
    %7436 = vmatpush2.bf16.msra.mxu0 0
    %7437 = vmatprep.subr.bf16.mxu0 0
    %7438 = vmatpush2.bf16.msra.mxu0 0
    %7439 = vmatprep.subr.bf16.mxu0 0
    %7440 = vmatpush2.bf16.msra.mxu0 0
    %7441 = vmatprep.subr.bf16.mxu0 0
    %7442 = vmatpush2.bf16.msra.mxu0 0
    %7443 = vmatprep.subr.bf16.mxu0 0
    %7444 = vmatpush2.bf16.msra.mxu0 0
    %7445 = vmatprep.subr.bf16.mxu0 0
    %7446 = vmatpush2.bf16.msra.mxu0 0
    %7447 = vmatprep.subr.bf16.mxu0 0
    %7448 = vmatpush2.bf16.msra.mxu0 0
    %7449 = vmatprep.subr.bf16.mxu0 0
    %7450 = vmatpush2.bf16.msra.mxu0 0
    %7451 = vmatprep.mubr.bf16.mxu0 0
    %7452 = vmatmul.mubr.bf16.gmra.mxu0 %v7226
    %v7453 = vpop.f32.mrf.mxu0
    %v7454 = vadd.f32 0.0, %v7453
    %v7455 = vpop.f32.mrf.mxu0
    %v7456 = vadd.f32 0.0, %v7455
    %v7457 = vpop.f32.mrf.mxu0
    %v7458 = vpop.f32.mrf.mxu0
    %7459 = vdwg.mxu0
    %7460 = vmatprep.subr.bf16.mxu0 %v7386
    %7461 = vmatpush1.bf16.msra.mxu0 %v7385
    %7462 = vmatprep.subr.bf16.mxu0 %v7382
    %7463 = vmatpush1.bf16.msra.mxu0 %v7381
    %7464 = vmatprep.subr.bf16.mxu0 %v7378
    %7465 = vmatpush1.bf16.msra.mxu0 %v7377
    %7466 = vmatprep.subr.bf16.mxu0 %v7374
    %7467 = vmatpush1.bf16.msra.mxu0 %v7373
    %7468 = vmatprep.subr.bf16.mxu0 %v7370
    %7469 = vmatpush1.bf16.msra.mxu0 %v7369
    %7470 = vmatprep.subr.bf16.mxu0 %v7366
    %7471 = vmatpush1.bf16.msra.mxu0 %v7365
    %7472 = vmatprep.subr.bf16.mxu0 %v7362
    %7473 = vmatpush1.bf16.msra.mxu0 %v7361
    %7474 = vmatprep.subr.bf16.mxu0 %v7358
    %7475 = vmatpush1.bf16.msra.mxu0 %v7357
    %7476 = vmatprep.subr.bf16.mxu0 0
    %7477 = vmatpush2.bf16.msra.mxu0 0
    %7478 = vmatprep.subr.bf16.mxu0 0
    %7479 = vmatpush2.bf16.msra.mxu0 0
    %7480 = vmatprep.subr.bf16.mxu0 0
    %7481 = vmatpush2.bf16.msra.mxu0 0
    %7482 = vmatprep.subr.bf16.mxu0 0
    %7483 = vmatpush2.bf16.msra.mxu0 0
    %7484 = vmatprep.subr.bf16.mxu0 0
    %7485 = vmatpush2.bf16.msra.mxu0 0
    %7486 = vmatprep.subr.bf16.mxu0 0
    %7487 = vmatpush2.bf16.msra.mxu0 0
    %7488 = vmatprep.subr.bf16.mxu0 0
    %7489 = vmatpush2.bf16.msra.mxu0 0
    %7490 = vmatprep.subr.bf16.mxu0 0
    %7491 = vmatpush2.bf16.msra.mxu0 0
    %7492 = vmatprep.mubr.bf16.mxu0 0
    %7493 = vmatmul.mubr.bf16.gmra.mxu0 %v7226
    %v7494 = vpop.f32.mrf.mxu0
    %v7495 = vadd.f32 0.0, %v7494
    %v7496 = vpop.f32.mrf.mxu0
    %v7497 = vadd.f32 0.0, %v7496
    %v7498 = vpop.f32.mrf.mxu0
    %v7499 = vpop.f32.mrf.mxu0
    %7500 = vdwg.mxu0
    %v7533 = vunpack.c.l.b16 %v7194
    %v7534 = vunpack.c.h.b16 %v7194
    %v7535 = vunpack.c.l.b16 %v7195
    %v7536 = vunpack.c.h.b16 %v7195
    %v7537 = vunpack.c.l.b16 %v7196
    %v7538 = vunpack.c.h.b16 %v7196
    %v7539 = vunpack.c.l.b16 %v7197
    %v7540 = vunpack.c.h.b16 %v7197
    %v7541 = vunpack.c.l.b16 %v7198
    %v7542 = vunpack.c.h.b16 %v7198
    %v7543 = vunpack.c.l.b16 %v7199
    %v7544 = vunpack.c.h.b16 %v7199
    %v7545 = vunpack.c.l.b16 %v7200
    %v7546 = vunpack.c.h.b16 %v7200
    %v7547 = vunpack.c.l.b16 %v7201
    %v7548 = vunpack.c.h.b16 %v7201
    %v7549 = vunpack.c.l.b16 %v7202
    %v7550 = vunpack.c.h.b16 %v7202
    %v7551 = vunpack.c.l.b16 %v7203
    %v7552 = vunpack.c.h.b16 %v7203
    %v7553 = vunpack.c.l.b16 %v7204
    %v7554 = vunpack.c.h.b16 %v7204
    %v7555 = vunpack.c.l.b16 %v7205
    %v7556 = vunpack.c.h.b16 %v7205
    %v7557 = vunpack.c.l.b16 %v7206
    %v7558 = vunpack.c.h.b16 %v7206
    %v7559 = vunpack.c.l.b16 %v7207
    %v7560 = vunpack.c.h.b16 %v7207
    %v7561 = vunpack.c.l.b16 %v7208
    %v7562 = vunpack.c.h.b16 %v7208
    %v7563 = vunpack.c.l.b16 %v7209
    %v7564 = vunpack.c.h.b16 %v7209
    %v7565 = vunpack.c.l.b16 %v7210
    %v7566 = vunpack.c.h.b16 %v7210
    %v7567 = vunpack.c.l.b16 %v7211
    %v7568 = vunpack.c.h.b16 %v7211
    %v7569 = vunpack.c.l.b16 %v7212
    %v7570 = vunpack.c.h.b16 %v7212
    %v7571 = vunpack.c.l.b16 %v7213
    %v7572 = vunpack.c.h.b16 %v7213
    %v7573 = vunpack.c.l.b16 %v7214
    %v7574 = vunpack.c.h.b16 %v7214
    %v7575 = vunpack.c.l.b16 %v7215
    %v7576 = vunpack.c.h.b16 %v7215
    %v7577 = vunpack.c.l.b16 %v7216
    %v7578 = vunpack.c.h.b16 %v7216
    %v7579 = vunpack.c.l.b16 %v7217
    %v7580 = vunpack.c.h.b16 %v7217
    %v7581 = vunpack.c.l.b16 %v7218
    %v7582 = vunpack.c.h.b16 %v7218
    %v7583 = vunpack.c.l.b16 %v7219
    %v7584 = vunpack.c.h.b16 %v7219
    %v7585 = vunpack.c.l.b16 %v7220
    %v7586 = vunpack.c.h.b16 %v7220
    %v7587 = vunpack.c.l.b16 %v7221
    %v7588 = vunpack.c.h.b16 %v7221
    %v7589 = vunpack.c.l.b16 %v7222
    %v7590 = vunpack.c.h.b16 %v7222
    %v7591 = vunpack.c.l.b16 %v7223
    %v7592 = vunpack.c.h.b16 %v7223
    %v7593 = vunpack.c.l.b16 %v7224
    %v7594 = vunpack.c.h.b16 %v7224
    %v7595 = vunpack.c.l.b16 %v7225
    %v7596 = vunpack.c.h.b16 %v7225
    %v7597 = vpack.c.b16 %v7537, %v7533
    %v7598 = vpack.c.b16 %v7538, %v7534
    %v7599 = vpack.c.b16 %v7539, %v7535
    %v7600 = vpack.c.b16 %v7540, %v7536
    %v7601 = vpack.c.b16 %v7545, %v7541
    %v7602 = vpack.c.b16 %v7546, %v7542
    %v7603 = vpack.c.b16 %v7547, %v7543
    %v7604 = vpack.c.b16 %v7548, %v7544
    %v7605 = vpack.c.b16 %v7553, %v7549
    %v7606 = vpack.c.b16 %v7554, %v7550
    %v7607 = vpack.c.b16 %v7555, %v7551
    %v7608 = vpack.c.b16 %v7556, %v7552
    %v7609 = vpack.c.b16 %v7561, %v7557
    %v7610 = vpack.c.b16 %v7562, %v7558
    %v7611 = vpack.c.b16 %v7563, %v7559
    %v7612 = vpack.c.b16 %v7564, %v7560
    %v7613 = vpack.c.b16 %v7569, %v7565
    %v7614 = vpack.c.b16 %v7570, %v7566
    %v7615 = vpack.c.b16 %v7571, %v7567
    %v7616 = vpack.c.b16 %v7572, %v7568
    %v7617 = vpack.c.b16 %v7577, %v7573
    %v7618 = vpack.c.b16 %v7578, %v7574
    %v7619 = vpack.c.b16 %v7579, %v7575
    %v7620 = vpack.c.b16 %v7580, %v7576
    %v7621 = vpack.c.b16 %v7585, %v7581
    %v7622 = vpack.c.b16 %v7586, %v7582
    %v7623 = vpack.c.b16 %v7587, %v7583
    %v7624 = vpack.c.b16 %v7588, %v7584
    %v7625 = vpack.c.b16 %v7593, %v7589
    %v7626 = vpack.c.b16 %v7594, %v7590
    %v7627 = vpack.c.b16 %v7595, %v7591
    %v7628 = vpack.c.b16 %v7596, %v7592
    %7661 = vmatprep.subr.bf16.mxu0 %v7626
    %7662 = vmatpush1.bf16.msra.mxu0 %v7625
    %7663 = vmatprep.subr.bf16.mxu0 %v7622
    %7664 = vmatpush1.bf16.msra.mxu0 %v7621
    %7665 = vmatprep.subr.bf16.mxu0 %v7618
    %7666 = vmatpush1.bf16.msra.mxu0 %v7617
    %7667 = vmatprep.subr.bf16.mxu0 %v7614
    %7668 = vmatpush1.bf16.msra.mxu0 %v7613
    %7669 = vmatprep.subr.bf16.mxu0 %v7610
    %7670 = vmatpush1.bf16.msra.mxu0 %v7609
    %7671 = vmatprep.subr.bf16.mxu0 %v7606
    %7672 = vmatpush1.bf16.msra.mxu0 %v7605
    %7673 = vmatprep.subr.bf16.mxu0 %v7602
    %7674 = vmatpush1.bf16.msra.mxu0 %v7601
    %7675 = vmatprep.subr.bf16.mxu0 %v7598
    %7676 = vmatpush1.bf16.msra.mxu0 %v7597
    %7677 = vmatprep.subr.bf16.mxu0 0
    %7678 = vmatpush2.bf16.msra.mxu0 0
    %7679 = vmatprep.subr.bf16.mxu0 0
    %7680 = vmatpush2.bf16.msra.mxu0 0
    %7681 = vmatprep.subr.bf16.mxu0 0
    %7682 = vmatpush2.bf16.msra.mxu0 0
    %7683 = vmatprep.subr.bf16.mxu0 0
    %7684 = vmatpush2.bf16.msra.mxu0 0
    %7685 = vmatprep.subr.bf16.mxu0 0
    %7686 = vmatpush2.bf16.msra.mxu0 0
    %7687 = vmatprep.subr.bf16.mxu0 0
    %7688 = vmatpush2.bf16.msra.mxu0 0
    %7689 = vmatprep.subr.bf16.mxu0 0
    %7690 = vmatpush2.bf16.msra.mxu0 0
    %7691 = vmatprep.subr.bf16.mxu0 0
    %7692 = vmatpush2.bf16.msra.mxu0 0
    %7693 = vmatprep.mubr.bf16.mxu0 0
    %7694 = vmatmul.mubr.bf16.gmra.mxu0 %v7193
    %v7695 = vpop.f32.mrf.mxu0
    %v7696 = vadd.f32 %v7454, %v7695
    %v7697 = vpop.f32.mrf.mxu0
    %v7698 = vadd.f32 %v7456, %v7697
    %v7699 = vpop.f32.mrf.mxu0
    %v7700 = vpop.f32.mrf.mxu0
    %7701 = vdwg.mxu0
    %7702 = vmatprep.subr.bf16.mxu0 %v7628
    %7703 = vmatpush1.bf16.msra.mxu0 %v7627
    %7704 = vmatprep.subr.bf16.mxu0 %v7624
    %7705 = vmatpush1.bf16.msra.mxu0 %v7623
    %7706 = vmatprep.subr.bf16.mxu0 %v7620
    %7707 = vmatpush1.bf16.msra.mxu0 %v7619
    %7708 = vmatprep.subr.bf16.mxu0 %v7616
    %7709 = vmatpush1.bf16.msra.mxu0 %v7615
    %7710 = vmatprep.subr.bf16.mxu0 %v7612
    %7711 = vmatpush1.bf16.msra.mxu0 %v7611
    %7712 = vmatprep.subr.bf16.mxu0 %v7608
    %7713 = vmatpush1.bf16.msra.mxu0 %v7607
    %7714 = vmatprep.subr.bf16.mxu0 %v7604
    %7715 = vmatpush1.bf16.msra.mxu0 %v7603
    %7716 = vmatprep.subr.bf16.mxu0 %v7600
    %7717 = vmatpush1.bf16.msra.mxu0 %v7599
    %7718 = vmatprep.subr.bf16.mxu0 0
    %7719 = vmatpush2.bf16.msra.mxu0 0
    %7720 = vmatprep.subr.bf16.mxu0 0
    %7721 = vmatpush2.bf16.msra.mxu0 0
    %7722 = vmatprep.subr.bf16.mxu0 0
    %7723 = vmatpush2.bf16.msra.mxu0 0
    %7724 = vmatprep.subr.bf16.mxu0 0
    %7725 = vmatpush2.bf16.msra.mxu0 0
    %7726 = vmatprep.subr.bf16.mxu0 0
    %7727 = vmatpush2.bf16.msra.mxu0 0
    %7728 = vmatprep.subr.bf16.mxu0 0
    %7729 = vmatpush2.bf16.msra.mxu0 0
    %7730 = vmatprep.subr.bf16.mxu0 0
    %7731 = vmatpush2.bf16.msra.mxu0 0
    %7732 = vmatprep.subr.bf16.mxu0 0
    %7733 = vmatpush2.bf16.msra.mxu0 0
    %7734 = vmatprep.mubr.bf16.mxu0 0
    %7735 = vmatmul.mubr.bf16.gmra.mxu0 %v7193
    %v7736 = vpop.f32.mrf.mxu0
    %v7737 = vadd.f32 %v7495, %v7736
    %v7738 = vpop.f32.mrf.mxu0
    %v7739 = vadd.f32 %v7497, %v7738
    %v7740 = vpop.f32.mrf.mxu0
    %v7741 = vpop.f32.mrf.mxu0
    %7742 = vdwg.mxu0
    %v7743 = vld [vmem:[#allocation10] sm:$0xff]
    %v7744 = vld [vmem:[#allocation10 + $0x8] sm:$0xff]
    %v7745 = vld [vmem:[#allocation10 + $0x10] sm:$0xff]
    %v7746 = vld [vmem:[#allocation10 + $0x18] sm:$0xff]
    %v7747 = vadd.f32 %v7696, %v7743
    %v7748 = vadd.f32 %v7698, %v7744
    %v7749 = vadd.f32 %v7737, %v7745
    %v7750 = vadd.f32 %v7739, %v7746
    %v7751 = vxor.u32 %v7747, 2147483648
    %v7752 = vmul.f32 %v7751, 1.442695
    %v7753 = vpow.pop %v7752
    %v7754 = vadd.f32 %v7753, 1.0
    %v7755 = vrcp.pop %v7754
    %v7756 = vmul.f32 1.0, %v7755
    %v7757 = vxor.u32 %v7748, 2147483648
    %v7758 = vmul.f32 %v7757, 1.442695
    %v7759 = vpow.pop %v7758
    %v7760 = vadd.f32 %v7759, 1.0
    %v7761 = vrcp.pop %v7760
    %v7762 = vmul.f32 1.0, %v7761
    %v7763 = vtanh.pop %v7749
    %v7764 = vxor.u32 %v7750, 2147483648
    %v7765 = vmul.f32 %v7764, 1.442695
    %v7766 = vpow.pop %v7765
    %v7767 = vadd.f32 %v7766, 1.0
    %v7768 = vrcp.pop %v7767
    %v7769 = vmul.f32 1.0, %v7768
    %v7770 = vmul.f32 %v7762, %v7192
    %v7771 = vmul.f32 %v7756, %v7763
    %v7772 = vadd.f32 %v7770, %v7771
    %v7773 = vtanh.pop %v7772
    %v7774 = vmul.f32 %v7769, %v7773
    %7775 = vst [vmem:[#allocation2] sm:$0xff] %v7774
    %7776 = vst [vmem:[#allocation3] sm:$0xff] %v7772
    %v7777 = vld [vmem:[%s714] sm:$0xff]
    %v7778 = vld [vmem:[%s716] sm:$0xff]
    %v7779 = vpack.c.bf16 %v7774, %v7774
    %v7780 = vld [vmem:[#allocation12] sm:$0xff]
    %v7781 = vld [vmem:[#allocation12 + $0x8] sm:$0xff]
    %v7782 = vld [vmem:[#allocation12 + $0x10] sm:$0xff]
    %v7783 = vld [vmem:[#allocation12 + $0x18] sm:$0xff]
    %v7784 = vld [vmem:[#allocation12 + $0x20] sm:$0xff]
    %v7785 = vld [vmem:[#allocation12 + $0x28] sm:$0xff]
    %v7786 = vld [vmem:[#allocation12 + $0x30] sm:$0xff]
    %v7787 = vld [vmem:[#allocation12 + $0x38] sm:$0xff]
    %v7788 = vld [vmem:[#allocation12 + $0x40] sm:$0xff]
    %v7789 = vld [vmem:[#allocation12 + $0x48] sm:$0xff]
    %v7790 = vld [vmem:[#allocation12 + $0x50] sm:$0xff]
    %v7791 = vld [vmem:[#allocation12 + $0x58] sm:$0xff]
    %v7792 = vld [vmem:[#allocation12 + $0x60] sm:$0xff]
    %v7793 = vld [vmem:[#allocation12 + $0x68] sm:$0xff]
    %v7794 = vld [vmem:[#allocation12 + $0x70] sm:$0xff]
    %v7795 = vld [vmem:[#allocation12 + $0x78] sm:$0xff]
    %v7796 = vld [vmem:[#allocation12 + $0x80] sm:$0xff]
    %v7797 = vld [vmem:[#allocation12 + $0x88] sm:$0xff]
    %v7798 = vld [vmem:[#allocation12 + $0x90] sm:$0xff]
    %v7799 = vld [vmem:[#allocation12 + $0x98] sm:$0xff]
    %v7800 = vld [vmem:[#allocation12 + $0xa0] sm:$0xff]
    %v7801 = vld [vmem:[#allocation12 + $0xa8] sm:$0xff]
    %v7802 = vld [vmem:[#allocation12 + $0xb0] sm:$0xff]
    %v7803 = vld [vmem:[#allocation12 + $0xb8] sm:$0xff]
    %v7804 = vld [vmem:[#allocation12 + $0xc0] sm:$0xff]
    %v7805 = vld [vmem:[#allocation12 + $0xc8] sm:$0xff]
    %v7806 = vld [vmem:[#allocation12 + $0xd0] sm:$0xff]
    %v7807 = vld [vmem:[#allocation12 + $0xd8] sm:$0xff]
    %v7808 = vld [vmem:[#allocation12 + $0xe0] sm:$0xff]
    %v7809 = vld [vmem:[#allocation12 + $0xe8] sm:$0xff]
    %v7810 = vld [vmem:[#allocation12 + $0xf0] sm:$0xff]
    %v7811 = vld [vmem:[#allocation12 + $0xf8] sm:$0xff]
    %v7812 = vpack.c.bf16 %v7777, %v7777
    %v7813 = vld [vmem:[#allocation13] sm:$0xff]
    %v7814 = vld [vmem:[#allocation13 + $0x8] sm:$0xff]
    %v7815 = vld [vmem:[#allocation13 + $0x10] sm:$0xff]
    %v7816 = vld [vmem:[#allocation13 + $0x18] sm:$0xff]
    %v7817 = vld [vmem:[#allocation13 + $0x20] sm:$0xff]
    %v7818 = vld [vmem:[#allocation13 + $0x28] sm:$0xff]
    %v7819 = vld [vmem:[#allocation13 + $0x30] sm:$0xff]
    %v7820 = vld [vmem:[#allocation13 + $0x38] sm:$0xff]
    %v7821 = vld [vmem:[#allocation13 + $0x40] sm:$0xff]
    %v7822 = vld [vmem:[#allocation13 + $0x48] sm:$0xff]
    %v7823 = vld [vmem:[#allocation13 + $0x50] sm:$0xff]
    %v7824 = vld [vmem:[#allocation13 + $0x58] sm:$0xff]
    %v7825 = vld [vmem:[#allocation13 + $0x60] sm:$0xff]
    %v7826 = vld [vmem:[#allocation13 + $0x68] sm:$0xff]
    %v7827 = vld [vmem:[#allocation13 + $0x70] sm:$0xff]
    %v7828 = vld [vmem:[#allocation13 + $0x78] sm:$0xff]
    %v7829 = vld [vmem:[#allocation13 + $0x80] sm:$0xff]
    %v7830 = vld [vmem:[#allocation13 + $0x88] sm:$0xff]
    %v7831 = vld [vmem:[#allocation13 + $0x90] sm:$0xff]
    %v7832 = vld [vmem:[#allocation13 + $0x98] sm:$0xff]
    %v7833 = vld [vmem:[#allocation13 + $0xa0] sm:$0xff]
    %v7834 = vld [vmem:[#allocation13 + $0xa8] sm:$0xff]
    %v7835 = vld [vmem:[#allocation13 + $0xb0] sm:$0xff]
    %v7836 = vld [vmem:[#allocation13 + $0xb8] sm:$0xff]
    %v7837 = vld [vmem:[#allocation13 + $0xc0] sm:$0xff]
    %v7838 = vld [vmem:[#allocation13 + $0xc8] sm:$0xff]
    %v7839 = vld [vmem:[#allocation13 + $0xd0] sm:$0xff]
    %v7840 = vld [vmem:[#allocation13 + $0xd8] sm:$0xff]
    %v7841 = vld [vmem:[#allocation13 + $0xe0] sm:$0xff]
    %v7842 = vld [vmem:[#allocation13 + $0xe8] sm:$0xff]
    %v7843 = vld [vmem:[#allocation13 + $0xf0] sm:$0xff]
    %v7844 = vld [vmem:[#allocation13 + $0xf8] sm:$0xff]
    %v7877 = vunpack.c.l.b16 %v7813
    %v7878 = vunpack.c.h.b16 %v7813
    %v7879 = vunpack.c.l.b16 %v7814
    %v7880 = vunpack.c.h.b16 %v7814
    %v7881 = vunpack.c.l.b16 %v7815
    %v7882 = vunpack.c.h.b16 %v7815
    %v7883 = vunpack.c.l.b16 %v7816
    %v7884 = vunpack.c.h.b16 %v7816
    %v7885 = vunpack.c.l.b16 %v7817
    %v7886 = vunpack.c.h.b16 %v7817
    %v7887 = vunpack.c.l.b16 %v7818
    %v7888 = vunpack.c.h.b16 %v7818
    %v7889 = vunpack.c.l.b16 %v7819
    %v7890 = vunpack.c.h.b16 %v7819
    %v7891 = vunpack.c.l.b16 %v7820
    %v7892 = vunpack.c.h.b16 %v7820
    %v7893 = vunpack.c.l.b16 %v7821
    %v7894 = vunpack.c.h.b16 %v7821
    %v7895 = vunpack.c.l.b16 %v7822
    %v7896 = vunpack.c.h.b16 %v7822
    %v7897 = vunpack.c.l.b16 %v7823
    %v7898 = vunpack.c.h.b16 %v7823
    %v7899 = vunpack.c.l.b16 %v7824
    %v7900 = vunpack.c.h.b16 %v7824
    %v7901 = vunpack.c.l.b16 %v7825
    %v7902 = vunpack.c.h.b16 %v7825
    %v7903 = vunpack.c.l.b16 %v7826
    %v7904 = vunpack.c.h.b16 %v7826
    %v7905 = vunpack.c.l.b16 %v7827
    %v7906 = vunpack.c.h.b16 %v7827
    %v7907 = vunpack.c.l.b16 %v7828
    %v7908 = vunpack.c.h.b16 %v7828
    %v7909 = vunpack.c.l.b16 %v7829
    %v7910 = vunpack.c.h.b16 %v7829
    %v7911 = vunpack.c.l.b16 %v7830
    %v7912 = vunpack.c.h.b16 %v7830
    %v7913 = vunpack.c.l.b16 %v7831
    %v7914 = vunpack.c.h.b16 %v7831
    %v7915 = vunpack.c.l.b16 %v7832
    %v7916 = vunpack.c.h.b16 %v7832
    %v7917 = vunpack.c.l.b16 %v7833
    %v7918 = vunpack.c.h.b16 %v7833
    %v7919 = vunpack.c.l.b16 %v7834
    %v7920 = vunpack.c.h.b16 %v7834
    %v7921 = vunpack.c.l.b16 %v7835
    %v7922 = vunpack.c.h.b16 %v7835
    %v7923 = vunpack.c.l.b16 %v7836
    %v7924 = vunpack.c.h.b16 %v7836
    %v7925 = vunpack.c.l.b16 %v7837
    %v7926 = vunpack.c.h.b16 %v7837
    %v7927 = vunpack.c.l.b16 %v7838
    %v7928 = vunpack.c.h.b16 %v7838
    %v7929 = vunpack.c.l.b16 %v7839
    %v7930 = vunpack.c.h.b16 %v7839
    %v7931 = vunpack.c.l.b16 %v7840
    %v7932 = vunpack.c.h.b16 %v7840
    %v7933 = vunpack.c.l.b16 %v7841
    %v7934 = vunpack.c.h.b16 %v7841
    %v7935 = vunpack.c.l.b16 %v7842
    %v7936 = vunpack.c.h.b16 %v7842
    %v7937 = vunpack.c.l.b16 %v7843
    %v7938 = vunpack.c.h.b16 %v7843
    %v7939 = vunpack.c.l.b16 %v7844
    %v7940 = vunpack.c.h.b16 %v7844
    %v7941 = vpack.c.b16 %v7881, %v7877
    %v7942 = vpack.c.b16 %v7882, %v7878
    %v7943 = vpack.c.b16 %v7883, %v7879
    %v7944 = vpack.c.b16 %v7884, %v7880
    %v7945 = vpack.c.b16 %v7889, %v7885
    %v7946 = vpack.c.b16 %v7890, %v7886
    %v7947 = vpack.c.b16 %v7891, %v7887
    %v7948 = vpack.c.b16 %v7892, %v7888
    %v7949 = vpack.c.b16 %v7897, %v7893
    %v7950 = vpack.c.b16 %v7898, %v7894
    %v7951 = vpack.c.b16 %v7899, %v7895
    %v7952 = vpack.c.b16 %v7900, %v7896
    %v7953 = vpack.c.b16 %v7905, %v7901
    %v7954 = vpack.c.b16 %v7906, %v7902
    %v7955 = vpack.c.b16 %v7907, %v7903
    %v7956 = vpack.c.b16 %v7908, %v7904
    %v7957 = vpack.c.b16 %v7913, %v7909
    %v7958 = vpack.c.b16 %v7914, %v7910
    %v7959 = vpack.c.b16 %v7915, %v7911
    %v7960 = vpack.c.b16 %v7916, %v7912
    %v7961 = vpack.c.b16 %v7921, %v7917
    %v7962 = vpack.c.b16 %v7922, %v7918
    %v7963 = vpack.c.b16 %v7923, %v7919
    %v7964 = vpack.c.b16 %v7924, %v7920
    %v7965 = vpack.c.b16 %v7929, %v7925
    %v7966 = vpack.c.b16 %v7930, %v7926
    %v7967 = vpack.c.b16 %v7931, %v7927
    %v7968 = vpack.c.b16 %v7932, %v7928
    %v7969 = vpack.c.b16 %v7937, %v7933
    %v7970 = vpack.c.b16 %v7938, %v7934
    %v7971 = vpack.c.b16 %v7939, %v7935
    %v7972 = vpack.c.b16 %v7940, %v7936
    %8005 = vmatprep.subr.bf16.mxu0 %v7970
    %8006 = vmatpush1.bf16.msra.mxu0 %v7969
    %8007 = vmatprep.subr.bf16.mxu0 %v7966
    %8008 = vmatpush1.bf16.msra.mxu0 %v7965
    %8009 = vmatprep.subr.bf16.mxu0 %v7962
    %8010 = vmatpush1.bf16.msra.mxu0 %v7961
    %8011 = vmatprep.subr.bf16.mxu0 %v7958
    %8012 = vmatpush1.bf16.msra.mxu0 %v7957
    %8013 = vmatprep.subr.bf16.mxu0 %v7954
    %8014 = vmatpush1.bf16.msra.mxu0 %v7953
    %8015 = vmatprep.subr.bf16.mxu0 %v7950
    %8016 = vmatpush1.bf16.msra.mxu0 %v7949
    %8017 = vmatprep.subr.bf16.mxu0 %v7946
    %8018 = vmatpush1.bf16.msra.mxu0 %v7945
    %8019 = vmatprep.subr.bf16.mxu0 %v7942
    %8020 = vmatpush1.bf16.msra.mxu0 %v7941
    %8021 = vmatprep.subr.bf16.mxu0 0
    %8022 = vmatpush2.bf16.msra.mxu0 0
    %8023 = vmatprep.subr.bf16.mxu0 0
    %8024 = vmatpush2.bf16.msra.mxu0 0
    %8025 = vmatprep.subr.bf16.mxu0 0
    %8026 = vmatpush2.bf16.msra.mxu0 0
    %8027 = vmatprep.subr.bf16.mxu0 0
    %8028 = vmatpush2.bf16.msra.mxu0 0
    %8029 = vmatprep.subr.bf16.mxu0 0
    %8030 = vmatpush2.bf16.msra.mxu0 0
    %8031 = vmatprep.subr.bf16.mxu0 0
    %8032 = vmatpush2.bf16.msra.mxu0 0
    %8033 = vmatprep.subr.bf16.mxu0 0
    %8034 = vmatpush2.bf16.msra.mxu0 0
    %8035 = vmatprep.subr.bf16.mxu0 0
    %8036 = vmatpush2.bf16.msra.mxu0 0
    %8037 = vmatprep.mubr.bf16.mxu0 0
    %8038 = vmatmul.mubr.bf16.gmra.mxu0 %v7812
    %v8039 = vpop.f32.mrf.mxu0
    %v8040 = vadd.f32 0.0, %v8039
    %v8041 = vpop.f32.mrf.mxu0
    %v8042 = vadd.f32 0.0, %v8041
    %v8043 = vpop.f32.mrf.mxu0
    %v8044 = vpop.f32.mrf.mxu0
    %8045 = vdwg.mxu0
    %8046 = vmatprep.subr.bf16.mxu0 %v7972
    %8047 = vmatpush1.bf16.msra.mxu0 %v7971
    %8048 = vmatprep.subr.bf16.mxu0 %v7968
    %8049 = vmatpush1.bf16.msra.mxu0 %v7967
    %8050 = vmatprep.subr.bf16.mxu0 %v7964
    %8051 = vmatpush1.bf16.msra.mxu0 %v7963
    %8052 = vmatprep.subr.bf16.mxu0 %v7960
    %8053 = vmatpush1.bf16.msra.mxu0 %v7959
    %8054 = vmatprep.subr.bf16.mxu0 %v7956
    %8055 = vmatpush1.bf16.msra.mxu0 %v7955
    %8056 = vmatprep.subr.bf16.mxu0 %v7952
    %8057 = vmatpush1.bf16.msra.mxu0 %v7951
    %8058 = vmatprep.subr.bf16.mxu0 %v7948
    %8059 = vmatpush1.bf16.msra.mxu0 %v7947
    %8060 = vmatprep.subr.bf16.mxu0 %v7944
    %8061 = vmatpush1.bf16.msra.mxu0 %v7943
    %8062 = vmatprep.subr.bf16.mxu0 0
    %8063 = vmatpush2.bf16.msra.mxu0 0
    %8064 = vmatprep.subr.bf16.mxu0 0
    %8065 = vmatpush2.bf16.msra.mxu0 0
    %8066 = vmatprep.subr.bf16.mxu0 0
    %8067 = vmatpush2.bf16.msra.mxu0 0
    %8068 = vmatprep.subr.bf16.mxu0 0
    %8069 = vmatpush2.bf16.msra.mxu0 0
    %8070 = vmatprep.subr.bf16.mxu0 0
    %8071 = vmatpush2.bf16.msra.mxu0 0
    %8072 = vmatprep.subr.bf16.mxu0 0
    %8073 = vmatpush2.bf16.msra.mxu0 0
    %8074 = vmatprep.subr.bf16.mxu0 0
    %8075 = vmatpush2.bf16.msra.mxu0 0
    %8076 = vmatprep.subr.bf16.mxu0 0
    %8077 = vmatpush2.bf16.msra.mxu0 0
    %8078 = vmatprep.mubr.bf16.mxu0 0
    %8079 = vmatmul.mubr.bf16.gmra.mxu0 %v7812
    %v8080 = vpop.f32.mrf.mxu0
    %v8081 = vadd.f32 0.0, %v8080
    %v8082 = vpop.f32.mrf.mxu0
    %v8083 = vadd.f32 0.0, %v8082
    %v8084 = vpop.f32.mrf.mxu0
    %v8085 = vpop.f32.mrf.mxu0
    %8086 = vdwg.mxu0
    %v8119 = vunpack.c.l.b16 %v7780
    %v8120 = vunpack.c.h.b16 %v7780
    %v8121 = vunpack.c.l.b16 %v7781
    %v8122 = vunpack.c.h.b16 %v7781
    %v8123 = vunpack.c.l.b16 %v7782
    %v8124 = vunpack.c.h.b16 %v7782
    %v8125 = vunpack.c.l.b16 %v7783
    %v8126 = vunpack.c.h.b16 %v7783
    %v8127 = vunpack.c.l.b16 %v7784
    %v8128 = vunpack.c.h.b16 %v7784
    %v8129 = vunpack.c.l.b16 %v7785
    %v8130 = vunpack.c.h.b16 %v7785
    %v8131 = vunpack.c.l.b16 %v7786
    %v8132 = vunpack.c.h.b16 %v7786
    %v8133 = vunpack.c.l.b16 %v7787
    %v8134 = vunpack.c.h.b16 %v7787
    %v8135 = vunpack.c.l.b16 %v7788
    %v8136 = vunpack.c.h.b16 %v7788
    %v8137 = vunpack.c.l.b16 %v7789
    %v8138 = vunpack.c.h.b16 %v7789
    %v8139 = vunpack.c.l.b16 %v7790
    %v8140 = vunpack.c.h.b16 %v7790
    %v8141 = vunpack.c.l.b16 %v7791
    %v8142 = vunpack.c.h.b16 %v7791
    %v8143 = vunpack.c.l.b16 %v7792
    %v8144 = vunpack.c.h.b16 %v7792
    %v8145 = vunpack.c.l.b16 %v7793
    %v8146 = vunpack.c.h.b16 %v7793
    %v8147 = vunpack.c.l.b16 %v7794
    %v8148 = vunpack.c.h.b16 %v7794
    %v8149 = vunpack.c.l.b16 %v7795
    %v8150 = vunpack.c.h.b16 %v7795
    %v8151 = vunpack.c.l.b16 %v7796
    %v8152 = vunpack.c.h.b16 %v7796
    %v8153 = vunpack.c.l.b16 %v7797
    %v8154 = vunpack.c.h.b16 %v7797
    %v8155 = vunpack.c.l.b16 %v7798
    %v8156 = vunpack.c.h.b16 %v7798
    %v8157 = vunpack.c.l.b16 %v7799
    %v8158 = vunpack.c.h.b16 %v7799
    %v8159 = vunpack.c.l.b16 %v7800
    %v8160 = vunpack.c.h.b16 %v7800
    %v8161 = vunpack.c.l.b16 %v7801
    %v8162 = vunpack.c.h.b16 %v7801
    %v8163 = vunpack.c.l.b16 %v7802
    %v8164 = vunpack.c.h.b16 %v7802
    %v8165 = vunpack.c.l.b16 %v7803
    %v8166 = vunpack.c.h.b16 %v7803
    %v8167 = vunpack.c.l.b16 %v7804
    %v8168 = vunpack.c.h.b16 %v7804
    %v8169 = vunpack.c.l.b16 %v7805
    %v8170 = vunpack.c.h.b16 %v7805
    %v8171 = vunpack.c.l.b16 %v7806
    %v8172 = vunpack.c.h.b16 %v7806
    %v8173 = vunpack.c.l.b16 %v7807
    %v8174 = vunpack.c.h.b16 %v7807
    %v8175 = vunpack.c.l.b16 %v7808
    %v8176 = vunpack.c.h.b16 %v7808
    %v8177 = vunpack.c.l.b16 %v7809
    %v8178 = vunpack.c.h.b16 %v7809
    %v8179 = vunpack.c.l.b16 %v7810
    %v8180 = vunpack.c.h.b16 %v7810
    %v8181 = vunpack.c.l.b16 %v7811
    %v8182 = vunpack.c.h.b16 %v7811
    %v8183 = vpack.c.b16 %v8123, %v8119
    %v8184 = vpack.c.b16 %v8124, %v8120
    %v8185 = vpack.c.b16 %v8125, %v8121
    %v8186 = vpack.c.b16 %v8126, %v8122
    %v8187 = vpack.c.b16 %v8131, %v8127
    %v8188 = vpack.c.b16 %v8132, %v8128
    %v8189 = vpack.c.b16 %v8133, %v8129
    %v8190 = vpack.c.b16 %v8134, %v8130
    %v8191 = vpack.c.b16 %v8139, %v8135
    %v8192 = vpack.c.b16 %v8140, %v8136
    %v8193 = vpack.c.b16 %v8141, %v8137
    %v8194 = vpack.c.b16 %v8142, %v8138
    %v8195 = vpack.c.b16 %v8147, %v8143
    %v8196 = vpack.c.b16 %v8148, %v8144
    %v8197 = vpack.c.b16 %v8149, %v8145
    %v8198 = vpack.c.b16 %v8150, %v8146
    %v8199 = vpack.c.b16 %v8155, %v8151
    %v8200 = vpack.c.b16 %v8156, %v8152
    %v8201 = vpack.c.b16 %v8157, %v8153
    %v8202 = vpack.c.b16 %v8158, %v8154
    %v8203 = vpack.c.b16 %v8163, %v8159
    %v8204 = vpack.c.b16 %v8164, %v8160
    %v8205 = vpack.c.b16 %v8165, %v8161
    %v8206 = vpack.c.b16 %v8166, %v8162
    %v8207 = vpack.c.b16 %v8171, %v8167
    %v8208 = vpack.c.b16 %v8172, %v8168
    %v8209 = vpack.c.b16 %v8173, %v8169
    %v8210 = vpack.c.b16 %v8174, %v8170
    %v8211 = vpack.c.b16 %v8179, %v8175
    %v8212 = vpack.c.b16 %v8180, %v8176
    %v8213 = vpack.c.b16 %v8181, %v8177
    %v8214 = vpack.c.b16 %v8182, %v8178
    %8247 = vmatprep.subr.bf16.mxu0 %v8212
    %8248 = vmatpush1.bf16.msra.mxu0 %v8211
    %8249 = vmatprep.subr.bf16.mxu0 %v8208
    %8250 = vmatpush1.bf16.msra.mxu0 %v8207
    %8251 = vmatprep.subr.bf16.mxu0 %v8204
    %8252 = vmatpush1.bf16.msra.mxu0 %v8203
    %8253 = vmatprep.subr.bf16.mxu0 %v8200
    %8254 = vmatpush1.bf16.msra.mxu0 %v8199
    %8255 = vmatprep.subr.bf16.mxu0 %v8196
    %8256 = vmatpush1.bf16.msra.mxu0 %v8195
    %8257 = vmatprep.subr.bf16.mxu0 %v8192
    %8258 = vmatpush1.bf16.msra.mxu0 %v8191
    %8259 = vmatprep.subr.bf16.mxu0 %v8188
    %8260 = vmatpush1.bf16.msra.mxu0 %v8187
    %8261 = vmatprep.subr.bf16.mxu0 %v8184
    %8262 = vmatpush1.bf16.msra.mxu0 %v8183
    %8263 = vmatprep.subr.bf16.mxu0 0
    %8264 = vmatpush2.bf16.msra.mxu0 0
    %8265 = vmatprep.subr.bf16.mxu0 0
    %8266 = vmatpush2.bf16.msra.mxu0 0
    %8267 = vmatprep.subr.bf16.mxu0 0
    %8268 = vmatpush2.bf16.msra.mxu0 0
    %8269 = vmatprep.subr.bf16.mxu0 0
    %8270 = vmatpush2.bf16.msra.mxu0 0
    %8271 = vmatprep.subr.bf16.mxu0 0
    %8272 = vmatpush2.bf16.msra.mxu0 0
    %8273 = vmatprep.subr.bf16.mxu0 0
    %8274 = vmatpush2.bf16.msra.mxu0 0
    %8275 = vmatprep.subr.bf16.mxu0 0
    %8276 = vmatpush2.bf16.msra.mxu0 0
    %8277 = vmatprep.subr.bf16.mxu0 0
    %8278 = vmatpush2.bf16.msra.mxu0 0
    %8279 = vmatprep.mubr.bf16.mxu0 0
    %8280 = vmatmul.mubr.bf16.gmra.mxu0 %v7779
    %v8281 = vpop.f32.mrf.mxu0
    %v8282 = vadd.f32 %v8040, %v8281
    %v8283 = vpop.f32.mrf.mxu0
    %v8284 = vadd.f32 %v8042, %v8283
    %v8285 = vpop.f32.mrf.mxu0
    %v8286 = vpop.f32.mrf.mxu0
    %8287 = vdwg.mxu0
    %8288 = vmatprep.subr.bf16.mxu0 %v8214
    %8289 = vmatpush1.bf16.msra.mxu0 %v8213
    %8290 = vmatprep.subr.bf16.mxu0 %v8210
    %8291 = vmatpush1.bf16.msra.mxu0 %v8209
    %8292 = vmatprep.subr.bf16.mxu0 %v8206
    %8293 = vmatpush1.bf16.msra.mxu0 %v8205
    %8294 = vmatprep.subr.bf16.mxu0 %v8202
    %8295 = vmatpush1.bf16.msra.mxu0 %v8201
    %8296 = vmatprep.subr.bf16.mxu0 %v8198
    %8297 = vmatpush1.bf16.msra.mxu0 %v8197
    %8298 = vmatprep.subr.bf16.mxu0 %v8194
    %8299 = vmatpush1.bf16.msra.mxu0 %v8193
    %8300 = vmatprep.subr.bf16.mxu0 %v8190
    %8301 = vmatpush1.bf16.msra.mxu0 %v8189
    %8302 = vmatprep.subr.bf16.mxu0 %v8186
    %8303 = vmatpush1.bf16.msra.mxu0 %v8185
    %8304 = vmatprep.subr.bf16.mxu0 0
    %8305 = vmatpush2.bf16.msra.mxu0 0
    %8306 = vmatprep.subr.bf16.mxu0 0
    %8307 = vmatpush2.bf16.msra.mxu0 0
    %8308 = vmatprep.subr.bf16.mxu0 0
    %8309 = vmatpush2.bf16.msra.mxu0 0
    %8310 = vmatprep.subr.bf16.mxu0 0
    %8311 = vmatpush2.bf16.msra.mxu0 0
    %8312 = vmatprep.subr.bf16.mxu0 0
    %8313 = vmatpush2.bf16.msra.mxu0 0
    %8314 = vmatprep.subr.bf16.mxu0 0
    %8315 = vmatpush2.bf16.msra.mxu0 0
    %8316 = vmatprep.subr.bf16.mxu0 0
    %8317 = vmatpush2.bf16.msra.mxu0 0
    %8318 = vmatprep.subr.bf16.mxu0 0
    %8319 = vmatpush2.bf16.msra.mxu0 0
    %8320 = vmatprep.mubr.bf16.mxu0 0
    %8321 = vmatmul.mubr.bf16.gmra.mxu0 %v7779
    %v8322 = vpop.f32.mrf.mxu0
    %v8323 = vadd.f32 %v8081, %v8322
    %v8324 = vpop.f32.mrf.mxu0
    %v8325 = vadd.f32 %v8083, %v8324
    %v8326 = vpop.f32.mrf.mxu0
    %v8327 = vpop.f32.mrf.mxu0
    %8328 = vdwg.mxu0
    %v8329 = vld [vmem:[#allocation15] sm:$0xff]
    %v8330 = vld [vmem:[#allocation15 + $0x8] sm:$0xff]
    %v8331 = vld [vmem:[#allocation15 + $0x10] sm:$0xff]
    %v8332 = vld [vmem:[#allocation15 + $0x18] sm:$0xff]
    %v8333 = vadd.f32 %v8282, %v8329
    %v8334 = vadd.f32 %v8284, %v8330
    %v8335 = vadd.f32 %v8323, %v8331
    %v8336 = vadd.f32 %v8325, %v8332
    %v8337 = vxor.u32 %v8333, 2147483648
    %v8338 = vmul.f32 %v8337, 1.442695
    %v8339 = vpow.pop %v8338
    %v8340 = vadd.f32 %v8339, 1.0
    %v8341 = vrcp.pop %v8340
    %v8342 = vmul.f32 1.0, %v8341
    %v8343 = vxor.u32 %v8334, 2147483648
    %v8344 = vmul.f32 %v8343, 1.442695
    %v8345 = vpow.pop %v8344
    %v8346 = vadd.f32 %v8345, 1.0
    %v8347 = vrcp.pop %v8346
    %v8348 = vmul.f32 1.0, %v8347
    %v8349 = vtanh.pop %v8335
    %v8350 = vxor.u32 %v8336, 2147483648
    %v8351 = vmul.f32 %v8350, 1.442695
    %v8352 = vpow.pop %v8351
    %v8353 = vadd.f32 %v8352, 1.0
    %v8354 = vrcp.pop %v8353
    %v8355 = vmul.f32 1.0, %v8354
    %v8356 = vmul.f32 %v8348, %v7778
    %v8357 = vmul.f32 %v8342, %v8349
    %v8358 = vadd.f32 %v8356, %v8357
    %v8359 = vtanh.pop %v8358
    %v8360 = vmul.f32 %v8355, %v8359
    %8361 = vst [vmem:[%s714] sm:$0xff] %v8360
    %8362 = vst [vmem:[%s716] sm:$0xff] %v8358
    %v8363 = vpack.c.bf16 %v8360, %v8360
    %s8364 = scalar_lea.vmem [#allocation16], 24
    %8365 = vst [vmem:[%s8364] sm:$0xf] %v8363
    %s8366 = scalar_lea.vmem [#allocation4], 56
    %v8367 = vld [vmem:[%s8366] sm:$0xff]
    %v8368 = vld [vmem:[#allocation2] sm:$0xff]
    %v8369 = vld [vmem:[#allocation3] sm:$0xff]
    %v8370 = vpack.c.bf16 %v8367, %v8367
    %v8371 = vld [vmem:[#allocation7] sm:$0xff]
    %v8372 = vld [vmem:[#allocation7 + $0x8] sm:$0xff]
    %v8373 = vld [vmem:[#allocation7 + $0x10] sm:$0xff]
    %v8374 = vld [vmem:[#allocation7 + $0x18] sm:$0xff]
    %v8375 = vld [vmem:[#allocation7 + $0x20] sm:$0xff]
    %v8376 = vld [vmem:[#allocation7 + $0x28] sm:$0xff]
    %v8377 = vld [vmem:[#allocation7 + $0x30] sm:$0xff]
    %v8378 = vld [vmem:[#allocation7 + $0x38] sm:$0xff]
    %v8379 = vld [vmem:[#allocation7 + $0x40] sm:$0xff]
    %v8380 = vld [vmem:[#allocation7 + $0x48] sm:$0xff]
    %v8381 = vld [vmem:[#allocation7 + $0x50] sm:$0xff]
    %v8382 = vld [vmem:[#allocation7 + $0x58] sm:$0xff]
    %v8383 = vld [vmem:[#allocation7 + $0x60] sm:$0xff]
    %v8384 = vld [vmem:[#allocation7 + $0x68] sm:$0xff]
    %v8385 = vld [vmem:[#allocation7 + $0x70] sm:$0xff]
    %v8386 = vld [vmem:[#allocation7 + $0x78] sm:$0xff]
    %v8387 = vld [vmem:[#allocation7 + $0x80] sm:$0xff]
    %v8388 = vld [vmem:[#allocation7 + $0x88] sm:$0xff]
    %v8389 = vld [vmem:[#allocation7 + $0x90] sm:$0xff]
    %v8390 = vld [vmem:[#allocation7 + $0x98] sm:$0xff]
    %v8391 = vld [vmem:[#allocation7 + $0xa0] sm:$0xff]
    %v8392 = vld [vmem:[#allocation7 + $0xa8] sm:$0xff]
    %v8393 = vld [vmem:[#allocation7 + $0xb0] sm:$0xff]
    %v8394 = vld [vmem:[#allocation7 + $0xb8] sm:$0xff]
    %v8395 = vld [vmem:[#allocation7 + $0xc0] sm:$0xff]
    %v8396 = vld [vmem:[#allocation7 + $0xc8] sm:$0xff]
    %v8397 = vld [vmem:[#allocation7 + $0xd0] sm:$0xff]
    %v8398 = vld [vmem:[#allocation7 + $0xd8] sm:$0xff]
    %v8399 = vld [vmem:[#allocation7 + $0xe0] sm:$0xff]
    %v8400 = vld [vmem:[#allocation7 + $0xe8] sm:$0xff]
    %v8401 = vld [vmem:[#allocation7 + $0xf0] sm:$0xff]
    %v8402 = vld [vmem:[#allocation7 + $0xf8] sm:$0xff]
    %v8403 = vpack.c.bf16 %v8368, %v8368
    %v8404 = vld [vmem:[#allocation9] sm:$0xff]
    %v8405 = vld [vmem:[#allocation9 + $0x8] sm:$0xff]
    %v8406 = vld [vmem:[#allocation9 + $0x10] sm:$0xff]
    %v8407 = vld [vmem:[#allocation9 + $0x18] sm:$0xff]
    %v8408 = vld [vmem:[#allocation9 + $0x20] sm:$0xff]
    %v8409 = vld [vmem:[#allocation9 + $0x28] sm:$0xff]
    %v8410 = vld [vmem:[#allocation9 + $0x30] sm:$0xff]
    %v8411 = vld [vmem:[#allocation9 + $0x38] sm:$0xff]
    %v8412 = vld [vmem:[#allocation9 + $0x40] sm:$0xff]
    %v8413 = vld [vmem:[#allocation9 + $0x48] sm:$0xff]
    %v8414 = vld [vmem:[#allocation9 + $0x50] sm:$0xff]
    %v8415 = vld [vmem:[#allocation9 + $0x58] sm:$0xff]
    %v8416 = vld [vmem:[#allocation9 + $0x60] sm:$0xff]
    %v8417 = vld [vmem:[#allocation9 + $0x68] sm:$0xff]
    %v8418 = vld [vmem:[#allocation9 + $0x70] sm:$0xff]
    %v8419 = vld [vmem:[#allocation9 + $0x78] sm:$0xff]
    %v8420 = vld [vmem:[#allocation9 + $0x80] sm:$0xff]
    %v8421 = vld [vmem:[#allocation9 + $0x88] sm:$0xff]
    %v8422 = vld [vmem:[#allocation9 + $0x90] sm:$0xff]
    %v8423 = vld [vmem:[#allocation9 + $0x98] sm:$0xff]
    %v8424 = vld [vmem:[#allocation9 + $0xa0] sm:$0xff]
    %v8425 = vld [vmem:[#allocation9 + $0xa8] sm:$0xff]
    %v8426 = vld [vmem:[#allocation9 + $0xb0] sm:$0xff]
    %v8427 = vld [vmem:[#allocation9 + $0xb8] sm:$0xff]
    %v8428 = vld [vmem:[#allocation9 + $0xc0] sm:$0xff]
    %v8429 = vld [vmem:[#allocation9 + $0xc8] sm:$0xff]
    %v8430 = vld [vmem:[#allocation9 + $0xd0] sm:$0xff]
    %v8431 = vld [vmem:[#allocation9 + $0xd8] sm:$0xff]
    %v8432 = vld [vmem:[#allocation9 + $0xe0] sm:$0xff]
    %v8433 = vld [vmem:[#allocation9 + $0xe8] sm:$0xff]
    %v8434 = vld [vmem:[#allocation9 + $0xf0] sm:$0xff]
    %v8435 = vld [vmem:[#allocation9 + $0xf8] sm:$0xff]
    %v8468 = vunpack.c.l.b16 %v8404
    %v8469 = vunpack.c.h.b16 %v8404
    %v8470 = vunpack.c.l.b16 %v8405
    %v8471 = vunpack.c.h.b16 %v8405
    %v8472 = vunpack.c.l.b16 %v8406
    %v8473 = vunpack.c.h.b16 %v8406
    %v8474 = vunpack.c.l.b16 %v8407
    %v8475 = vunpack.c.h.b16 %v8407
    %v8476 = vunpack.c.l.b16 %v8408
    %v8477 = vunpack.c.h.b16 %v8408
    %v8478 = vunpack.c.l.b16 %v8409
    %v8479 = vunpack.c.h.b16 %v8409
    %v8480 = vunpack.c.l.b16 %v8410
    %v8481 = vunpack.c.h.b16 %v8410
    %v8482 = vunpack.c.l.b16 %v8411
    %v8483 = vunpack.c.h.b16 %v8411
    %v8484 = vunpack.c.l.b16 %v8412
    %v8485 = vunpack.c.h.b16 %v8412
    %v8486 = vunpack.c.l.b16 %v8413
    %v8487 = vunpack.c.h.b16 %v8413
    %v8488 = vunpack.c.l.b16 %v8414
    %v8489 = vunpack.c.h.b16 %v8414
    %v8490 = vunpack.c.l.b16 %v8415
    %v8491 = vunpack.c.h.b16 %v8415
    %v8492 = vunpack.c.l.b16 %v8416
    %v8493 = vunpack.c.h.b16 %v8416
    %v8494 = vunpack.c.l.b16 %v8417
    %v8495 = vunpack.c.h.b16 %v8417
    %v8496 = vunpack.c.l.b16 %v8418
    %v8497 = vunpack.c.h.b16 %v8418
    %v8498 = vunpack.c.l.b16 %v8419
    %v8499 = vunpack.c.h.b16 %v8419
    %v8500 = vunpack.c.l.b16 %v8420
    %v8501 = vunpack.c.h.b16 %v8420
    %v8502 = vunpack.c.l.b16 %v8421
    %v8503 = vunpack.c.h.b16 %v8421
    %v8504 = vunpack.c.l.b16 %v8422
    %v8505 = vunpack.c.h.b16 %v8422
    %v8506 = vunpack.c.l.b16 %v8423
    %v8507 = vunpack.c.h.b16 %v8423
    %v8508 = vunpack.c.l.b16 %v8424
    %v8509 = vunpack.c.h.b16 %v8424
    %v8510 = vunpack.c.l.b16 %v8425
    %v8511 = vunpack.c.h.b16 %v8425
    %v8512 = vunpack.c.l.b16 %v8426
    %v8513 = vunpack.c.h.b16 %v8426
    %v8514 = vunpack.c.l.b16 %v8427
    %v8515 = vunpack.c.h.b16 %v8427
    %v8516 = vunpack.c.l.b16 %v8428
    %v8517 = vunpack.c.h.b16 %v8428
    %v8518 = vunpack.c.l.b16 %v8429
    %v8519 = vunpack.c.h.b16 %v8429
    %v8520 = vunpack.c.l.b16 %v8430
    %v8521 = vunpack.c.h.b16 %v8430
    %v8522 = vunpack.c.l.b16 %v8431
    %v8523 = vunpack.c.h.b16 %v8431
    %v8524 = vunpack.c.l.b16 %v8432
    %v8525 = vunpack.c.h.b16 %v8432
    %v8526 = vunpack.c.l.b16 %v8433
    %v8527 = vunpack.c.h.b16 %v8433
    %v8528 = vunpack.c.l.b16 %v8434
    %v8529 = vunpack.c.h.b16 %v8434
    %v8530 = vunpack.c.l.b16 %v8435
    %v8531 = vunpack.c.h.b16 %v8435
    %v8532 = vpack.c.b16 %v8472, %v8468
    %v8533 = vpack.c.b16 %v8473, %v8469
    %v8534 = vpack.c.b16 %v8474, %v8470
    %v8535 = vpack.c.b16 %v8475, %v8471
    %v8536 = vpack.c.b16 %v8480, %v8476
    %v8537 = vpack.c.b16 %v8481, %v8477
    %v8538 = vpack.c.b16 %v8482, %v8478
    %v8539 = vpack.c.b16 %v8483, %v8479
    %v8540 = vpack.c.b16 %v8488, %v8484
    %v8541 = vpack.c.b16 %v8489, %v8485
    %v8542 = vpack.c.b16 %v8490, %v8486
    %v8543 = vpack.c.b16 %v8491, %v8487
    %v8544 = vpack.c.b16 %v8496, %v8492
    %v8545 = vpack.c.b16 %v8497, %v8493
    %v8546 = vpack.c.b16 %v8498, %v8494
    %v8547 = vpack.c.b16 %v8499, %v8495
    %v8548 = vpack.c.b16 %v8504, %v8500
    %v8549 = vpack.c.b16 %v8505, %v8501
    %v8550 = vpack.c.b16 %v8506, %v8502
    %v8551 = vpack.c.b16 %v8507, %v8503
    %v8552 = vpack.c.b16 %v8512, %v8508
    %v8553 = vpack.c.b16 %v8513, %v8509
    %v8554 = vpack.c.b16 %v8514, %v8510
    %v8555 = vpack.c.b16 %v8515, %v8511
    %v8556 = vpack.c.b16 %v8520, %v8516
    %v8557 = vpack.c.b16 %v8521, %v8517
    %v8558 = vpack.c.b16 %v8522, %v8518
    %v8559 = vpack.c.b16 %v8523, %v8519
    %v8560 = vpack.c.b16 %v8528, %v8524
    %v8561 = vpack.c.b16 %v8529, %v8525
    %v8562 = vpack.c.b16 %v8530, %v8526
    %v8563 = vpack.c.b16 %v8531, %v8527
    %8596 = vmatprep.subr.bf16.mxu0 %v8561
    %8597 = vmatpush1.bf16.msra.mxu0 %v8560
    %8598 = vmatprep.subr.bf16.mxu0 %v8557
    %8599 = vmatpush1.bf16.msra.mxu0 %v8556
    %8600 = vmatprep.subr.bf16.mxu0 %v8553
    %8601 = vmatpush1.bf16.msra.mxu0 %v8552
    %8602 = vmatprep.subr.bf16.mxu0 %v8549
    %8603 = vmatpush1.bf16.msra.mxu0 %v8548
    %8604 = vmatprep.subr.bf16.mxu0 %v8545
    %8605 = vmatpush1.bf16.msra.mxu0 %v8544
    %8606 = vmatprep.subr.bf16.mxu0 %v8541
    %8607 = vmatpush1.bf16.msra.mxu0 %v8540
    %8608 = vmatprep.subr.bf16.mxu0 %v8537
    %8609 = vmatpush1.bf16.msra.mxu0 %v8536
    %8610 = vmatprep.subr.bf16.mxu0 %v8533
    %8611 = vmatpush1.bf16.msra.mxu0 %v8532
    %8612 = vmatprep.subr.bf16.mxu0 0
    %8613 = vmatpush2.bf16.msra.mxu0 0
    %8614 = vmatprep.subr.bf16.mxu0 0
    %8615 = vmatpush2.bf16.msra.mxu0 0
    %8616 = vmatprep.subr.bf16.mxu0 0
    %8617 = vmatpush2.bf16.msra.mxu0 0
    %8618 = vmatprep.subr.bf16.mxu0 0
    %8619 = vmatpush2.bf16.msra.mxu0 0
    %8620 = vmatprep.subr.bf16.mxu0 0
    %8621 = vmatpush2.bf16.msra.mxu0 0
    %8622 = vmatprep.subr.bf16.mxu0 0
    %8623 = vmatpush2.bf16.msra.mxu0 0
    %8624 = vmatprep.subr.bf16.mxu0 0
    %8625 = vmatpush2.bf16.msra.mxu0 0
    %8626 = vmatprep.subr.bf16.mxu0 0
    %8627 = vmatpush2.bf16.msra.mxu0 0
    %8628 = vmatprep.mubr.bf16.mxu0 0
    %8629 = vmatmul.mubr.bf16.gmra.mxu0 %v8403
    %v8630 = vpop.f32.mrf.mxu0
    %v8631 = vadd.f32 0.0, %v8630
    %v8632 = vpop.f32.mrf.mxu0
    %v8633 = vadd.f32 0.0, %v8632
    %v8634 = vpop.f32.mrf.mxu0
    %v8635 = vpop.f32.mrf.mxu0
    %8636 = vdwg.mxu0
    %8637 = vmatprep.subr.bf16.mxu0 %v8563
    %8638 = vmatpush1.bf16.msra.mxu0 %v8562
    %8639 = vmatprep.subr.bf16.mxu0 %v8559
    %8640 = vmatpush1.bf16.msra.mxu0 %v8558
    %8641 = vmatprep.subr.bf16.mxu0 %v8555
    %8642 = vmatpush1.bf16.msra.mxu0 %v8554
    %8643 = vmatprep.subr.bf16.mxu0 %v8551
    %8644 = vmatpush1.bf16.msra.mxu0 %v8550
    %8645 = vmatprep.subr.bf16.mxu0 %v8547
    %8646 = vmatpush1.bf16.msra.mxu0 %v8546
    %8647 = vmatprep.subr.bf16.mxu0 %v8543
    %8648 = vmatpush1.bf16.msra.mxu0 %v8542
    %8649 = vmatprep.subr.bf16.mxu0 %v8539
    %8650 = vmatpush1.bf16.msra.mxu0 %v8538
    %8651 = vmatprep.subr.bf16.mxu0 %v8535
    %8652 = vmatpush1.bf16.msra.mxu0 %v8534
    %8653 = vmatprep.subr.bf16.mxu0 0
    %8654 = vmatpush2.bf16.msra.mxu0 0
    %8655 = vmatprep.subr.bf16.mxu0 0
    %8656 = vmatpush2.bf16.msra.mxu0 0
    %8657 = vmatprep.subr.bf16.mxu0 0
    %8658 = vmatpush2.bf16.msra.mxu0 0
    %8659 = vmatprep.subr.bf16.mxu0 0
    %8660 = vmatpush2.bf16.msra.mxu0 0
    %8661 = vmatprep.subr.bf16.mxu0 0
    %8662 = vmatpush2.bf16.msra.mxu0 0
    %8663 = vmatprep.subr.bf16.mxu0 0
    %8664 = vmatpush2.bf16.msra.mxu0 0
    %8665 = vmatprep.subr.bf16.mxu0 0
    %8666 = vmatpush2.bf16.msra.mxu0 0
    %8667 = vmatprep.subr.bf16.mxu0 0
    %8668 = vmatpush2.bf16.msra.mxu0 0
    %8669 = vmatprep.mubr.bf16.mxu0 0
    %8670 = vmatmul.mubr.bf16.gmra.mxu0 %v8403
    %v8671 = vpop.f32.mrf.mxu0
    %v8672 = vadd.f32 0.0, %v8671
    %v8673 = vpop.f32.mrf.mxu0
    %v8674 = vadd.f32 0.0, %v8673
    %v8675 = vpop.f32.mrf.mxu0
    %v8676 = vpop.f32.mrf.mxu0
    %8677 = vdwg.mxu0
    %v8710 = vunpack.c.l.b16 %v8371
    %v8711 = vunpack.c.h.b16 %v8371
    %v8712 = vunpack.c.l.b16 %v8372
    %v8713 = vunpack.c.h.b16 %v8372
    %v8714 = vunpack.c.l.b16 %v8373
    %v8715 = vunpack.c.h.b16 %v8373
    %v8716 = vunpack.c.l.b16 %v8374
    %v8717 = vunpack.c.h.b16 %v8374
    %v8718 = vunpack.c.l.b16 %v8375
    %v8719 = vunpack.c.h.b16 %v8375
    %v8720 = vunpack.c.l.b16 %v8376
    %v8721 = vunpack.c.h.b16 %v8376
    %v8722 = vunpack.c.l.b16 %v8377
    %v8723 = vunpack.c.h.b16 %v8377
    %v8724 = vunpack.c.l.b16 %v8378
    %v8725 = vunpack.c.h.b16 %v8378
    %v8726 = vunpack.c.l.b16 %v8379
    %v8727 = vunpack.c.h.b16 %v8379
    %v8728 = vunpack.c.l.b16 %v8380
    %v8729 = vunpack.c.h.b16 %v8380
    %v8730 = vunpack.c.l.b16 %v8381
    %v8731 = vunpack.c.h.b16 %v8381
    %v8732 = vunpack.c.l.b16 %v8382
    %v8733 = vunpack.c.h.b16 %v8382
    %v8734 = vunpack.c.l.b16 %v8383
    %v8735 = vunpack.c.h.b16 %v8383
    %v8736 = vunpack.c.l.b16 %v8384
    %v8737 = vunpack.c.h.b16 %v8384
    %v8738 = vunpack.c.l.b16 %v8385
    %v8739 = vunpack.c.h.b16 %v8385
    %v8740 = vunpack.c.l.b16 %v8386
    %v8741 = vunpack.c.h.b16 %v8386
    %v8742 = vunpack.c.l.b16 %v8387
    %v8743 = vunpack.c.h.b16 %v8387
    %v8744 = vunpack.c.l.b16 %v8388
    %v8745 = vunpack.c.h.b16 %v8388
    %v8746 = vunpack.c.l.b16 %v8389
    %v8747 = vunpack.c.h.b16 %v8389
    %v8748 = vunpack.c.l.b16 %v8390
    %v8749 = vunpack.c.h.b16 %v8390
    %v8750 = vunpack.c.l.b16 %v8391
    %v8751 = vunpack.c.h.b16 %v8391
    %v8752 = vunpack.c.l.b16 %v8392
    %v8753 = vunpack.c.h.b16 %v8392
    %v8754 = vunpack.c.l.b16 %v8393
    %v8755 = vunpack.c.h.b16 %v8393
    %v8756 = vunpack.c.l.b16 %v8394
    %v8757 = vunpack.c.h.b16 %v8394
    %v8758 = vunpack.c.l.b16 %v8395
    %v8759 = vunpack.c.h.b16 %v8395
    %v8760 = vunpack.c.l.b16 %v8396
    %v8761 = vunpack.c.h.b16 %v8396
    %v8762 = vunpack.c.l.b16 %v8397
    %v8763 = vunpack.c.h.b16 %v8397
    %v8764 = vunpack.c.l.b16 %v8398
    %v8765 = vunpack.c.h.b16 %v8398
    %v8766 = vunpack.c.l.b16 %v8399
    %v8767 = vunpack.c.h.b16 %v8399
    %v8768 = vunpack.c.l.b16 %v8400
    %v8769 = vunpack.c.h.b16 %v8400
    %v8770 = vunpack.c.l.b16 %v8401
    %v8771 = vunpack.c.h.b16 %v8401
    %v8772 = vunpack.c.l.b16 %v8402
    %v8773 = vunpack.c.h.b16 %v8402
    %v8774 = vpack.c.b16 %v8714, %v8710
    %v8775 = vpack.c.b16 %v8715, %v8711
    %v8776 = vpack.c.b16 %v8716, %v8712
    %v8777 = vpack.c.b16 %v8717, %v8713
    %v8778 = vpack.c.b16 %v8722, %v8718
    %v8779 = vpack.c.b16 %v8723, %v8719
    %v8780 = vpack.c.b16 %v8724, %v8720
    %v8781 = vpack.c.b16 %v8725, %v8721
    %v8782 = vpack.c.b16 %v8730, %v8726
    %v8783 = vpack.c.b16 %v8731, %v8727
    %v8784 = vpack.c.b16 %v8732, %v8728
    %v8785 = vpack.c.b16 %v8733, %v8729
    %v8786 = vpack.c.b16 %v8738, %v8734
    %v8787 = vpack.c.b16 %v8739, %v8735
    %v8788 = vpack.c.b16 %v8740, %v8736
    %v8789 = vpack.c.b16 %v8741, %v8737
    %v8790 = vpack.c.b16 %v8746, %v8742
    %v8791 = vpack.c.b16 %v8747, %v8743
    %v8792 = vpack.c.b16 %v8748, %v8744
    %v8793 = vpack.c.b16 %v8749, %v8745
    %v8794 = vpack.c.b16 %v8754, %v8750
    %v8795 = vpack.c.b16 %v8755, %v8751
    %v8796 = vpack.c.b16 %v8756, %v8752
    %v8797 = vpack.c.b16 %v8757, %v8753
    %v8798 = vpack.c.b16 %v8762, %v8758
    %v8799 = vpack.c.b16 %v8763, %v8759
    %v8800 = vpack.c.b16 %v8764, %v8760
    %v8801 = vpack.c.b16 %v8765, %v8761
    %v8802 = vpack.c.b16 %v8770, %v8766
    %v8803 = vpack.c.b16 %v8771, %v8767
    %v8804 = vpack.c.b16 %v8772, %v8768
    %v8805 = vpack.c.b16 %v8773, %v8769
    %8838 = vmatprep.subr.bf16.mxu0 %v8803
    %8839 = vmatpush1.bf16.msra.mxu0 %v8802
    %8840 = vmatprep.subr.bf16.mxu0 %v8799
    %8841 = vmatpush1.bf16.msra.mxu0 %v8798
    %8842 = vmatprep.subr.bf16.mxu0 %v8795
    %8843 = vmatpush1.bf16.msra.mxu0 %v8794
    %8844 = vmatprep.subr.bf16.mxu0 %v8791
    %8845 = vmatpush1.bf16.msra.mxu0 %v8790
    %8846 = vmatprep.subr.bf16.mxu0 %v8787
    %8847 = vmatpush1.bf16.msra.mxu0 %v8786
    %8848 = vmatprep.subr.bf16.mxu0 %v8783
    %8849 = vmatpush1.bf16.msra.mxu0 %v8782
    %8850 = vmatprep.subr.bf16.mxu0 %v8779
    %8851 = vmatpush1.bf16.msra.mxu0 %v8778
    %8852 = vmatprep.subr.bf16.mxu0 %v8775
    %8853 = vmatpush1.bf16.msra.mxu0 %v8774
    %8854 = vmatprep.subr.bf16.mxu0 0
    %8855 = vmatpush2.bf16.msra.mxu0 0
    %8856 = vmatprep.subr.bf16.mxu0 0
    %8857 = vmatpush2.bf16.msra.mxu0 0
    %8858 = vmatprep.subr.bf16.mxu0 0
    %8859 = vmatpush2.bf16.msra.mxu0 0
    %8860 = vmatprep.subr.bf16.mxu0 0
    %8861 = vmatpush2.bf16.msra.mxu0 0
    %8862 = vmatprep.subr.bf16.mxu0 0
    %8863 = vmatpush2.bf16.msra.mxu0 0
    %8864 = vmatprep.subr.bf16.mxu0 0
    %8865 = vmatpush2.bf16.msra.mxu0 0
    %8866 = vmatprep.subr.bf16.mxu0 0
    %8867 = vmatpush2.bf16.msra.mxu0 0
    %8868 = vmatprep.subr.bf16.mxu0 0
    %8869 = vmatpush2.bf16.msra.mxu0 0
    %8870 = vmatprep.mubr.bf16.mxu0 0
    %8871 = vmatmul.mubr.bf16.gmra.mxu0 %v8370
    %v8872 = vpop.f32.mrf.mxu0
    %v8873 = vadd.f32 %v8631, %v8872
    %v8874 = vpop.f32.mrf.mxu0
    %v8875 = vadd.f32 %v8633, %v8874
    %v8876 = vpop.f32.mrf.mxu0
    %v8877 = vpop.f32.mrf.mxu0
    %8878 = vdwg.mxu0
    %8879 = vmatprep.subr.bf16.mxu0 %v8805
    %8880 = vmatpush1.bf16.msra.mxu0 %v8804
    %8881 = vmatprep.subr.bf16.mxu0 %v8801
    %8882 = vmatpush1.bf16.msra.mxu0 %v8800
    %8883 = vmatprep.subr.bf16.mxu0 %v8797
    %8884 = vmatpush1.bf16.msra.mxu0 %v8796
    %8885 = vmatprep.subr.bf16.mxu0 %v8793
    %8886 = vmatpush1.bf16.msra.mxu0 %v8792
    %8887 = vmatprep.subr.bf16.mxu0 %v8789
    %8888 = vmatpush1.bf16.msra.mxu0 %v8788
    %8889 = vmatprep.subr.bf16.mxu0 %v8785
    %8890 = vmatpush1.bf16.msra.mxu0 %v8784
    %8891 = vmatprep.subr.bf16.mxu0 %v8781
    %8892 = vmatpush1.bf16.msra.mxu0 %v8780
    %8893 = vmatprep.subr.bf16.mxu0 %v8777
    %8894 = vmatpush1.bf16.msra.mxu0 %v8776
    %8895 = vmatprep.subr.bf16.mxu0 0
    %8896 = vmatpush2.bf16.msra.mxu0 0
    %8897 = vmatprep.subr.bf16.mxu0 0
    %8898 = vmatpush2.bf16.msra.mxu0 0
    %8899 = vmatprep.subr.bf16.mxu0 0
    %8900 = vmatpush2.bf16.msra.mxu0 0
    %8901 = vmatprep.subr.bf16.mxu0 0
    %8902 = vmatpush2.bf16.msra.mxu0 0
    %8903 = vmatprep.subr.bf16.mxu0 0
    %8904 = vmatpush2.bf16.msra.mxu0 0
    %8905 = vmatprep.subr.bf16.mxu0 0
    %8906 = vmatpush2.bf16.msra.mxu0 0
    %8907 = vmatprep.subr.bf16.mxu0 0
    %8908 = vmatpush2.bf16.msra.mxu0 0
    %8909 = vmatprep.subr.bf16.mxu0 0
    %8910 = vmatpush2.bf16.msra.mxu0 0
    %8911 = vmatprep.mubr.bf16.mxu0 0
    %8912 = vmatmul.mubr.bf16.gmra.mxu0 %v8370
    %v8913 = vpop.f32.mrf.mxu0
    %v8914 = vadd.f32 %v8672, %v8913
    %v8915 = vpop.f32.mrf.mxu0
    %v8916 = vadd.f32 %v8674, %v8915
    %v8917 = vpop.f32.mrf.mxu0
    %v8918 = vpop.f32.mrf.mxu0
    %8919 = vdwg.mxu0
    %v8920 = vld [vmem:[#allocation10] sm:$0xff]
    %v8921 = vld [vmem:[#allocation10 + $0x8] sm:$0xff]
    %v8922 = vld [vmem:[#allocation10 + $0x10] sm:$0xff]
    %v8923 = vld [vmem:[#allocation10 + $0x18] sm:$0xff]
    %v8924 = vadd.f32 %v8873, %v8920
    %v8925 = vadd.f32 %v8875, %v8921
    %v8926 = vadd.f32 %v8914, %v8922
    %v8927 = vadd.f32 %v8916, %v8923
    %v8928 = vxor.u32 %v8924, 2147483648
    %v8929 = vmul.f32 %v8928, 1.442695
    %v8930 = vpow.pop %v8929
    %v8931 = vadd.f32 %v8930, 1.0
    %v8932 = vrcp.pop %v8931
    %v8933 = vmul.f32 1.0, %v8932
    %v8934 = vxor.u32 %v8925, 2147483648
    %v8935 = vmul.f32 %v8934, 1.442695
    %v8936 = vpow.pop %v8935
    %v8937 = vadd.f32 %v8936, 1.0
    %v8938 = vrcp.pop %v8937
    %v8939 = vmul.f32 1.0, %v8938
    %v8940 = vtanh.pop %v8926
    %v8941 = vxor.u32 %v8927, 2147483648
    %v8942 = vmul.f32 %v8941, 1.442695
    %v8943 = vpow.pop %v8942
    %v8944 = vadd.f32 %v8943, 1.0
    %v8945 = vrcp.pop %v8944
    %v8946 = vmul.f32 1.0, %v8945
    %v8947 = vmul.f32 %v8939, %v8369
    %v8948 = vmul.f32 %v8933, %v8940
    %v8949 = vadd.f32 %v8947, %v8948
    %v8950 = vtanh.pop %v8949
    %v8951 = vmul.f32 %v8946, %v8950
    %8952 = vst [vmem:[#allocation2] sm:$0xff] %v8951
    %8953 = vst [vmem:[#allocation3] sm:$0xff] %v8949
    %v8954 = vld [vmem:[%s714] sm:$0xff]
    %v8955 = vld [vmem:[%s716] sm:$0xff]
    %v8956 = vpack.c.bf16 %v8951, %v8951
    %v8957 = vld [vmem:[#allocation12] sm:$0xff]
    %v8958 = vld [vmem:[#allocation12 + $0x8] sm:$0xff]
    %v8959 = vld [vmem:[#allocation12 + $0x10] sm:$0xff]
    %v8960 = vld [vmem:[#allocation12 + $0x18] sm:$0xff]
    %v8961 = vld [vmem:[#allocation12 + $0x20] sm:$0xff]
    %v8962 = vld [vmem:[#allocation12 + $0x28] sm:$0xff]
    %v8963 = vld [vmem:[#allocation12 + $0x30] sm:$0xff]
    %v8964 = vld [vmem:[#allocation12 + $0x38] sm:$0xff]
    %v8965 = vld [vmem:[#allocation12 + $0x40] sm:$0xff]
    %v8966 = vld [vmem:[#allocation12 + $0x48] sm:$0xff]
    %v8967 = vld [vmem:[#allocation12 + $0x50] sm:$0xff]
    %v8968 = vld [vmem:[#allocation12 + $0x58] sm:$0xff]
    %v8969 = vld [vmem:[#allocation12 + $0x60] sm:$0xff]
    %v8970 = vld [vmem:[#allocation12 + $0x68] sm:$0xff]
    %v8971 = vld [vmem:[#allocation12 + $0x70] sm:$0xff]
    %v8972 = vld [vmem:[#allocation12 + $0x78] sm:$0xff]
    %v8973 = vld [vmem:[#allocation12 + $0x80] sm:$0xff]
    %v8974 = vld [vmem:[#allocation12 + $0x88] sm:$0xff]
    %v8975 = vld [vmem:[#allocation12 + $0x90] sm:$0xff]
    %v8976 = vld [vmem:[#allocation12 + $0x98] sm:$0xff]
    %v8977 = vld [vmem:[#allocation12 + $0xa0] sm:$0xff]
    %v8978 = vld [vmem:[#allocation12 + $0xa8] sm:$0xff]
    %v8979 = vld [vmem:[#allocation12 + $0xb0] sm:$0xff]
    %v8980 = vld [vmem:[#allocation12 + $0xb8] sm:$0xff]
    %v8981 = vld [vmem:[#allocation12 + $0xc0] sm:$0xff]
    %v8982 = vld [vmem:[#allocation12 + $0xc8] sm:$0xff]
    %v8983 = vld [vmem:[#allocation12 + $0xd0] sm:$0xff]
    %v8984 = vld [vmem:[#allocation12 + $0xd8] sm:$0xff]
    %v8985 = vld [vmem:[#allocation12 + $0xe0] sm:$0xff]
    %v8986 = vld [vmem:[#allocation12 + $0xe8] sm:$0xff]
    %v8987 = vld [vmem:[#allocation12 + $0xf0] sm:$0xff]
    %v8988 = vld [vmem:[#allocation12 + $0xf8] sm:$0xff]
    %v8989 = vpack.c.bf16 %v8954, %v8954
    %v8990 = vld [vmem:[#allocation13] sm:$0xff]
    %v8991 = vld [vmem:[#allocation13 + $0x8] sm:$0xff]
    %v8992 = vld [vmem:[#allocation13 + $0x10] sm:$0xff]
    %v8993 = vld [vmem:[#allocation13 + $0x18] sm:$0xff]
    %v8994 = vld [vmem:[#allocation13 + $0x20] sm:$0xff]
    %v8995 = vld [vmem:[#allocation13 + $0x28] sm:$0xff]
    %v8996 = vld [vmem:[#allocation13 + $0x30] sm:$0xff]
    %v8997 = vld [vmem:[#allocation13 + $0x38] sm:$0xff]
    %v8998 = vld [vmem:[#allocation13 + $0x40] sm:$0xff]
    %v8999 = vld [vmem:[#allocation13 + $0x48] sm:$0xff]
    %v9000 = vld [vmem:[#allocation13 + $0x50] sm:$0xff]
    %v9001 = vld [vmem:[#allocation13 + $0x58] sm:$0xff]
    %v9002 = vld [vmem:[#allocation13 + $0x60] sm:$0xff]
    %v9003 = vld [vmem:[#allocation13 + $0x68] sm:$0xff]
    %v9004 = vld [vmem:[#allocation13 + $0x70] sm:$0xff]
    %v9005 = vld [vmem:[#allocation13 + $0x78] sm:$0xff]
    %v9006 = vld [vmem:[#allocation13 + $0x80] sm:$0xff]
    %v9007 = vld [vmem:[#allocation13 + $0x88] sm:$0xff]
    %v9008 = vld [vmem:[#allocation13 + $0x90] sm:$0xff]
    %v9009 = vld [vmem:[#allocation13 + $0x98] sm:$0xff]
    %v9010 = vld [vmem:[#allocation13 + $0xa0] sm:$0xff]
    %v9011 = vld [vmem:[#allocation13 + $0xa8] sm:$0xff]
    %v9012 = vld [vmem:[#allocation13 + $0xb0] sm:$0xff]
    %v9013 = vld [vmem:[#allocation13 + $0xb8] sm:$0xff]
    %v9014 = vld [vmem:[#allocation13 + $0xc0] sm:$0xff]
    %v9015 = vld [vmem:[#allocation13 + $0xc8] sm:$0xff]
    %v9016 = vld [vmem:[#allocation13 + $0xd0] sm:$0xff]
    %v9017 = vld [vmem:[#allocation13 + $0xd8] sm:$0xff]
    %v9018 = vld [vmem:[#allocation13 + $0xe0] sm:$0xff]
    %v9019 = vld [vmem:[#allocation13 + $0xe8] sm:$0xff]
    %v9020 = vld [vmem:[#allocation13 + $0xf0] sm:$0xff]
    %v9021 = vld [vmem:[#allocation13 + $0xf8] sm:$0xff]
    %v9054 = vunpack.c.l.b16 %v8990
    %v9055 = vunpack.c.h.b16 %v8990
    %v9056 = vunpack.c.l.b16 %v8991
    %v9057 = vunpack.c.h.b16 %v8991
    %v9058 = vunpack.c.l.b16 %v8992
    %v9059 = vunpack.c.h.b16 %v8992
    %v9060 = vunpack.c.l.b16 %v8993
    %v9061 = vunpack.c.h.b16 %v8993
    %v9062 = vunpack.c.l.b16 %v8994
    %v9063 = vunpack.c.h.b16 %v8994
    %v9064 = vunpack.c.l.b16 %v8995
    %v9065 = vunpack.c.h.b16 %v8995
    %v9066 = vunpack.c.l.b16 %v8996
    %v9067 = vunpack.c.h.b16 %v8996
    %v9068 = vunpack.c.l.b16 %v8997
    %v9069 = vunpack.c.h.b16 %v8997
    %v9070 = vunpack.c.l.b16 %v8998
    %v9071 = vunpack.c.h.b16 %v8998
    %v9072 = vunpack.c.l.b16 %v8999
    %v9073 = vunpack.c.h.b16 %v8999
    %v9074 = vunpack.c.l.b16 %v9000
    %v9075 = vunpack.c.h.b16 %v9000
    %v9076 = vunpack.c.l.b16 %v9001
    %v9077 = vunpack.c.h.b16 %v9001
    %v9078 = vunpack.c.l.b16 %v9002
    %v9079 = vunpack.c.h.b16 %v9002
    %v9080 = vunpack.c.l.b16 %v9003
    %v9081 = vunpack.c.h.b16 %v9003
    %v9082 = vunpack.c.l.b16 %v9004
    %v9083 = vunpack.c.h.b16 %v9004
    %v9084 = vunpack.c.l.b16 %v9005
    %v9085 = vunpack.c.h.b16 %v9005
    %v9086 = vunpack.c.l.b16 %v9006
    %v9087 = vunpack.c.h.b16 %v9006
    %v9088 = vunpack.c.l.b16 %v9007
    %v9089 = vunpack.c.h.b16 %v9007
    %v9090 = vunpack.c.l.b16 %v9008
    %v9091 = vunpack.c.h.b16 %v9008
    %v9092 = vunpack.c.l.b16 %v9009
    %v9093 = vunpack.c.h.b16 %v9009
    %v9094 = vunpack.c.l.b16 %v9010
    %v9095 = vunpack.c.h.b16 %v9010
    %v9096 = vunpack.c.l.b16 %v9011
    %v9097 = vunpack.c.h.b16 %v9011
    %v9098 = vunpack.c.l.b16 %v9012
    %v9099 = vunpack.c.h.b16 %v9012
    %v9100 = vunpack.c.l.b16 %v9013
    %v9101 = vunpack.c.h.b16 %v9013
    %v9102 = vunpack.c.l.b16 %v9014
    %v9103 = vunpack.c.h.b16 %v9014
    %v9104 = vunpack.c.l.b16 %v9015
    %v9105 = vunpack.c.h.b16 %v9015
    %v9106 = vunpack.c.l.b16 %v9016
    %v9107 = vunpack.c.h.b16 %v9016
    %v9108 = vunpack.c.l.b16 %v9017
    %v9109 = vunpack.c.h.b16 %v9017
    %v9110 = vunpack.c.l.b16 %v9018
    %v9111 = vunpack.c.h.b16 %v9018
    %v9112 = vunpack.c.l.b16 %v9019
    %v9113 = vunpack.c.h.b16 %v9019
    %v9114 = vunpack.c.l.b16 %v9020
    %v9115 = vunpack.c.h.b16 %v9020
    %v9116 = vunpack.c.l.b16 %v9021
    %v9117 = vunpack.c.h.b16 %v9021
    %v9118 = vpack.c.b16 %v9058, %v9054
    %v9119 = vpack.c.b16 %v9059, %v9055
    %v9120 = vpack.c.b16 %v9060, %v9056
    %v9121 = vpack.c.b16 %v9061, %v9057
    %v9122 = vpack.c.b16 %v9066, %v9062
    %v9123 = vpack.c.b16 %v9067, %v9063
    %v9124 = vpack.c.b16 %v9068, %v9064
    %v9125 = vpack.c.b16 %v9069, %v9065
    %v9126 = vpack.c.b16 %v9074, %v9070
    %v9127 = vpack.c.b16 %v9075, %v9071
    %v9128 = vpack.c.b16 %v9076, %v9072
    %v9129 = vpack.c.b16 %v9077, %v9073
    %v9130 = vpack.c.b16 %v9082, %v9078
    %v9131 = vpack.c.b16 %v9083, %v9079
    %v9132 = vpack.c.b16 %v9084, %v9080
    %v9133 = vpack.c.b16 %v9085, %v9081
    %v9134 = vpack.c.b16 %v9090, %v9086
    %v9135 = vpack.c.b16 %v9091, %v9087
    %v9136 = vpack.c.b16 %v9092, %v9088
    %v9137 = vpack.c.b16 %v9093, %v9089
    %v9138 = vpack.c.b16 %v9098, %v9094
    %v9139 = vpack.c.b16 %v9099, %v9095
    %v9140 = vpack.c.b16 %v9100, %v9096
    %v9141 = vpack.c.b16 %v9101, %v9097
    %v9142 = vpack.c.b16 %v9106, %v9102
    %v9143 = vpack.c.b16 %v9107, %v9103
    %v9144 = vpack.c.b16 %v9108, %v9104
    %v9145 = vpack.c.b16 %v9109, %v9105
    %v9146 = vpack.c.b16 %v9114, %v9110
    %v9147 = vpack.c.b16 %v9115, %v9111
    %v9148 = vpack.c.b16 %v9116, %v9112
    %v9149 = vpack.c.b16 %v9117, %v9113
    %9182 = vmatprep.subr.bf16.mxu0 %v9147
    %9183 = vmatpush1.bf16.msra.mxu0 %v9146
    %9184 = vmatprep.subr.bf16.mxu0 %v9143
    %9185 = vmatpush1.bf16.msra.mxu0 %v9142
    %9186 = vmatprep.subr.bf16.mxu0 %v9139
    %9187 = vmatpush1.bf16.msra.mxu0 %v9138
    %9188 = vmatprep.subr.bf16.mxu0 %v9135
    %9189 = vmatpush1.bf16.msra.mxu0 %v9134
    %9190 = vmatprep.subr.bf16.mxu0 %v9131
    %9191 = vmatpush1.bf16.msra.mxu0 %v9130
    %9192 = vmatprep.subr.bf16.mxu0 %v9127
    %9193 = vmatpush1.bf16.msra.mxu0 %v9126
    %9194 = vmatprep.subr.bf16.mxu0 %v9123
    %9195 = vmatpush1.bf16.msra.mxu0 %v9122
    %9196 = vmatprep.subr.bf16.mxu0 %v9119
    %9197 = vmatpush1.bf16.msra.mxu0 %v9118
    %9198 = vmatprep.subr.bf16.mxu0 0
    %9199 = vmatpush2.bf16.msra.mxu0 0
    %9200 = vmatprep.subr.bf16.mxu0 0
    %9201 = vmatpush2.bf16.msra.mxu0 0
    %9202 = vmatprep.subr.bf16.mxu0 0
    %9203 = vmatpush2.bf16.msra.mxu0 0
    %9204 = vmatprep.subr.bf16.mxu0 0
    %9205 = vmatpush2.bf16.msra.mxu0 0
    %9206 = vmatprep.subr.bf16.mxu0 0
    %9207 = vmatpush2.bf16.msra.mxu0 0
    %9208 = vmatprep.subr.bf16.mxu0 0
    %9209 = vmatpush2.bf16.msra.mxu0 0
    %9210 = vmatprep.subr.bf16.mxu0 0
    %9211 = vmatpush2.bf16.msra.mxu0 0
    %9212 = vmatprep.subr.bf16.mxu0 0
    %9213 = vmatpush2.bf16.msra.mxu0 0
    %9214 = vmatprep.mubr.bf16.mxu0 0
    %9215 = vmatmul.mubr.bf16.gmra.mxu0 %v8989
    %v9216 = vpop.f32.mrf.mxu0
    %v9217 = vadd.f32 0.0, %v9216
    %v9218 = vpop.f32.mrf.mxu0
    %v9219 = vadd.f32 0.0, %v9218
    %v9220 = vpop.f32.mrf.mxu0
    %v9221 = vpop.f32.mrf.mxu0
    %9222 = vdwg.mxu0
    %9223 = vmatprep.subr.bf16.mxu0 %v9149
    %9224 = vmatpush1.bf16.msra.mxu0 %v9148
    %9225 = vmatprep.subr.bf16.mxu0 %v9145
    %9226 = vmatpush1.bf16.msra.mxu0 %v9144
    %9227 = vmatprep.subr.bf16.mxu0 %v9141
    %9228 = vmatpush1.bf16.msra.mxu0 %v9140
    %9229 = vmatprep.subr.bf16.mxu0 %v9137
    %9230 = vmatpush1.bf16.msra.mxu0 %v9136
    %9231 = vmatprep.subr.bf16.mxu0 %v9133
    %9232 = vmatpush1.bf16.msra.mxu0 %v9132
    %9233 = vmatprep.subr.bf16.mxu0 %v9129
    %9234 = vmatpush1.bf16.msra.mxu0 %v9128
    %9235 = vmatprep.subr.bf16.mxu0 %v9125
    %9236 = vmatpush1.bf16.msra.mxu0 %v9124
    %9237 = vmatprep.subr.bf16.mxu0 %v9121
    %9238 = vmatpush1.bf16.msra.mxu0 %v9120
    %9239 = vmatprep.subr.bf16.mxu0 0
    %9240 = vmatpush2.bf16.msra.mxu0 0
    %9241 = vmatprep.subr.bf16.mxu0 0
    %9242 = vmatpush2.bf16.msra.mxu0 0
    %9243 = vmatprep.subr.bf16.mxu0 0
    %9244 = vmatpush2.bf16.msra.mxu0 0
    %9245 = vmatprep.subr.bf16.mxu0 0
    %9246 = vmatpush2.bf16.msra.mxu0 0
    %9247 = vmatprep.subr.bf16.mxu0 0
    %9248 = vmatpush2.bf16.msra.mxu0 0
    %9249 = vmatprep.subr.bf16.mxu0 0
    %9250 = vmatpush2.bf16.msra.mxu0 0
    %9251 = vmatprep.subr.bf16.mxu0 0
    %9252 = vmatpush2.bf16.msra.mxu0 0
    %9253 = vmatprep.subr.bf16.mxu0 0
    %9254 = vmatpush2.bf16.msra.mxu0 0
    %9255 = vmatprep.mubr.bf16.mxu0 0
    %9256 = vmatmul.mubr.bf16.gmra.mxu0 %v8989
    %v9257 = vpop.f32.mrf.mxu0
    %v9258 = vadd.f32 0.0, %v9257
    %v9259 = vpop.f32.mrf.mxu0
    %v9260 = vadd.f32 0.0, %v9259
    %v9261 = vpop.f32.mrf.mxu0
    %v9262 = vpop.f32.mrf.mxu0
    %9263 = vdwg.mxu0
    %v9296 = vunpack.c.l.b16 %v8957
    %v9297 = vunpack.c.h.b16 %v8957
    %v9298 = vunpack.c.l.b16 %v8958
    %v9299 = vunpack.c.h.b16 %v8958
    %v9300 = vunpack.c.l.b16 %v8959
    %v9301 = vunpack.c.h.b16 %v8959
    %v9302 = vunpack.c.l.b16 %v8960
    %v9303 = vunpack.c.h.b16 %v8960
    %v9304 = vunpack.c.l.b16 %v8961
    %v9305 = vunpack.c.h.b16 %v8961
    %v9306 = vunpack.c.l.b16 %v8962
    %v9307 = vunpack.c.h.b16 %v8962
    %v9308 = vunpack.c.l.b16 %v8963
    %v9309 = vunpack.c.h.b16 %v8963
    %v9310 = vunpack.c.l.b16 %v8964
    %v9311 = vunpack.c.h.b16 %v8964
    %v9312 = vunpack.c.l.b16 %v8965
    %v9313 = vunpack.c.h.b16 %v8965
    %v9314 = vunpack.c.l.b16 %v8966
    %v9315 = vunpack.c.h.b16 %v8966
    %v9316 = vunpack.c.l.b16 %v8967
    %v9317 = vunpack.c.h.b16 %v8967
    %v9318 = vunpack.c.l.b16 %v8968
    %v9319 = vunpack.c.h.b16 %v8968
    %v9320 = vunpack.c.l.b16 %v8969
    %v9321 = vunpack.c.h.b16 %v8969
    %v9322 = vunpack.c.l.b16 %v8970
    %v9323 = vunpack.c.h.b16 %v8970
    %v9324 = vunpack.c.l.b16 %v8971
    %v9325 = vunpack.c.h.b16 %v8971
    %v9326 = vunpack.c.l.b16 %v8972
    %v9327 = vunpack.c.h.b16 %v8972
    %v9328 = vunpack.c.l.b16 %v8973
    %v9329 = vunpack.c.h.b16 %v8973
    %v9330 = vunpack.c.l.b16 %v8974
    %v9331 = vunpack.c.h.b16 %v8974
    %v9332 = vunpack.c.l.b16 %v8975
    %v9333 = vunpack.c.h.b16 %v8975
    %v9334 = vunpack.c.l.b16 %v8976
    %v9335 = vunpack.c.h.b16 %v8976
    %v9336 = vunpack.c.l.b16 %v8977
    %v9337 = vunpack.c.h.b16 %v8977
    %v9338 = vunpack.c.l.b16 %v8978
    %v9339 = vunpack.c.h.b16 %v8978
    %v9340 = vunpack.c.l.b16 %v8979
    %v9341 = vunpack.c.h.b16 %v8979
    %v9342 = vunpack.c.l.b16 %v8980
    %v9343 = vunpack.c.h.b16 %v8980
    %v9344 = vunpack.c.l.b16 %v8981
    %v9345 = vunpack.c.h.b16 %v8981
    %v9346 = vunpack.c.l.b16 %v8982
    %v9347 = vunpack.c.h.b16 %v8982
    %v9348 = vunpack.c.l.b16 %v8983
    %v9349 = vunpack.c.h.b16 %v8983
    %v9350 = vunpack.c.l.b16 %v8984
    %v9351 = vunpack.c.h.b16 %v8984
    %v9352 = vunpack.c.l.b16 %v8985
    %v9353 = vunpack.c.h.b16 %v8985
    %v9354 = vunpack.c.l.b16 %v8986
    %v9355 = vunpack.c.h.b16 %v8986
    %v9356 = vunpack.c.l.b16 %v8987
    %v9357 = vunpack.c.h.b16 %v8987
    %v9358 = vunpack.c.l.b16 %v8988
    %v9359 = vunpack.c.h.b16 %v8988
    %v9360 = vpack.c.b16 %v9300, %v9296
    %v9361 = vpack.c.b16 %v9301, %v9297
    %v9362 = vpack.c.b16 %v9302, %v9298
    %v9363 = vpack.c.b16 %v9303, %v9299
    %v9364 = vpack.c.b16 %v9308, %v9304
    %v9365 = vpack.c.b16 %v9309, %v9305
    %v9366 = vpack.c.b16 %v9310, %v9306
    %v9367 = vpack.c.b16 %v9311, %v9307
    %v9368 = vpack.c.b16 %v9316, %v9312
    %v9369 = vpack.c.b16 %v9317, %v9313
    %v9370 = vpack.c.b16 %v9318, %v9314
    %v9371 = vpack.c.b16 %v9319, %v9315
    %v9372 = vpack.c.b16 %v9324, %v9320
    %v9373 = vpack.c.b16 %v9325, %v9321
    %v9374 = vpack.c.b16 %v9326, %v9322
    %v9375 = vpack.c.b16 %v9327, %v9323
    %v9376 = vpack.c.b16 %v9332, %v9328
    %v9377 = vpack.c.b16 %v9333, %v9329
    %v9378 = vpack.c.b16 %v9334, %v9330
    %v9379 = vpack.c.b16 %v9335, %v9331
    %v9380 = vpack.c.b16 %v9340, %v9336
    %v9381 = vpack.c.b16 %v9341, %v9337
    %v9382 = vpack.c.b16 %v9342, %v9338
    %v9383 = vpack.c.b16 %v9343, %v9339
    %v9384 = vpack.c.b16 %v9348, %v9344
    %v9385 = vpack.c.b16 %v9349, %v9345
    %v9386 = vpack.c.b16 %v9350, %v9346
    %v9387 = vpack.c.b16 %v9351, %v9347
    %v9388 = vpack.c.b16 %v9356, %v9352
    %v9389 = vpack.c.b16 %v9357, %v9353
    %v9390 = vpack.c.b16 %v9358, %v9354
    %v9391 = vpack.c.b16 %v9359, %v9355
    %9424 = vmatprep.subr.bf16.mxu0 %v9389
    %9425 = vmatpush1.bf16.msra.mxu0 %v9388
    %9426 = vmatprep.subr.bf16.mxu0 %v9385
    %9427 = vmatpush1.bf16.msra.mxu0 %v9384
    %9428 = vmatprep.subr.bf16.mxu0 %v9381
    %9429 = vmatpush1.bf16.msra.mxu0 %v9380
    %9430 = vmatprep.subr.bf16.mxu0 %v9377
    %9431 = vmatpush1.bf16.msra.mxu0 %v9376
    %9432 = vmatprep.subr.bf16.mxu0 %v9373
    %9433 = vmatpush1.bf16.msra.mxu0 %v9372
    %9434 = vmatprep.subr.bf16.mxu0 %v9369
    %9435 = vmatpush1.bf16.msra.mxu0 %v9368
    %9436 = vmatprep.subr.bf16.mxu0 %v9365
    %9437 = vmatpush1.bf16.msra.mxu0 %v9364
    %9438 = vmatprep.subr.bf16.mxu0 %v9361
    %9439 = vmatpush1.bf16.msra.mxu0 %v9360
    %9440 = vmatprep.subr.bf16.mxu0 0
    %9441 = vmatpush2.bf16.msra.mxu0 0
    %9442 = vmatprep.subr.bf16.mxu0 0
    %9443 = vmatpush2.bf16.msra.mxu0 0
    %9444 = vmatprep.subr.bf16.mxu0 0
    %9445 = vmatpush2.bf16.msra.mxu0 0
    %9446 = vmatprep.subr.bf16.mxu0 0
    %9447 = vmatpush2.bf16.msra.mxu0 0
    %9448 = vmatprep.subr.bf16.mxu0 0
    %9449 = vmatpush2.bf16.msra.mxu0 0
    %9450 = vmatprep.subr.bf16.mxu0 0
    %9451 = vmatpush2.bf16.msra.mxu0 0
    %9452 = vmatprep.subr.bf16.mxu0 0
    %9453 = vmatpush2.bf16.msra.mxu0 0
    %9454 = vmatprep.subr.bf16.mxu0 0
    %9455 = vmatpush2.bf16.msra.mxu0 0
    %9456 = vmatprep.mubr.bf16.mxu0 0
    %9457 = vmatmul.mubr.bf16.gmra.mxu0 %v8956
    %v9458 = vpop.f32.mrf.mxu0
    %v9459 = vadd.f32 %v9217, %v9458
    %v9460 = vpop.f32.mrf.mxu0
    %v9461 = vadd.f32 %v9219, %v9460
    %v9462 = vpop.f32.mrf.mxu0
    %v9463 = vpop.f32.mrf.mxu0
    %9464 = vdwg.mxu0
    %9465 = vmatprep.subr.bf16.mxu0 %v9391
    %9466 = vmatpush1.bf16.msra.mxu0 %v9390
    %9467 = vmatprep.subr.bf16.mxu0 %v9387
    %9468 = vmatpush1.bf16.msra.mxu0 %v9386
    %9469 = vmatprep.subr.bf16.mxu0 %v9383
    %9470 = vmatpush1.bf16.msra.mxu0 %v9382
    %9471 = vmatprep.subr.bf16.mxu0 %v9379
    %9472 = vmatpush1.bf16.msra.mxu0 %v9378
    %9473 = vmatprep.subr.bf16.mxu0 %v9375
    %9474 = vmatpush1.bf16.msra.mxu0 %v9374
    %9475 = vmatprep.subr.bf16.mxu0 %v9371
    %9476 = vmatpush1.bf16.msra.mxu0 %v9370
    %9477 = vmatprep.subr.bf16.mxu0 %v9367
    %9478 = vmatpush1.bf16.msra.mxu0 %v9366
    %9479 = vmatprep.subr.bf16.mxu0 %v9363
    %9480 = vmatpush1.bf16.msra.mxu0 %v9362
    %9481 = vmatprep.subr.bf16.mxu0 0
    %9482 = vmatpush2.bf16.msra.mxu0 0
    %9483 = vmatprep.subr.bf16.mxu0 0
    %9484 = vmatpush2.bf16.msra.mxu0 0
    %9485 = vmatprep.subr.bf16.mxu0 0
    %9486 = vmatpush2.bf16.msra.mxu0 0
    %9487 = vmatprep.subr.bf16.mxu0 0
    %9488 = vmatpush2.bf16.msra.mxu0 0
    %9489 = vmatprep.subr.bf16.mxu0 0
    %9490 = vmatpush2.bf16.msra.mxu0 0
    %9491 = vmatprep.subr.bf16.mxu0 0
    %9492 = vmatpush2.bf16.msra.mxu0 0
    %9493 = vmatprep.subr.bf16.mxu0 0
    %9494 = vmatpush2.bf16.msra.mxu0 0
    %9495 = vmatprep.subr.bf16.mxu0 0
    %9496 = vmatpush2.bf16.msra.mxu0 0
    %9497 = vmatprep.mubr.bf16.mxu0 0
    %9498 = vmatmul.mubr.bf16.gmra.mxu0 %v8956
    %v9499 = vpop.f32.mrf.mxu0
    %v9500 = vadd.f32 %v9258, %v9499
    %v9501 = vpop.f32.mrf.mxu0
    %v9502 = vadd.f32 %v9260, %v9501
    %v9503 = vpop.f32.mrf.mxu0
    %v9504 = vpop.f32.mrf.mxu0
    %9505 = vdwg.mxu0
    %v9506 = vld [vmem:[#allocation15] sm:$0xff]
    %v9507 = vld [vmem:[#allocation15 + $0x8] sm:$0xff]
    %v9508 = vld [vmem:[#allocation15 + $0x10] sm:$0xff]
    %v9509 = vld [vmem:[#allocation15 + $0x18] sm:$0xff]
    %v9510 = vadd.f32 %v9459, %v9506
    %v9511 = vadd.f32 %v9461, %v9507
    %v9512 = vadd.f32 %v9500, %v9508
    %v9513 = vadd.f32 %v9502, %v9509
    %v9514 = vxor.u32 %v9510, 2147483648
    %v9515 = vmul.f32 %v9514, 1.442695
    %v9516 = vpow.pop %v9515
    %v9517 = vadd.f32 %v9516, 1.0
    %v9518 = vrcp.pop %v9517
    %v9519 = vmul.f32 1.0, %v9518
    %v9520 = vxor.u32 %v9511, 2147483648
    %v9521 = vmul.f32 %v9520, 1.442695
    %v9522 = vpow.pop %v9521
    %v9523 = vadd.f32 %v9522, 1.0
    %v9524 = vrcp.pop %v9523
    %v9525 = vmul.f32 1.0, %v9524
    %v9526 = vtanh.pop %v9512
    %v9527 = vxor.u32 %v9513, 2147483648
    %v9528 = vmul.f32 %v9527, 1.442695
    %v9529 = vpow.pop %v9528
    %v9530 = vadd.f32 %v9529, 1.0
    %v9531 = vrcp.pop %v9530
    %v9532 = vmul.f32 1.0, %v9531
    %v9533 = vmul.f32 %v9525, %v8955
    %v9534 = vmul.f32 %v9519, %v9526
    %v9535 = vadd.f32 %v9533, %v9534
    %v9536 = vtanh.pop %v9535
    %v9537 = vmul.f32 %v9532, %v9536
    %9538 = vst [vmem:[%s714] sm:$0xff] %v9537
    %9539 = vst [vmem:[%s716] sm:$0xff] %v9535
    %v9540 = vpack.c.bf16 %v9537, %v9537
    %s9541 = scalar_lea.vmem [#allocation16], 28
    %9542 = vst [vmem:[%s9541] sm:$0xf] %v9540
    // Predicated region
    $region62: #{tpu_custom_call.1} parent=1 // pred_check
      _
    $region63: #{tpu_custom_call.1} parent=1 // pred_check_branch
      %9544 = sbr.rel (0) target = $region65
    $region64: #{tpu_custom_call.1} parent=1 // pred_region
      %s9546 = ssub.s32 512, 512
      %9547 = vsyncadd [#allocation6], %s9546
      %s9548 = sshll.u32 [#allocation16], 4
      %s9549 = int_to_ptr.vmem [resolvable:$true] %s9548
      %9554 = dma.vmem_to_hbm [thread:$0]  %s9549, 512, %s7, [#allocation6], 64, 64, 4
    $region65: #{tpu_custom_call.1} parent=1 // pred_fallthru
      _
    // Predicated region
    $region66: #{tpu_custom_call.1} parent=1 // pred_check
      _
    $region67: #{tpu_custom_call.1} parent=1 // pred_check_branch
      %9556 = sbr.rel (0) target = $region69
    $region68: #{tpu_custom_call.1} parent=1 // pred_region
      %9557 = dma.done [#allocation6], 512
    $region69: #{tpu_custom_call.1} parent=1 // pred_fallthru
      _
    %9558 = vsyncpa [#allocation5], 1
    %9559 = vsyncpa [#allocation8], 1
    %9560 = vsyncpa [#allocation11], 1
    %9561 = vsyncpa [#allocation14], 1
    %9562 = vsyncpa [#allocation6], 1

</llo_original>
